<compile_context>
chip_gen: v7x
topology: tpu7x:2x2x1
jax: 0.10.0
libtpu: 0.0.40
codegen_flags: <defaults>
</compile_context>

<pallas_src>
import math
import jax
import jax.numpy as jnp
from jax.experimental import pallas as pl
from jax.experimental.pallas import tpu as pltpu

LN_EPS = 1e-5   # nn.LayerNorm default eps
GN_EPS = 1e-8   # nn.GroupNorm eps used by Dual_DPA_Block


# ----------------------------------------------------------------------------
# Fused pass kernel: cmEncoderLayer + GroupNorm(1, D) + residual, one batch
# element per grid step.  x block: (1, NB, L, D)  (NB = in-kernel batch,
# L = sequence length, D = features = out_channels).
#
# vec slab row layout (each row zero-padded to the slab width W):
#   0: bqkv (3D)  1: bo (D)   2: n1w (D)  3: n1b (D)  4: b1 (F)
#   5: b2 (D)     6: n2w (D)  7: n2b (D)  8: gn_w (D) 9: gn_b (D)
# ----------------------------------------------------------------------------
def _dpa_pass_kernel(x_ref, wqkv_ref, wo_ref, w1_ref, w2_ref, vec_ref, o_ref):
    x = x_ref[0].astype(jnp.float32)               # (NB, L, D)
    NB, L, D = x.shape
    F = w1_ref.shape[1]
    D3 = wqkv_ref.shape[1]
    vec = vec_ref[...].astype(jnp.float32)         # (10, W)

    x2 = x.reshape(NB * L, D)                      # batched rows for the MXU

    # ---- fused Q/K/V projection: one (M=NB*L, D) x (D, 3D) matmul ----
    qkv = jnp.dot(x2, wqkv_ref[...], preferred_element_type=jnp.float32)
    qkv = qkv + vec[0:1, :D3]
    q = qkv[:, 0 * D:1 * D].reshape(NB, L, D)
    k = qkv[:, 1 * D:2 * D].reshape(NB, L, D)
    v = qkv[:, 2 * D:3 * D].reshape(NB, L, D)

    # ---- single-head scaled-dot-product attention, batched over NB ----
    s = jnp.einsum("bqd,bkd->bqk", q, k,
                   preferred_element_type=jnp.float32) * (1.0 / math.sqrt(D))
    s = s - jnp.max(s, axis=-1, keepdims=True)
    p = jnp.exp(s)
    p = p * pl.reciprocal(jnp.sum(p, axis=-1, keepdims=True))
    a = jnp.einsum("bqk,bkd->bqd", p, v, preferred_element_type=jnp.float32)

    a2 = jnp.dot(a.reshape(NB * L, D), wo_ref[...],
                 preferred_element_type=jnp.float32) + vec[1:2, :D]

    # ---- residual + LayerNorm 1 ----
    s1 = x2 + a2
    mu = jnp.mean(s1, axis=-1, keepdims=True)
    var = jnp.mean((s1 - mu) ** 2, axis=-1, keepdims=True)
    s1 = (s1 - mu) * jax.lax.rsqrt(var + LN_EPS) * vec[2:3, :D] + vec[3:4, :D]

    # ---- feed-forward: linear -> relu -> linear ----
    h = jnp.dot(s1, w1_ref[...], preferred_element_type=jnp.float32) + vec[4:5, :F]
    h = jnp.maximum(h, 0.0)
    f = jnp.dot(h, w2_ref[...], preferred_element_type=jnp.float32) + vec[5:6, :D]

    # ---- residual + LayerNorm 2 ----
    s2 = s1 + f
    mu2 = jnp.mean(s2, axis=-1, keepdims=True)
    var2 = jnp.mean((s2 - mu2) ** 2, axis=-1, keepdims=True)
    enc = (s2 - mu2) * jax.lax.rsqrt(var2 + LN_EPS) * vec[6:7, :D] + vec[7:8, :D]

    # ---- GroupNorm(num_groups=1, C=D) over the whole per-batch slab ----
    gmu = jnp.mean(enc)
    gvar = jnp.mean((enc - gmu) ** 2)
    gn = (enc - gmu) * jax.lax.rsqrt(gvar + GN_EPS) * vec[8:9, :D] + vec[9:10, :D]

    # ---- residual with the pass input ----
    out = gn + x2
    o_ref[0] = out.reshape(NB, L, D).astype(o_ref.dtype)


# ----------------------------------------------------------------------------
# Parameter packing + pass wrapper.
# ----------------------------------------------------------------------------
def _pack_pass_params(p, d, f):
    wqkv = jnp.concatenate([p["wq"], p["wk"], p["wv"]], axis=1)        # (d, 3d)
    width = max(3 * d, f)

    def row(v):
        return jnp.pad(v, (0, width - v.shape[0]))[None, :]

    vec = jnp.concatenate([
        row(jnp.concatenate([p["bq"], p["bk"], p["bv"]])),             # 0: bqkv
        row(p["bo"]),                                                  # 1
        row(p["n1w"]), row(p["n1b"]),                                  # 2, 3
        row(p["b1"]),                                                  # 4
        row(p["b2"]),                                                  # 5
        row(p["n2w"]), row(p["n2b"]),                                  # 6, 7
        row(p["gn_w"]), row(p["gn_b"]),                                # 8, 9
    ], axis=0)                                                         # (10, width)
    return wqkv, p["wo"], p["w1"], p["w2"], vec


def dpa_pass(y, p):
    """Fused cmEncoderLayer + GroupNorm + residual.  y: (B, NB, L, D)."""
    B, NB, L, D = y.shape
    F = p["w1"].shape[1]
    wqkv, wo, w1, w2, vec = _pack_pass_params(p, D, F)

    def full2d(arr):
        return pl.BlockSpec(arr.shape, lambda b: (0, 0))

    return pl.pallas_call(
        _dpa_pass_kernel,
        out_shape=jax.ShapeDtypeStruct((B, NB, L, D), y.dtype),
        grid=(B,),
        in_specs=[
            pl.BlockSpec((1, NB, L, D), lambda b: (b, 0, 0, 0)),
            full2d(wqkv), full2d(wo), full2d(w1), full2d(w2), full2d(vec),
        ],
        out_specs=pl.BlockSpec((1, NB, L, D), lambda b: (b, 0, 0, 0)),
        compiler_params=pltpu.CompilerParams(dimension_semantics=("parallel",)),
    )(y, wqkv, wo, w1, w2, vec)


# ----------------------------------------------------------------------------
# Dual_DPA_Block forward.  Only three tiny XLA transposes remain as glue.
# ----------------------------------------------------------------------------
def dual_dpa_block(x, params):
    """x: (B, N, K, S) -> (B, N, K, S)   (eval-mode forward)."""
    B, N, K, S = x.shape
    # intra pass: batch over S, sequence along K, features N
    y = jnp.transpose(x, (0, 3, 2, 1))                  # (B, S, K, N)
    y = dpa_pass(y, params["intra"])
    # inter pass: batch over K, sequence along S, features N
    z = jnp.transpose(y, (0, 2, 1, 3))                  # (B, K, S, N)
    z = dpa_pass(z, params["inter"])
    return jnp.transpose(z, (0, 3, 1, 2))               # (B, N, K, S)


# ----------------------------------------------------------------------------
# Deterministic synthetic parameters (module shapes, not a checkpoint).
# ----------------------------------------------------------------------------
def init_pass_params(key, d, f):
    ks = jax.random.split(key, 18)
    w = lambda k, shape: jax.random.normal(k, shape, jnp.float32) * 0.1
    return {
        "wq": w(ks[0], (d, d)), "bq": w(ks[1], (d,)),
        "wk": w(ks[2], (d, d)), "bk": w(ks[3], (d,)),
        "wv": w(ks[4], (d, d)), "bv": w(ks[5], (d,)),
        "wo": w(ks[6], (d, d)), "bo": w(ks[7], (d,)),
        "n1w": 1.0 + w(ks[8], (d,)), "n1b": w(ks[9], (d,)),
        "w1": w(ks[10], (d, f)), "b1": w(ks[11], (f,)),
        "w2": w(ks[12], (f, d)), "b2": w(ks[13], (d,)),
        "n2w": 1.0 + w(ks[14], (d,)), "n2b": w(ks[15], (d,)),
        "gn_w": 1.0 + w(ks[16], (d,)), "gn_b": w(ks[17], (d,)),
    }


# ----------------------------------------------------------------------------
# Pure-JAX reference (numerical sanity check).
# ----------------------------------------------------------------------------
def _ln_ref(x, g, b):
    mu = jnp.mean(x, axis=-1, keepdims=True)
    var = jnp.mean((x - mu) ** 2, axis=-1, keepdims=True)
    return (x - mu) * jax.lax.rsqrt(var + LN_EPS) * g + b


def _encoder_ref(x, p):
    d = x.shape[-1]
    q = x @ p["wq"] + p["bq"]
    k = x @ p["wk"] + p["bk"]
    v = x @ p["wv"] + p["bv"]
    s = jnp.einsum("bld,bmd->blm", q, k) / math.sqrt(d)
    a = jax.nn.softmax(s, axis=-1)
    o = jnp.einsum("blm,bmd->bld", a, v) @ p["wo"] + p["bo"]
    s1 = _ln_ref(x + o, p["n1w"], p["n1b"])
    f = jax.nn.relu(s1 @ p["w1"] + p["b1"]) @ p["w2"] + p["b2"]
    return _ln_ref(s1 + f, p["n2w"], p["n2b"])


def _gn_add_ref(y, res, g, b):
    mu = jnp.mean(y, axis=(1, 2, 3), keepdims=True)
    var = jnp.mean((y - mu) ** 2, axis=(1, 2, 3), keepdims=True)
    yn = (y - mu) * jax.lax.rsqrt(var + GN_EPS)
    return yn * g[None, :, None, None] + b[None, :, None, None] + res


def _dual_dpa_ref(x, params):
    B, N, K, S = x.shape
    pa, pe = params["intra"], params["inter"]
    intra = _encoder_ref(jnp.transpose(x, (0, 3, 2, 1)).reshape(B * S, K, N), pa)
    intra = jnp.transpose(intra.reshape(B, S, K, N), (0, 3, 2, 1))
    intra = _gn_add_ref(intra, x, pa["gn_w"], pa["gn_b"])
    inter = _encoder_ref(jnp.transpose(intra, (0, 2, 3, 1)).reshape(B * K, S, N), pe)
    inter = jnp.transpose(inter.reshape(B, K, S, N), (0, 3, 1, 2))
    return _gn_add_ref(inter, intra, pe["gn_w"], pe["gn_b"])


if __name__ == "__main__":
    B, N, K, S = 2, 32, 16, 8      # out_channels = N = 32
    HIDDEN = 64                    # hidden_channels (dim_feedforward)

    key = jax.random.PRNGKey(0)
    kx, k1, k2 = jax.random.split(key, 3)
    x = jax.random.normal(kx, (B, N, K, S), jnp.float32)
    params = {"intra": init_pass_params(k1, N, HIDDEN),
              "inter": init_pass_params(k2, N, HIDDEN)}

    out = jax.jit(dual_dpa_block)(x, params)
    out = jax.block_until_ready(out)
    assert out.shape == (B, N, K, S)

    ref = _dual_dpa_ref(x, params)
    err = jnp.max(jnp.abs(out - ref))
    assert jnp.allclose(out, ref, atol=2e-3, rtol=2e-3), f"max err {err}"

    print("KERNEL_OK")
</pallas_src>

<mosaic_0001>
module attributes {stable_mosaic.version = 11 : i64} {
  func.func @_dpa_pass_kernel(%arg0: i32, %arg1: memref<1x8x16x32xf32, #tpu.memory_space<vmem>>, %arg2: memref<32x96xf32, #tpu.memory_space<vmem>>, %arg3: memref<32x32xf32, #tpu.memory_space<vmem>>, %arg4: memref<32x64xf32, #tpu.memory_space<vmem>>, %arg5: memref<64x32xf32, #tpu.memory_space<vmem>>, %arg6: memref<10x96xf32, #tpu.memory_space<vmem>>, %arg7: memref<1x8x16x32xf32, #tpu.memory_space<vmem>>) attributes {dimension_semantics = [#tpu.dimension_semantics<parallel>], iteration_bounds = array<i64: 2>, scalar_prefetch = 0 : i64, scratch_operands = 0 : i64, tpu.core_type = #tpu.core_type<tc>, window_params = [{transform_indices = @transform_0, window_bounds = array<i64: 1, 8, 16, 32>}, {pipeline_mode = #tpu.pipeline_mode<synchronous>, transform_indices = @transform_1, window_bounds = array<i64: 32, 96>}, {pipeline_mode = #tpu.pipeline_mode<synchronous>, transform_indices = @transform_2, window_bounds = array<i64: 32, 32>}, {pipeline_mode = #tpu.pipeline_mode<synchronous>, transform_indices = @transform_3, window_bounds = array<i64: 32, 64>}, {pipeline_mode = #tpu.pipeline_mode<synchronous>, transform_indices = @transform_4, window_bounds = array<i64: 64, 32>}, {pipeline_mode = #tpu.pipeline_mode<synchronous>, transform_indices = @transform_5, window_bounds = array<i64: 10, 96>}, {transform_indices = @transform_6, window_bounds = array<i64: 1, 8, 16, 32>}]} {
    %c0 = arith.constant 0 : index
    %c0_0 = arith.constant 0 : index
    %c0_1 = arith.constant 0 : index
    %c0_2 = arith.constant 0 : index
    %0 = vector.load %arg1[%c0, %c0_0, %c0_1, %c0_2] : memref<1x8x16x32xf32, #tpu.memory_space<vmem>>, vector<1x8x16x32xf32>
    %1 = vector.shape_cast %0 : vector<1x8x16x32xf32> to vector<8x16x32xf32>
    %c0_3 = arith.constant 0 : index
    %c0_4 = arith.constant 0 : index
    %2 = vector.load %arg6[%c0_3, %c0_4] : memref<10x96xf32, #tpu.memory_space<vmem>>, vector<10x96xf32>
    %3 = vector.shape_cast %1 : vector<8x16x32xf32> to vector<128x32xf32>
    %c0_5 = arith.constant 0 : index
    %c0_6 = arith.constant 0 : index
    %4 = vector.load %arg2[%c0_5, %c0_6] : memref<32x96xf32, #tpu.memory_space<vmem>>, vector<32x96xf32>
    %cst = arith.constant dense<0.000000e+00> : vector<128x96xf32>
    %5 = tpu.matmul %3, %4, %cst {dimension_numbers = #tpu.dot_dimension_numbers<[1], [0], [0], [1], [0, 0, 1, 1], [], []>} : vector<128x32xf32>, vector<32x96xf32>, vector<128x96xf32> -> vector<128x96xf32>
    %6 = vector.extract_strided_slice %2 {offsets = [0, 0], sizes = [1, 96], strides = [1, 1]} : vector<10x96xf32> to vector<1x96xf32>
    %7 = vector.broadcast %6 : vector<1x96xf32> to vector<128x96xf32>
    %8 = arith.addf %5, %7 : vector<128x96xf32>
    %9 = vector.extract_strided_slice %8 {offsets = [0, 0], sizes = [128, 32], strides = [1, 1]} : vector<128x96xf32> to vector<128x32xf32>
    %10 = vector.shape_cast %9 : vector<128x32xf32> to vector<8x16x32xf32>
    %11 = vector.extract_strided_slice %8 {offsets = [0, 32], sizes = [128, 32], strides = [1, 1]} : vector<128x96xf32> to vector<128x32xf32>
    %12 = vector.shape_cast %11 : vector<128x32xf32> to vector<8x16x32xf32>
    %13 = vector.extract_strided_slice %8 {offsets = [0, 64], sizes = [128, 32], strides = [1, 1]} : vector<128x96xf32> to vector<128x32xf32>
    %14 = vector.shape_cast %13 : vector<128x32xf32> to vector<8x16x32xf32>
    "tpu.trace_start"() <{level = 10 : i32, message = "bqd,bkd->bqk"}> : () -> ()
    %cst_7 = arith.constant dense<0.000000e+00> : vector<8x16x16xf32>
    %15 = tpu.matmul %10, %12, %cst_7 {dimension_numbers = #tpu.dot_dimension_numbers<[2], [2], [1], [1], [0, 0, 0, 1, 1, 1], [0], [0]>} : vector<8x16x32xf32>, vector<8x16x32xf32>, vector<8x16x16xf32> -> vector<8x16x16xf32>
    "tpu.trace_stop"() : () -> ()
    %cst_8 = arith.constant 0.176776692 : f32
    %16 = vector.broadcast %cst_8 : f32 to vector<8x16x16xf32>
    %17 = arith.mulf %15, %16 : vector<8x16x16xf32>
    %cst_9 = arith.constant dense<0xFF800000> : vector<8x16xf32>
    %18 = vector.multi_reduction <maximumf>, %17, %cst_9 [2] : vector<8x16x16xf32> to vector<8x16xf32>
    %19 = vector.shape_cast %18 : vector<8x16xf32> to vector<8x16x1xf32>
    %20 = vector.broadcast %19 : vector<8x16x1xf32> to vector<8x16x16xf32>
    %21 = arith.subf %17, %20 : vector<8x16x16xf32>
    %22 = math.exp %21 : vector<8x16x16xf32>
    %cst_10 = arith.constant dense<0.000000e+00> : vector<8x16xf32>
    %23 = vector.multi_reduction <add>, %22, %cst_10 [2] : vector<8x16x16xf32> to vector<8x16xf32>
    %24 = vector.shape_cast %23 : vector<8x16xf32> to vector<8x16x1xf32>
    %25 = tpu.reciprocal %24 : vector<8x16x1xf32> -> vector<8x16x1xf32>
    %26 = vector.broadcast %25 : vector<8x16x1xf32> to vector<8x16x16xf32>
    %27 = arith.mulf %22, %26 : vector<8x16x16xf32>
    "tpu.trace_start"() <{level = 10 : i32, message = "bqk,bkd->bqd"}> : () -> ()
    %cst_11 = arith.constant dense<0.000000e+00> : vector<8x16x32xf32>
    %28 = tpu.matmul %27, %14, %cst_11 {dimension_numbers = #tpu.dot_dimension_numbers<[2], [1], [1], [2], [0, 0, 0, 1, 1, 2], [0], [0]>} : vector<8x16x16xf32>, vector<8x16x32xf32>, vector<8x16x32xf32> -> vector<8x16x32xf32>
    "tpu.trace_stop"() : () -> ()
    %29 = vector.shape_cast %28 : vector<8x16x32xf32> to vector<128x32xf32>
    %c0_12 = arith.constant 0 : index
    %c0_13 = arith.constant 0 : index
    %30 = vector.load %arg3[%c0_12, %c0_13] : memref<32x32xf32, #tpu.memory_space<vmem>>, vector<32x32xf32>
    %cst_14 = arith.constant dense<0.000000e+00> : vector<128x32xf32>
    %31 = tpu.matmul %29, %30, %cst_14 {dimension_numbers = #tpu.dot_dimension_numbers<[1], [0], [0], [1], [0, 0, 1, 1], [], []>} : vector<128x32xf32>, vector<32x32xf32>, vector<128x32xf32> -> vector<128x32xf32>
    %32 = vector.extract_strided_slice %2 {offsets = [1, 0], sizes = [1, 32], strides = [1, 1]} : vector<10x96xf32> to vector<1x32xf32>
    %33 = vector.broadcast %32 : vector<1x32xf32> to vector<128x32xf32>
    %34 = arith.addf %31, %33 : vector<128x32xf32>
    %35 = arith.addf %3, %34 : vector<128x32xf32>
    %cst_15 = arith.constant dense<0.000000e+00> : vector<128xf32>
    %36 = vector.multi_reduction <add>, %35, %cst_15 [1] : vector<128x32xf32> to vector<128xf32>
    %37 = vector.shape_cast %36 : vector<128xf32> to vector<128x1xf32>
    %cst_16 = arith.constant 3.200000e+01 : f32
    %38 = vector.broadcast %cst_16 : f32 to vector<128x1xf32>
    %39 = arith.divf %37, %38 : vector<128x1xf32>
    %40 = vector.broadcast %39 : vector<128x1xf32> to vector<128x32xf32>
    %41 = arith.subf %35, %40 : vector<128x32xf32>
    %42 = arith.mulf %41, %41 : vector<128x32xf32>
    %cst_17 = arith.constant dense<0.000000e+00> : vector<128xf32>
    %43 = vector.multi_reduction <add>, %42, %cst_17 [1] : vector<128x32xf32> to vector<128xf32>
    %44 = vector.shape_cast %43 : vector<128xf32> to vector<128x1xf32>
    %cst_18 = arith.constant 3.200000e+01 : f32
    %45 = vector.broadcast %cst_18 : f32 to vector<128x1xf32>
    %46 = arith.divf %44, %45 : vector<128x1xf32>
    %47 = vector.broadcast %39 : vector<128x1xf32> to vector<128x32xf32>
    %48 = arith.subf %35, %47 : vector<128x32xf32>
    %cst_19 = arith.constant 9.99999974E-6 : f32
    %49 = vector.broadcast %cst_19 : f32 to vector<128x1xf32>
    %50 = arith.addf %46, %49 : vector<128x1xf32>
    %51 = math.rsqrt %50 : vector<128x1xf32>
    %52 = vector.broadcast %51 : vector<128x1xf32> to vector<128x32xf32>
    %53 = arith.mulf %48, %52 : vector<128x32xf32>
    %54 = vector.extract_strided_slice %2 {offsets = [2, 0], sizes = [1, 32], strides = [1, 1]} : vector<10x96xf32> to vector<1x32xf32>
    %55 = vector.broadcast %54 : vector<1x32xf32> to vector<128x32xf32>
    %56 = arith.mulf %53, %55 : vector<128x32xf32>
    %57 = vector.extract_strided_slice %2 {offsets = [3, 0], sizes = [1, 32], strides = [1, 1]} : vector<10x96xf32> to vector<1x32xf32>
    %58 = vector.broadcast %57 : vector<1x32xf32> to vector<128x32xf32>
    %59 = arith.addf %56, %58 : vector<128x32xf32>
    %c0_20 = arith.constant 0 : index
    %c0_21 = arith.constant 0 : index
    %60 = vector.load %arg4[%c0_20, %c0_21] : memref<32x64xf32, #tpu.memory_space<vmem>>, vector<32x64xf32>
    %cst_22 = arith.constant dense<0.000000e+00> : vector<128x64xf32>
    %61 = tpu.matmul %59, %60, %cst_22 {dimension_numbers = #tpu.dot_dimension_numbers<[1], [0], [0], [1], [0, 0, 1, 1], [], []>} : vector<128x32xf32>, vector<32x64xf32>, vector<128x64xf32> -> vector<128x64xf32>
    %62 = vector.extract_strided_slice %2 {offsets = [4, 0], sizes = [1, 64], strides = [1, 1]} : vector<10x96xf32> to vector<1x64xf32>
    %63 = vector.broadcast %62 : vector<1x64xf32> to vector<128x64xf32>
    %64 = arith.addf %61, %63 : vector<128x64xf32>
    %cst_23 = arith.constant 0.000000e+00 : f32
    %65 = vector.broadcast %cst_23 : f32 to vector<128x64xf32>
    %66 = arith.maximumf %64, %65 : vector<128x64xf32>
    %c0_24 = arith.constant 0 : index
    %c0_25 = arith.constant 0 : index
    %67 = vector.load %arg5[%c0_24, %c0_25] : memref<64x32xf32, #tpu.memory_space<vmem>>, vector<64x32xf32>
    %cst_26 = arith.constant dense<0.000000e+00> : vector<128x32xf32>
    %68 = tpu.matmul %66, %67, %cst_26 {dimension_numbers = #tpu.dot_dimension_numbers<[1], [0], [0], [1], [0, 0, 1, 1], [], []>} : vector<128x64xf32>, vector<64x32xf32>, vector<128x32xf32> -> vector<128x32xf32>
    %69 = vector.extract_strided_slice %2 {offsets = [5, 0], sizes = [1, 32], strides = [1, 1]} : vector<10x96xf32> to vector<1x32xf32>
    %70 = vector.broadcast %69 : vector<1x32xf32> to vector<128x32xf32>
    %71 = arith.addf %68, %70 : vector<128x32xf32>
    %72 = arith.addf %59, %71 : vector<128x32xf32>
    %cst_27 = arith.constant dense<0.000000e+00> : vector<128xf32>
    %73 = vector.multi_reduction <add>, %72, %cst_27 [1] : vector<128x32xf32> to vector<128xf32>
    %74 = vector.shape_cast %73 : vector<128xf32> to vector<128x1xf32>
    %cst_28 = arith.constant 3.200000e+01 : f32
    %75 = vector.broadcast %cst_28 : f32 to vector<128x1xf32>
    %76 = arith.divf %74, %75 : vector<128x1xf32>
    %77 = vector.broadcast %76 : vector<128x1xf32> to vector<128x32xf32>
    %78 = arith.subf %72, %77 : vector<128x32xf32>
    %79 = arith.mulf %78, %78 : vector<128x32xf32>
    %cst_29 = arith.constant dense<0.000000e+00> : vector<128xf32>
    %80 = vector.multi_reduction <add>, %79, %cst_29 [1] : vector<128x32xf32> to vector<128xf32>
    %81 = vector.shape_cast %80 : vector<128xf32> to vector<128x1xf32>
    %cst_30 = arith.constant 3.200000e+01 : f32
    %82 = vector.broadcast %cst_30 : f32 to vector<128x1xf32>
    %83 = arith.divf %81, %82 : vector<128x1xf32>
    %84 = vector.broadcast %76 : vector<128x1xf32> to vector<128x32xf32>
    %85 = arith.subf %72, %84 : vector<128x32xf32>
    %cst_31 = arith.constant 9.99999974E-6 : f32
    %86 = vector.broadcast %cst_31 : f32 to vector<128x1xf32>
    %87 = arith.addf %83, %86 : vector<128x1xf32>
    %88 = math.rsqrt %87 : vector<128x1xf32>
    %89 = vector.broadcast %88 : vector<128x1xf32> to vector<128x32xf32>
    %90 = arith.mulf %85, %89 : vector<128x32xf32>
    %91 = vector.extract_strided_slice %2 {offsets = [6, 0], sizes = [1, 32], strides = [1, 1]} : vector<10x96xf32> to vector<1x32xf32>
    %92 = vector.broadcast %91 : vector<1x32xf32> to vector<128x32xf32>
    %93 = arith.mulf %90, %92 : vector<128x32xf32>
    %94 = vector.extract_strided_slice %2 {offsets = [7, 0], sizes = [1, 32], strides = [1, 1]} : vector<10x96xf32> to vector<1x32xf32>
    %95 = vector.broadcast %94 : vector<1x32xf32> to vector<128x32xf32>
    %96 = arith.addf %93, %95 : vector<128x32xf32>
    %97 = vector.shape_cast %96 : vector<128x32xf32> to vector<1x128x32xf32>
    %cst_32 = arith.constant dense<0.000000e+00> : vector<1xf32>
    %98 = vector.multi_reduction <add>, %97, %cst_32 [1, 2] : vector<1x128x32xf32> to vector<1xf32>
    %99 = vector.shape_cast %98 : vector<1xf32> to vector<1x1x1xf32>
    %100 = vector.extract %99[0, 0, 0] : f32 from vector<1x1x1xf32>
    %cst_33 = arith.constant 4.096000e+03 : f32
    %101 = arith.divf %100, %cst_33 : f32
    %102 = vector.broadcast %101 : f32 to vector<128x32xf32>
    %103 = arith.subf %96, %102 : vector<128x32xf32>
    %104 = arith.mulf %103, %103 : vector<128x32xf32>
    %105 = vector.shape_cast %104 : vector<128x32xf32> to vector<1x128x32xf32>
    %cst_34 = arith.constant dense<0.000000e+00> : vector<1xf32>
    %106 = vector.multi_reduction <add>, %105, %cst_34 [1, 2] : vector<1x128x32xf32> to vector<1xf32>
    %107 = vector.shape_cast %106 : vector<1xf32> to vector<1x1x1xf32>
    %108 = vector.extract %107[0, 0, 0] : f32 from vector<1x1x1xf32>
    %cst_35 = arith.constant 4.096000e+03 : f32
    %109 = arith.divf %108, %cst_35 : f32
    %110 = vector.broadcast %101 : f32 to vector<128x32xf32>
    %111 = arith.subf %96, %110 : vector<128x32xf32>
    %cst_36 = arith.constant 9.99999993E-9 : f32
    %112 = arith.addf %109, %cst_36 : f32
    %113 = math.rsqrt %112 : f32
    %114 = vector.broadcast %113 : f32 to vector<128x32xf32>
    %115 = arith.mulf %111, %114 : vector<128x32xf32>
    %116 = vector.extract_strided_slice %2 {offsets = [8, 0], sizes = [1, 32], strides = [1, 1]} : vector<10x96xf32> to vector<1x32xf32>
    %117 = vector.broadcast %116 : vector<1x32xf32> to vector<128x32xf32>
    %118 = arith.mulf %115, %117 : vector<128x32xf32>
    %119 = vector.extract_strided_slice %2 {offsets = [9, 0], sizes = [1, 32], strides = [1, 1]} : vector<10x96xf32> to vector<1x32xf32>
    %120 = vector.broadcast %119 : vector<1x32xf32> to vector<128x32xf32>
    %121 = arith.addf %118, %120 : vector<128x32xf32>
    %122 = arith.addf %121, %3 : vector<128x32xf32>
    %123 = vector.shape_cast %122 : vector<128x32xf32> to vector<8x16x32xf32>
    %c0_37 = arith.constant 0 : index
    %c0_38 = arith.constant 0 : index
    %c0_39 = arith.constant 0 : index
    %c0_40 = arith.constant 0 : index
    %124 = vector.load %arg7[%c0_37, %c0_38, %c0_39, %c0_40] : memref<1x8x16x32xf32, #tpu.memory_space<vmem>>, vector<1x8x16x32xf32>
    %125 = vector.shape_cast %124 : vector<1x8x16x32xf32> to vector<8x16x32xf32>
    %126 = vector.shape_cast %123 : vector<8x16x32xf32> to vector<1x8x16x32xf32>
    tpu.vector_store %arg7[%c0_37, %c0_38, %c0_39, %c0_40], %126 {strides = array<i32>} : memref<1x8x16x32xf32, #tpu.memory_space<vmem>>, vector<1x8x16x32xf32>,
    return
  }
  func.func @transform_0(%arg0: i32) -> (i32, i32, i32, i32) {
    %c0_i32 = arith.constant 0 : i32
    %c0_i32_0 = arith.constant 0 : i32
    %c0_i32_1 = arith.constant 0 : i32
    %c0_i32_2 = arith.constant 0 : i32
    return %arg0, %c0_i32, %c0_i32_0, %c0_i32_1 : i32, i32, i32, i32
  }
  func.func @transform_1(%arg0: i32) -> (i32, i32) {
    %c0_i32 = arith.constant 0 : i32
    %c0_i32_0 = arith.constant 0 : i32
    %c0_i32_1 = arith.constant 0 : i32
    return %c0_i32, %c0_i32_0 : i32, i32
  }
  func.func @transform_2(%arg0: i32) -> (i32, i32) {
    %c0_i32 = arith.constant 0 : i32
    %c0_i32_0 = arith.constant 0 : i32
    %c0_i32_1 = arith.constant 0 : i32
    return %c0_i32, %c0_i32_0 : i32, i32
  }
  func.func @transform_3(%arg0: i32) -> (i32, i32) {
    %c0_i32 = arith.constant 0 : i32
    %c0_i32_0 = arith.constant 0 : i32
    %c0_i32_1 = arith.constant 0 : i32
    return %c0_i32, %c0_i32_0 : i32, i32
  }
  func.func @transform_4(%arg0: i32) -> (i32, i32) {
    %c0_i32 = arith.constant 0 : i32
    %c0_i32_0 = arith.constant 0 : i32
    %c0_i32_1 = arith.constant 0 : i32
    return %c0_i32, %c0_i32_0 : i32, i32
  }
  func.func @transform_5(%arg0: i32) -> (i32, i32) {
    %c0_i32 = arith.constant 0 : i32
    %c0_i32_0 = arith.constant 0 : i32
    %c0_i32_1 = arith.constant 0 : i32
    return %c0_i32, %c0_i32_0 : i32, i32
  }
  func.func @transform_6(%arg0: i32) -> (i32, i32, i32, i32) {
    %c0_i32 = arith.constant 0 : i32
    %c0_i32_0 = arith.constant 0 : i32
    %c0_i32_1 = arith.constant 0 : i32
    %c0_i32_2 = arith.constant 0 : i32
    return %arg0, %c0_i32, %c0_i32_0, %c0_i32_1 : i32, i32, i32, i32
  }
}

module attributes {stable_mosaic.version = 11 : i64} {
  func.func @_dpa_pass_kernel(%arg0: i32, %arg1: memref<1x16x8x32xf32, #tpu.memory_space<vmem>>, %arg2: memref<32x96xf32, #tpu.memory_space<vmem>>, %arg3: memref<32x32xf32, #tpu.memory_space<vmem>>, %arg4: memref<32x64xf32, #tpu.memory_space<vmem>>, %arg5: memref<64x32xf32, #tpu.memory_space<vmem>>, %arg6: memref<10x96xf32, #tpu.memory_space<vmem>>, %arg7: memref<1x16x8x32xf32, #tpu.memory_space<vmem>>) attributes {dimension_semantics = [#tpu.dimension_semantics<parallel>], iteration_bounds = array<i64: 2>, scalar_prefetch = 0 : i64, scratch_operands = 0 : i64, tpu.core_type = #tpu.core_type<tc>, window_params = [{transform_indices = @transform_0, window_bounds = array<i64: 1, 16, 8, 32>}, {pipeline_mode = #tpu.pipeline_mode<synchronous>, transform_indices = @transform_1, window_bounds = array<i64: 32, 96>}, {pipeline_mode = #tpu.pipeline_mode<synchronous>, transform_indices = @transform_2, window_bounds = array<i64: 32, 32>}, {pipeline_mode = #tpu.pipeline_mode<synchronous>, transform_indices = @transform_3, window_bounds = array<i64: 32, 64>}, {pipeline_mode = #tpu.pipeline_mode<synchronous>, transform_indices = @transform_4, window_bounds = array<i64: 64, 32>}, {pipeline_mode = #tpu.pipeline_mode<synchronous>, transform_indices = @transform_5, window_bounds = array<i64: 10, 96>}, {transform_indices = @transform_6, window_bounds = array<i64: 1, 16, 8, 32>}]} {
    %c0 = arith.constant 0 : index
    %c0_0 = arith.constant 0 : index
    %c0_1 = arith.constant 0 : index
    %c0_2 = arith.constant 0 : index
    %0 = vector.load %arg1[%c0, %c0_0, %c0_1, %c0_2] : memref<1x16x8x32xf32, #tpu.memory_space<vmem>>, vector<1x16x8x32xf32>
    %1 = vector.shape_cast %0 : vector<1x16x8x32xf32> to vector<16x8x32xf32>
    %c0_3 = arith.constant 0 : index
    %c0_4 = arith.constant 0 : index
    %2 = vector.load %arg6[%c0_3, %c0_4] : memref<10x96xf32, #tpu.memory_space<vmem>>, vector<10x96xf32>
    %3 = vector.shape_cast %1 : vector<16x8x32xf32> to vector<128x32xf32>
    %c0_5 = arith.constant 0 : index
    %c0_6 = arith.constant 0 : index
    %4 = vector.load %arg2[%c0_5, %c0_6] : memref<32x96xf32, #tpu.memory_space<vmem>>, vector<32x96xf32>
    %cst = arith.constant dense<0.000000e+00> : vector<128x96xf32>
    %5 = tpu.matmul %3, %4, %cst {dimension_numbers = #tpu.dot_dimension_numbers<[1], [0], [0], [1], [0, 0, 1, 1], [], []>} : vector<128x32xf32>, vector<32x96xf32>, vector<128x96xf32> -> vector<128x96xf32>
    %6 = vector.extract_strided_slice %2 {offsets = [0, 0], sizes = [1, 96], strides = [1, 1]} : vector<10x96xf32> to vector<1x96xf32>
    %7 = vector.broadcast %6 : vector<1x96xf32> to vector<128x96xf32>
    %8 = arith.addf %5, %7 : vector<128x96xf32>
    %9 = vector.extract_strided_slice %8 {offsets = [0, 0], sizes = [128, 32], strides = [1, 1]} : vector<128x96xf32> to vector<128x32xf32>
    %10 = vector.shape_cast %9 : vector<128x32xf32> to vector<16x8x32xf32>
    %11 = vector.extract_strided_slice %8 {offsets = [0, 32], sizes = [128, 32], strides = [1, 1]} : vector<128x96xf32> to vector<128x32xf32>
    %12 = vector.shape_cast %11 : vector<128x32xf32> to vector<16x8x32xf32>
    %13 = vector.extract_strided_slice %8 {offsets = [0, 64], sizes = [128, 32], strides = [1, 1]} : vector<128x96xf32> to vector<128x32xf32>
    %14 = vector.shape_cast %13 : vector<128x32xf32> to vector<16x8x32xf32>
    "tpu.trace_start"() <{level = 10 : i32, message = "bqd,bkd->bqk"}> : () -> ()
    %cst_7 = arith.constant dense<0.000000e+00> : vector<16x8x8xf32>
    %15 = tpu.matmul %10, %12, %cst_7 {dimension_numbers = #tpu.dot_dimension_numbers<[2], [2], [1], [1], [0, 0, 0, 1, 1, 1], [0], [0]>} : vector<16x8x32xf32>, vector<16x8x32xf32>, vector<16x8x8xf32> -> vector<16x8x8xf32>
    "tpu.trace_stop"() : () -> ()
    %cst_8 = arith.constant 0.176776692 : f32
    %16 = vector.broadcast %cst_8 : f32 to vector<16x8x8xf32>
    %17 = arith.mulf %15, %16 : vector<16x8x8xf32>
    %cst_9 = arith.constant dense<0xFF800000> : vector<16x8xf32>
    %18 = vector.multi_reduction <maximumf>, %17, %cst_9 [2] : vector<16x8x8xf32> to vector<16x8xf32>
    %19 = vector.shape_cast %18 : vector<16x8xf32> to vector<16x8x1xf32>
    %20 = vector.broadcast %19 : vector<16x8x1xf32> to vector<16x8x8xf32>
    %21 = arith.subf %17, %20 : vector<16x8x8xf32>
    %22 = math.exp %21 : vector<16x8x8xf32>
    %cst_10 = arith.constant dense<0.000000e+00> : vector<16x8xf32>
    %23 = vector.multi_reduction <add>, %22, %cst_10 [2] : vector<16x8x8xf32> to vector<16x8xf32>
    %24 = vector.shape_cast %23 : vector<16x8xf32> to vector<16x8x1xf32>
    %25 = tpu.reciprocal %24 : vector<16x8x1xf32> -> vector<16x8x1xf32>
    %26 = vector.broadcast %25 : vector<16x8x1xf32> to vector<16x8x8xf32>
    %27 = arith.mulf %22, %26 : vector<16x8x8xf32>
    "tpu.trace_start"() <{level = 10 : i32, message = "bqk,bkd->bqd"}> : () -> ()
    %cst_11 = arith.constant dense<0.000000e+00> : vector<16x8x32xf32>
    %28 = tpu.matmul %27, %14, %cst_11 {dimension_numbers = #tpu.dot_dimension_numbers<[2], [1], [1], [2], [0, 0, 0, 1, 1, 2], [0], [0]>} : vector<16x8x8xf32>, vector<16x8x32xf32>, vector<16x8x32xf32> -> vector<16x8x32xf32>
    "tpu.trace_stop"() : () -> ()
    %29 = vector.shape_cast %28 : vector<16x8x32xf32> to vector<128x32xf32>
    %c0_12 = arith.constant 0 : index
    %c0_13 = arith.constant 0 : index
    %30 = vector.load %arg3[%c0_12, %c0_13] : memref<32x32xf32, #tpu.memory_space<vmem>>, vector<32x32xf32>
    %cst_14 = arith.constant dense<0.000000e+00> : vector<128x32xf32>
    %31 = tpu.matmul %29, %30, %cst_14 {dimension_numbers = #tpu.dot_dimension_numbers<[1], [0], [0], [1], [0, 0, 1, 1], [], []>} : vector<128x32xf32>, vector<32x32xf32>, vector<128x32xf32> -> vector<128x32xf32>
    %32 = vector.extract_strided_slice %2 {offsets = [1, 0], sizes = [1, 32], strides = [1, 1]} : vector<10x96xf32> to vector<1x32xf32>
    %33 = vector.broadcast %32 : vector<1x32xf32> to vector<128x32xf32>
    %34 = arith.addf %31, %33 : vector<128x32xf32>
    %35 = arith.addf %3, %34 : vector<128x32xf32>
    %cst_15 = arith.constant dense<0.000000e+00> : vector<128xf32>
    %36 = vector.multi_reduction <add>, %35, %cst_15 [1] : vector<128x32xf32> to vector<128xf32>
    %37 = vector.shape_cast %36 : vector<128xf32> to vector<128x1xf32>
    %cst_16 = arith.constant 3.200000e+01 : f32
    %38 = vector.broadcast %cst_16 : f32 to vector<128x1xf32>
    %39 = arith.divf %37, %38 : vector<128x1xf32>
    %40 = vector.broadcast %39 : vector<128x1xf32> to vector<128x32xf32>
    %41 = arith.subf %35, %40 : vector<128x32xf32>
    %42 = arith.mulf %41, %41 : vector<128x32xf32>
    %cst_17 = arith.constant dense<0.000000e+00> : vector<128xf32>
    %43 = vector.multi_reduction <add>, %42, %cst_17 [1] : vector<128x32xf32> to vector<128xf32>
    %44 = vector.shape_cast %43 : vector<128xf32> to vector<128x1xf32>
    %cst_18 = arith.constant 3.200000e+01 : f32
    %45 = vector.broadcast %cst_18 : f32 to vector<128x1xf32>
    %46 = arith.divf %44, %45 : vector<128x1xf32>
    %47 = vector.broadcast %39 : vector<128x1xf32> to vector<128x32xf32>
    %48 = arith.subf %35, %47 : vector<128x32xf32>
    %cst_19 = arith.constant 9.99999974E-6 : f32
    %49 = vector.broadcast %cst_19 : f32 to vector<128x1xf32>
    %50 = arith.addf %46, %49 : vector<128x1xf32>
    %51 = math.rsqrt %50 : vector<128x1xf32>
    %52 = vector.broadcast %51 : vector<128x1xf32> to vector<128x32xf32>
    %53 = arith.mulf %48, %52 : vector<128x32xf32>
    %54 = vector.extract_strided_slice %2 {offsets = [2, 0], sizes = [1, 32], strides = [1, 1]} : vector<10x96xf32> to vector<1x32xf32>
    %55 = vector.broadcast %54 : vector<1x32xf32> to vector<128x32xf32>
    %56 = arith.mulf %53, %55 : vector<128x32xf32>
    %57 = vector.extract_strided_slice %2 {offsets = [3, 0], sizes = [1, 32], strides = [1, 1]} : vector<10x96xf32> to vector<1x32xf32>
    %58 = vector.broadcast %57 : vector<1x32xf32> to vector<128x32xf32>
    %59 = arith.addf %56, %58 : vector<128x32xf32>
    %c0_20 = arith.constant 0 : index
    %c0_21 = arith.constant 0 : index
    %60 = vector.load %arg4[%c0_20, %c0_21] : memref<32x64xf32, #tpu.memory_space<vmem>>, vector<32x64xf32>
    %cst_22 = arith.constant dense<0.000000e+00> : vector<128x64xf32>
    %61 = tpu.matmul %59, %60, %cst_22 {dimension_numbers = #tpu.dot_dimension_numbers<[1], [0], [0], [1], [0, 0, 1, 1], [], []>} : vector<128x32xf32>, vector<32x64xf32>, vector<128x64xf32> -> vector<128x64xf32>
    %62 = vector.extract_strided_slice %2 {offsets = [4, 0], sizes = [1, 64], strides = [1, 1]} : vector<10x96xf32> to vector<1x64xf32>
    %63 = vector.broadcast %62 : vector<1x64xf32> to vector<128x64xf32>
    %64 = arith.addf %61, %63 : vector<128x64xf32>
    %cst_23 = arith.constant 0.000000e+00 : f32
    %65 = vector.broadcast %cst_23 : f32 to vector<128x64xf32>
    %66 = arith.maximumf %64, %65 : vector<128x64xf32>
    %c0_24 = arith.constant 0 : index
    %c0_25 = arith.constant 0 : index
    %67 = vector.load %arg5[%c0_24, %c0_25] : memref<64x32xf32, #tpu.memory_space<vmem>>, vector<64x32xf32>
    %cst_26 = arith.constant dense<0.000000e+00> : vector<128x32xf32>
    %68 = tpu.matmul %66, %67, %cst_26 {dimension_numbers = #tpu.dot_dimension_numbers<[1], [0], [0], [1], [0, 0, 1, 1], [], []>} : vector<128x64xf32>, vector<64x32xf32>, vector<128x32xf32> -> vector<128x32xf32>
    %69 = vector.extract_strided_slice %2 {offsets = [5, 0], sizes = [1, 32], strides = [1, 1]} : vector<10x96xf32> to vector<1x32xf32>
    %70 = vector.broadcast %69 : vector<1x32xf32> to vector<128x32xf32>
    %71 = arith.addf %68, %70 : vector<128x32xf32>
    %72 = arith.addf %59, %71 : vector<128x32xf32>
    %cst_27 = arith.constant dense<0.000000e+00> : vector<128xf32>
    %73 = vector.multi_reduction <add>, %72, %cst_27 [1] : vector<128x32xf32> to vector<128xf32>
    %74 = vector.shape_cast %73 : vector<128xf32> to vector<128x1xf32>
    %cst_28 = arith.constant 3.200000e+01 : f32
    %75 = vector.broadcast %cst_28 : f32 to vector<128x1xf32>
    %76 = arith.divf %74, %75 : vector<128x1xf32>
    %77 = vector.broadcast %76 : vector<128x1xf32> to vector<128x32xf32>
    %78 = arith.subf %72, %77 : vector<128x32xf32>
    %79 = arith.mulf %78, %78 : vector<128x32xf32>
    %cst_29 = arith.constant dense<0.000000e+00> : vector<128xf32>
    %80 = vector.multi_reduction <add>, %79, %cst_29 [1] : vector<128x32xf32> to vector<128xf32>
    %81 = vector.shape_cast %80 : vector<128xf32> to vector<128x1xf32>
    %cst_30 = arith.constant 3.200000e+01 : f32
    %82 = vector.broadcast %cst_30 : f32 to vector<128x1xf32>
    %83 = arith.divf %81, %82 : vector<128x1xf32>
    %84 = vector.broadcast %76 : vector<128x1xf32> to vector<128x32xf32>
    %85 = arith.subf %72, %84 : vector<128x32xf32>
    %cst_31 = arith.constant 9.99999974E-6 : f32
    %86 = vector.broadcast %cst_31 : f32 to vector<128x1xf32>
    %87 = arith.addf %83, %86 : vector<128x1xf32>
    %88 = math.rsqrt %87 : vector<128x1xf32>
    %89 = vector.broadcast %88 : vector<128x1xf32> to vector<128x32xf32>
    %90 = arith.mulf %85, %89 : vector<128x32xf32>
    %91 = vector.extract_strided_slice %2 {offsets = [6, 0], sizes = [1, 32], strides = [1, 1]} : vector<10x96xf32> to vector<1x32xf32>
    %92 = vector.broadcast %91 : vector<1x32xf32> to vector<128x32xf32>
    %93 = arith.mulf %90, %92 : vector<128x32xf32>
    %94 = vector.extract_strided_slice %2 {offsets = [7, 0], sizes = [1, 32], strides = [1, 1]} : vector<10x96xf32> to vector<1x32xf32>
    %95 = vector.broadcast %94 : vector<1x32xf32> to vector<128x32xf32>
    %96 = arith.addf %93, %95 : vector<128x32xf32>
    %97 = vector.shape_cast %96 : vector<128x32xf32> to vector<1x128x32xf32>
    %cst_32 = arith.constant dense<0.000000e+00> : vector<1xf32>
    %98 = vector.multi_reduction <add>, %97, %cst_32 [1, 2] : vector<1x128x32xf32> to vector<1xf32>
    %99 = vector.shape_cast %98 : vector<1xf32> to vector<1x1x1xf32>
    %100 = vector.extract %99[0, 0, 0] : f32 from vector<1x1x1xf32>
    %cst_33 = arith.constant 4.096000e+03 : f32
    %101 = arith.divf %100, %cst_33 : f32
    %102 = vector.broadcast %101 : f32 to vector<128x32xf32>
    %103 = arith.subf %96, %102 : vector<128x32xf32>
    %104 = arith.mulf %103, %103 : vector<128x32xf32>
    %105 = vector.shape_cast %104 : vector<128x32xf32> to vector<1x128x32xf32>
    %cst_34 = arith.constant dense<0.000000e+00> : vector<1xf32>
    %106 = vector.multi_reduction <add>, %105, %cst_34 [1, 2] : vector<1x128x32xf32> to vector<1xf32>
    %107 = vector.shape_cast %106 : vector<1xf32> to vector<1x1x1xf32>
    %108 = vector.extract %107[0, 0, 0] : f32 from vector<1x1x1xf32>
    %cst_35 = arith.constant 4.096000e+03 : f32
    %109 = arith.divf %108, %cst_35 : f32
    %110 = vector.broadcast %101 : f32 to vector<128x32xf32>
    %111 = arith.subf %96, %110 : vector<128x32xf32>
    %cst_36 = arith.constant 9.99999993E-9 : f32
    %112 = arith.addf %109, %cst_36 : f32
    %113 = math.rsqrt %112 : f32
    %114 = vector.broadcast %113 : f32 to vector<128x32xf32>
    %115 = arith.mulf %111, %114 : vector<128x32xf32>
    %116 = vector.extract_strided_slice %2 {offsets = [8, 0], sizes = [1, 32], strides = [1, 1]} : vector<10x96xf32> to vector<1x32xf32>
    %117 = vector.broadcast %116 : vector<1x32xf32> to vector<128x32xf32>
    %118 = arith.mulf %115, %117 : vector<128x32xf32>
    %119 = vector.extract_strided_slice %2 {offsets = [9, 0], sizes = [1, 32], strides = [1, 1]} : vector<10x96xf32> to vector<1x32xf32>
    %120 = vector.broadcast %119 : vector<1x32xf32> to vector<128x32xf32>
    %121 = arith.addf %118, %120 : vector<128x32xf32>
    %122 = arith.addf %121, %3 : vector<128x32xf32>
    %123 = vector.shape_cast %122 : vector<128x32xf32> to vector<16x8x32xf32>
    %c0_37 = arith.constant 0 : index
    %c0_38 = arith.constant 0 : index
    %c0_39 = arith.constant 0 : index
    %c0_40 = arith.constant 0 : index
    %124 = vector.load %arg7[%c0_37, %c0_38, %c0_39, %c0_40] : memref<1x16x8x32xf32, #tpu.memory_space<vmem>>, vector<1x16x8x32xf32>
    %125 = vector.shape_cast %124 : vector<1x16x8x32xf32> to vector<16x8x32xf32>
    %126 = vector.shape_cast %123 : vector<16x8x32xf32> to vector<1x16x8x32xf32>
    tpu.vector_store %arg7[%c0_37, %c0_38, %c0_39, %c0_40], %126 {strides = array<i32>} : memref<1x16x8x32xf32, #tpu.memory_space<vmem>>, vector<1x16x8x32xf32>,
    return
  }
  func.func @transform_0(%arg0: i32) -> (i32, i32, i32, i32) {
    %c0_i32 = arith.constant 0 : i32
    %c0_i32_0 = arith.constant 0 : i32
    %c0_i32_1 = arith.constant 0 : i32
    %c0_i32_2 = arith.constant 0 : i32
    return %arg0, %c0_i32, %c0_i32_0, %c0_i32_1 : i32, i32, i32, i32
  }
  func.func @transform_1(%arg0: i32) -> (i32, i32) {
    %c0_i32 = arith.constant 0 : i32
    %c0_i32_0 = arith.constant 0 : i32
    %c0_i32_1 = arith.constant 0 : i32
    return %c0_i32, %c0_i32_0 : i32, i32
  }
  func.func @transform_2(%arg0: i32) -> (i32, i32) {
    %c0_i32 = arith.constant 0 : i32
    %c0_i32_0 = arith.constant 0 : i32
    %c0_i32_1 = arith.constant 0 : i32
    return %c0_i32, %c0_i32_0 : i32, i32
  }
  func.func @transform_3(%arg0: i32) -> (i32, i32) {
    %c0_i32 = arith.constant 0 : i32
    %c0_i32_0 = arith.constant 0 : i32
    %c0_i32_1 = arith.constant 0 : i32
    return %c0_i32, %c0_i32_0 : i32, i32
  }
  func.func @transform_4(%arg0: i32) -> (i32, i32) {
    %c0_i32 = arith.constant 0 : i32
    %c0_i32_0 = arith.constant 0 : i32
    %c0_i32_1 = arith.constant 0 : i32
    return %c0_i32, %c0_i32_0 : i32, i32
  }
  func.func @transform_5(%arg0: i32) -> (i32, i32) {
    %c0_i32 = arith.constant 0 : i32
    %c0_i32_0 = arith.constant 0 : i32
    %c0_i32_1 = arith.constant 0 : i32
    return %c0_i32, %c0_i32_0 : i32, i32
  }
  func.func @transform_6(%arg0: i32) -> (i32, i32, i32, i32) {
    %c0_i32 = arith.constant 0 : i32
    %c0_i32_0 = arith.constant 0 : i32
    %c0_i32_1 = arith.constant 0 : i32
    %c0_i32_2 = arith.constant 0 : i32
    return %arg0, %c0_i32, %c0_i32_0, %c0_i32_1 : i32, i32, i32, i32
  }
}

</mosaic_0001>

<llo_original>
// kernel: dual_dpa_block.2
$region0: #{dual_dpa_block.2}
  #allocation0 [shape = 'u32[]', space=smem, size = 0x4, offset = 0x4, fixed_abs, tag = 'smem constant byte address 0x4 - core index']
  #allocation1 [shape = 'u32[144,128]{1,0:T(1,128)}', space=vmem, size = 0x12000, scoped, tag = 'internal scratch']
  %s0 = inlined_call_operand.vmem [shape: f32[2,8,16,32], index: 0, kind: input, shape index: {}]
  %s1 = inlined_call_operand.vmem [shape: f32[32,96], index: 1, kind: input, shape index: {}]
  %s2 = inlined_call_operand.vmem [shape: f32[32,32], index: 2, kind: input, shape index: {}]
  %s3 = inlined_call_operand.vmem [shape: f32[32,64], index: 3, kind: input, shape index: {}]
  %s4 = inlined_call_operand.vmem [shape: f32[64,32], index: 4, kind: input, shape index: {}]
  %s5 = inlined_call_operand.vmem [shape: f32[10,96], index: 5, kind: input, shape index: {}]
  %s6 = inlined_call_operand.vmem [shape: f32[2,8,16,32], index: 6, kind: output, shape index: {}]
  %s7 = sld [smem:[#allocation0]]
  $region57: #{dual_dpa_block.2} parent=0
    _
  %s9 = ssub.s32 1, %s7
  %s10 = scalar_select 0, %s9, %s7
  loop: start=0, step=1, limit=4
  $region2: #{dual_dpa_block.2} parent=0 // loop_pre_header
    _
  $region3: #{dual_dpa_block.2} parent=0 // loop_header
    %s12 = sphi 0, %s16
    %p13 = scmp.ge.s32.totalorder %s12, 4
    %s22 = sphi 0, %s24
    %s25 = sphi 0, %s22
    %s26 = sphi 0, %s25
    %s42 = sphi 0, %s26
    %s46 = sphi 0, %s46
    %s48 = sphi 0, %s46
    %s49 = sphi 0, %s48
    %s63 = sphi 0, %s49
    %s67 = sphi 0, %s67
    %s69 = sphi 0, %s67
    %s70 = sphi 0, %s69
    %s84 = sphi 0, %s70
    %s88 = sphi 0, %s88
    %s90 = sphi 0, %s88
    %s91 = sphi 0, %s90
    %s105 = sphi 0, %s91
    %s109 = sphi 0, %s109
    %s111 = sphi 0, %s109
    %s112 = sphi 0, %s111
    %s126 = sphi 0, %s112
    %s130 = sphi 0, %s130
    %s132 = sphi 0, %s130
    %s133 = sphi 0, %s132
    %s147 = sphi 0, %s133
    %s153 = sphi 0, %s155
    %s156 = sphi 0, %s153
    %s157 = sphi 0, %s156
    %s173 = sphi 0, %s157
  $region4: #{dual_dpa_block.2} parent=0 // loop_header_branch
    %15 = sbr.rel (%p13) target = $region8
  $region5: #{dual_dpa_block.2} parent=0 // loop_body
    %s17 = ssub.s32 %s12, 1
    %s18 = ssub.s32 %s12, 2
    %s19 = sadd.s32 %s12, 1
    %s20 = ssub.s32 %s12, %s19
    %p21 = scmp.eq.s32.totalorder %s20, 0
    %s23 = sadd.s32 %s22, 1
    %s24 = scalar_select %p21, %s22, %s23
    %p27 = pneg %p21
    %p28 = scmp.eq.s32.totalorder %s12, 1
    %p29 = por %p27, %p28
    %p30 = scmp.ne.s32.totalorder %s22, %s25
    %p31 = scmp.eq.s32.totalorder %s12, 0
    %p32 = por %p30, %p31
    %p33 = scmp.ne.s32.totalorder %s22, %s25
    %p34 = scmp.eq.s32.totalorder %s17, 1
    %p35 = por %p33, %p34
    %p36 = scmp.ne.s32.totalorder %s25, %s26
    %p37 = scmp.eq.s32.totalorder %s17, 0
    %p38 = por %p36, %p37
    %p39 = scmp.ne.s32.totalorder %s25, %s26
    %p40 = scmp.eq.s32.totalorder %s18, 1
    %p41 = por %p39, %p40
    %p43 = scmp.ne.s32.totalorder %s26, %s42
    %p44 = scmp.eq.s32.totalorder %s18, 0
    %p45 = por %p43, %p44
    %s47 = sadd.s32 %s46, 1
    %p50 = scmp.eq.s32.totalorder %s12, 1
    %p51 = scmp.ne.s32.totalorder %s46, %s48
    %p52 = scmp.eq.s32.totalorder %s12, 0
    %p53 = por %p51, %p52
    %p54 = scmp.ne.s32.totalorder %s46, %s48
    %p55 = scmp.eq.s32.totalorder %s17, 1
    %p56 = por %p54, %p55
    %p57 = scmp.ne.s32.totalorder %s48, %s49
    %p58 = scmp.eq.s32.totalorder %s17, 0
    %p59 = por %p57, %p58
    %p60 = scmp.ne.s32.totalorder %s48, %s49
    %p61 = scmp.eq.s32.totalorder %s18, 1
    %p62 = por %p60, %p61
    %p64 = scmp.ne.s32.totalorder %s49, %s63
    %p65 = scmp.eq.s32.totalorder %s18, 0
    %p66 = por %p64, %p65
    %s68 = sadd.s32 %s67, 1
    %p71 = scmp.eq.s32.totalorder %s12, 1
    %p72 = scmp.ne.s32.totalorder %s67, %s69
    %p73 = scmp.eq.s32.totalorder %s12, 0
    %p74 = por %p72, %p73
    %p75 = scmp.ne.s32.totalorder %s67, %s69
    %p76 = scmp.eq.s32.totalorder %s17, 1
    %p77 = por %p75, %p76
    %p78 = scmp.ne.s32.totalorder %s69, %s70
    %p79 = scmp.eq.s32.totalorder %s17, 0
    %p80 = por %p78, %p79
    %p81 = scmp.ne.s32.totalorder %s69, %s70
    %p82 = scmp.eq.s32.totalorder %s18, 1
    %p83 = por %p81, %p82
    %p85 = scmp.ne.s32.totalorder %s70, %s84
    %p86 = scmp.eq.s32.totalorder %s18, 0
    %p87 = por %p85, %p86
    %s89 = sadd.s32 %s88, 1
    %p92 = scmp.eq.s32.totalorder %s12, 1
    %p93 = scmp.ne.s32.totalorder %s88, %s90
    %p94 = scmp.eq.s32.totalorder %s12, 0
    %p95 = por %p93, %p94
    %p96 = scmp.ne.s32.totalorder %s88, %s90
    %p97 = scmp.eq.s32.totalorder %s17, 1
    %p98 = por %p96, %p97
    %p99 = scmp.ne.s32.totalorder %s90, %s91
    %p100 = scmp.eq.s32.totalorder %s17, 0
    %p101 = por %p99, %p100
    %p102 = scmp.ne.s32.totalorder %s90, %s91
    %p103 = scmp.eq.s32.totalorder %s18, 1
    %p104 = por %p102, %p103
    %p106 = scmp.ne.s32.totalorder %s91, %s105
    %p107 = scmp.eq.s32.totalorder %s18, 0
    %p108 = por %p106, %p107
    %s110 = sadd.s32 %s109, 1
    %p113 = scmp.eq.s32.totalorder %s12, 1
    %p114 = scmp.ne.s32.totalorder %s109, %s111
    %p115 = scmp.eq.s32.totalorder %s12, 0
    %p116 = por %p114, %p115
    %p117 = scmp.ne.s32.totalorder %s109, %s111
    %p118 = scmp.eq.s32.totalorder %s17, 1
    %p119 = por %p117, %p118
    %p120 = scmp.ne.s32.totalorder %s111, %s112
    %p121 = scmp.eq.s32.totalorder %s17, 0
    %p122 = por %p120, %p121
    %p123 = scmp.ne.s32.totalorder %s111, %s112
    %p124 = scmp.eq.s32.totalorder %s18, 1
    %p125 = por %p123, %p124
    %p127 = scmp.ne.s32.totalorder %s112, %s126
    %p128 = scmp.eq.s32.totalorder %s18, 0
    %p129 = por %p127, %p128
    %s131 = sadd.s32 %s130, 1
    %p134 = scmp.eq.s32.totalorder %s12, 1
    %p135 = scmp.ne.s32.totalorder %s130, %s132
    %p136 = scmp.eq.s32.totalorder %s12, 0
    %p137 = por %p135, %p136
    %p138 = scmp.ne.s32.totalorder %s130, %s132
    %p139 = scmp.eq.s32.totalorder %s17, 1
    %p140 = por %p138, %p139
    %p141 = scmp.ne.s32.totalorder %s132, %s133
    %p142 = scmp.eq.s32.totalorder %s17, 0
    %p143 = por %p141, %p142
    %p144 = scmp.ne.s32.totalorder %s132, %s133
    %p145 = scmp.eq.s32.totalorder %s18, 1
    %p146 = por %p144, %p145
    %p148 = scmp.ne.s32.totalorder %s133, %s147
    %p149 = scmp.eq.s32.totalorder %s18, 0
    %p150 = por %p148, %p149
    %s151 = ssub.s32 %s12, %s19
    %p152 = scmp.eq.s32.totalorder %s151, 0
    %s154 = sadd.s32 %s153, 1
    %s155 = scalar_select %p152, %s153, %s154
    %p158 = pneg %p152
    %p159 = scmp.eq.s32.totalorder %s12, 1
    %p160 = por %p158, %p159
    %p161 = scmp.ne.s32.totalorder %s153, %s156
    %p162 = scmp.eq.s32.totalorder %s12, 0
    %p163 = por %p161, %p162
    %p164 = scmp.ne.s32.totalorder %s153, %s156
    %p165 = scmp.eq.s32.totalorder %s17, 1
    %p166 = por %p164, %p165
    %p167 = scmp.ne.s32.totalorder %s156, %s157
    %p168 = scmp.eq.s32.totalorder %s17, 0
    %p169 = por %p167, %p168
    %p170 = scmp.ne.s32.totalorder %s156, %s157
    %p171 = scmp.eq.s32.totalorder %s18, 1
    %p172 = por %p170, %p171
    %p174 = scmp.ne.s32.totalorder %s157, %s173
    %p175 = scmp.eq.s32.totalorder %s18, 0
    %p176 = por %p174, %p175
    %p177 = scmp.le.s32.totalorder 1, %s12
    %p178 = scmp.lt.s32.totalorder %s12, 3
    %p179 = pnand %p177, %p178
    %p180 = pneg %p179
    // Predicated region
    $region9: #{dual_dpa_block.2} parent=5 // pred_check
      _
    $region10: #{dual_dpa_block.2} parent=5 // pred_check_branch
      %182 = sbr.rel (%p179) target = $region12
    $region11: #{dual_dpa_block.2} parent=5 // pred_region
      %s183 = ssub.s32 %s12, 1
      // Predicated region
      $region13: #{dual_dpa_block.2} parent=11 // pred_check
        %p184 = pneg %p59
      $region14: #{dual_dpa_block.2} parent=11 // pred_check_branch
        %186 = sbr.rel (%p184) target = $region16
      $region15: #{dual_dpa_block.2} parent=11 // pred_region
        _
      $region16: #{dual_dpa_block.2} parent=11 // pred_fallthru
        _
      // Predicated region
      $region17: #{dual_dpa_block.2} parent=11 // pred_check
        %p187 = pneg %p80
      $region18: #{dual_dpa_block.2} parent=11 // pred_check_branch
        %189 = sbr.rel (%p187) target = $region20
      $region19: #{dual_dpa_block.2} parent=11 // pred_region
        _
      $region20: #{dual_dpa_block.2} parent=11 // pred_fallthru
        _
      // Predicated region
      $region21: #{dual_dpa_block.2} parent=11 // pred_check
        %p190 = pneg %p101
      $region22: #{dual_dpa_block.2} parent=11 // pred_check_branch
        %192 = sbr.rel (%p190) target = $region24
      $region23: #{dual_dpa_block.2} parent=11 // pred_region
        _
      $region24: #{dual_dpa_block.2} parent=11 // pred_fallthru
        _
      // Predicated region
      $region25: #{dual_dpa_block.2} parent=11 // pred_check
        %p193 = pneg %p122
      $region26: #{dual_dpa_block.2} parent=11 // pred_check_branch
        %195 = sbr.rel (%p193) target = $region28
      $region27: #{dual_dpa_block.2} parent=11 // pred_region
        _
      $region28: #{dual_dpa_block.2} parent=11 // pred_fallthru
        _
      // Predicated region
      $region29: #{dual_dpa_block.2} parent=11 // pred_check
        %p196 = pneg %p143
      $region30: #{dual_dpa_block.2} parent=11 // pred_check_branch
        %198 = sbr.rel (%p196) target = $region32
      $region31: #{dual_dpa_block.2} parent=11 // pred_region
        _
      $region32: #{dual_dpa_block.2} parent=11 // pred_fallthru
        _
    $region12: #{dual_dpa_block.2} parent=5 // pred_fallthru
      _
    %p199 = scmp.lt.s32.totalorder %s12, 2
    // Predicated region
    $region33: #{dual_dpa_block.2} parent=5 // pred_check
      %p200 = pneg %p199
    $region34: #{dual_dpa_block.2} parent=5 // pred_check_branch
      %202 = sbr.rel (%p200) target = $region36
    $region35: #{dual_dpa_block.2} parent=5 // pred_region
      // Predicated region
      $region37: #{dual_dpa_block.2} parent=35 // pred_check
        %p203 = pneg %p32
      $region38: #{dual_dpa_block.2} parent=35 // pred_check_branch
        %205 = sbr.rel (%p203) target = $region40
      $region39: #{dual_dpa_block.2} parent=35 // pred_region
        %p206 = scmp.lt.s32.totalorder %s12, 1
        %s207 = scalar_select %p206, %s12, 1
        %s208 = smul.addr %s207, 16
        %s209 = smul.addr %s208, 8
        %s210 = scalar_lea.vmem %s0, %s209
      $region40: #{dual_dpa_block.2} parent=35 // pred_fallthru
        _
    $region36: #{dual_dpa_block.2} parent=5 // pred_fallthru
      _
    %p211 = scmp.le.s32.totalorder 1, %s12
    %p212 = scmp.lt.s32.totalorder %s12, 3
    %p213 = pnand %p211, %p212
    %p214 = pneg %p213
    // Predicated region
    $region41: #{dual_dpa_block.2} parent=5 // pred_check
      _
    $region42: #{dual_dpa_block.2} parent=5 // pred_check_branch
      %216 = sbr.rel (%p213) target = $region44
    $region43: #{dual_dpa_block.2} parent=5 // pred_region
      %s217 = ssub.s32 %s12, 1
      %p218 = scmp.lt.s32.totalorder %s17, 1
      %s219 = scalar_select %p218, %s17, 1
      %s220 = smul.addr %s219, 16
      %s221 = smul.addr %s220, 8
      %s222 = scalar_lea.vmem %s0, %s221
      %p223 = pneg %p38
      %p224 = pneg %p35
      %p225 = pneg %p59
      %p226 = pneg %p56
      %p227 = pneg %p80
      %p228 = pneg %p77
      %p229 = pneg %p101
      %p230 = pneg %p98
      %p231 = pneg %p122
      %p232 = pneg %p119
      %p233 = pneg %p143
      %p234 = pneg %p140
      %p235 = pneg %p169
      %p236 = pneg %p166
      %p237 = scmp.lt.s32.totalorder %s17, 1
      %s238 = scalar_select %p237, %s17, 1
      %s239 = smul.addr %s238, 16
      %s240 = smul.addr %s239, 8
      %s241 = scalar_lea.vmem %s6, %s240
      %p242 = scmp.lt.s32.totalorder %s17, 1
      %s243 = scalar_select %p242, %s17, 1
      %s244 = smul.addr %s243, 16
      %s245 = smul.addr %s244, 8
      %s246 = scalar_lea.vmem %s0, %s245
      %p247 = scmp.lt.s32.totalorder %s17, 1
      %s248 = scalar_select %p247, %s17, 1
      %s249 = smul.addr %s248, 16
      %s250 = smul.addr %s249, 8
      %s251 = scalar_lea.vmem %s6, %s250
      %v252 = vld [vmem:[%s246] sm:$0xff]
      %v253 = vld [vmem:[%s246 + $0x8] sm:$0xff]
      %v254 = vld [vmem:[%s246 + $0x10] sm:$0xff]
      %v255 = vld [vmem:[%s246 + $0x18] sm:$0xff]
      %v256 = vld [vmem:[%s246 + $0x20] sm:$0xff]
      %v257 = vld [vmem:[%s246 + $0x28] sm:$0xff]
      %v258 = vld [vmem:[%s246 + $0x30] sm:$0xff]
      %v259 = vld [vmem:[%s246 + $0x38] sm:$0xff]
      %v260 = vld [vmem:[%s246 + $0x40] sm:$0xff]
      %v261 = vld [vmem:[%s246 + $0x48] sm:$0xff]
      %v262 = vld [vmem:[%s246 + $0x50] sm:$0xff]
      %v263 = vld [vmem:[%s246 + $0x58] sm:$0xff]
      %v264 = vld [vmem:[%s246 + $0x60] sm:$0xff]
      %v265 = vld [vmem:[%s246 + $0x68] sm:$0xff]
      %v266 = vld [vmem:[%s246 + $0x70] sm:$0xff]
      %v267 = vld [vmem:[%s246 + $0x78] sm:$0xff]
      %v268 = vld [vmem:[%s5] sm:$0xff]
      %v269 = vld [vmem:[%s5 + $0x8] sm:$0x3]
      %v270 = vld [vmem:[%s1] sm:$0xff]
      %v271 = vld [vmem:[%s1 + $0x8] sm:$0xff]
      %v272 = vld [vmem:[%s1 + $0x10] sm:$0xff]
      %v273 = vld [vmem:[%s1 + $0x18] sm:$0xff]
      %v274 = vlaneseq
      %v275 = vshrl.u32 %v274, 7
      %v276 = vsub.s32 0, %v275
      %v277 = vrot.slane %v268, %v276
      %vm278 = vcmask 261120
      %v280 = vsel %vm278, %v252, 0
      %v283 = vsel %vm278, %v253, 0
      %v286 = vsel %vm278, %v254, 0
      %v289 = vsel %vm278, %v255, 0
      %v292 = vsel %vm278, %v256, 0
      %v295 = vsel %vm278, %v257, 0
      %v298 = vsel %vm278, %v258, 0
      %v301 = vsel %vm278, %v259, 0
      %v304 = vsel %vm278, %v260, 0
      %v307 = vsel %vm278, %v261, 0
      %v310 = vsel %vm278, %v262, 0
      %v313 = vsel %vm278, %v263, 0
      %v316 = vsel %vm278, %v264, 0
      %v319 = vsel %vm278, %v265, 0
      %v322 = vsel %vm278, %v266, 0
      %v325 = vsel %vm278, %v267, 0
      %327 = vmatprep.subr.mxu0 0.0
      %328 = vmatpush1.msra.mxu0 %v270
      %329 = vmatprep.subr.mxu0 0.0
      %330 = vmatpush1.msra.mxu0 %v271
      %331 = vmatprep.subr.mxu0 0.0
      %332 = vmatpush1.msra.mxu0 %v272
      %333 = vmatprep.subr.mxu0 0.0
      %334 = vmatpush1.msra.mxu0 %v273
      %335 = vmatprep.subr.mxu0 0.0
      %336 = vmatpush1.msra.mxu0 0.0
      %337 = vmatprep.subr.mxu0 0.0
      %338 = vmatpush1.msra.mxu0 0.0
      %339 = vmatprep.subr.mxu0 0.0
      %340 = vmatpush1.msra.mxu0 0.0
      %341 = vmatprep.subr.mxu0 0.0
      %342 = vmatpush1.msra.mxu0 0.0
      %343 = vmatprep.subr.mxu0 0.0
      %344 = vmatpush1.msra.mxu0 0.0
      %345 = vmatprep.subr.mxu0 0.0
      %346 = vmatpush1.msra.mxu0 0.0
      %347 = vmatprep.subr.mxu0 0.0
      %348 = vmatpush1.msra.mxu0 0.0
      %349 = vmatprep.subr.mxu0 0.0
      %350 = vmatpush1.msra.mxu0 0.0
      %351 = vmatprep.subr.mxu0 0.0
      %352 = vmatpush1.msra.mxu0 0.0
      %353 = vmatprep.subr.mxu0 0.0
      %354 = vmatpush1.msra.mxu0 0.0
      %355 = vmatprep.subr.mxu0 0.0
      %356 = vmatpush1.msra.mxu0 0.0
      %357 = vmatprep.subr.mxu0 0.0
      %358 = vmatpush1.msra.mxu0 0.0
      %359 = vmatprep.subr.mxu0 0.0
      %360 = vmatpush1.msra.mxu0 0.0
      %361 = vmatprep.subr.mxu0 0.0
      %362 = vmatpush1.msra.mxu0 0.0
      %363 = vmatprep.subr.mxu0 0.0
      %364 = vmatpush1.msra.mxu0 0.0
      %365 = vmatprep.subr.mxu0 0.0
      %366 = vmatpush1.msra.mxu0 0.0
      %367 = vmatprep.subr.mxu0 0.0
      %368 = vmatpush1.msra.mxu0 0.0
      %369 = vmatprep.subr.mxu0 0.0
      %370 = vmatpush1.msra.mxu0 0.0
      %371 = vmatprep.subr.mxu0 0.0
      %372 = vmatpush1.msra.mxu0 0.0
      %373 = vmatprep.subr.mxu0 0.0
      %374 = vmatpush1.msra.mxu0 0.0
      %375 = vmatprep.subr.mxu0 0.0
      %376 = vmatpush1.msra.mxu0 0.0
      %377 = vmatprep.subr.mxu0 0.0
      %378 = vmatpush1.msra.mxu0 0.0
      %379 = vmatprep.subr.mxu0 0.0
      %380 = vmatpush1.msra.mxu0 0.0
      %381 = vmatprep.subr.mxu0 0.0
      %382 = vmatpush1.msra.mxu0 0.0
      %383 = vmatprep.subr.mxu0 0.0
      %384 = vmatpush1.msra.mxu0 0.0
      %385 = vmatprep.subr.mxu0 0.0
      %386 = vmatpush1.msra.mxu0 0.0
      %387 = vmatprep.subr.mxu0 0.0
      %388 = vmatpush1.msra.mxu0 0.0
      %389 = vmatprep.subr.mxu0 0.0
      %390 = vmatpush1.msra.mxu0 0.0
      %391 = vmatprep.mubr.f32.mxu0 0.0
      %392 = vmatmul.mubr.f32.gmra.mrb[0].mxu0 %v280
      %v393 = vpop.f32.mrb[0].mxu0
      %v394 = vadd.f32 %v277, %v393
      %v395 = vpop.f32.mrb[0].mxu0
      %396 = vmatprep.mubr.f32.mxu0 0.0
      %397 = vmatmul.mubr.f32.gmra.mrb[0].mxu0 %v283
      %v398 = vpop.f32.mrb[0].mxu0
      %v399 = vadd.f32 %v277, %v398
      %v400 = vpop.f32.mrb[0].mxu0
      %401 = vmatprep.mubr.f32.mxu0 0.0
      %402 = vmatmul.mubr.f32.gmra.mrb[0].mxu0 %v286
      %v403 = vpop.f32.mrb[0].mxu0
      %v404 = vadd.f32 %v277, %v403
      %v405 = vpop.f32.mrb[0].mxu0
      %406 = vmatprep.mubr.f32.mxu0 0.0
      %407 = vmatmul.mubr.f32.gmra.mrb[0].mxu0 %v289
      %v408 = vpop.f32.mrb[0].mxu0
      %v409 = vadd.f32 %v277, %v408
      %v410 = vpop.f32.mrb[0].mxu0
      %411 = vmatprep.mubr.f32.mxu0 0.0
      %412 = vmatmul.mubr.f32.gmra.mrb[0].mxu0 %v292
      %v413 = vpop.f32.mrb[0].mxu0
      %v414 = vadd.f32 %v277, %v413
      %v415 = vpop.f32.mrb[0].mxu0
      %416 = vmatprep.mubr.f32.mxu0 0.0
      %417 = vmatmul.mubr.f32.gmra.mrb[0].mxu0 %v295
      %v418 = vpop.f32.mrb[0].mxu0
      %v419 = vadd.f32 %v277, %v418
      %v420 = vpop.f32.mrb[0].mxu0
      %421 = vmatprep.mubr.f32.mxu0 0.0
      %422 = vmatmul.mubr.f32.gmra.mrb[0].mxu0 %v298
      %v423 = vpop.f32.mrb[0].mxu0
      %v424 = vadd.f32 %v277, %v423
      %v425 = vpop.f32.mrb[0].mxu0
      %426 = vmatprep.mubr.f32.mxu0 0.0
      %427 = vmatmul.mubr.f32.gmra.mrb[0].mxu0 %v301
      %v428 = vpop.f32.mrb[0].mxu0
      %v429 = vadd.f32 %v277, %v428
      %v430 = vpop.f32.mrb[0].mxu0
      %431 = vmatprep.mubr.f32.mxu0 0.0
      %432 = vmatmul.mubr.f32.gmra.mrb[0].mxu0 %v304
      %v433 = vpop.f32.mrb[0].mxu0
      %v434 = vadd.f32 %v277, %v433
      %v435 = vpop.f32.mrb[0].mxu0
      %436 = vmatprep.mubr.f32.mxu0 0.0
      %437 = vmatmul.mubr.f32.gmra.mrb[0].mxu0 %v307
      %v438 = vpop.f32.mrb[0].mxu0
      %v439 = vadd.f32 %v277, %v438
      %v440 = vpop.f32.mrb[0].mxu0
      %441 = vmatprep.mubr.f32.mxu0 0.0
      %442 = vmatmul.mubr.f32.gmra.mrb[0].mxu0 %v310
      %v443 = vpop.f32.mrb[0].mxu0
      %v444 = vadd.f32 %v277, %v443
      %v445 = vpop.f32.mrb[0].mxu0
      %446 = vmatprep.mubr.f32.mxu0 0.0
      %447 = vmatmul.mubr.f32.gmra.mrb[0].mxu0 %v313
      %v448 = vpop.f32.mrb[0].mxu0
      %v449 = vadd.f32 %v277, %v448
      %v450 = vpop.f32.mrb[0].mxu0
      %451 = vmatprep.mubr.f32.mxu0 0.0
      %452 = vmatmul.mubr.f32.gmra.mrb[0].mxu0 %v316
      %v453 = vpop.f32.mrb[0].mxu0
      %v454 = vadd.f32 %v277, %v453
      %v455 = vpop.f32.mrb[0].mxu0
      %456 = vmatprep.mubr.f32.mxu0 0.0
      %457 = vmatmul.mubr.f32.gmra.mrb[0].mxu0 %v319
      %v458 = vpop.f32.mrb[0].mxu0
      %v459 = vadd.f32 %v277, %v458
      %v460 = vpop.f32.mrb[0].mxu0
      %461 = vmatprep.mubr.f32.mxu0 0.0
      %462 = vmatmul.mubr.f32.gmra.mrb[0].mxu0 %v322
      %v463 = vpop.f32.mrb[0].mxu0
      %v464 = vadd.f32 %v277, %v463
      %v465 = vpop.f32.mrb[0].mxu0
      %466 = vmatprep.mubr.f32.mxu0 0.0
      %467 = vmatmul.mubr.f32.gmra.mrb[0].mxu0 %v325
      %v468 = vpop.f32.mrb[0].mxu0
      %v469 = vadd.f32 %v277, %v468
      %v470 = vpop.f32.mrb[0].mxu0
      %471 = vdwg.mxu0
      %474 = vrot.lane.b32.xlu0 %v394, 96
      %v475 = vpop.permute.xlu0 %474
      %476 = vrot.lane.b32.xlu0 %v399, 96
      %v477 = vpop.permute.xlu0 %476
      %v478 = vsel %vm278, %v394, 0
      %v480 = vsel %vm278, %v399, 0
      %v482 = vsel %vm278, %v475, 0
      %v484 = vsel %vm278, %v477, 0
      %486 = vmatprep.subr.mxu0 0.0
      %487 = vmatpush1.xpose.msra.mxu0 %v482
      %488 = vmatprep.subr.mxu0 0.0
      %489 = vmatpush1.xpose.msra.mxu0 %v484
      %490 = vmatprep.subr.mxu0 0.0
      %491 = vmatpush1.xpose.msra.mxu0 0.0
      %492 = vmatprep.subr.mxu0 0.0
      %493 = vmatpush1.xpose.msra.mxu0 0.0
      %494 = vmatprep.subr.mxu0 0.0
      %495 = vmatpush1.xpose.msra.mxu0 0.0
      %496 = vmatprep.subr.mxu0 0.0
      %497 = vmatpush1.xpose.msra.mxu0 0.0
      %498 = vmatprep.subr.mxu0 0.0
      %499 = vmatpush1.xpose.msra.mxu0 0.0
      %500 = vmatprep.subr.mxu0 0.0
      %501 = vmatpush1.xpose.msra.mxu0 0.0
      %502 = vmatprep.subr.mxu0 0.0
      %503 = vmatpush1.xpose.msra.mxu0 0.0
      %504 = vmatprep.subr.mxu0 0.0
      %505 = vmatpush1.xpose.msra.mxu0 0.0
      %506 = vmatprep.subr.mxu0 0.0
      %507 = vmatpush1.xpose.msra.mxu0 0.0
      %508 = vmatprep.subr.mxu0 0.0
      %509 = vmatpush1.xpose.msra.mxu0 0.0
      %510 = vmatprep.subr.mxu0 0.0
      %511 = vmatpush1.xpose.msra.mxu0 0.0
      %512 = vmatprep.subr.mxu0 0.0
      %513 = vmatpush1.xpose.msra.mxu0 0.0
      %514 = vmatprep.subr.mxu0 0.0
      %515 = vmatpush1.xpose.msra.mxu0 0.0
      %516 = vmatprep.subr.mxu0 0.0
      %517 = vmatpush1.xpose.msra.mxu0 0.0
      %518 = vmatprep.subr.mxu0 0.0
      %519 = vmatpush1.xpose.msra.mxu0 0.0
      %520 = vmatprep.subr.mxu0 0.0
      %521 = vmatpush1.xpose.msra.mxu0 0.0
      %522 = vmatprep.subr.mxu0 0.0
      %523 = vmatpush1.xpose.msra.mxu0 0.0
      %524 = vmatprep.subr.mxu0 0.0
      %525 = vmatpush1.xpose.msra.mxu0 0.0
      %526 = vmatprep.subr.mxu0 0.0
      %527 = vmatpush1.xpose.msra.mxu0 0.0
      %528 = vmatprep.subr.mxu0 0.0
      %529 = vmatpush1.xpose.msra.mxu0 0.0
      %530 = vmatprep.subr.mxu0 0.0
      %531 = vmatpush1.xpose.msra.mxu0 0.0
      %532 = vmatprep.subr.mxu0 0.0
      %533 = vmatpush1.xpose.msra.mxu0 0.0
      %534 = vmatprep.subr.mxu0 0.0
      %535 = vmatpush1.xpose.msra.mxu0 0.0
      %536 = vmatprep.subr.mxu0 0.0
      %537 = vmatpush1.xpose.msra.mxu0 0.0
      %538 = vmatprep.subr.mxu0 0.0
      %539 = vmatpush1.xpose.msra.mxu0 0.0
      %540 = vmatprep.subr.mxu0 0.0
      %541 = vmatpush1.xpose.msra.mxu0 0.0
      %542 = vmatprep.subr.mxu0 0.0
      %543 = vmatpush1.xpose.msra.mxu0 0.0
      %544 = vmatprep.subr.mxu0 0.0
      %545 = vmatpush1.xpose.msra.mxu0 0.0
      %546 = vmatprep.subr.mxu0 0.0
      %547 = vmatpush1.xpose.msra.mxu0 0.0
      %548 = vmatprep.subr.mxu0 0.0
      %549 = vmatpush1.xpose.msra.mxu0 0.0
      %550 = vmatprep.mubr.f32.mxu0 0.0
      %551 = vmatmul.mubr.f32.gmra.mrb[0].mxu0 %v478
      %v552 = vpop.f32.mrb[0].mxu0
      %v553 = vadd.f32 0.0, %v552
      %v554 = vpop.f32.mrb[0].mxu0
      %555 = vmatprep.mubr.f32.mxu0 0.0
      %556 = vmatmul.mubr.f32.gmra.mrb[0].mxu0 %v480
      %v557 = vpop.f32.mrb[0].mxu0
      %v558 = vadd.f32 0.0, %v557
      %v559 = vpop.f32.mrb[0].mxu0
      %560 = vdwg.mxu0
      %563 = vrot.lane.b32.xlu0 %v404, 96
      %v564 = vpop.permute.xlu0 %563
      %565 = vrot.lane.b32.xlu0 %v409, 96
      %v566 = vpop.permute.xlu0 %565
      %v567 = vsel %vm278, %v404, 0
      %v569 = vsel %vm278, %v409, 0
      %v571 = vsel %vm278, %v564, 0
      %v573 = vsel %vm278, %v566, 0
      %575 = vmatprep.subr.mxu0 0.0
      %576 = vmatpush1.xpose.msra.mxu0 %v571
      %577 = vmatprep.subr.mxu0 0.0
      %578 = vmatpush1.xpose.msra.mxu0 %v573
      %579 = vmatprep.subr.mxu0 0.0
      %580 = vmatpush1.xpose.msra.mxu0 0.0
      %581 = vmatprep.subr.mxu0 0.0
      %582 = vmatpush1.xpose.msra.mxu0 0.0
      %583 = vmatprep.subr.mxu0 0.0
      %584 = vmatpush1.xpose.msra.mxu0 0.0
      %585 = vmatprep.subr.mxu0 0.0
      %586 = vmatpush1.xpose.msra.mxu0 0.0
      %587 = vmatprep.subr.mxu0 0.0
      %588 = vmatpush1.xpose.msra.mxu0 0.0
      %589 = vmatprep.subr.mxu0 0.0
      %590 = vmatpush1.xpose.msra.mxu0 0.0
      %591 = vmatprep.subr.mxu0 0.0
      %592 = vmatpush1.xpose.msra.mxu0 0.0
      %593 = vmatprep.subr.mxu0 0.0
      %594 = vmatpush1.xpose.msra.mxu0 0.0
      %595 = vmatprep.subr.mxu0 0.0
      %596 = vmatpush1.xpose.msra.mxu0 0.0
      %597 = vmatprep.subr.mxu0 0.0
      %598 = vmatpush1.xpose.msra.mxu0 0.0
      %599 = vmatprep.subr.mxu0 0.0
      %600 = vmatpush1.xpose.msra.mxu0 0.0
      %601 = vmatprep.subr.mxu0 0.0
      %602 = vmatpush1.xpose.msra.mxu0 0.0
      %603 = vmatprep.subr.mxu0 0.0
      %604 = vmatpush1.xpose.msra.mxu0 0.0
      %605 = vmatprep.subr.mxu0 0.0
      %606 = vmatpush1.xpose.msra.mxu0 0.0
      %607 = vmatprep.subr.mxu0 0.0
      %608 = vmatpush1.xpose.msra.mxu0 0.0
      %609 = vmatprep.subr.mxu0 0.0
      %610 = vmatpush1.xpose.msra.mxu0 0.0
      %611 = vmatprep.subr.mxu0 0.0
      %612 = vmatpush1.xpose.msra.mxu0 0.0
      %613 = vmatprep.subr.mxu0 0.0
      %614 = vmatpush1.xpose.msra.mxu0 0.0
      %615 = vmatprep.subr.mxu0 0.0
      %616 = vmatpush1.xpose.msra.mxu0 0.0
      %617 = vmatprep.subr.mxu0 0.0
      %618 = vmatpush1.xpose.msra.mxu0 0.0
      %619 = vmatprep.subr.mxu0 0.0
      %620 = vmatpush1.xpose.msra.mxu0 0.0
      %621 = vmatprep.subr.mxu0 0.0
      %622 = vmatpush1.xpose.msra.mxu0 0.0
      %623 = vmatprep.subr.mxu0 0.0
      %624 = vmatpush1.xpose.msra.mxu0 0.0
      %625 = vmatprep.subr.mxu0 0.0
      %626 = vmatpush1.xpose.msra.mxu0 0.0
      %627 = vmatprep.subr.mxu0 0.0
      %628 = vmatpush1.xpose.msra.mxu0 0.0
      %629 = vmatprep.subr.mxu0 0.0
      %630 = vmatpush1.xpose.msra.mxu0 0.0
      %631 = vmatprep.subr.mxu0 0.0
      %632 = vmatpush1.xpose.msra.mxu0 0.0
      %633 = vmatprep.subr.mxu0 0.0
      %634 = vmatpush1.xpose.msra.mxu0 0.0
      %635 = vmatprep.subr.mxu0 0.0
      %636 = vmatpush1.xpose.msra.mxu0 0.0
      %637 = vmatprep.subr.mxu0 0.0
      %638 = vmatpush1.xpose.msra.mxu0 0.0
      %639 = vmatprep.mubr.f32.mxu0 0.0
      %640 = vmatmul.mubr.f32.gmra.mrb[0].mxu0 %v567
      %v641 = vpop.f32.mrb[0].mxu0
      %v642 = vadd.f32 0.0, %v641
      %v643 = vpop.f32.mrb[0].mxu0
      %644 = vmatprep.mubr.f32.mxu0 0.0
      %645 = vmatmul.mubr.f32.gmra.mrb[0].mxu0 %v569
      %v646 = vpop.f32.mrb[0].mxu0
      %v647 = vadd.f32 0.0, %v646
      %v648 = vpop.f32.mrb[0].mxu0
      %649 = vdwg.mxu0
      %652 = vrot.lane.b32.xlu0 %v414, 96
      %v653 = vpop.permute.xlu0 %652
      %654 = vrot.lane.b32.xlu0 %v419, 96
      %v655 = vpop.permute.xlu0 %654
      %v656 = vsel %vm278, %v414, 0
      %v658 = vsel %vm278, %v419, 0
      %v660 = vsel %vm278, %v653, 0
      %v662 = vsel %vm278, %v655, 0
      %664 = vmatprep.subr.mxu0 0.0
      %665 = vmatpush1.xpose.msra.mxu0 %v660
      %666 = vmatprep.subr.mxu0 0.0
      %667 = vmatpush1.xpose.msra.mxu0 %v662
      %668 = vmatprep.subr.mxu0 0.0
      %669 = vmatpush1.xpose.msra.mxu0 0.0
      %670 = vmatprep.subr.mxu0 0.0
      %671 = vmatpush1.xpose.msra.mxu0 0.0
      %672 = vmatprep.subr.mxu0 0.0
      %673 = vmatpush1.xpose.msra.mxu0 0.0
      %674 = vmatprep.subr.mxu0 0.0
      %675 = vmatpush1.xpose.msra.mxu0 0.0
      %676 = vmatprep.subr.mxu0 0.0
      %677 = vmatpush1.xpose.msra.mxu0 0.0
      %678 = vmatprep.subr.mxu0 0.0
      %679 = vmatpush1.xpose.msra.mxu0 0.0
      %680 = vmatprep.subr.mxu0 0.0
      %681 = vmatpush1.xpose.msra.mxu0 0.0
      %682 = vmatprep.subr.mxu0 0.0
      %683 = vmatpush1.xpose.msra.mxu0 0.0
      %684 = vmatprep.subr.mxu0 0.0
      %685 = vmatpush1.xpose.msra.mxu0 0.0
      %686 = vmatprep.subr.mxu0 0.0
      %687 = vmatpush1.xpose.msra.mxu0 0.0
      %688 = vmatprep.subr.mxu0 0.0
      %689 = vmatpush1.xpose.msra.mxu0 0.0
      %690 = vmatprep.subr.mxu0 0.0
      %691 = vmatpush1.xpose.msra.mxu0 0.0
      %692 = vmatprep.subr.mxu0 0.0
      %693 = vmatpush1.xpose.msra.mxu0 0.0
      %694 = vmatprep.subr.mxu0 0.0
      %695 = vmatpush1.xpose.msra.mxu0 0.0
      %696 = vmatprep.subr.mxu0 0.0
      %697 = vmatpush1.xpose.msra.mxu0 0.0
      %698 = vmatprep.subr.mxu0 0.0
      %699 = vmatpush1.xpose.msra.mxu0 0.0
      %700 = vmatprep.subr.mxu0 0.0
      %701 = vmatpush1.xpose.msra.mxu0 0.0
      %702 = vmatprep.subr.mxu0 0.0
      %703 = vmatpush1.xpose.msra.mxu0 0.0
      %704 = vmatprep.subr.mxu0 0.0
      %705 = vmatpush1.xpose.msra.mxu0 0.0
      %706 = vmatprep.subr.mxu0 0.0
      %707 = vmatpush1.xpose.msra.mxu0 0.0
      %708 = vmatprep.subr.mxu0 0.0
      %709 = vmatpush1.xpose.msra.mxu0 0.0
      %710 = vmatprep.subr.mxu0 0.0
      %711 = vmatpush1.xpose.msra.mxu0 0.0
      %712 = vmatprep.subr.mxu0 0.0
      %713 = vmatpush1.xpose.msra.mxu0 0.0
      %714 = vmatprep.subr.mxu0 0.0
      %715 = vmatpush1.xpose.msra.mxu0 0.0
      %716 = vmatprep.subr.mxu0 0.0
      %717 = vmatpush1.xpose.msra.mxu0 0.0
      %718 = vmatprep.subr.mxu0 0.0
      %719 = vmatpush1.xpose.msra.mxu0 0.0
      %720 = vmatprep.subr.mxu0 0.0
      %721 = vmatpush1.xpose.msra.mxu0 0.0
      %722 = vmatprep.subr.mxu0 0.0
      %723 = vmatpush1.xpose.msra.mxu0 0.0
      %724 = vmatprep.subr.mxu0 0.0
      %725 = vmatpush1.xpose.msra.mxu0 0.0
      %726 = vmatprep.subr.mxu0 0.0
      %727 = vmatpush1.xpose.msra.mxu0 0.0
      %728 = vmatprep.mubr.f32.mxu0 0.0
      %729 = vmatmul.mubr.f32.gmra.mrb[0].mxu0 %v656
      %v730 = vpop.f32.mrb[0].mxu0
      %v731 = vadd.f32 0.0, %v730
      %v732 = vpop.f32.mrb[0].mxu0
      %733 = vmatprep.mubr.f32.mxu0 0.0
      %734 = vmatmul.mubr.f32.gmra.mrb[0].mxu0 %v658
      %v735 = vpop.f32.mrb[0].mxu0
      %v736 = vadd.f32 0.0, %v735
      %v737 = vpop.f32.mrb[0].mxu0
      %738 = vdwg.mxu0
      %741 = vrot.lane.b32.xlu0 %v424, 96
      %v742 = vpop.permute.xlu0 %741
      %743 = vrot.lane.b32.xlu0 %v429, 96
      %v744 = vpop.permute.xlu0 %743
      %v745 = vsel %vm278, %v424, 0
      %v747 = vsel %vm278, %v429, 0
      %v749 = vsel %vm278, %v742, 0
      %v751 = vsel %vm278, %v744, 0
      %753 = vmatprep.subr.mxu0 0.0
      %754 = vmatpush1.xpose.msra.mxu0 %v749
      %755 = vmatprep.subr.mxu0 0.0
      %756 = vmatpush1.xpose.msra.mxu0 %v751
      %757 = vmatprep.subr.mxu0 0.0
      %758 = vmatpush1.xpose.msra.mxu0 0.0
      %759 = vmatprep.subr.mxu0 0.0
      %760 = vmatpush1.xpose.msra.mxu0 0.0
      %761 = vmatprep.subr.mxu0 0.0
      %762 = vmatpush1.xpose.msra.mxu0 0.0
      %763 = vmatprep.subr.mxu0 0.0
      %764 = vmatpush1.xpose.msra.mxu0 0.0
      %765 = vmatprep.subr.mxu0 0.0
      %766 = vmatpush1.xpose.msra.mxu0 0.0
      %767 = vmatprep.subr.mxu0 0.0
      %768 = vmatpush1.xpose.msra.mxu0 0.0
      %769 = vmatprep.subr.mxu0 0.0
      %770 = vmatpush1.xpose.msra.mxu0 0.0
      %771 = vmatprep.subr.mxu0 0.0
      %772 = vmatpush1.xpose.msra.mxu0 0.0
      %773 = vmatprep.subr.mxu0 0.0
      %774 = vmatpush1.xpose.msra.mxu0 0.0
      %775 = vmatprep.subr.mxu0 0.0
      %776 = vmatpush1.xpose.msra.mxu0 0.0
      %777 = vmatprep.subr.mxu0 0.0
      %778 = vmatpush1.xpose.msra.mxu0 0.0
      %779 = vmatprep.subr.mxu0 0.0
      %780 = vmatpush1.xpose.msra.mxu0 0.0
      %781 = vmatprep.subr.mxu0 0.0
      %782 = vmatpush1.xpose.msra.mxu0 0.0
      %783 = vmatprep.subr.mxu0 0.0
      %784 = vmatpush1.xpose.msra.mxu0 0.0
      %785 = vmatprep.subr.mxu0 0.0
      %786 = vmatpush1.xpose.msra.mxu0 0.0
      %787 = vmatprep.subr.mxu0 0.0
      %788 = vmatpush1.xpose.msra.mxu0 0.0
      %789 = vmatprep.subr.mxu0 0.0
      %790 = vmatpush1.xpose.msra.mxu0 0.0
      %791 = vmatprep.subr.mxu0 0.0
      %792 = vmatpush1.xpose.msra.mxu0 0.0
      %793 = vmatprep.subr.mxu0 0.0
      %794 = vmatpush1.xpose.msra.mxu0 0.0
      %795 = vmatprep.subr.mxu0 0.0
      %796 = vmatpush1.xpose.msra.mxu0 0.0
      %797 = vmatprep.subr.mxu0 0.0
      %798 = vmatpush1.xpose.msra.mxu0 0.0
      %799 = vmatprep.subr.mxu0 0.0
      %800 = vmatpush1.xpose.msra.mxu0 0.0
      %801 = vmatprep.subr.mxu0 0.0
      %802 = vmatpush1.xpose.msra.mxu0 0.0
      %803 = vmatprep.subr.mxu0 0.0
      %804 = vmatpush1.xpose.msra.mxu0 0.0
      %805 = vmatprep.subr.mxu0 0.0
      %806 = vmatpush1.xpose.msra.mxu0 0.0
      %807 = vmatprep.subr.mxu0 0.0
      %808 = vmatpush1.xpose.msra.mxu0 0.0
      %809 = vmatprep.subr.mxu0 0.0
      %810 = vmatpush1.xpose.msra.mxu0 0.0
      %811 = vmatprep.subr.mxu0 0.0
      %812 = vmatpush1.xpose.msra.mxu0 0.0
      %813 = vmatprep.subr.mxu0 0.0
      %814 = vmatpush1.xpose.msra.mxu0 0.0
      %815 = vmatprep.subr.mxu0 0.0
      %816 = vmatpush1.xpose.msra.mxu0 0.0
      %817 = vmatprep.mubr.f32.mxu0 0.0
      %818 = vmatmul.mubr.f32.gmra.mrb[0].mxu0 %v745
      %v819 = vpop.f32.mrb[0].mxu0
      %v820 = vadd.f32 0.0, %v819
      %v821 = vpop.f32.mrb[0].mxu0
      %822 = vmatprep.mubr.f32.mxu0 0.0
      %823 = vmatmul.mubr.f32.gmra.mrb[0].mxu0 %v747
      %v824 = vpop.f32.mrb[0].mxu0
      %v825 = vadd.f32 0.0, %v824
      %v826 = vpop.f32.mrb[0].mxu0
      %827 = vdwg.mxu0
      %830 = vrot.lane.b32.xlu0 %v434, 96
      %v831 = vpop.permute.xlu0 %830
      %832 = vrot.lane.b32.xlu0 %v439, 96
      %v833 = vpop.permute.xlu0 %832
      %v834 = vsel %vm278, %v434, 0
      %v836 = vsel %vm278, %v439, 0
      %v838 = vsel %vm278, %v831, 0
      %v840 = vsel %vm278, %v833, 0
      %842 = vmatprep.subr.mxu0 0.0
      %843 = vmatpush1.xpose.msra.mxu0 %v838
      %844 = vmatprep.subr.mxu0 0.0
      %845 = vmatpush1.xpose.msra.mxu0 %v840
      %846 = vmatprep.subr.mxu0 0.0
      %847 = vmatpush1.xpose.msra.mxu0 0.0
      %848 = vmatprep.subr.mxu0 0.0
      %849 = vmatpush1.xpose.msra.mxu0 0.0
      %850 = vmatprep.subr.mxu0 0.0
      %851 = vmatpush1.xpose.msra.mxu0 0.0
      %852 = vmatprep.subr.mxu0 0.0
      %853 = vmatpush1.xpose.msra.mxu0 0.0
      %854 = vmatprep.subr.mxu0 0.0
      %855 = vmatpush1.xpose.msra.mxu0 0.0
      %856 = vmatprep.subr.mxu0 0.0
      %857 = vmatpush1.xpose.msra.mxu0 0.0
      %858 = vmatprep.subr.mxu0 0.0
      %859 = vmatpush1.xpose.msra.mxu0 0.0
      %860 = vmatprep.subr.mxu0 0.0
      %861 = vmatpush1.xpose.msra.mxu0 0.0
      %862 = vmatprep.subr.mxu0 0.0
      %863 = vmatpush1.xpose.msra.mxu0 0.0
      %864 = vmatprep.subr.mxu0 0.0
      %865 = vmatpush1.xpose.msra.mxu0 0.0
      %866 = vmatprep.subr.mxu0 0.0
      %867 = vmatpush1.xpose.msra.mxu0 0.0
      %868 = vmatprep.subr.mxu0 0.0
      %869 = vmatpush1.xpose.msra.mxu0 0.0
      %870 = vmatprep.subr.mxu0 0.0
      %871 = vmatpush1.xpose.msra.mxu0 0.0
      %872 = vmatprep.subr.mxu0 0.0
      %873 = vmatpush1.xpose.msra.mxu0 0.0
      %874 = vmatprep.subr.mxu0 0.0
      %875 = vmatpush1.xpose.msra.mxu0 0.0
      %876 = vmatprep.subr.mxu0 0.0
      %877 = vmatpush1.xpose.msra.mxu0 0.0
      %878 = vmatprep.subr.mxu0 0.0
      %879 = vmatpush1.xpose.msra.mxu0 0.0
      %880 = vmatprep.subr.mxu0 0.0
      %881 = vmatpush1.xpose.msra.mxu0 0.0
      %882 = vmatprep.subr.mxu0 0.0
      %883 = vmatpush1.xpose.msra.mxu0 0.0
      %884 = vmatprep.subr.mxu0 0.0
      %885 = vmatpush1.xpose.msra.mxu0 0.0
      %886 = vmatprep.subr.mxu0 0.0
      %887 = vmatpush1.xpose.msra.mxu0 0.0
      %888 = vmatprep.subr.mxu0 0.0
      %889 = vmatpush1.xpose.msra.mxu0 0.0
      %890 = vmatprep.subr.mxu0 0.0
      %891 = vmatpush1.xpose.msra.mxu0 0.0
      %892 = vmatprep.subr.mxu0 0.0
      %893 = vmatpush1.xpose.msra.mxu0 0.0
      %894 = vmatprep.subr.mxu0 0.0
      %895 = vmatpush1.xpose.msra.mxu0 0.0
      %896 = vmatprep.subr.mxu0 0.0
      %897 = vmatpush1.xpose.msra.mxu0 0.0
      %898 = vmatprep.subr.mxu0 0.0
      %899 = vmatpush1.xpose.msra.mxu0 0.0
      %900 = vmatprep.subr.mxu0 0.0
      %901 = vmatpush1.xpose.msra.mxu0 0.0
      %902 = vmatprep.subr.mxu0 0.0
      %903 = vmatpush1.xpose.msra.mxu0 0.0
      %904 = vmatprep.subr.mxu0 0.0
      %905 = vmatpush1.xpose.msra.mxu0 0.0
      %906 = vmatprep.mubr.f32.mxu0 0.0
      %907 = vmatmul.mubr.f32.gmra.mrb[0].mxu0 %v834
      %v908 = vpop.f32.mrb[0].mxu0
      %v909 = vadd.f32 0.0, %v908
      %v910 = vpop.f32.mrb[0].mxu0
      %911 = vmatprep.mubr.f32.mxu0 0.0
      %912 = vmatmul.mubr.f32.gmra.mrb[0].mxu0 %v836
      %v913 = vpop.f32.mrb[0].mxu0
      %v914 = vadd.f32 0.0, %v913
      %v915 = vpop.f32.mrb[0].mxu0
      %916 = vdwg.mxu0
      %919 = vrot.lane.b32.xlu0 %v444, 96
      %v920 = vpop.permute.xlu0 %919
      %921 = vrot.lane.b32.xlu0 %v449, 96
      %v922 = vpop.permute.xlu0 %921
      %v923 = vsel %vm278, %v444, 0
      %v925 = vsel %vm278, %v449, 0
      %v927 = vsel %vm278, %v920, 0
      %v929 = vsel %vm278, %v922, 0
      %931 = vmatprep.subr.mxu0 0.0
      %932 = vmatpush1.xpose.msra.mxu0 %v927
      %933 = vmatprep.subr.mxu0 0.0
      %934 = vmatpush1.xpose.msra.mxu0 %v929
      %935 = vmatprep.subr.mxu0 0.0
      %936 = vmatpush1.xpose.msra.mxu0 0.0
      %937 = vmatprep.subr.mxu0 0.0
      %938 = vmatpush1.xpose.msra.mxu0 0.0
      %939 = vmatprep.subr.mxu0 0.0
      %940 = vmatpush1.xpose.msra.mxu0 0.0
      %941 = vmatprep.subr.mxu0 0.0
      %942 = vmatpush1.xpose.msra.mxu0 0.0
      %943 = vmatprep.subr.mxu0 0.0
      %944 = vmatpush1.xpose.msra.mxu0 0.0
      %945 = vmatprep.subr.mxu0 0.0
      %946 = vmatpush1.xpose.msra.mxu0 0.0
      %947 = vmatprep.subr.mxu0 0.0
      %948 = vmatpush1.xpose.msra.mxu0 0.0
      %949 = vmatprep.subr.mxu0 0.0
      %950 = vmatpush1.xpose.msra.mxu0 0.0
      %951 = vmatprep.subr.mxu0 0.0
      %952 = vmatpush1.xpose.msra.mxu0 0.0
      %953 = vmatprep.subr.mxu0 0.0
      %954 = vmatpush1.xpose.msra.mxu0 0.0
      %955 = vmatprep.subr.mxu0 0.0
      %956 = vmatpush1.xpose.msra.mxu0 0.0
      %957 = vmatprep.subr.mxu0 0.0
      %958 = vmatpush1.xpose.msra.mxu0 0.0
      %959 = vmatprep.subr.mxu0 0.0
      %960 = vmatpush1.xpose.msra.mxu0 0.0
      %961 = vmatprep.subr.mxu0 0.0
      %962 = vmatpush1.xpose.msra.mxu0 0.0
      %963 = vmatprep.subr.mxu0 0.0
      %964 = vmatpush1.xpose.msra.mxu0 0.0
      %965 = vmatprep.subr.mxu0 0.0
      %966 = vmatpush1.xpose.msra.mxu0 0.0
      %967 = vmatprep.subr.mxu0 0.0
      %968 = vmatpush1.xpose.msra.mxu0 0.0
      %969 = vmatprep.subr.mxu0 0.0
      %970 = vmatpush1.xpose.msra.mxu0 0.0
      %971 = vmatprep.subr.mxu0 0.0
      %972 = vmatpush1.xpose.msra.mxu0 0.0
      %973 = vmatprep.subr.mxu0 0.0
      %974 = vmatpush1.xpose.msra.mxu0 0.0
      %975 = vmatprep.subr.mxu0 0.0
      %976 = vmatpush1.xpose.msra.mxu0 0.0
      %977 = vmatprep.subr.mxu0 0.0
      %978 = vmatpush1.xpose.msra.mxu0 0.0
      %979 = vmatprep.subr.mxu0 0.0
      %980 = vmatpush1.xpose.msra.mxu0 0.0
      %981 = vmatprep.subr.mxu0 0.0
      %982 = vmatpush1.xpose.msra.mxu0 0.0
      %983 = vmatprep.subr.mxu0 0.0
      %984 = vmatpush1.xpose.msra.mxu0 0.0
      %985 = vmatprep.subr.mxu0 0.0
      %986 = vmatpush1.xpose.msra.mxu0 0.0
      %987 = vmatprep.subr.mxu0 0.0
      %988 = vmatpush1.xpose.msra.mxu0 0.0
      %989 = vmatprep.subr.mxu0 0.0
      %990 = vmatpush1.xpose.msra.mxu0 0.0
      %991 = vmatprep.subr.mxu0 0.0
      %992 = vmatpush1.xpose.msra.mxu0 0.0
      %993 = vmatprep.subr.mxu0 0.0
      %994 = vmatpush1.xpose.msra.mxu0 0.0
      %995 = vmatprep.mubr.f32.mxu0 0.0
      %996 = vmatmul.mubr.f32.gmra.mrb[0].mxu0 %v923
      %v997 = vpop.f32.mrb[0].mxu0
      %v998 = vadd.f32 0.0, %v997
      %v999 = vpop.f32.mrb[0].mxu0
      %1000 = vmatprep.mubr.f32.mxu0 0.0
      %1001 = vmatmul.mubr.f32.gmra.mrb[0].mxu0 %v925
      %v1002 = vpop.f32.mrb[0].mxu0
      %v1003 = vadd.f32 0.0, %v1002
      %v1004 = vpop.f32.mrb[0].mxu0
      %1005 = vdwg.mxu0
      %1008 = vrot.lane.b32.xlu0 %v454, 96
      %v1009 = vpop.permute.xlu0 %1008
      %1010 = vrot.lane.b32.xlu0 %v459, 96
      %v1011 = vpop.permute.xlu0 %1010
      %v1012 = vsel %vm278, %v454, 0
      %v1014 = vsel %vm278, %v459, 0
      %v1016 = vsel %vm278, %v1009, 0
      %v1018 = vsel %vm278, %v1011, 0
      %1020 = vmatprep.subr.mxu0 0.0
      %1021 = vmatpush1.xpose.msra.mxu0 %v1016
      %1022 = vmatprep.subr.mxu0 0.0
      %1023 = vmatpush1.xpose.msra.mxu0 %v1018
      %1024 = vmatprep.subr.mxu0 0.0
      %1025 = vmatpush1.xpose.msra.mxu0 0.0
      %1026 = vmatprep.subr.mxu0 0.0
      %1027 = vmatpush1.xpose.msra.mxu0 0.0
      %1028 = vmatprep.subr.mxu0 0.0
      %1029 = vmatpush1.xpose.msra.mxu0 0.0
      %1030 = vmatprep.subr.mxu0 0.0
      %1031 = vmatpush1.xpose.msra.mxu0 0.0
      %1032 = vmatprep.subr.mxu0 0.0
      %1033 = vmatpush1.xpose.msra.mxu0 0.0
      %1034 = vmatprep.subr.mxu0 0.0
      %1035 = vmatpush1.xpose.msra.mxu0 0.0
      %1036 = vmatprep.subr.mxu0 0.0
      %1037 = vmatpush1.xpose.msra.mxu0 0.0
      %1038 = vmatprep.subr.mxu0 0.0
      %1039 = vmatpush1.xpose.msra.mxu0 0.0
      %1040 = vmatprep.subr.mxu0 0.0
      %1041 = vmatpush1.xpose.msra.mxu0 0.0
      %1042 = vmatprep.subr.mxu0 0.0
      %1043 = vmatpush1.xpose.msra.mxu0 0.0
      %1044 = vmatprep.subr.mxu0 0.0
      %1045 = vmatpush1.xpose.msra.mxu0 0.0
      %1046 = vmatprep.subr.mxu0 0.0
      %1047 = vmatpush1.xpose.msra.mxu0 0.0
      %1048 = vmatprep.subr.mxu0 0.0
      %1049 = vmatpush1.xpose.msra.mxu0 0.0
      %1050 = vmatprep.subr.mxu0 0.0
      %1051 = vmatpush1.xpose.msra.mxu0 0.0
      %1052 = vmatprep.subr.mxu0 0.0
      %1053 = vmatpush1.xpose.msra.mxu0 0.0
      %1054 = vmatprep.subr.mxu0 0.0
      %1055 = vmatpush1.xpose.msra.mxu0 0.0
      %1056 = vmatprep.subr.mxu0 0.0
      %1057 = vmatpush1.xpose.msra.mxu0 0.0
      %1058 = vmatprep.subr.mxu0 0.0
      %1059 = vmatpush1.xpose.msra.mxu0 0.0
      %1060 = vmatprep.subr.mxu0 0.0
      %1061 = vmatpush1.xpose.msra.mxu0 0.0
      %1062 = vmatprep.subr.mxu0 0.0
      %1063 = vmatpush1.xpose.msra.mxu0 0.0
      %1064 = vmatprep.subr.mxu0 0.0
      %1065 = vmatpush1.xpose.msra.mxu0 0.0
      %1066 = vmatprep.subr.mxu0 0.0
      %1067 = vmatpush1.xpose.msra.mxu0 0.0
      %1068 = vmatprep.subr.mxu0 0.0
      %1069 = vmatpush1.xpose.msra.mxu0 0.0
      %1070 = vmatprep.subr.mxu0 0.0
      %1071 = vmatpush1.xpose.msra.mxu0 0.0
      %1072 = vmatprep.subr.mxu0 0.0
      %1073 = vmatpush1.xpose.msra.mxu0 0.0
      %1074 = vmatprep.subr.mxu0 0.0
      %1075 = vmatpush1.xpose.msra.mxu0 0.0
      %1076 = vmatprep.subr.mxu0 0.0
      %1077 = vmatpush1.xpose.msra.mxu0 0.0
      %1078 = vmatprep.subr.mxu0 0.0
      %1079 = vmatpush1.xpose.msra.mxu0 0.0
      %1080 = vmatprep.subr.mxu0 0.0
      %1081 = vmatpush1.xpose.msra.mxu0 0.0
      %1082 = vmatprep.subr.mxu0 0.0
      %1083 = vmatpush1.xpose.msra.mxu0 0.0
      %1084 = vmatprep.mubr.f32.mxu0 0.0
      %1085 = vmatmul.mubr.f32.gmra.mrb[0].mxu0 %v1012
      %v1086 = vpop.f32.mrb[0].mxu0
      %v1087 = vadd.f32 0.0, %v1086
      %v1088 = vpop.f32.mrb[0].mxu0
      %1089 = vmatprep.mubr.f32.mxu0 0.0
      %1090 = vmatmul.mubr.f32.gmra.mrb[0].mxu0 %v1014
      %v1091 = vpop.f32.mrb[0].mxu0
      %v1092 = vadd.f32 0.0, %v1091
      %v1093 = vpop.f32.mrb[0].mxu0
      %1094 = vdwg.mxu0
      %1097 = vrot.lane.b32.xlu0 %v464, 96
      %v1098 = vpop.permute.xlu0 %1097
      %1099 = vrot.lane.b32.xlu0 %v469, 96
      %v1100 = vpop.permute.xlu0 %1099
      %v1101 = vsel %vm278, %v464, 0
      %v1103 = vsel %vm278, %v469, 0
      %v1105 = vsel %vm278, %v1098, 0
      %v1107 = vsel %vm278, %v1100, 0
      %1109 = vmatprep.subr.mxu0 0.0
      %1110 = vmatpush1.xpose.msra.mxu0 %v1105
      %1111 = vmatprep.subr.mxu0 0.0
      %1112 = vmatpush1.xpose.msra.mxu0 %v1107
      %1113 = vmatprep.subr.mxu0 0.0
      %1114 = vmatpush1.xpose.msra.mxu0 0.0
      %1115 = vmatprep.subr.mxu0 0.0
      %1116 = vmatpush1.xpose.msra.mxu0 0.0
      %1117 = vmatprep.subr.mxu0 0.0
      %1118 = vmatpush1.xpose.msra.mxu0 0.0
      %1119 = vmatprep.subr.mxu0 0.0
      %1120 = vmatpush1.xpose.msra.mxu0 0.0
      %1121 = vmatprep.subr.mxu0 0.0
      %1122 = vmatpush1.xpose.msra.mxu0 0.0
      %1123 = vmatprep.subr.mxu0 0.0
      %1124 = vmatpush1.xpose.msra.mxu0 0.0
      %1125 = vmatprep.subr.mxu0 0.0
      %1126 = vmatpush1.xpose.msra.mxu0 0.0
      %1127 = vmatprep.subr.mxu0 0.0
      %1128 = vmatpush1.xpose.msra.mxu0 0.0
      %1129 = vmatprep.subr.mxu0 0.0
      %1130 = vmatpush1.xpose.msra.mxu0 0.0
      %1131 = vmatprep.subr.mxu0 0.0
      %1132 = vmatpush1.xpose.msra.mxu0 0.0
      %1133 = vmatprep.subr.mxu0 0.0
      %1134 = vmatpush1.xpose.msra.mxu0 0.0
      %1135 = vmatprep.subr.mxu0 0.0
      %1136 = vmatpush1.xpose.msra.mxu0 0.0
      %1137 = vmatprep.subr.mxu0 0.0
      %1138 = vmatpush1.xpose.msra.mxu0 0.0
      %1139 = vmatprep.subr.mxu0 0.0
      %1140 = vmatpush1.xpose.msra.mxu0 0.0
      %1141 = vmatprep.subr.mxu0 0.0
      %1142 = vmatpush1.xpose.msra.mxu0 0.0
      %1143 = vmatprep.subr.mxu0 0.0
      %1144 = vmatpush1.xpose.msra.mxu0 0.0
      %1145 = vmatprep.subr.mxu0 0.0
      %1146 = vmatpush1.xpose.msra.mxu0 0.0
      %1147 = vmatprep.subr.mxu0 0.0
      %1148 = vmatpush1.xpose.msra.mxu0 0.0
      %1149 = vmatprep.subr.mxu0 0.0
      %1150 = vmatpush1.xpose.msra.mxu0 0.0
      %1151 = vmatprep.subr.mxu0 0.0
      %1152 = vmatpush1.xpose.msra.mxu0 0.0
      %1153 = vmatprep.subr.mxu0 0.0
      %1154 = vmatpush1.xpose.msra.mxu0 0.0
      %1155 = vmatprep.subr.mxu0 0.0
      %1156 = vmatpush1.xpose.msra.mxu0 0.0
      %1157 = vmatprep.subr.mxu0 0.0
      %1158 = vmatpush1.xpose.msra.mxu0 0.0
      %1159 = vmatprep.subr.mxu0 0.0
      %1160 = vmatpush1.xpose.msra.mxu0 0.0
      %1161 = vmatprep.subr.mxu0 0.0
      %1162 = vmatpush1.xpose.msra.mxu0 0.0
      %1163 = vmatprep.subr.mxu0 0.0
      %1164 = vmatpush1.xpose.msra.mxu0 0.0
      %1165 = vmatprep.subr.mxu0 0.0
      %1166 = vmatpush1.xpose.msra.mxu0 0.0
      %1167 = vmatprep.subr.mxu0 0.0
      %1168 = vmatpush1.xpose.msra.mxu0 0.0
      %1169 = vmatprep.subr.mxu0 0.0
      %1170 = vmatpush1.xpose.msra.mxu0 0.0
      %1171 = vmatprep.subr.mxu0 0.0
      %1172 = vmatpush1.xpose.msra.mxu0 0.0
      %1173 = vmatprep.mubr.f32.mxu0 0.0
      %1174 = vmatmul.mubr.f32.gmra.mrb[0].mxu0 %v1101
      %v1175 = vpop.f32.mrb[0].mxu0
      %v1176 = vadd.f32 0.0, %v1175
      %v1177 = vpop.f32.mrb[0].mxu0
      %1178 = vmatprep.mubr.f32.mxu0 0.0
      %1179 = vmatmul.mubr.f32.gmra.mrb[0].mxu0 %v1103
      %v1180 = vpop.f32.mrb[0].mxu0
      %v1181 = vadd.f32 0.0, %v1180
      %v1182 = vpop.f32.mrb[0].mxu0
      %1183 = vdwg.mxu0
      %v1184 = vmul.f32 %v553, 0.17677669
      %v1185 = vmul.f32 %v558, 0.17677669
      %v1186 = vmul.f32 %v642, 0.17677669
      %v1187 = vmul.f32 %v647, 0.17677669
      %v1188 = vmul.f32 %v731, 0.17677669
      %v1189 = vmul.f32 %v736, 0.17677669
      %v1190 = vmul.f32 %v820, 0.17677669
      %v1191 = vmul.f32 %v825, 0.17677669
      %v1192 = vmul.f32 %v909, 0.17677669
      %v1193 = vmul.f32 %v914, 0.17677669
      %v1194 = vmul.f32 %v998, 0.17677669
      %v1195 = vmul.f32 %v1003, 0.17677669
      %v1196 = vmul.f32 %v1087, 0.17677669
      %v1197 = vmul.f32 %v1092, 0.17677669
      %v1198 = vmul.f32 %v1176, 0.17677669
      %v1199 = vmul.f32 %v1181, 0.17677669
      %vm1200 = vcmask 130048
      %v1201 = vsel %vm1200, %v1184, -inf
      %1202 = vmax.xlane.f32.xlu0 %v1201
      %v1203 = vpop.xlane.xlu0 %1202
      %v1204 = vsel %vm1200, %v1185, -inf
      %1205 = vmax.xlane.f32.xlu0 %v1204
      %v1206 = vpop.xlane.xlu0 %1205
      %v1207 = vsel %vm1200, %v1186, -inf
      %1208 = vmax.xlane.f32.xlu0 %v1207
      %v1209 = vpop.xlane.xlu0 %1208
      %v1210 = vsel %vm1200, %v1187, -inf
      %1211 = vmax.xlane.f32.xlu0 %v1210
      %v1212 = vpop.xlane.xlu0 %1211
      %v1213 = vsel %vm1200, %v1188, -inf
      %1214 = vmax.xlane.f32.xlu0 %v1213
      %v1215 = vpop.xlane.xlu0 %1214
      %v1216 = vsel %vm1200, %v1189, -inf
      %1217 = vmax.xlane.f32.xlu0 %v1216
      %v1218 = vpop.xlane.xlu0 %1217
      %v1219 = vsel %vm1200, %v1190, -inf
      %1220 = vmax.xlane.f32.xlu0 %v1219
      %v1221 = vpop.xlane.xlu0 %1220
      %v1222 = vsel %vm1200, %v1191, -inf
      %1223 = vmax.xlane.f32.xlu0 %v1222
      %v1224 = vpop.xlane.xlu0 %1223
      %v1225 = vsel %vm1200, %v1192, -inf
      %1226 = vmax.xlane.f32.xlu0 %v1225
      %v1227 = vpop.xlane.xlu0 %1226
      %v1228 = vsel %vm1200, %v1193, -inf
      %1229 = vmax.xlane.f32.xlu0 %v1228
      %v1230 = vpop.xlane.xlu0 %1229
      %v1231 = vsel %vm1200, %v1194, -inf
      %1232 = vmax.xlane.f32.xlu0 %v1231
      %v1233 = vpop.xlane.xlu0 %1232
      %v1234 = vsel %vm1200, %v1195, -inf
      %1235 = vmax.xlane.f32.xlu0 %v1234
      %v1236 = vpop.xlane.xlu0 %1235
      %v1237 = vsel %vm1200, %v1196, -inf
      %1238 = vmax.xlane.f32.xlu0 %v1237
      %v1239 = vpop.xlane.xlu0 %1238
      %v1240 = vsel %vm1200, %v1197, -inf
      %1241 = vmax.xlane.f32.xlu0 %v1240
      %v1242 = vpop.xlane.xlu0 %1241
      %v1243 = vsel %vm1200, %v1198, -inf
      %1244 = vmax.xlane.f32.xlu0 %v1243
      %v1245 = vpop.xlane.xlu0 %1244
      %v1246 = vsel %vm1200, %v1199, -inf
      %1247 = vmax.xlane.f32.xlu0 %v1246
      %v1248 = vpop.xlane.xlu0 %1247
      %v1249 = vsub.f32 %v1184, %v1203
      %v1250 = vsub.f32 %v1185, %v1206
      %v1251 = vsub.f32 %v1186, %v1209
      %v1252 = vsub.f32 %v1187, %v1212
      %v1253 = vsub.f32 %v1188, %v1215
      %v1254 = vsub.f32 %v1189, %v1218
      %v1255 = vsub.f32 %v1190, %v1221
      %v1256 = vsub.f32 %v1191, %v1224
      %v1257 = vsub.f32 %v1192, %v1227
      %v1258 = vsub.f32 %v1193, %v1230
      %v1259 = vsub.f32 %v1194, %v1233
      %v1260 = vsub.f32 %v1195, %v1236
      %v1261 = vsub.f32 %v1196, %v1239
      %v1262 = vsub.f32 %v1197, %v1242
      %v1263 = vsub.f32 %v1198, %v1245
      %v1264 = vsub.f32 %v1199, %v1248
      %v1265 = vmul.f32 %v1249, 1.442695
      %v1266 = vpow.pop %v1265
      %v1267 = vmul.f32 %v1250, 1.442695
      %v1268 = vpow.pop %v1267
      %v1269 = vmul.f32 %v1251, 1.442695
      %v1270 = vpow.pop %v1269
      %v1271 = vmul.f32 %v1252, 1.442695
      %v1272 = vpow.pop %v1271
      %v1273 = vmul.f32 %v1253, 1.442695
      %v1274 = vpow.pop %v1273
      %v1275 = vmul.f32 %v1254, 1.442695
      %v1276 = vpow.pop %v1275
      %v1277 = vmul.f32 %v1255, 1.442695
      %v1278 = vpow.pop %v1277
      %v1279 = vmul.f32 %v1256, 1.442695
      %v1280 = vpow.pop %v1279
      %v1281 = vmul.f32 %v1257, 1.442695
      %v1282 = vpow.pop %v1281
      %v1283 = vmul.f32 %v1258, 1.442695
      %v1284 = vpow.pop %v1283
      %v1285 = vmul.f32 %v1259, 1.442695
      %v1286 = vpow.pop %v1285
      %v1287 = vmul.f32 %v1260, 1.442695
      %v1288 = vpow.pop %v1287
      %v1289 = vmul.f32 %v1261, 1.442695
      %v1290 = vpow.pop %v1289
      %v1291 = vmul.f32 %v1262, 1.442695
      %v1292 = vpow.pop %v1291
      %v1293 = vmul.f32 %v1263, 1.442695
      %v1294 = vpow.pop %v1293
      %v1295 = vmul.f32 %v1264, 1.442695
      %v1296 = vpow.pop %v1295
      %v1297 = vsel %vm1200, %v1266, 0.0
      %1298 = vadd.xlane.f32.xlu0 %v1297
      %v1299 = vpop.xlane.xlu0 %1298
      %v1300 = vsel %vm1200, %v1268, 0.0
      %1301 = vadd.xlane.f32.xlu0 %v1300
      %v1302 = vpop.xlane.xlu0 %1301
      %v1303 = vsel %vm1200, %v1270, 0.0
      %1304 = vadd.xlane.f32.xlu0 %v1303
      %v1305 = vpop.xlane.xlu0 %1304
      %v1306 = vsel %vm1200, %v1272, 0.0
      %1307 = vadd.xlane.f32.xlu0 %v1306
      %v1308 = vpop.xlane.xlu0 %1307
      %v1309 = vsel %vm1200, %v1274, 0.0
      %1310 = vadd.xlane.f32.xlu0 %v1309
      %v1311 = vpop.xlane.xlu0 %1310
      %v1312 = vsel %vm1200, %v1276, 0.0
      %1313 = vadd.xlane.f32.xlu0 %v1312
      %v1314 = vpop.xlane.xlu0 %1313
      %v1315 = vsel %vm1200, %v1278, 0.0
      %1316 = vadd.xlane.f32.xlu0 %v1315
      %v1317 = vpop.xlane.xlu0 %1316
      %v1318 = vsel %vm1200, %v1280, 0.0
      %1319 = vadd.xlane.f32.xlu0 %v1318
      %v1320 = vpop.xlane.xlu0 %1319
      %v1321 = vsel %vm1200, %v1282, 0.0
      %1322 = vadd.xlane.f32.xlu0 %v1321
      %v1323 = vpop.xlane.xlu0 %1322
      %v1324 = vsel %vm1200, %v1284, 0.0
      %1325 = vadd.xlane.f32.xlu0 %v1324
      %v1326 = vpop.xlane.xlu0 %1325
      %v1327 = vsel %vm1200, %v1286, 0.0
      %1328 = vadd.xlane.f32.xlu0 %v1327
      %v1329 = vpop.xlane.xlu0 %1328
      %v1330 = vsel %vm1200, %v1288, 0.0
      %1331 = vadd.xlane.f32.xlu0 %v1330
      %v1332 = vpop.xlane.xlu0 %1331
      %v1333 = vsel %vm1200, %v1290, 0.0
      %1334 = vadd.xlane.f32.xlu0 %v1333
      %v1335 = vpop.xlane.xlu0 %1334
      %v1336 = vsel %vm1200, %v1292, 0.0
      %1337 = vadd.xlane.f32.xlu0 %v1336
      %v1338 = vpop.xlane.xlu0 %1337
      %v1339 = vsel %vm1200, %v1294, 0.0
      %1340 = vadd.xlane.f32.xlu0 %v1339
      %v1341 = vpop.xlane.xlu0 %1340
      %v1342 = vsel %vm1200, %v1296, 0.0
      %1343 = vadd.xlane.f32.xlu0 %v1342
      %v1344 = vpop.xlane.xlu0 %1343
      %v1345 = vrcp.pop %v1299
      %v1346 = vrcp.pop %v1302
      %v1347 = vrcp.pop %v1305
      %v1348 = vrcp.pop %v1308
      %v1349 = vrcp.pop %v1311
      %v1350 = vrcp.pop %v1314
      %v1351 = vrcp.pop %v1317
      %v1352 = vrcp.pop %v1320
      %v1353 = vrcp.pop %v1323
      %v1354 = vrcp.pop %v1326
      %v1355 = vrcp.pop %v1329
      %v1356 = vrcp.pop %v1332
      %v1357 = vrcp.pop %v1335
      %v1358 = vrcp.pop %v1338
      %v1359 = vrcp.pop %v1341
      %v1360 = vrcp.pop %v1344
      %v1361 = vmul.f32 %v1266, %v1345
      %v1362 = vmul.f32 %v1268, %v1346
      %v1363 = vmul.f32 %v1270, %v1347
      %v1364 = vmul.f32 %v1272, %v1348
      %v1365 = vmul.f32 %v1274, %v1349
      %v1366 = vmul.f32 %v1276, %v1350
      %v1367 = vmul.f32 %v1278, %v1351
      %v1368 = vmul.f32 %v1280, %v1352
      %v1369 = vmul.f32 %v1282, %v1353
      %v1370 = vmul.f32 %v1284, %v1354
      %v1371 = vmul.f32 %v1286, %v1355
      %v1372 = vmul.f32 %v1288, %v1356
      %v1373 = vmul.f32 %v1290, %v1357
      %v1374 = vmul.f32 %v1292, %v1358
      %v1375 = vmul.f32 %v1294, %v1359
      %v1376 = vmul.f32 %v1296, %v1360
      %1377 = vrot.lane.b32.xlu0 %v394, 64
      %v1378 = vpop.permute.xlu0 %1377
      %1379 = vrot.lane.b32.xlu0 %v399, 64
      %v1380 = vpop.permute.xlu0 %1379
      %v1384 = vsel %vm1200, %v1361, 0
      %v1387 = vsel %vm1200, %v1362, 0
      %1389 = vmatprep.subr.mxu0 0.0
      %1390 = vmatpush1.msra.mxu0 %v1378
      %1391 = vmatprep.subr.mxu0 0.0
      %1392 = vmatpush1.msra.mxu0 %v1380
      %1393 = vmatprep.subr.mxu0 0.0
      %1394 = vmatpush1.msra.mxu0 0.0
      %1395 = vmatprep.subr.mxu0 0.0
      %1396 = vmatpush1.msra.mxu0 0.0
      %1397 = vmatprep.subr.mxu0 0.0
      %1398 = vmatpush1.msra.mxu0 0.0
      %1399 = vmatprep.subr.mxu0 0.0
      %1400 = vmatpush1.msra.mxu0 0.0
      %1401 = vmatprep.subr.mxu0 0.0
      %1402 = vmatpush1.msra.mxu0 0.0
      %1403 = vmatprep.subr.mxu0 0.0
      %1404 = vmatpush1.msra.mxu0 0.0
      %1405 = vmatprep.subr.mxu0 0.0
      %1406 = vmatpush1.msra.mxu0 0.0
      %1407 = vmatprep.subr.mxu0 0.0
      %1408 = vmatpush1.msra.mxu0 0.0
      %1409 = vmatprep.subr.mxu0 0.0
      %1410 = vmatpush1.msra.mxu0 0.0
      %1411 = vmatprep.subr.mxu0 0.0
      %1412 = vmatpush1.msra.mxu0 0.0
      %1413 = vmatprep.subr.mxu0 0.0
      %1414 = vmatpush1.msra.mxu0 0.0
      %1415 = vmatprep.subr.mxu0 0.0
      %1416 = vmatpush1.msra.mxu0 0.0
      %1417 = vmatprep.subr.mxu0 0.0
      %1418 = vmatpush1.msra.mxu0 0.0
      %1419 = vmatprep.subr.mxu0 0.0
      %1420 = vmatpush1.msra.mxu0 0.0
      %1421 = vmatprep.subr.mxu0 0.0
      %1422 = vmatpush1.msra.mxu0 0.0
      %1423 = vmatprep.subr.mxu0 0.0
      %1424 = vmatpush1.msra.mxu0 0.0
      %1425 = vmatprep.subr.mxu0 0.0
      %1426 = vmatpush1.msra.mxu0 0.0
      %1427 = vmatprep.subr.mxu0 0.0
      %1428 = vmatpush1.msra.mxu0 0.0
      %1429 = vmatprep.subr.mxu0 0.0
      %1430 = vmatpush1.msra.mxu0 0.0
      %1431 = vmatprep.subr.mxu0 0.0
      %1432 = vmatpush1.msra.mxu0 0.0
      %1433 = vmatprep.subr.mxu0 0.0
      %1434 = vmatpush1.msra.mxu0 0.0
      %1435 = vmatprep.subr.mxu0 0.0
      %1436 = vmatpush1.msra.mxu0 0.0
      %1437 = vmatprep.subr.mxu0 0.0
      %1438 = vmatpush1.msra.mxu0 0.0
      %1439 = vmatprep.subr.mxu0 0.0
      %1440 = vmatpush1.msra.mxu0 0.0
      %1441 = vmatprep.subr.mxu0 0.0
      %1442 = vmatpush1.msra.mxu0 0.0
      %1443 = vmatprep.subr.mxu0 0.0
      %1444 = vmatpush1.msra.mxu0 0.0
      %1445 = vmatprep.subr.mxu0 0.0
      %1446 = vmatpush1.msra.mxu0 0.0
      %1447 = vmatprep.subr.mxu0 0.0
      %1448 = vmatpush1.msra.mxu0 0.0
      %1449 = vmatprep.subr.mxu0 0.0
      %1450 = vmatpush1.msra.mxu0 0.0
      %1451 = vmatprep.subr.mxu0 0.0
      %1452 = vmatpush1.msra.mxu0 0.0
      %1453 = vmatprep.mubr.f32.mxu0 0.0
      %1454 = vmatmul.mubr.f32.gmra.mrb[0].mxu0 %v1384
      %v1455 = vpop.f32.mrb[0].mxu0
      %v1456 = vadd.f32 0.0, %v1455
      %v1457 = vpop.f32.mrb[0].mxu0
      %1458 = vmatprep.mubr.f32.mxu0 0.0
      %1459 = vmatmul.mubr.f32.gmra.mrb[0].mxu0 %v1387
      %v1460 = vpop.f32.mrb[0].mxu0
      %v1461 = vadd.f32 0.0, %v1460
      %v1462 = vpop.f32.mrb[0].mxu0
      %1463 = vdwg.mxu0
      %1464 = vrot.lane.b32.xlu0 %v404, 64
      %v1465 = vpop.permute.xlu0 %1464
      %1466 = vrot.lane.b32.xlu0 %v409, 64
      %v1467 = vpop.permute.xlu0 %1466
      %v1471 = vsel %vm1200, %v1363, 0
      %v1474 = vsel %vm1200, %v1364, 0
      %1476 = vmatprep.subr.mxu0 0.0
      %1477 = vmatpush1.msra.mxu0 %v1465
      %1478 = vmatprep.subr.mxu0 0.0
      %1479 = vmatpush1.msra.mxu0 %v1467
      %1480 = vmatprep.subr.mxu0 0.0
      %1481 = vmatpush1.msra.mxu0 0.0
      %1482 = vmatprep.subr.mxu0 0.0
      %1483 = vmatpush1.msra.mxu0 0.0
      %1484 = vmatprep.subr.mxu0 0.0
      %1485 = vmatpush1.msra.mxu0 0.0
      %1486 = vmatprep.subr.mxu0 0.0
      %1487 = vmatpush1.msra.mxu0 0.0
      %1488 = vmatprep.subr.mxu0 0.0
      %1489 = vmatpush1.msra.mxu0 0.0
      %1490 = vmatprep.subr.mxu0 0.0
      %1491 = vmatpush1.msra.mxu0 0.0
      %1492 = vmatprep.subr.mxu0 0.0
      %1493 = vmatpush1.msra.mxu0 0.0
      %1494 = vmatprep.subr.mxu0 0.0
      %1495 = vmatpush1.msra.mxu0 0.0
      %1496 = vmatprep.subr.mxu0 0.0
      %1497 = vmatpush1.msra.mxu0 0.0
      %1498 = vmatprep.subr.mxu0 0.0
      %1499 = vmatpush1.msra.mxu0 0.0
      %1500 = vmatprep.subr.mxu0 0.0
      %1501 = vmatpush1.msra.mxu0 0.0
      %1502 = vmatprep.subr.mxu0 0.0
      %1503 = vmatpush1.msra.mxu0 0.0
      %1504 = vmatprep.subr.mxu0 0.0
      %1505 = vmatpush1.msra.mxu0 0.0
      %1506 = vmatprep.subr.mxu0 0.0
      %1507 = vmatpush1.msra.mxu0 0.0
      %1508 = vmatprep.subr.mxu0 0.0
      %1509 = vmatpush1.msra.mxu0 0.0
      %1510 = vmatprep.subr.mxu0 0.0
      %1511 = vmatpush1.msra.mxu0 0.0
      %1512 = vmatprep.subr.mxu0 0.0
      %1513 = vmatpush1.msra.mxu0 0.0
      %1514 = vmatprep.subr.mxu0 0.0
      %1515 = vmatpush1.msra.mxu0 0.0
      %1516 = vmatprep.subr.mxu0 0.0
      %1517 = vmatpush1.msra.mxu0 0.0
      %1518 = vmatprep.subr.mxu0 0.0
      %1519 = vmatpush1.msra.mxu0 0.0
      %1520 = vmatprep.subr.mxu0 0.0
      %1521 = vmatpush1.msra.mxu0 0.0
      %1522 = vmatprep.subr.mxu0 0.0
      %1523 = vmatpush1.msra.mxu0 0.0
      %1524 = vmatprep.subr.mxu0 0.0
      %1525 = vmatpush1.msra.mxu0 0.0
      %1526 = vmatprep.subr.mxu0 0.0
      %1527 = vmatpush1.msra.mxu0 0.0
      %1528 = vmatprep.subr.mxu0 0.0
      %1529 = vmatpush1.msra.mxu0 0.0
      %1530 = vmatprep.subr.mxu0 0.0
      %1531 = vmatpush1.msra.mxu0 0.0
      %1532 = vmatprep.subr.mxu0 0.0
      %1533 = vmatpush1.msra.mxu0 0.0
      %1534 = vmatprep.subr.mxu0 0.0
      %1535 = vmatpush1.msra.mxu0 0.0
      %1536 = vmatprep.subr.mxu0 0.0
      %1537 = vmatpush1.msra.mxu0 0.0
      %1538 = vmatprep.subr.mxu0 0.0
      %1539 = vmatpush1.msra.mxu0 0.0
      %1540 = vmatprep.mubr.f32.mxu0 0.0
      %1541 = vmatmul.mubr.f32.gmra.mrb[0].mxu0 %v1471
      %v1542 = vpop.f32.mrb[0].mxu0
      %v1543 = vadd.f32 0.0, %v1542
      %v1544 = vpop.f32.mrb[0].mxu0
      %1545 = vmatprep.mubr.f32.mxu0 0.0
      %1546 = vmatmul.mubr.f32.gmra.mrb[0].mxu0 %v1474
      %v1547 = vpop.f32.mrb[0].mxu0
      %v1548 = vadd.f32 0.0, %v1547
      %v1549 = vpop.f32.mrb[0].mxu0
      %1550 = vdwg.mxu0
      %1551 = vrot.lane.b32.xlu0 %v414, 64
      %v1552 = vpop.permute.xlu0 %1551
      %1553 = vrot.lane.b32.xlu0 %v419, 64
      %v1554 = vpop.permute.xlu0 %1553
      %v1558 = vsel %vm1200, %v1365, 0
      %v1561 = vsel %vm1200, %v1366, 0
      %1563 = vmatprep.subr.mxu0 0.0
      %1564 = vmatpush1.msra.mxu0 %v1552
      %1565 = vmatprep.subr.mxu0 0.0
      %1566 = vmatpush1.msra.mxu0 %v1554
      %1567 = vmatprep.subr.mxu0 0.0
      %1568 = vmatpush1.msra.mxu0 0.0
      %1569 = vmatprep.subr.mxu0 0.0
      %1570 = vmatpush1.msra.mxu0 0.0
      %1571 = vmatprep.subr.mxu0 0.0
      %1572 = vmatpush1.msra.mxu0 0.0
      %1573 = vmatprep.subr.mxu0 0.0
      %1574 = vmatpush1.msra.mxu0 0.0
      %1575 = vmatprep.subr.mxu0 0.0
      %1576 = vmatpush1.msra.mxu0 0.0
      %1577 = vmatprep.subr.mxu0 0.0
      %1578 = vmatpush1.msra.mxu0 0.0
      %1579 = vmatprep.subr.mxu0 0.0
      %1580 = vmatpush1.msra.mxu0 0.0
      %1581 = vmatprep.subr.mxu0 0.0
      %1582 = vmatpush1.msra.mxu0 0.0
      %1583 = vmatprep.subr.mxu0 0.0
      %1584 = vmatpush1.msra.mxu0 0.0
      %1585 = vmatprep.subr.mxu0 0.0
      %1586 = vmatpush1.msra.mxu0 0.0
      %1587 = vmatprep.subr.mxu0 0.0
      %1588 = vmatpush1.msra.mxu0 0.0
      %1589 = vmatprep.subr.mxu0 0.0
      %1590 = vmatpush1.msra.mxu0 0.0
      %1591 = vmatprep.subr.mxu0 0.0
      %1592 = vmatpush1.msra.mxu0 0.0
      %1593 = vmatprep.subr.mxu0 0.0
      %1594 = vmatpush1.msra.mxu0 0.0
      %1595 = vmatprep.subr.mxu0 0.0
      %1596 = vmatpush1.msra.mxu0 0.0
      %1597 = vmatprep.subr.mxu0 0.0
      %1598 = vmatpush1.msra.mxu0 0.0
      %1599 = vmatprep.subr.mxu0 0.0
      %1600 = vmatpush1.msra.mxu0 0.0
      %1601 = vmatprep.subr.mxu0 0.0
      %1602 = vmatpush1.msra.mxu0 0.0
      %1603 = vmatprep.subr.mxu0 0.0
      %1604 = vmatpush1.msra.mxu0 0.0
      %1605 = vmatprep.subr.mxu0 0.0
      %1606 = vmatpush1.msra.mxu0 0.0
      %1607 = vmatprep.subr.mxu0 0.0
      %1608 = vmatpush1.msra.mxu0 0.0
      %1609 = vmatprep.subr.mxu0 0.0
      %1610 = vmatpush1.msra.mxu0 0.0
      %1611 = vmatprep.subr.mxu0 0.0
      %1612 = vmatpush1.msra.mxu0 0.0
      %1613 = vmatprep.subr.mxu0 0.0
      %1614 = vmatpush1.msra.mxu0 0.0
      %1615 = vmatprep.subr.mxu0 0.0
      %1616 = vmatpush1.msra.mxu0 0.0
      %1617 = vmatprep.subr.mxu0 0.0
      %1618 = vmatpush1.msra.mxu0 0.0
      %1619 = vmatprep.subr.mxu0 0.0
      %1620 = vmatpush1.msra.mxu0 0.0
      %1621 = vmatprep.subr.mxu0 0.0
      %1622 = vmatpush1.msra.mxu0 0.0
      %1623 = vmatprep.subr.mxu0 0.0
      %1624 = vmatpush1.msra.mxu0 0.0
      %1625 = vmatprep.subr.mxu0 0.0
      %1626 = vmatpush1.msra.mxu0 0.0
      %1627 = vmatprep.mubr.f32.mxu0 0.0
      %1628 = vmatmul.mubr.f32.gmra.mrb[0].mxu0 %v1558
      %v1629 = vpop.f32.mrb[0].mxu0
      %v1630 = vadd.f32 0.0, %v1629
      %v1631 = vpop.f32.mrb[0].mxu0
      %1632 = vmatprep.mubr.f32.mxu0 0.0
      %1633 = vmatmul.mubr.f32.gmra.mrb[0].mxu0 %v1561
      %v1634 = vpop.f32.mrb[0].mxu0
      %v1635 = vadd.f32 0.0, %v1634
      %v1636 = vpop.f32.mrb[0].mxu0
      %1637 = vdwg.mxu0
      %1638 = vrot.lane.b32.xlu0 %v424, 64
      %v1639 = vpop.permute.xlu0 %1638
      %1640 = vrot.lane.b32.xlu0 %v429, 64
      %v1641 = vpop.permute.xlu0 %1640
      %v1645 = vsel %vm1200, %v1367, 0
      %v1648 = vsel %vm1200, %v1368, 0
      %1650 = vmatprep.subr.mxu0 0.0
      %1651 = vmatpush1.msra.mxu0 %v1639
      %1652 = vmatprep.subr.mxu0 0.0
      %1653 = vmatpush1.msra.mxu0 %v1641
      %1654 = vmatprep.subr.mxu0 0.0
      %1655 = vmatpush1.msra.mxu0 0.0
      %1656 = vmatprep.subr.mxu0 0.0
      %1657 = vmatpush1.msra.mxu0 0.0
      %1658 = vmatprep.subr.mxu0 0.0
      %1659 = vmatpush1.msra.mxu0 0.0
      %1660 = vmatprep.subr.mxu0 0.0
      %1661 = vmatpush1.msra.mxu0 0.0
      %1662 = vmatprep.subr.mxu0 0.0
      %1663 = vmatpush1.msra.mxu0 0.0
      %1664 = vmatprep.subr.mxu0 0.0
      %1665 = vmatpush1.msra.mxu0 0.0
      %1666 = vmatprep.subr.mxu0 0.0
      %1667 = vmatpush1.msra.mxu0 0.0
      %1668 = vmatprep.subr.mxu0 0.0
      %1669 = vmatpush1.msra.mxu0 0.0
      %1670 = vmatprep.subr.mxu0 0.0
      %1671 = vmatpush1.msra.mxu0 0.0
      %1672 = vmatprep.subr.mxu0 0.0
      %1673 = vmatpush1.msra.mxu0 0.0
      %1674 = vmatprep.subr.mxu0 0.0
      %1675 = vmatpush1.msra.mxu0 0.0
      %1676 = vmatprep.subr.mxu0 0.0
      %1677 = vmatpush1.msra.mxu0 0.0
      %1678 = vmatprep.subr.mxu0 0.0
      %1679 = vmatpush1.msra.mxu0 0.0
      %1680 = vmatprep.subr.mxu0 0.0
      %1681 = vmatpush1.msra.mxu0 0.0
      %1682 = vmatprep.subr.mxu0 0.0
      %1683 = vmatpush1.msra.mxu0 0.0
      %1684 = vmatprep.subr.mxu0 0.0
      %1685 = vmatpush1.msra.mxu0 0.0
      %1686 = vmatprep.subr.mxu0 0.0
      %1687 = vmatpush1.msra.mxu0 0.0
      %1688 = vmatprep.subr.mxu0 0.0
      %1689 = vmatpush1.msra.mxu0 0.0
      %1690 = vmatprep.subr.mxu0 0.0
      %1691 = vmatpush1.msra.mxu0 0.0
      %1692 = vmatprep.subr.mxu0 0.0
      %1693 = vmatpush1.msra.mxu0 0.0
      %1694 = vmatprep.subr.mxu0 0.0
      %1695 = vmatpush1.msra.mxu0 0.0
      %1696 = vmatprep.subr.mxu0 0.0
      %1697 = vmatpush1.msra.mxu0 0.0
      %1698 = vmatprep.subr.mxu0 0.0
      %1699 = vmatpush1.msra.mxu0 0.0
      %1700 = vmatprep.subr.mxu0 0.0
      %1701 = vmatpush1.msra.mxu0 0.0
      %1702 = vmatprep.subr.mxu0 0.0
      %1703 = vmatpush1.msra.mxu0 0.0
      %1704 = vmatprep.subr.mxu0 0.0
      %1705 = vmatpush1.msra.mxu0 0.0
      %1706 = vmatprep.subr.mxu0 0.0
      %1707 = vmatpush1.msra.mxu0 0.0
      %1708 = vmatprep.subr.mxu0 0.0
      %1709 = vmatpush1.msra.mxu0 0.0
      %1710 = vmatprep.subr.mxu0 0.0
      %1711 = vmatpush1.msra.mxu0 0.0
      %1712 = vmatprep.subr.mxu0 0.0
      %1713 = vmatpush1.msra.mxu0 0.0
      %1714 = vmatprep.mubr.f32.mxu0 0.0
      %1715 = vmatmul.mubr.f32.gmra.mrb[0].mxu0 %v1645
      %v1716 = vpop.f32.mrb[0].mxu0
      %v1717 = vadd.f32 0.0, %v1716
      %v1718 = vpop.f32.mrb[0].mxu0
      %1719 = vmatprep.mubr.f32.mxu0 0.0
      %1720 = vmatmul.mubr.f32.gmra.mrb[0].mxu0 %v1648
      %v1721 = vpop.f32.mrb[0].mxu0
      %v1722 = vadd.f32 0.0, %v1721
      %v1723 = vpop.f32.mrb[0].mxu0
      %1724 = vdwg.mxu0
      %1725 = vrot.lane.b32.xlu0 %v434, 64
      %v1726 = vpop.permute.xlu0 %1725
      %1727 = vrot.lane.b32.xlu0 %v439, 64
      %v1728 = vpop.permute.xlu0 %1727
      %v1732 = vsel %vm1200, %v1369, 0
      %v1735 = vsel %vm1200, %v1370, 0
      %1737 = vmatprep.subr.mxu0 0.0
      %1738 = vmatpush1.msra.mxu0 %v1726
      %1739 = vmatprep.subr.mxu0 0.0
      %1740 = vmatpush1.msra.mxu0 %v1728
      %1741 = vmatprep.subr.mxu0 0.0
      %1742 = vmatpush1.msra.mxu0 0.0
      %1743 = vmatprep.subr.mxu0 0.0
      %1744 = vmatpush1.msra.mxu0 0.0
      %1745 = vmatprep.subr.mxu0 0.0
      %1746 = vmatpush1.msra.mxu0 0.0
      %1747 = vmatprep.subr.mxu0 0.0
      %1748 = vmatpush1.msra.mxu0 0.0
      %1749 = vmatprep.subr.mxu0 0.0
      %1750 = vmatpush1.msra.mxu0 0.0
      %1751 = vmatprep.subr.mxu0 0.0
      %1752 = vmatpush1.msra.mxu0 0.0
      %1753 = vmatprep.subr.mxu0 0.0
      %1754 = vmatpush1.msra.mxu0 0.0
      %1755 = vmatprep.subr.mxu0 0.0
      %1756 = vmatpush1.msra.mxu0 0.0
      %1757 = vmatprep.subr.mxu0 0.0
      %1758 = vmatpush1.msra.mxu0 0.0
      %1759 = vmatprep.subr.mxu0 0.0
      %1760 = vmatpush1.msra.mxu0 0.0
      %1761 = vmatprep.subr.mxu0 0.0
      %1762 = vmatpush1.msra.mxu0 0.0
      %1763 = vmatprep.subr.mxu0 0.0
      %1764 = vmatpush1.msra.mxu0 0.0
      %1765 = vmatprep.subr.mxu0 0.0
      %1766 = vmatpush1.msra.mxu0 0.0
      %1767 = vmatprep.subr.mxu0 0.0
      %1768 = vmatpush1.msra.mxu0 0.0
      %1769 = vmatprep.subr.mxu0 0.0
      %1770 = vmatpush1.msra.mxu0 0.0
      %1771 = vmatprep.subr.mxu0 0.0
      %1772 = vmatpush1.msra.mxu0 0.0
      %1773 = vmatprep.subr.mxu0 0.0
      %1774 = vmatpush1.msra.mxu0 0.0
      %1775 = vmatprep.subr.mxu0 0.0
      %1776 = vmatpush1.msra.mxu0 0.0
      %1777 = vmatprep.subr.mxu0 0.0
      %1778 = vmatpush1.msra.mxu0 0.0
      %1779 = vmatprep.subr.mxu0 0.0
      %1780 = vmatpush1.msra.mxu0 0.0
      %1781 = vmatprep.subr.mxu0 0.0
      %1782 = vmatpush1.msra.mxu0 0.0
      %1783 = vmatprep.subr.mxu0 0.0
      %1784 = vmatpush1.msra.mxu0 0.0
      %1785 = vmatprep.subr.mxu0 0.0
      %1786 = vmatpush1.msra.mxu0 0.0
      %1787 = vmatprep.subr.mxu0 0.0
      %1788 = vmatpush1.msra.mxu0 0.0
      %1789 = vmatprep.subr.mxu0 0.0
      %1790 = vmatpush1.msra.mxu0 0.0
      %1791 = vmatprep.subr.mxu0 0.0
      %1792 = vmatpush1.msra.mxu0 0.0
      %1793 = vmatprep.subr.mxu0 0.0
      %1794 = vmatpush1.msra.mxu0 0.0
      %1795 = vmatprep.subr.mxu0 0.0
      %1796 = vmatpush1.msra.mxu0 0.0
      %1797 = vmatprep.subr.mxu0 0.0
      %1798 = vmatpush1.msra.mxu0 0.0
      %1799 = vmatprep.subr.mxu0 0.0
      %1800 = vmatpush1.msra.mxu0 0.0
      %1801 = vmatprep.mubr.f32.mxu0 0.0
      %1802 = vmatmul.mubr.f32.gmra.mrb[0].mxu0 %v1732
      %v1803 = vpop.f32.mrb[0].mxu0
      %v1804 = vadd.f32 0.0, %v1803
      %v1805 = vpop.f32.mrb[0].mxu0
      %1806 = vmatprep.mubr.f32.mxu0 0.0
      %1807 = vmatmul.mubr.f32.gmra.mrb[0].mxu0 %v1735
      %v1808 = vpop.f32.mrb[0].mxu0
      %v1809 = vadd.f32 0.0, %v1808
      %v1810 = vpop.f32.mrb[0].mxu0
      %1811 = vdwg.mxu0
      %1812 = vrot.lane.b32.xlu0 %v444, 64
      %v1813 = vpop.permute.xlu0 %1812
      %1814 = vrot.lane.b32.xlu0 %v449, 64
      %v1815 = vpop.permute.xlu0 %1814
      %v1819 = vsel %vm1200, %v1371, 0
      %v1822 = vsel %vm1200, %v1372, 0
      %1824 = vmatprep.subr.mxu0 0.0
      %1825 = vmatpush1.msra.mxu0 %v1813
      %1826 = vmatprep.subr.mxu0 0.0
      %1827 = vmatpush1.msra.mxu0 %v1815
      %1828 = vmatprep.subr.mxu0 0.0
      %1829 = vmatpush1.msra.mxu0 0.0
      %1830 = vmatprep.subr.mxu0 0.0
      %1831 = vmatpush1.msra.mxu0 0.0
      %1832 = vmatprep.subr.mxu0 0.0
      %1833 = vmatpush1.msra.mxu0 0.0
      %1834 = vmatprep.subr.mxu0 0.0
      %1835 = vmatpush1.msra.mxu0 0.0
      %1836 = vmatprep.subr.mxu0 0.0
      %1837 = vmatpush1.msra.mxu0 0.0
      %1838 = vmatprep.subr.mxu0 0.0
      %1839 = vmatpush1.msra.mxu0 0.0
      %1840 = vmatprep.subr.mxu0 0.0
      %1841 = vmatpush1.msra.mxu0 0.0
      %1842 = vmatprep.subr.mxu0 0.0
      %1843 = vmatpush1.msra.mxu0 0.0
      %1844 = vmatprep.subr.mxu0 0.0
      %1845 = vmatpush1.msra.mxu0 0.0
      %1846 = vmatprep.subr.mxu0 0.0
      %1847 = vmatpush1.msra.mxu0 0.0
      %1848 = vmatprep.subr.mxu0 0.0
      %1849 = vmatpush1.msra.mxu0 0.0
      %1850 = vmatprep.subr.mxu0 0.0
      %1851 = vmatpush1.msra.mxu0 0.0
      %1852 = vmatprep.subr.mxu0 0.0
      %1853 = vmatpush1.msra.mxu0 0.0
      %1854 = vmatprep.subr.mxu0 0.0
      %1855 = vmatpush1.msra.mxu0 0.0
      %1856 = vmatprep.subr.mxu0 0.0
      %1857 = vmatpush1.msra.mxu0 0.0
      %1858 = vmatprep.subr.mxu0 0.0
      %1859 = vmatpush1.msra.mxu0 0.0
      %1860 = vmatprep.subr.mxu0 0.0
      %1861 = vmatpush1.msra.mxu0 0.0
      %1862 = vmatprep.subr.mxu0 0.0
      %1863 = vmatpush1.msra.mxu0 0.0
      %1864 = vmatprep.subr.mxu0 0.0
      %1865 = vmatpush1.msra.mxu0 0.0
      %1866 = vmatprep.subr.mxu0 0.0
      %1867 = vmatpush1.msra.mxu0 0.0
      %1868 = vmatprep.subr.mxu0 0.0
      %1869 = vmatpush1.msra.mxu0 0.0
      %1870 = vmatprep.subr.mxu0 0.0
      %1871 = vmatpush1.msra.mxu0 0.0
      %1872 = vmatprep.subr.mxu0 0.0
      %1873 = vmatpush1.msra.mxu0 0.0
      %1874 = vmatprep.subr.mxu0 0.0
      %1875 = vmatpush1.msra.mxu0 0.0
      %1876 = vmatprep.subr.mxu0 0.0
      %1877 = vmatpush1.msra.mxu0 0.0
      %1878 = vmatprep.subr.mxu0 0.0
      %1879 = vmatpush1.msra.mxu0 0.0
      %1880 = vmatprep.subr.mxu0 0.0
      %1881 = vmatpush1.msra.mxu0 0.0
      %1882 = vmatprep.subr.mxu0 0.0
      %1883 = vmatpush1.msra.mxu0 0.0
      %1884 = vmatprep.subr.mxu0 0.0
      %1885 = vmatpush1.msra.mxu0 0.0
      %1886 = vmatprep.subr.mxu0 0.0
      %1887 = vmatpush1.msra.mxu0 0.0
      %1888 = vmatprep.mubr.f32.mxu0 0.0
      %1889 = vmatmul.mubr.f32.gmra.mrb[0].mxu0 %v1819
      %v1890 = vpop.f32.mrb[0].mxu0
      %v1891 = vadd.f32 0.0, %v1890
      %v1892 = vpop.f32.mrb[0].mxu0
      %1893 = vmatprep.mubr.f32.mxu0 0.0
      %1894 = vmatmul.mubr.f32.gmra.mrb[0].mxu0 %v1822
      %v1895 = vpop.f32.mrb[0].mxu0
      %v1896 = vadd.f32 0.0, %v1895
      %v1897 = vpop.f32.mrb[0].mxu0
      %1898 = vdwg.mxu0
      %1899 = vrot.lane.b32.xlu0 %v454, 64
      %v1900 = vpop.permute.xlu0 %1899
      %1901 = vrot.lane.b32.xlu0 %v459, 64
      %v1902 = vpop.permute.xlu0 %1901
      %v1906 = vsel %vm1200, %v1373, 0
      %v1909 = vsel %vm1200, %v1374, 0
      %1911 = vmatprep.subr.mxu0 0.0
      %1912 = vmatpush1.msra.mxu0 %v1900
      %1913 = vmatprep.subr.mxu0 0.0
      %1914 = vmatpush1.msra.mxu0 %v1902
      %1915 = vmatprep.subr.mxu0 0.0
      %1916 = vmatpush1.msra.mxu0 0.0
      %1917 = vmatprep.subr.mxu0 0.0
      %1918 = vmatpush1.msra.mxu0 0.0
      %1919 = vmatprep.subr.mxu0 0.0
      %1920 = vmatpush1.msra.mxu0 0.0
      %1921 = vmatprep.subr.mxu0 0.0
      %1922 = vmatpush1.msra.mxu0 0.0
      %1923 = vmatprep.subr.mxu0 0.0
      %1924 = vmatpush1.msra.mxu0 0.0
      %1925 = vmatprep.subr.mxu0 0.0
      %1926 = vmatpush1.msra.mxu0 0.0
      %1927 = vmatprep.subr.mxu0 0.0
      %1928 = vmatpush1.msra.mxu0 0.0
      %1929 = vmatprep.subr.mxu0 0.0
      %1930 = vmatpush1.msra.mxu0 0.0
      %1931 = vmatprep.subr.mxu0 0.0
      %1932 = vmatpush1.msra.mxu0 0.0
      %1933 = vmatprep.subr.mxu0 0.0
      %1934 = vmatpush1.msra.mxu0 0.0
      %1935 = vmatprep.subr.mxu0 0.0
      %1936 = vmatpush1.msra.mxu0 0.0
      %1937 = vmatprep.subr.mxu0 0.0
      %1938 = vmatpush1.msra.mxu0 0.0
      %1939 = vmatprep.subr.mxu0 0.0
      %1940 = vmatpush1.msra.mxu0 0.0
      %1941 = vmatprep.subr.mxu0 0.0
      %1942 = vmatpush1.msra.mxu0 0.0
      %1943 = vmatprep.subr.mxu0 0.0
      %1944 = vmatpush1.msra.mxu0 0.0
      %1945 = vmatprep.subr.mxu0 0.0
      %1946 = vmatpush1.msra.mxu0 0.0
      %1947 = vmatprep.subr.mxu0 0.0
      %1948 = vmatpush1.msra.mxu0 0.0
      %1949 = vmatprep.subr.mxu0 0.0
      %1950 = vmatpush1.msra.mxu0 0.0
      %1951 = vmatprep.subr.mxu0 0.0
      %1952 = vmatpush1.msra.mxu0 0.0
      %1953 = vmatprep.subr.mxu0 0.0
      %1954 = vmatpush1.msra.mxu0 0.0
      %1955 = vmatprep.subr.mxu0 0.0
      %1956 = vmatpush1.msra.mxu0 0.0
      %1957 = vmatprep.subr.mxu0 0.0
      %1958 = vmatpush1.msra.mxu0 0.0
      %1959 = vmatprep.subr.mxu0 0.0
      %1960 = vmatpush1.msra.mxu0 0.0
      %1961 = vmatprep.subr.mxu0 0.0
      %1962 = vmatpush1.msra.mxu0 0.0
      %1963 = vmatprep.subr.mxu0 0.0
      %1964 = vmatpush1.msra.mxu0 0.0
      %1965 = vmatprep.subr.mxu0 0.0
      %1966 = vmatpush1.msra.mxu0 0.0
      %1967 = vmatprep.subr.mxu0 0.0
      %1968 = vmatpush1.msra.mxu0 0.0
      %1969 = vmatprep.subr.mxu0 0.0
      %1970 = vmatpush1.msra.mxu0 0.0
      %1971 = vmatprep.subr.mxu0 0.0
      %1972 = vmatpush1.msra.mxu0 0.0
      %1973 = vmatprep.subr.mxu0 0.0
      %1974 = vmatpush1.msra.mxu0 0.0
      %1975 = vmatprep.mubr.f32.mxu0 0.0
      %1976 = vmatmul.mubr.f32.gmra.mrb[0].mxu0 %v1906
      %v1977 = vpop.f32.mrb[0].mxu0
      %v1978 = vadd.f32 0.0, %v1977
      %v1979 = vpop.f32.mrb[0].mxu0
      %1980 = vmatprep.mubr.f32.mxu0 0.0
      %1981 = vmatmul.mubr.f32.gmra.mrb[0].mxu0 %v1909
      %v1982 = vpop.f32.mrb[0].mxu0
      %v1983 = vadd.f32 0.0, %v1982
      %v1984 = vpop.f32.mrb[0].mxu0
      %1985 = vdwg.mxu0
      %1986 = vrot.lane.b32.xlu0 %v464, 64
      %v1987 = vpop.permute.xlu0 %1986
      %1988 = vrot.lane.b32.xlu0 %v469, 64
      %v1989 = vpop.permute.xlu0 %1988
      %v1993 = vsel %vm1200, %v1375, 0
      %v1996 = vsel %vm1200, %v1376, 0
      %1998 = vmatprep.subr.mxu0 0.0
      %1999 = vmatpush1.msra.mxu0 %v1987
      %2000 = vmatprep.subr.mxu0 0.0
      %2001 = vmatpush1.msra.mxu0 %v1989
      %2002 = vmatprep.subr.mxu0 0.0
      %2003 = vmatpush1.msra.mxu0 0.0
      %2004 = vmatprep.subr.mxu0 0.0
      %2005 = vmatpush1.msra.mxu0 0.0
      %2006 = vmatprep.subr.mxu0 0.0
      %2007 = vmatpush1.msra.mxu0 0.0
      %2008 = vmatprep.subr.mxu0 0.0
      %2009 = vmatpush1.msra.mxu0 0.0
      %2010 = vmatprep.subr.mxu0 0.0
      %2011 = vmatpush1.msra.mxu0 0.0
      %2012 = vmatprep.subr.mxu0 0.0
      %2013 = vmatpush1.msra.mxu0 0.0
      %2014 = vmatprep.subr.mxu0 0.0
      %2015 = vmatpush1.msra.mxu0 0.0
      %2016 = vmatprep.subr.mxu0 0.0
      %2017 = vmatpush1.msra.mxu0 0.0
      %2018 = vmatprep.subr.mxu0 0.0
      %2019 = vmatpush1.msra.mxu0 0.0
      %2020 = vmatprep.subr.mxu0 0.0
      %2021 = vmatpush1.msra.mxu0 0.0
      %2022 = vmatprep.subr.mxu0 0.0
      %2023 = vmatpush1.msra.mxu0 0.0
      %2024 = vmatprep.subr.mxu0 0.0
      %2025 = vmatpush1.msra.mxu0 0.0
      %2026 = vmatprep.subr.mxu0 0.0
      %2027 = vmatpush1.msra.mxu0 0.0
      %2028 = vmatprep.subr.mxu0 0.0
      %2029 = vmatpush1.msra.mxu0 0.0
      %2030 = vmatprep.subr.mxu0 0.0
      %2031 = vmatpush1.msra.mxu0 0.0
      %2032 = vmatprep.subr.mxu0 0.0
      %2033 = vmatpush1.msra.mxu0 0.0
      %2034 = vmatprep.subr.mxu0 0.0
      %2035 = vmatpush1.msra.mxu0 0.0
      %2036 = vmatprep.subr.mxu0 0.0
      %2037 = vmatpush1.msra.mxu0 0.0
      %2038 = vmatprep.subr.mxu0 0.0
      %2039 = vmatpush1.msra.mxu0 0.0
      %2040 = vmatprep.subr.mxu0 0.0
      %2041 = vmatpush1.msra.mxu0 0.0
      %2042 = vmatprep.subr.mxu0 0.0
      %2043 = vmatpush1.msra.mxu0 0.0
      %2044 = vmatprep.subr.mxu0 0.0
      %2045 = vmatpush1.msra.mxu0 0.0
      %2046 = vmatprep.subr.mxu0 0.0
      %2047 = vmatpush1.msra.mxu0 0.0
      %2048 = vmatprep.subr.mxu0 0.0
      %2049 = vmatpush1.msra.mxu0 0.0
      %2050 = vmatprep.subr.mxu0 0.0
      %2051 = vmatpush1.msra.mxu0 0.0
      %2052 = vmatprep.subr.mxu0 0.0
      %2053 = vmatpush1.msra.mxu0 0.0
      %2054 = vmatprep.subr.mxu0 0.0
      %2055 = vmatpush1.msra.mxu0 0.0
      %2056 = vmatprep.subr.mxu0 0.0
      %2057 = vmatpush1.msra.mxu0 0.0
      %2058 = vmatprep.subr.mxu0 0.0
      %2059 = vmatpush1.msra.mxu0 0.0
      %2060 = vmatprep.subr.mxu0 0.0
      %2061 = vmatpush1.msra.mxu0 0.0
      %2062 = vmatprep.mubr.f32.mxu0 0.0
      %2063 = vmatmul.mubr.f32.gmra.mrb[0].mxu0 %v1993
      %v2064 = vpop.f32.mrb[0].mxu0
      %v2065 = vadd.f32 0.0, %v2064
      %v2066 = vpop.f32.mrb[0].mxu0
      %2067 = vmatprep.mubr.f32.mxu0 0.0
      %2068 = vmatmul.mubr.f32.gmra.mrb[0].mxu0 %v1996
      %v2069 = vpop.f32.mrb[0].mxu0
      %v2070 = vadd.f32 0.0, %v2069
      %v2071 = vpop.f32.mrb[0].mxu0
      %2072 = vdwg.mxu0
      %v2073 = vld [vmem:[%s2] sm:$0xff]
      %v2074 = vld [vmem:[%s2 + $0x8] sm:$0xff]
      %v2075 = vld [vmem:[%s2 + $0x10] sm:$0xff]
      %v2076 = vld [vmem:[%s2 + $0x18] sm:$0xff]
      %v2077 = vlaneseq
      %v2078 = vshrl.u32 %v2077, 7
      %v2079 = vsub.s32 1, %v2078
      %v2080 = vrot.slane %v268, %v2079
      %v2082 = vsel %vm278, %v1456, 0
      %v2085 = vsel %vm278, %v1461, 0
      %v2088 = vsel %vm278, %v1543, 0
      %v2091 = vsel %vm278, %v1548, 0
      %v2094 = vsel %vm278, %v1630, 0
      %v2097 = vsel %vm278, %v1635, 0
      %v2100 = vsel %vm278, %v1717, 0
      %v2103 = vsel %vm278, %v1722, 0
      %v2106 = vsel %vm278, %v1804, 0
      %v2109 = vsel %vm278, %v1809, 0
      %v2112 = vsel %vm278, %v1891, 0
      %v2115 = vsel %vm278, %v1896, 0
      %v2118 = vsel %vm278, %v1978, 0
      %v2121 = vsel %vm278, %v1983, 0
      %v2124 = vsel %vm278, %v2065, 0
      %v2127 = vsel %vm278, %v2070, 0
      %2129 = vmatprep.subr.mxu0 0.0
      %2130 = vmatpush1.msra.mxu0 %v2073
      %2131 = vmatprep.subr.mxu0 0.0
      %2132 = vmatpush1.msra.mxu0 %v2074
      %2133 = vmatprep.subr.mxu0 0.0
      %2134 = vmatpush1.msra.mxu0 %v2075
      %2135 = vmatprep.subr.mxu0 0.0
      %2136 = vmatpush1.msra.mxu0 %v2076
      %2137 = vmatprep.subr.mxu0 0.0
      %2138 = vmatpush1.msra.mxu0 0.0
      %2139 = vmatprep.subr.mxu0 0.0
      %2140 = vmatpush1.msra.mxu0 0.0
      %2141 = vmatprep.subr.mxu0 0.0
      %2142 = vmatpush1.msra.mxu0 0.0
      %2143 = vmatprep.subr.mxu0 0.0
      %2144 = vmatpush1.msra.mxu0 0.0
      %2145 = vmatprep.subr.mxu0 0.0
      %2146 = vmatpush1.msra.mxu0 0.0
      %2147 = vmatprep.subr.mxu0 0.0
      %2148 = vmatpush1.msra.mxu0 0.0
      %2149 = vmatprep.subr.mxu0 0.0
      %2150 = vmatpush1.msra.mxu0 0.0
      %2151 = vmatprep.subr.mxu0 0.0
      %2152 = vmatpush1.msra.mxu0 0.0
      %2153 = vmatprep.subr.mxu0 0.0
      %2154 = vmatpush1.msra.mxu0 0.0
      %2155 = vmatprep.subr.mxu0 0.0
      %2156 = vmatpush1.msra.mxu0 0.0
      %2157 = vmatprep.subr.mxu0 0.0
      %2158 = vmatpush1.msra.mxu0 0.0
      %2159 = vmatprep.subr.mxu0 0.0
      %2160 = vmatpush1.msra.mxu0 0.0
      %2161 = vmatprep.subr.mxu0 0.0
      %2162 = vmatpush1.msra.mxu0 0.0
      %2163 = vmatprep.subr.mxu0 0.0
      %2164 = vmatpush1.msra.mxu0 0.0
      %2165 = vmatprep.subr.mxu0 0.0
      %2166 = vmatpush1.msra.mxu0 0.0
      %2167 = vmatprep.subr.mxu0 0.0
      %2168 = vmatpush1.msra.mxu0 0.0
      %2169 = vmatprep.subr.mxu0 0.0
      %2170 = vmatpush1.msra.mxu0 0.0
      %2171 = vmatprep.subr.mxu0 0.0
      %2172 = vmatpush1.msra.mxu0 0.0
      %2173 = vmatprep.subr.mxu0 0.0
      %2174 = vmatpush1.msra.mxu0 0.0
      %2175 = vmatprep.subr.mxu0 0.0
      %2176 = vmatpush1.msra.mxu0 0.0
      %2177 = vmatprep.subr.mxu0 0.0
      %2178 = vmatpush1.msra.mxu0 0.0
      %2179 = vmatprep.subr.mxu0 0.0
      %2180 = vmatpush1.msra.mxu0 0.0
      %2181 = vmatprep.subr.mxu0 0.0
      %2182 = vmatpush1.msra.mxu0 0.0
      %2183 = vmatprep.subr.mxu0 0.0
      %2184 = vmatpush1.msra.mxu0 0.0
      %2185 = vmatprep.subr.mxu0 0.0
      %2186 = vmatpush1.msra.mxu0 0.0
      %2187 = vmatprep.subr.mxu0 0.0
      %2188 = vmatpush1.msra.mxu0 0.0
      %2189 = vmatprep.subr.mxu0 0.0
      %2190 = vmatpush1.msra.mxu0 0.0
      %2191 = vmatprep.subr.mxu0 0.0
      %2192 = vmatpush1.msra.mxu0 0.0
      %2193 = vmatprep.mubr.f32.mxu0 0.0
      %2194 = vmatmul.mubr.f32.gmra.mrb[0].mxu0 %v2082
      %v2195 = vpop.f32.mrb[0].mxu0
      %v2196 = vadd.f32 %v2080, %v2195
      %v2197 = vpop.f32.mrb[0].mxu0
      %2198 = vmatprep.mubr.f32.mxu0 0.0
      %2199 = vmatmul.mubr.f32.gmra.mrb[0].mxu0 %v2085
      %v2200 = vpop.f32.mrb[0].mxu0
      %v2201 = vadd.f32 %v2080, %v2200
      %v2202 = vpop.f32.mrb[0].mxu0
      %2203 = vmatprep.mubr.f32.mxu0 0.0
      %2204 = vmatmul.mubr.f32.gmra.mrb[0].mxu0 %v2088
      %v2205 = vpop.f32.mrb[0].mxu0
      %v2206 = vadd.f32 %v2080, %v2205
      %v2207 = vpop.f32.mrb[0].mxu0
      %2208 = vmatprep.mubr.f32.mxu0 0.0
      %2209 = vmatmul.mubr.f32.gmra.mrb[0].mxu0 %v2091
      %v2210 = vpop.f32.mrb[0].mxu0
      %v2211 = vadd.f32 %v2080, %v2210
      %v2212 = vpop.f32.mrb[0].mxu0
      %2213 = vmatprep.mubr.f32.mxu0 0.0
      %2214 = vmatmul.mubr.f32.gmra.mrb[0].mxu0 %v2094
      %v2215 = vpop.f32.mrb[0].mxu0
      %v2216 = vadd.f32 %v2080, %v2215
      %v2217 = vpop.f32.mrb[0].mxu0
      %2218 = vmatprep.mubr.f32.mxu0 0.0
      %2219 = vmatmul.mubr.f32.gmra.mrb[0].mxu0 %v2097
      %v2220 = vpop.f32.mrb[0].mxu0
      %v2221 = vadd.f32 %v2080, %v2220
      %v2222 = vpop.f32.mrb[0].mxu0
      %2223 = vmatprep.mubr.f32.mxu0 0.0
      %2224 = vmatmul.mubr.f32.gmra.mrb[0].mxu0 %v2100
      %v2225 = vpop.f32.mrb[0].mxu0
      %v2226 = vadd.f32 %v2080, %v2225
      %v2227 = vpop.f32.mrb[0].mxu0
      %2228 = vmatprep.mubr.f32.mxu0 0.0
      %2229 = vmatmul.mubr.f32.gmra.mrb[0].mxu0 %v2103
      %v2230 = vpop.f32.mrb[0].mxu0
      %v2231 = vadd.f32 %v2080, %v2230
      %v2232 = vpop.f32.mrb[0].mxu0
      %2233 = vmatprep.mubr.f32.mxu0 0.0
      %2234 = vmatmul.mubr.f32.gmra.mrb[0].mxu0 %v2106
      %v2235 = vpop.f32.mrb[0].mxu0
      %v2236 = vadd.f32 %v2080, %v2235
      %v2237 = vpop.f32.mrb[0].mxu0
      %2238 = vmatprep.mubr.f32.mxu0 0.0
      %2239 = vmatmul.mubr.f32.gmra.mrb[0].mxu0 %v2109
      %v2240 = vpop.f32.mrb[0].mxu0
      %v2241 = vadd.f32 %v2080, %v2240
      %v2242 = vpop.f32.mrb[0].mxu0
      %2243 = vmatprep.mubr.f32.mxu0 0.0
      %2244 = vmatmul.mubr.f32.gmra.mrb[0].mxu0 %v2112
      %v2245 = vpop.f32.mrb[0].mxu0
      %v2246 = vadd.f32 %v2080, %v2245
      %v2247 = vpop.f32.mrb[0].mxu0
      %2248 = vmatprep.mubr.f32.mxu0 0.0
      %2249 = vmatmul.mubr.f32.gmra.mrb[0].mxu0 %v2115
      %v2250 = vpop.f32.mrb[0].mxu0
      %v2251 = vadd.f32 %v2080, %v2250
      %v2252 = vpop.f32.mrb[0].mxu0
      %2253 = vmatprep.mubr.f32.mxu0 0.0
      %2254 = vmatmul.mubr.f32.gmra.mrb[0].mxu0 %v2118
      %v2255 = vpop.f32.mrb[0].mxu0
      %v2256 = vadd.f32 %v2080, %v2255
      %v2257 = vpop.f32.mrb[0].mxu0
      %2258 = vmatprep.mubr.f32.mxu0 0.0
      %2259 = vmatmul.mubr.f32.gmra.mrb[0].mxu0 %v2121
      %v2260 = vpop.f32.mrb[0].mxu0
      %v2261 = vadd.f32 %v2080, %v2260
      %v2262 = vpop.f32.mrb[0].mxu0
      %2263 = vmatprep.mubr.f32.mxu0 0.0
      %2264 = vmatmul.mubr.f32.gmra.mrb[0].mxu0 %v2124
      %v2265 = vpop.f32.mrb[0].mxu0
      %v2266 = vadd.f32 %v2080, %v2265
      %v2267 = vpop.f32.mrb[0].mxu0
      %2268 = vmatprep.mubr.f32.mxu0 0.0
      %2269 = vmatmul.mubr.f32.gmra.mrb[0].mxu0 %v2127
      %v2270 = vpop.f32.mrb[0].mxu0
      %v2271 = vadd.f32 %v2080, %v2270
      %v2272 = vpop.f32.mrb[0].mxu0
      %2273 = vdwg.mxu0
      %v2274 = vadd.f32 %v252, %v2196
      %v2275 = vadd.f32 %v253, %v2201
      %v2276 = vadd.f32 %v254, %v2206
      %v2277 = vadd.f32 %v255, %v2211
      %v2278 = vadd.f32 %v256, %v2216
      %v2279 = vadd.f32 %v257, %v2221
      %v2280 = vadd.f32 %v258, %v2226
      %v2281 = vadd.f32 %v259, %v2231
      %v2282 = vadd.f32 %v260, %v2236
      %v2283 = vadd.f32 %v261, %v2241
      %v2284 = vadd.f32 %v262, %v2246
      %v2285 = vadd.f32 %v263, %v2251
      %v2286 = vadd.f32 %v264, %v2256
      %v2287 = vadd.f32 %v265, %v2261
      %v2288 = vadd.f32 %v266, %v2266
      %v2289 = vadd.f32 %v267, %v2271
      %v2290 = vsel %vm278, %v2274, 0.0
      %2291 = vadd.xlane.f32.xlu0 %v2290
      %v2292 = vpop.xlane.xlu0 %2291
      %v2293 = vsel %vm278, %v2275, 0.0
      %2294 = vadd.xlane.f32.xlu0 %v2293
      %v2295 = vpop.xlane.xlu0 %2294
      %v2296 = vsel %vm278, %v2276, 0.0
      %2297 = vadd.xlane.f32.xlu0 %v2296
      %v2298 = vpop.xlane.xlu0 %2297
      %v2299 = vsel %vm278, %v2277, 0.0
      %2300 = vadd.xlane.f32.xlu0 %v2299
      %v2301 = vpop.xlane.xlu0 %2300
      %v2302 = vsel %vm278, %v2278, 0.0
      %2303 = vadd.xlane.f32.xlu0 %v2302
      %v2304 = vpop.xlane.xlu0 %2303
      %v2305 = vsel %vm278, %v2279, 0.0
      %2306 = vadd.xlane.f32.xlu0 %v2305
      %v2307 = vpop.xlane.xlu0 %2306
      %v2308 = vsel %vm278, %v2280, 0.0
      %2309 = vadd.xlane.f32.xlu0 %v2308
      %v2310 = vpop.xlane.xlu0 %2309
      %v2311 = vsel %vm278, %v2281, 0.0
      %2312 = vadd.xlane.f32.xlu0 %v2311
      %v2313 = vpop.xlane.xlu0 %2312
      %v2314 = vsel %vm278, %v2282, 0.0
      %2315 = vadd.xlane.f32.xlu0 %v2314
      %v2316 = vpop.xlane.xlu0 %2315
      %v2317 = vsel %vm278, %v2283, 0.0
      %2318 = vadd.xlane.f32.xlu0 %v2317
      %v2319 = vpop.xlane.xlu0 %2318
      %v2320 = vsel %vm278, %v2284, 0.0
      %2321 = vadd.xlane.f32.xlu0 %v2320
      %v2322 = vpop.xlane.xlu0 %2321
      %v2323 = vsel %vm278, %v2285, 0.0
      %2324 = vadd.xlane.f32.xlu0 %v2323
      %v2325 = vpop.xlane.xlu0 %2324
      %v2326 = vsel %vm278, %v2286, 0.0
      %2327 = vadd.xlane.f32.xlu0 %v2326
      %v2328 = vpop.xlane.xlu0 %2327
      %v2329 = vsel %vm278, %v2287, 0.0
      %2330 = vadd.xlane.f32.xlu0 %v2329
      %v2331 = vpop.xlane.xlu0 %2330
      %v2332 = vsel %vm278, %v2288, 0.0
      %2333 = vadd.xlane.f32.xlu0 %v2332
      %v2334 = vpop.xlane.xlu0 %2333
      %v2335 = vsel %vm278, %v2289, 0.0
      %2336 = vadd.xlane.f32.xlu0 %v2335
      %v2337 = vpop.xlane.xlu0 %2336
      %v2338 = vrcp.pop 32.0
      %v2339 = vmul.f32 %v2292, %v2338
      %v2340 = vmul.f32 %v2295, %v2338
      %v2341 = vmul.f32 %v2298, %v2338
      %v2342 = vmul.f32 %v2301, %v2338
      %v2343 = vmul.f32 %v2304, %v2338
      %v2344 = vmul.f32 %v2307, %v2338
      %v2345 = vmul.f32 %v2310, %v2338
      %v2346 = vmul.f32 %v2313, %v2338
      %v2347 = vmul.f32 %v2316, %v2338
      %v2348 = vmul.f32 %v2319, %v2338
      %v2349 = vmul.f32 %v2322, %v2338
      %v2350 = vmul.f32 %v2325, %v2338
      %v2351 = vmul.f32 %v2328, %v2338
      %v2352 = vmul.f32 %v2331, %v2338
      %v2353 = vmul.f32 %v2334, %v2338
      %v2354 = vmul.f32 %v2337, %v2338
      %v2355 = vsub.f32 %v2274, %v2339
      %v2356 = vsub.f32 %v2275, %v2340
      %v2357 = vsub.f32 %v2276, %v2341
      %v2358 = vsub.f32 %v2277, %v2342
      %v2359 = vsub.f32 %v2278, %v2343
      %v2360 = vsub.f32 %v2279, %v2344
      %v2361 = vsub.f32 %v2280, %v2345
      %v2362 = vsub.f32 %v2281, %v2346
      %v2363 = vsub.f32 %v2282, %v2347
      %v2364 = vsub.f32 %v2283, %v2348
      %v2365 = vsub.f32 %v2284, %v2349
      %v2366 = vsub.f32 %v2285, %v2350
      %v2367 = vsub.f32 %v2286, %v2351
      %v2368 = vsub.f32 %v2287, %v2352
      %v2369 = vsub.f32 %v2288, %v2353
      %v2370 = vsub.f32 %v2289, %v2354
      %v2371 = vmul.f32 %v2355, %v2355
      %v2372 = vmul.f32 %v2356, %v2356
      %v2373 = vmul.f32 %v2357, %v2357
      %v2374 = vmul.f32 %v2358, %v2358
      %v2375 = vmul.f32 %v2359, %v2359
      %v2376 = vmul.f32 %v2360, %v2360
      %v2377 = vmul.f32 %v2361, %v2361
      %v2378 = vmul.f32 %v2362, %v2362
      %v2379 = vmul.f32 %v2363, %v2363
      %v2380 = vmul.f32 %v2364, %v2364
      %v2381 = vmul.f32 %v2365, %v2365
      %v2382 = vmul.f32 %v2366, %v2366
      %v2383 = vmul.f32 %v2367, %v2367
      %v2384 = vmul.f32 %v2368, %v2368
      %v2385 = vmul.f32 %v2369, %v2369
      %v2386 = vmul.f32 %v2370, %v2370
      %v2387 = vsel %vm278, %v2371, 0.0
      %2388 = vadd.xlane.f32.xlu0 %v2387
      %v2389 = vpop.xlane.xlu0 %2388
      %v2390 = vsel %vm278, %v2372, 0.0
      %2391 = vadd.xlane.f32.xlu0 %v2390
      %v2392 = vpop.xlane.xlu0 %2391
      %v2393 = vsel %vm278, %v2373, 0.0
      %2394 = vadd.xlane.f32.xlu0 %v2393
      %v2395 = vpop.xlane.xlu0 %2394
      %v2396 = vsel %vm278, %v2374, 0.0
      %2397 = vadd.xlane.f32.xlu0 %v2396
      %v2398 = vpop.xlane.xlu0 %2397
      %v2399 = vsel %vm278, %v2375, 0.0
      %2400 = vadd.xlane.f32.xlu0 %v2399
      %v2401 = vpop.xlane.xlu0 %2400
      %v2402 = vsel %vm278, %v2376, 0.0
      %2403 = vadd.xlane.f32.xlu0 %v2402
      %v2404 = vpop.xlane.xlu0 %2403
      %v2405 = vsel %vm278, %v2377, 0.0
      %2406 = vadd.xlane.f32.xlu0 %v2405
      %v2407 = vpop.xlane.xlu0 %2406
      %v2408 = vsel %vm278, %v2378, 0.0
      %2409 = vadd.xlane.f32.xlu0 %v2408
      %v2410 = vpop.xlane.xlu0 %2409
      %v2411 = vsel %vm278, %v2379, 0.0
      %2412 = vadd.xlane.f32.xlu0 %v2411
      %v2413 = vpop.xlane.xlu0 %2412
      %v2414 = vsel %vm278, %v2380, 0.0
      %2415 = vadd.xlane.f32.xlu0 %v2414
      %v2416 = vpop.xlane.xlu0 %2415
      %v2417 = vsel %vm278, %v2381, 0.0
      %2418 = vadd.xlane.f32.xlu0 %v2417
      %v2419 = vpop.xlane.xlu0 %2418
      %v2420 = vsel %vm278, %v2382, 0.0
      %2421 = vadd.xlane.f32.xlu0 %v2420
      %v2422 = vpop.xlane.xlu0 %2421
      %v2423 = vsel %vm278, %v2383, 0.0
      %2424 = vadd.xlane.f32.xlu0 %v2423
      %v2425 = vpop.xlane.xlu0 %2424
      %v2426 = vsel %vm278, %v2384, 0.0
      %2427 = vadd.xlane.f32.xlu0 %v2426
      %v2428 = vpop.xlane.xlu0 %2427
      %v2429 = vsel %vm278, %v2385, 0.0
      %2430 = vadd.xlane.f32.xlu0 %v2429
      %v2431 = vpop.xlane.xlu0 %2430
      %v2432 = vsel %vm278, %v2386, 0.0
      %2433 = vadd.xlane.f32.xlu0 %v2432
      %v2434 = vpop.xlane.xlu0 %2433
      %v2435 = vmul.f32 %v2389, %v2338
      %v2436 = vmul.f32 %v2392, %v2338
      %v2437 = vmul.f32 %v2395, %v2338
      %v2438 = vmul.f32 %v2398, %v2338
      %v2439 = vmul.f32 %v2401, %v2338
      %v2440 = vmul.f32 %v2404, %v2338
      %v2441 = vmul.f32 %v2407, %v2338
      %v2442 = vmul.f32 %v2410, %v2338
      %v2443 = vmul.f32 %v2413, %v2338
      %v2444 = vmul.f32 %v2416, %v2338
      %v2445 = vmul.f32 %v2419, %v2338
      %v2446 = vmul.f32 %v2422, %v2338
      %v2447 = vmul.f32 %v2425, %v2338
      %v2448 = vmul.f32 %v2428, %v2338
      %v2449 = vmul.f32 %v2431, %v2338
      %v2450 = vmul.f32 %v2434, %v2338
      %v2451 = vadd.f32 %v2435, 1e-05
      %v2452 = vadd.f32 %v2436, 1e-05
      %v2453 = vadd.f32 %v2437, 1e-05
      %v2454 = vadd.f32 %v2438, 1e-05
      %v2455 = vadd.f32 %v2439, 1e-05
      %v2456 = vadd.f32 %v2440, 1e-05
      %v2457 = vadd.f32 %v2441, 1e-05
      %v2458 = vadd.f32 %v2442, 1e-05
      %v2459 = vadd.f32 %v2443, 1e-05
      %v2460 = vadd.f32 %v2444, 1e-05
      %v2461 = vadd.f32 %v2445, 1e-05
      %v2462 = vadd.f32 %v2446, 1e-05
      %v2463 = vadd.f32 %v2447, 1e-05
      %v2464 = vadd.f32 %v2448, 1e-05
      %v2465 = vadd.f32 %v2449, 1e-05
      %v2466 = vadd.f32 %v2450, 1e-05
      %v2467 = vrsqrt.pop %v2451
      %v2468 = vrsqrt.pop %v2452
      %v2469 = vrsqrt.pop %v2453
      %v2470 = vrsqrt.pop %v2454
      %v2471 = vrsqrt.pop %v2455
      %v2472 = vrsqrt.pop %v2456
      %v2473 = vrsqrt.pop %v2457
      %v2474 = vrsqrt.pop %v2458
      %v2475 = vrsqrt.pop %v2459
      %v2476 = vrsqrt.pop %v2460
      %v2477 = vrsqrt.pop %v2461
      %v2478 = vrsqrt.pop %v2462
      %v2479 = vrsqrt.pop %v2463
      %v2480 = vrsqrt.pop %v2464
      %v2481 = vrsqrt.pop %v2465
      %v2482 = vrsqrt.pop %v2466
      %v2483 = vmul.f32 %v2355, %v2467
      %v2484 = vmul.f32 %v2356, %v2468
      %v2485 = vmul.f32 %v2357, %v2469
      %v2486 = vmul.f32 %v2358, %v2470
      %v2487 = vmul.f32 %v2359, %v2471
      %v2488 = vmul.f32 %v2360, %v2472
      %v2489 = vmul.f32 %v2361, %v2473
      %v2490 = vmul.f32 %v2362, %v2474
      %v2491 = vmul.f32 %v2363, %v2475
      %v2492 = vmul.f32 %v2364, %v2476
      %v2493 = vmul.f32 %v2365, %v2477
      %v2494 = vmul.f32 %v2366, %v2478
      %v2495 = vmul.f32 %v2367, %v2479
      %v2496 = vmul.f32 %v2368, %v2480
      %v2497 = vmul.f32 %v2369, %v2481
      %v2498 = vmul.f32 %v2370, %v2482
      %v2499 = vlaneseq
      %v2500 = vshrl.u32 %v2499, 7
      %v2501 = vsub.s32 2, %v2500
      %v2502 = vrot.slane %v268, %v2501
      %v2503 = vmul.f32 %v2483, %v2502
      %v2504 = vmul.f32 %v2484, %v2502
      %v2505 = vmul.f32 %v2485, %v2502
      %v2506 = vmul.f32 %v2486, %v2502
      %v2507 = vmul.f32 %v2487, %v2502
      %v2508 = vmul.f32 %v2488, %v2502
      %v2509 = vmul.f32 %v2489, %v2502
      %v2510 = vmul.f32 %v2490, %v2502
      %v2511 = vmul.f32 %v2491, %v2502
      %v2512 = vmul.f32 %v2492, %v2502
      %v2513 = vmul.f32 %v2493, %v2502
      %v2514 = vmul.f32 %v2494, %v2502
      %v2515 = vmul.f32 %v2495, %v2502
      %v2516 = vmul.f32 %v2496, %v2502
      %v2517 = vmul.f32 %v2497, %v2502
      %v2518 = vmul.f32 %v2498, %v2502
      %v2519 = vlaneseq
      %v2520 = vshrl.u32 %v2519, 7
      %v2521 = vsub.s32 3, %v2520
      %v2522 = vrot.slane %v268, %v2521
      %v2523 = vadd.f32 %v2503, %v2522
      %v2524 = vadd.f32 %v2504, %v2522
      %v2525 = vadd.f32 %v2505, %v2522
      %v2526 = vadd.f32 %v2506, %v2522
      %v2527 = vadd.f32 %v2507, %v2522
      %v2528 = vadd.f32 %v2508, %v2522
      %v2529 = vadd.f32 %v2509, %v2522
      %v2530 = vadd.f32 %v2510, %v2522
      %v2531 = vadd.f32 %v2511, %v2522
      %v2532 = vadd.f32 %v2512, %v2522
      %v2533 = vadd.f32 %v2513, %v2522
      %v2534 = vadd.f32 %v2514, %v2522
      %v2535 = vadd.f32 %v2515, %v2522
      %v2536 = vadd.f32 %v2516, %v2522
      %v2537 = vadd.f32 %v2517, %v2522
      %v2538 = vadd.f32 %v2518, %v2522
      %v2539 = vld [vmem:[%s3] sm:$0xff]
      %v2540 = vld [vmem:[%s3 + $0x8] sm:$0xff]
      %v2541 = vld [vmem:[%s3 + $0x10] sm:$0xff]
      %v2542 = vld [vmem:[%s3 + $0x18] sm:$0xff]
      %v2543 = vlaneseq
      %v2544 = vshrl.u32 %v2543, 7
      %v2545 = vsub.s32 4, %v2544
      %v2546 = vrot.slane %v268, %v2545
      %v2548 = vsel %vm278, %v2523, 0
      %v2551 = vsel %vm278, %v2524, 0
      %v2554 = vsel %vm278, %v2525, 0
      %v2557 = vsel %vm278, %v2526, 0
      %v2560 = vsel %vm278, %v2527, 0
      %v2563 = vsel %vm278, %v2528, 0
      %v2566 = vsel %vm278, %v2529, 0
      %v2569 = vsel %vm278, %v2530, 0
      %v2572 = vsel %vm278, %v2531, 0
      %v2575 = vsel %vm278, %v2532, 0
      %v2578 = vsel %vm278, %v2533, 0
      %v2581 = vsel %vm278, %v2534, 0
      %v2584 = vsel %vm278, %v2535, 0
      %v2587 = vsel %vm278, %v2536, 0
      %v2590 = vsel %vm278, %v2537, 0
      %v2593 = vsel %vm278, %v2538, 0
      %2595 = vmatprep.subr.mxu0 0.0
      %2596 = vmatpush1.msra.mxu0 %v2539
      %2597 = vmatprep.subr.mxu0 0.0
      %2598 = vmatpush1.msra.mxu0 %v2540
      %2599 = vmatprep.subr.mxu0 0.0
      %2600 = vmatpush1.msra.mxu0 %v2541
      %2601 = vmatprep.subr.mxu0 0.0
      %2602 = vmatpush1.msra.mxu0 %v2542
      %2603 = vmatprep.subr.mxu0 0.0
      %2604 = vmatpush1.msra.mxu0 0.0
      %2605 = vmatprep.subr.mxu0 0.0
      %2606 = vmatpush1.msra.mxu0 0.0
      %2607 = vmatprep.subr.mxu0 0.0
      %2608 = vmatpush1.msra.mxu0 0.0
      %2609 = vmatprep.subr.mxu0 0.0
      %2610 = vmatpush1.msra.mxu0 0.0
      %2611 = vmatprep.subr.mxu0 0.0
      %2612 = vmatpush1.msra.mxu0 0.0
      %2613 = vmatprep.subr.mxu0 0.0
      %2614 = vmatpush1.msra.mxu0 0.0
      %2615 = vmatprep.subr.mxu0 0.0
      %2616 = vmatpush1.msra.mxu0 0.0
      %2617 = vmatprep.subr.mxu0 0.0
      %2618 = vmatpush1.msra.mxu0 0.0
      %2619 = vmatprep.subr.mxu0 0.0
      %2620 = vmatpush1.msra.mxu0 0.0
      %2621 = vmatprep.subr.mxu0 0.0
      %2622 = vmatpush1.msra.mxu0 0.0
      %2623 = vmatprep.subr.mxu0 0.0
      %2624 = vmatpush1.msra.mxu0 0.0
      %2625 = vmatprep.subr.mxu0 0.0
      %2626 = vmatpush1.msra.mxu0 0.0
      %2627 = vmatprep.subr.mxu0 0.0
      %2628 = vmatpush1.msra.mxu0 0.0
      %2629 = vmatprep.subr.mxu0 0.0
      %2630 = vmatpush1.msra.mxu0 0.0
      %2631 = vmatprep.subr.mxu0 0.0
      %2632 = vmatpush1.msra.mxu0 0.0
      %2633 = vmatprep.subr.mxu0 0.0
      %2634 = vmatpush1.msra.mxu0 0.0
      %2635 = vmatprep.subr.mxu0 0.0
      %2636 = vmatpush1.msra.mxu0 0.0
      %2637 = vmatprep.subr.mxu0 0.0
      %2638 = vmatpush1.msra.mxu0 0.0
      %2639 = vmatprep.subr.mxu0 0.0
      %2640 = vmatpush1.msra.mxu0 0.0
      %2641 = vmatprep.subr.mxu0 0.0
      %2642 = vmatpush1.msra.mxu0 0.0
      %2643 = vmatprep.subr.mxu0 0.0
      %2644 = vmatpush1.msra.mxu0 0.0
      %2645 = vmatprep.subr.mxu0 0.0
      %2646 = vmatpush1.msra.mxu0 0.0
      %2647 = vmatprep.subr.mxu0 0.0
      %2648 = vmatpush1.msra.mxu0 0.0
      %2649 = vmatprep.subr.mxu0 0.0
      %2650 = vmatpush1.msra.mxu0 0.0
      %2651 = vmatprep.subr.mxu0 0.0
      %2652 = vmatpush1.msra.mxu0 0.0
      %2653 = vmatprep.subr.mxu0 0.0
      %2654 = vmatpush1.msra.mxu0 0.0
      %2655 = vmatprep.subr.mxu0 0.0
      %2656 = vmatpush1.msra.mxu0 0.0
      %2657 = vmatprep.subr.mxu0 0.0
      %2658 = vmatpush1.msra.mxu0 0.0
      %2659 = vmatprep.mubr.f32.mxu0 0.0
      %2660 = vmatmul.mubr.f32.gmra.mrb[0].mxu0 %v2548
      %v2661 = vpop.f32.mrb[0].mxu0
      %v2662 = vadd.f32 %v2546, %v2661
      %v2663 = vpop.f32.mrb[0].mxu0
      %2664 = vmatprep.mubr.f32.mxu0 0.0
      %2665 = vmatmul.mubr.f32.gmra.mrb[0].mxu0 %v2551
      %v2666 = vpop.f32.mrb[0].mxu0
      %v2667 = vadd.f32 %v2546, %v2666
      %v2668 = vpop.f32.mrb[0].mxu0
      %2669 = vmatprep.mubr.f32.mxu0 0.0
      %2670 = vmatmul.mubr.f32.gmra.mrb[0].mxu0 %v2554
      %v2671 = vpop.f32.mrb[0].mxu0
      %v2672 = vadd.f32 %v2546, %v2671
      %v2673 = vpop.f32.mrb[0].mxu0
      %2674 = vmatprep.mubr.f32.mxu0 0.0
      %2675 = vmatmul.mubr.f32.gmra.mrb[0].mxu0 %v2557
      %v2676 = vpop.f32.mrb[0].mxu0
      %v2677 = vadd.f32 %v2546, %v2676
      %v2678 = vpop.f32.mrb[0].mxu0
      %2679 = vmatprep.mubr.f32.mxu0 0.0
      %2680 = vmatmul.mubr.f32.gmra.mrb[0].mxu0 %v2560
      %v2681 = vpop.f32.mrb[0].mxu0
      %v2682 = vadd.f32 %v2546, %v2681
      %v2683 = vpop.f32.mrb[0].mxu0
      %2684 = vmatprep.mubr.f32.mxu0 0.0
      %2685 = vmatmul.mubr.f32.gmra.mrb[0].mxu0 %v2563
      %v2686 = vpop.f32.mrb[0].mxu0
      %v2687 = vadd.f32 %v2546, %v2686
      %v2688 = vpop.f32.mrb[0].mxu0
      %2689 = vmatprep.mubr.f32.mxu0 0.0
      %2690 = vmatmul.mubr.f32.gmra.mrb[0].mxu0 %v2566
      %v2691 = vpop.f32.mrb[0].mxu0
      %v2692 = vadd.f32 %v2546, %v2691
      %v2693 = vpop.f32.mrb[0].mxu0
      %2694 = vmatprep.mubr.f32.mxu0 0.0
      %2695 = vmatmul.mubr.f32.gmra.mrb[0].mxu0 %v2569
      %v2696 = vpop.f32.mrb[0].mxu0
      %v2697 = vadd.f32 %v2546, %v2696
      %v2698 = vpop.f32.mrb[0].mxu0
      %2699 = vmatprep.mubr.f32.mxu0 0.0
      %2700 = vmatmul.mubr.f32.gmra.mrb[0].mxu0 %v2572
      %v2701 = vpop.f32.mrb[0].mxu0
      %v2702 = vadd.f32 %v2546, %v2701
      %v2703 = vpop.f32.mrb[0].mxu0
      %2704 = vmatprep.mubr.f32.mxu0 0.0
      %2705 = vmatmul.mubr.f32.gmra.mrb[0].mxu0 %v2575
      %v2706 = vpop.f32.mrb[0].mxu0
      %v2707 = vadd.f32 %v2546, %v2706
      %v2708 = vpop.f32.mrb[0].mxu0
      %2709 = vmatprep.mubr.f32.mxu0 0.0
      %2710 = vmatmul.mubr.f32.gmra.mrb[0].mxu0 %v2578
      %v2711 = vpop.f32.mrb[0].mxu0
      %v2712 = vadd.f32 %v2546, %v2711
      %v2713 = vpop.f32.mrb[0].mxu0
      %2714 = vmatprep.mubr.f32.mxu0 0.0
      %2715 = vmatmul.mubr.f32.gmra.mrb[0].mxu0 %v2581
      %v2716 = vpop.f32.mrb[0].mxu0
      %v2717 = vadd.f32 %v2546, %v2716
      %v2718 = vpop.f32.mrb[0].mxu0
      %2719 = vmatprep.mubr.f32.mxu0 0.0
      %2720 = vmatmul.mubr.f32.gmra.mrb[0].mxu0 %v2584
      %v2721 = vpop.f32.mrb[0].mxu0
      %v2722 = vadd.f32 %v2546, %v2721
      %v2723 = vpop.f32.mrb[0].mxu0
      %2724 = vmatprep.mubr.f32.mxu0 0.0
      %2725 = vmatmul.mubr.f32.gmra.mrb[0].mxu0 %v2587
      %v2726 = vpop.f32.mrb[0].mxu0
      %v2727 = vadd.f32 %v2546, %v2726
      %v2728 = vpop.f32.mrb[0].mxu0
      %2729 = vmatprep.mubr.f32.mxu0 0.0
      %2730 = vmatmul.mubr.f32.gmra.mrb[0].mxu0 %v2590
      %v2731 = vpop.f32.mrb[0].mxu0
      %v2732 = vadd.f32 %v2546, %v2731
      %v2733 = vpop.f32.mrb[0].mxu0
      %2734 = vmatprep.mubr.f32.mxu0 0.0
      %2735 = vmatmul.mubr.f32.gmra.mrb[0].mxu0 %v2593
      %v2736 = vpop.f32.mrb[0].mxu0
      %v2737 = vadd.f32 %v2546, %v2736
      %v2738 = vpop.f32.mrb[0].mxu0
      %2739 = vdwg.mxu0
      %v2740 = vmax.f32 %v2662, 0.0
      %v2741 = vmax.f32 %v2667, 0.0
      %v2742 = vmax.f32 %v2672, 0.0
      %v2743 = vmax.f32 %v2677, 0.0
      %v2744 = vmax.f32 %v2682, 0.0
      %v2745 = vmax.f32 %v2687, 0.0
      %v2746 = vmax.f32 %v2692, 0.0
      %v2747 = vmax.f32 %v2697, 0.0
      %v2748 = vmax.f32 %v2702, 0.0
      %v2749 = vmax.f32 %v2707, 0.0
      %v2750 = vmax.f32 %v2712, 0.0
      %v2751 = vmax.f32 %v2717, 0.0
      %v2752 = vmax.f32 %v2722, 0.0
      %v2753 = vmax.f32 %v2727, 0.0
      %v2754 = vmax.f32 %v2732, 0.0
      %v2755 = vmax.f32 %v2737, 0.0
      %v2756 = vld [vmem:[%s4] sm:$0xff]
      %v2757 = vld [vmem:[%s4 + $0x8] sm:$0xff]
      %v2758 = vld [vmem:[%s4 + $0x10] sm:$0xff]
      %v2759 = vld [vmem:[%s4 + $0x18] sm:$0xff]
      %v2760 = vld [vmem:[%s4 + $0x20] sm:$0xff]
      %v2761 = vld [vmem:[%s4 + $0x28] sm:$0xff]
      %v2762 = vld [vmem:[%s4 + $0x30] sm:$0xff]
      %v2763 = vld [vmem:[%s4 + $0x38] sm:$0xff]
      %v2764 = vlaneseq
      %v2765 = vshrl.u32 %v2764, 7
      %v2766 = vsub.s32 5, %v2765
      %v2767 = vrot.slane %v268, %v2766
      %vm2768 = vcmask 523264
      %v2770 = vsel %vm2768, %v2740, 0
      %v2773 = vsel %vm2768, %v2741, 0
      %v2776 = vsel %vm2768, %v2742, 0
      %v2779 = vsel %vm2768, %v2743, 0
      %v2782 = vsel %vm2768, %v2744, 0
      %v2785 = vsel %vm2768, %v2745, 0
      %v2788 = vsel %vm2768, %v2746, 0
      %v2791 = vsel %vm2768, %v2747, 0
      %v2794 = vsel %vm2768, %v2748, 0
      %v2797 = vsel %vm2768, %v2749, 0
      %v2800 = vsel %vm2768, %v2750, 0
      %v2803 = vsel %vm2768, %v2751, 0
      %v2806 = vsel %vm2768, %v2752, 0
      %v2809 = vsel %vm2768, %v2753, 0
      %v2812 = vsel %vm2768, %v2754, 0
      %v2815 = vsel %vm2768, %v2755, 0
      %2817 = vmatprep.subr.mxu0 0.0
      %2818 = vmatpush1.msra.mxu0 %v2756
      %2819 = vmatprep.subr.mxu0 0.0
      %2820 = vmatpush1.msra.mxu0 %v2757
      %2821 = vmatprep.subr.mxu0 0.0
      %2822 = vmatpush1.msra.mxu0 %v2758
      %2823 = vmatprep.subr.mxu0 0.0
      %2824 = vmatpush1.msra.mxu0 %v2759
      %2825 = vmatprep.subr.mxu0 0.0
      %2826 = vmatpush1.msra.mxu0 %v2760
      %2827 = vmatprep.subr.mxu0 0.0
      %2828 = vmatpush1.msra.mxu0 %v2761
      %2829 = vmatprep.subr.mxu0 0.0
      %2830 = vmatpush1.msra.mxu0 %v2762
      %2831 = vmatprep.subr.mxu0 0.0
      %2832 = vmatpush1.msra.mxu0 %v2763
      %2833 = vmatprep.subr.mxu0 0.0
      %2834 = vmatpush1.msra.mxu0 0.0
      %2835 = vmatprep.subr.mxu0 0.0
      %2836 = vmatpush1.msra.mxu0 0.0
      %2837 = vmatprep.subr.mxu0 0.0
      %2838 = vmatpush1.msra.mxu0 0.0
      %2839 = vmatprep.subr.mxu0 0.0
      %2840 = vmatpush1.msra.mxu0 0.0
      %2841 = vmatprep.subr.mxu0 0.0
      %2842 = vmatpush1.msra.mxu0 0.0
      %2843 = vmatprep.subr.mxu0 0.0
      %2844 = vmatpush1.msra.mxu0 0.0
      %2845 = vmatprep.subr.mxu0 0.0
      %2846 = vmatpush1.msra.mxu0 0.0
      %2847 = vmatprep.subr.mxu0 0.0
      %2848 = vmatpush1.msra.mxu0 0.0
      %2849 = vmatprep.subr.mxu0 0.0
      %2850 = vmatpush1.msra.mxu0 0.0
      %2851 = vmatprep.subr.mxu0 0.0
      %2852 = vmatpush1.msra.mxu0 0.0
      %2853 = vmatprep.subr.mxu0 0.0
      %2854 = vmatpush1.msra.mxu0 0.0
      %2855 = vmatprep.subr.mxu0 0.0
      %2856 = vmatpush1.msra.mxu0 0.0
      %2857 = vmatprep.subr.mxu0 0.0
      %2858 = vmatpush1.msra.mxu0 0.0
      %2859 = vmatprep.subr.mxu0 0.0
      %2860 = vmatpush1.msra.mxu0 0.0
      %2861 = vmatprep.subr.mxu0 0.0
      %2862 = vmatpush1.msra.mxu0 0.0
      %2863 = vmatprep.subr.mxu0 0.0
      %2864 = vmatpush1.msra.mxu0 0.0
      %2865 = vmatprep.subr.mxu0 0.0
      %2866 = vmatpush1.msra.mxu0 0.0
      %2867 = vmatprep.subr.mxu0 0.0
      %2868 = vmatpush1.msra.mxu0 0.0
      %2869 = vmatprep.subr.mxu0 0.0
      %2870 = vmatpush1.msra.mxu0 0.0
      %2871 = vmatprep.subr.mxu0 0.0
      %2872 = vmatpush1.msra.mxu0 0.0
      %2873 = vmatprep.subr.mxu0 0.0
      %2874 = vmatpush1.msra.mxu0 0.0
      %2875 = vmatprep.subr.mxu0 0.0
      %2876 = vmatpush1.msra.mxu0 0.0
      %2877 = vmatprep.subr.mxu0 0.0
      %2878 = vmatpush1.msra.mxu0 0.0
      %2879 = vmatprep.subr.mxu0 0.0
      %2880 = vmatpush1.msra.mxu0 0.0
      %2881 = vmatprep.mubr.f32.mxu0 0.0
      %2882 = vmatmul.mubr.f32.gmra.mrb[0].mxu0 %v2770
      %v2883 = vpop.f32.mrb[0].mxu0
      %v2884 = vadd.f32 %v2767, %v2883
      %v2885 = vpop.f32.mrb[0].mxu0
      %2886 = vmatprep.mubr.f32.mxu0 0.0
      %2887 = vmatmul.mubr.f32.gmra.mrb[0].mxu0 %v2773
      %v2888 = vpop.f32.mrb[0].mxu0
      %v2889 = vadd.f32 %v2767, %v2888
      %v2890 = vpop.f32.mrb[0].mxu0
      %2891 = vmatprep.mubr.f32.mxu0 0.0
      %2892 = vmatmul.mubr.f32.gmra.mrb[0].mxu0 %v2776
      %v2893 = vpop.f32.mrb[0].mxu0
      %v2894 = vadd.f32 %v2767, %v2893
      %v2895 = vpop.f32.mrb[0].mxu0
      %2896 = vmatprep.mubr.f32.mxu0 0.0
      %2897 = vmatmul.mubr.f32.gmra.mrb[0].mxu0 %v2779
      %v2898 = vpop.f32.mrb[0].mxu0
      %v2899 = vadd.f32 %v2767, %v2898
      %v2900 = vpop.f32.mrb[0].mxu0
      %2901 = vmatprep.mubr.f32.mxu0 0.0
      %2902 = vmatmul.mubr.f32.gmra.mrb[0].mxu0 %v2782
      %v2903 = vpop.f32.mrb[0].mxu0
      %v2904 = vadd.f32 %v2767, %v2903
      %v2905 = vpop.f32.mrb[0].mxu0
      %2906 = vmatprep.mubr.f32.mxu0 0.0
      %2907 = vmatmul.mubr.f32.gmra.mrb[0].mxu0 %v2785
      %v2908 = vpop.f32.mrb[0].mxu0
      %v2909 = vadd.f32 %v2767, %v2908
      %v2910 = vpop.f32.mrb[0].mxu0
      %2911 = vmatprep.mubr.f32.mxu0 0.0
      %2912 = vmatmul.mubr.f32.gmra.mrb[0].mxu0 %v2788
      %v2913 = vpop.f32.mrb[0].mxu0
      %v2914 = vadd.f32 %v2767, %v2913
      %v2915 = vpop.f32.mrb[0].mxu0
      %2916 = vmatprep.mubr.f32.mxu0 0.0
      %2917 = vmatmul.mubr.f32.gmra.mrb[0].mxu0 %v2791
      %v2918 = vpop.f32.mrb[0].mxu0
      %v2919 = vadd.f32 %v2767, %v2918
      %v2920 = vpop.f32.mrb[0].mxu0
      %2921 = vmatprep.mubr.f32.mxu0 0.0
      %2922 = vmatmul.mubr.f32.gmra.mrb[0].mxu0 %v2794
      %v2923 = vpop.f32.mrb[0].mxu0
      %v2924 = vadd.f32 %v2767, %v2923
      %v2925 = vpop.f32.mrb[0].mxu0
      %2926 = vmatprep.mubr.f32.mxu0 0.0
      %2927 = vmatmul.mubr.f32.gmra.mrb[0].mxu0 %v2797
      %v2928 = vpop.f32.mrb[0].mxu0
      %v2929 = vadd.f32 %v2767, %v2928
      %v2930 = vpop.f32.mrb[0].mxu0
      %2931 = vmatprep.mubr.f32.mxu0 0.0
      %2932 = vmatmul.mubr.f32.gmra.mrb[0].mxu0 %v2800
      %v2933 = vpop.f32.mrb[0].mxu0
      %v2934 = vadd.f32 %v2767, %v2933
      %v2935 = vpop.f32.mrb[0].mxu0
      %2936 = vmatprep.mubr.f32.mxu0 0.0
      %2937 = vmatmul.mubr.f32.gmra.mrb[0].mxu0 %v2803
      %v2938 = vpop.f32.mrb[0].mxu0
      %v2939 = vadd.f32 %v2767, %v2938
      %v2940 = vpop.f32.mrb[0].mxu0
      %2941 = vmatprep.mubr.f32.mxu0 0.0
      %2942 = vmatmul.mubr.f32.gmra.mrb[0].mxu0 %v2806
      %v2943 = vpop.f32.mrb[0].mxu0
      %v2944 = vadd.f32 %v2767, %v2943
      %v2945 = vpop.f32.mrb[0].mxu0
      %2946 = vmatprep.mubr.f32.mxu0 0.0
      %2947 = vmatmul.mubr.f32.gmra.mrb[0].mxu0 %v2809
      %v2948 = vpop.f32.mrb[0].mxu0
      %v2949 = vadd.f32 %v2767, %v2948
      %v2950 = vpop.f32.mrb[0].mxu0
      %2951 = vmatprep.mubr.f32.mxu0 0.0
      %2952 = vmatmul.mubr.f32.gmra.mrb[0].mxu0 %v2812
      %v2953 = vpop.f32.mrb[0].mxu0
      %v2954 = vadd.f32 %v2767, %v2953
      %v2955 = vpop.f32.mrb[0].mxu0
      %2956 = vmatprep.mubr.f32.mxu0 0.0
      %2957 = vmatmul.mubr.f32.gmra.mrb[0].mxu0 %v2815
      %v2958 = vpop.f32.mrb[0].mxu0
      %v2959 = vadd.f32 %v2767, %v2958
      %v2960 = vpop.f32.mrb[0].mxu0
      %2961 = vdwg.mxu0
      %v2962 = vadd.f32 %v2523, %v2884
      %v2963 = vadd.f32 %v2524, %v2889
      %v2964 = vadd.f32 %v2525, %v2894
      %v2965 = vadd.f32 %v2526, %v2899
      %v2966 = vadd.f32 %v2527, %v2904
      %v2967 = vadd.f32 %v2528, %v2909
      %v2968 = vadd.f32 %v2529, %v2914
      %v2969 = vadd.f32 %v2530, %v2919
      %v2970 = vadd.f32 %v2531, %v2924
      %v2971 = vadd.f32 %v2532, %v2929
      %v2972 = vadd.f32 %v2533, %v2934
      %v2973 = vadd.f32 %v2534, %v2939
      %v2974 = vadd.f32 %v2535, %v2944
      %v2975 = vadd.f32 %v2536, %v2949
      %v2976 = vadd.f32 %v2537, %v2954
      %v2977 = vadd.f32 %v2538, %v2959
      %v2978 = vsel %vm278, %v2962, 0.0
      %2979 = vadd.xlane.f32.xlu0 %v2978
      %v2980 = vpop.xlane.xlu0 %2979
      %v2981 = vsel %vm278, %v2963, 0.0
      %2982 = vadd.xlane.f32.xlu0 %v2981
      %v2983 = vpop.xlane.xlu0 %2982
      %v2984 = vsel %vm278, %v2964, 0.0
      %2985 = vadd.xlane.f32.xlu0 %v2984
      %v2986 = vpop.xlane.xlu0 %2985
      %v2987 = vsel %vm278, %v2965, 0.0
      %2988 = vadd.xlane.f32.xlu0 %v2987
      %v2989 = vpop.xlane.xlu0 %2988
      %v2990 = vsel %vm278, %v2966, 0.0
      %2991 = vadd.xlane.f32.xlu0 %v2990
      %v2992 = vpop.xlane.xlu0 %2991
      %v2993 = vsel %vm278, %v2967, 0.0
      %2994 = vadd.xlane.f32.xlu0 %v2993
      %v2995 = vpop.xlane.xlu0 %2994
      %v2996 = vsel %vm278, %v2968, 0.0
      %2997 = vadd.xlane.f32.xlu0 %v2996
      %v2998 = vpop.xlane.xlu0 %2997
      %v2999 = vsel %vm278, %v2969, 0.0
      %3000 = vadd.xlane.f32.xlu0 %v2999
      %v3001 = vpop.xlane.xlu0 %3000
      %v3002 = vsel %vm278, %v2970, 0.0
      %3003 = vadd.xlane.f32.xlu0 %v3002
      %v3004 = vpop.xlane.xlu0 %3003
      %v3005 = vsel %vm278, %v2971, 0.0
      %3006 = vadd.xlane.f32.xlu0 %v3005
      %v3007 = vpop.xlane.xlu0 %3006
      %v3008 = vsel %vm278, %v2972, 0.0
      %3009 = vadd.xlane.f32.xlu0 %v3008
      %v3010 = vpop.xlane.xlu0 %3009
      %v3011 = vsel %vm278, %v2973, 0.0
      %3012 = vadd.xlane.f32.xlu0 %v3011
      %v3013 = vpop.xlane.xlu0 %3012
      %v3014 = vsel %vm278, %v2974, 0.0
      %3015 = vadd.xlane.f32.xlu0 %v3014
      %v3016 = vpop.xlane.xlu0 %3015
      %v3017 = vsel %vm278, %v2975, 0.0
      %3018 = vadd.xlane.f32.xlu0 %v3017
      %v3019 = vpop.xlane.xlu0 %3018
      %v3020 = vsel %vm278, %v2976, 0.0
      %3021 = vadd.xlane.f32.xlu0 %v3020
      %v3022 = vpop.xlane.xlu0 %3021
      %v3023 = vsel %vm278, %v2977, 0.0
      %3024 = vadd.xlane.f32.xlu0 %v3023
      %v3025 = vpop.xlane.xlu0 %3024
      %v3026 = vmul.f32 %v2980, %v2338
      %v3027 = vmul.f32 %v2983, %v2338
      %v3028 = vmul.f32 %v2986, %v2338
      %v3029 = vmul.f32 %v2989, %v2338
      %v3030 = vmul.f32 %v2992, %v2338
      %v3031 = vmul.f32 %v2995, %v2338
      %v3032 = vmul.f32 %v2998, %v2338
      %v3033 = vmul.f32 %v3001, %v2338
      %v3034 = vmul.f32 %v3004, %v2338
      %v3035 = vmul.f32 %v3007, %v2338
      %v3036 = vmul.f32 %v3010, %v2338
      %v3037 = vmul.f32 %v3013, %v2338
      %v3038 = vmul.f32 %v3016, %v2338
      %v3039 = vmul.f32 %v3019, %v2338
      %v3040 = vmul.f32 %v3022, %v2338
      %v3041 = vmul.f32 %v3025, %v2338
      %v3042 = vsub.f32 %v2962, %v3026
      %v3043 = vsub.f32 %v2963, %v3027
      %v3044 = vsub.f32 %v2964, %v3028
      %v3045 = vsub.f32 %v2965, %v3029
      %v3046 = vsub.f32 %v2966, %v3030
      %v3047 = vsub.f32 %v2967, %v3031
      %v3048 = vsub.f32 %v2968, %v3032
      %v3049 = vsub.f32 %v2969, %v3033
      %v3050 = vsub.f32 %v2970, %v3034
      %v3051 = vsub.f32 %v2971, %v3035
      %v3052 = vsub.f32 %v2972, %v3036
      %v3053 = vsub.f32 %v2973, %v3037
      %v3054 = vsub.f32 %v2974, %v3038
      %v3055 = vsub.f32 %v2975, %v3039
      %v3056 = vsub.f32 %v2976, %v3040
      %v3057 = vsub.f32 %v2977, %v3041
      %v3058 = vmul.f32 %v3042, %v3042
      %v3059 = vmul.f32 %v3043, %v3043
      %v3060 = vmul.f32 %v3044, %v3044
      %v3061 = vmul.f32 %v3045, %v3045
      %v3062 = vmul.f32 %v3046, %v3046
      %v3063 = vmul.f32 %v3047, %v3047
      %v3064 = vmul.f32 %v3048, %v3048
      %v3065 = vmul.f32 %v3049, %v3049
      %v3066 = vmul.f32 %v3050, %v3050
      %v3067 = vmul.f32 %v3051, %v3051
      %v3068 = vmul.f32 %v3052, %v3052
      %v3069 = vmul.f32 %v3053, %v3053
      %v3070 = vmul.f32 %v3054, %v3054
      %v3071 = vmul.f32 %v3055, %v3055
      %v3072 = vmul.f32 %v3056, %v3056
      %v3073 = vmul.f32 %v3057, %v3057
      %v3074 = vsel %vm278, %v3058, 0.0
      %3075 = vadd.xlane.f32.xlu0 %v3074
      %v3076 = vpop.xlane.xlu0 %3075
      %v3077 = vsel %vm278, %v3059, 0.0
      %3078 = vadd.xlane.f32.xlu0 %v3077
      %v3079 = vpop.xlane.xlu0 %3078
      %v3080 = vsel %vm278, %v3060, 0.0
      %3081 = vadd.xlane.f32.xlu0 %v3080
      %v3082 = vpop.xlane.xlu0 %3081
      %v3083 = vsel %vm278, %v3061, 0.0
      %3084 = vadd.xlane.f32.xlu0 %v3083
      %v3085 = vpop.xlane.xlu0 %3084
      %v3086 = vsel %vm278, %v3062, 0.0
      %3087 = vadd.xlane.f32.xlu0 %v3086
      %v3088 = vpop.xlane.xlu0 %3087
      %v3089 = vsel %vm278, %v3063, 0.0
      %3090 = vadd.xlane.f32.xlu0 %v3089
      %v3091 = vpop.xlane.xlu0 %3090
      %v3092 = vsel %vm278, %v3064, 0.0
      %3093 = vadd.xlane.f32.xlu0 %v3092
      %v3094 = vpop.xlane.xlu0 %3093
      %v3095 = vsel %vm278, %v3065, 0.0
      %3096 = vadd.xlane.f32.xlu0 %v3095
      %v3097 = vpop.xlane.xlu0 %3096
      %v3098 = vsel %vm278, %v3066, 0.0
      %3099 = vadd.xlane.f32.xlu0 %v3098
      %v3100 = vpop.xlane.xlu0 %3099
      %v3101 = vsel %vm278, %v3067, 0.0
      %3102 = vadd.xlane.f32.xlu0 %v3101
      %v3103 = vpop.xlane.xlu0 %3102
      %v3104 = vsel %vm278, %v3068, 0.0
      %3105 = vadd.xlane.f32.xlu0 %v3104
      %v3106 = vpop.xlane.xlu0 %3105
      %v3107 = vsel %vm278, %v3069, 0.0
      %3108 = vadd.xlane.f32.xlu0 %v3107
      %v3109 = vpop.xlane.xlu0 %3108
      %v3110 = vsel %vm278, %v3070, 0.0
      %3111 = vadd.xlane.f32.xlu0 %v3110
      %v3112 = vpop.xlane.xlu0 %3111
      %v3113 = vsel %vm278, %v3071, 0.0
      %3114 = vadd.xlane.f32.xlu0 %v3113
      %v3115 = vpop.xlane.xlu0 %3114
      %v3116 = vsel %vm278, %v3072, 0.0
      %3117 = vadd.xlane.f32.xlu0 %v3116
      %v3118 = vpop.xlane.xlu0 %3117
      %v3119 = vsel %vm278, %v3073, 0.0
      %3120 = vadd.xlane.f32.xlu0 %v3119
      %v3121 = vpop.xlane.xlu0 %3120
      %v3122 = vmul.f32 %v3076, %v2338
      %v3123 = vmul.f32 %v3079, %v2338
      %v3124 = vmul.f32 %v3082, %v2338
      %v3125 = vmul.f32 %v3085, %v2338
      %v3126 = vmul.f32 %v3088, %v2338
      %v3127 = vmul.f32 %v3091, %v2338
      %v3128 = vmul.f32 %v3094, %v2338
      %v3129 = vmul.f32 %v3097, %v2338
      %v3130 = vmul.f32 %v3100, %v2338
      %v3131 = vmul.f32 %v3103, %v2338
      %v3132 = vmul.f32 %v3106, %v2338
      %v3133 = vmul.f32 %v3109, %v2338
      %v3134 = vmul.f32 %v3112, %v2338
      %v3135 = vmul.f32 %v3115, %v2338
      %v3136 = vmul.f32 %v3118, %v2338
      %v3137 = vmul.f32 %v3121, %v2338
      %v3138 = vadd.f32 %v3122, 1e-05
      %v3139 = vadd.f32 %v3123, 1e-05
      %v3140 = vadd.f32 %v3124, 1e-05
      %v3141 = vadd.f32 %v3125, 1e-05
      %v3142 = vadd.f32 %v3126, 1e-05
      %v3143 = vadd.f32 %v3127, 1e-05
      %v3144 = vadd.f32 %v3128, 1e-05
      %v3145 = vadd.f32 %v3129, 1e-05
      %v3146 = vadd.f32 %v3130, 1e-05
      %v3147 = vadd.f32 %v3131, 1e-05
      %v3148 = vadd.f32 %v3132, 1e-05
      %v3149 = vadd.f32 %v3133, 1e-05
      %v3150 = vadd.f32 %v3134, 1e-05
      %v3151 = vadd.f32 %v3135, 1e-05
      %v3152 = vadd.f32 %v3136, 1e-05
      %v3153 = vadd.f32 %v3137, 1e-05
      %v3154 = vrsqrt.pop %v3138
      %v3155 = vrsqrt.pop %v3139
      %v3156 = vrsqrt.pop %v3140
      %v3157 = vrsqrt.pop %v3141
      %v3158 = vrsqrt.pop %v3142
      %v3159 = vrsqrt.pop %v3143
      %v3160 = vrsqrt.pop %v3144
      %v3161 = vrsqrt.pop %v3145
      %v3162 = vrsqrt.pop %v3146
      %v3163 = vrsqrt.pop %v3147
      %v3164 = vrsqrt.pop %v3148
      %v3165 = vrsqrt.pop %v3149
      %v3166 = vrsqrt.pop %v3150
      %v3167 = vrsqrt.pop %v3151
      %v3168 = vrsqrt.pop %v3152
      %v3169 = vrsqrt.pop %v3153
      %v3170 = vmul.f32 %v3042, %v3154
      %v3171 = vmul.f32 %v3043, %v3155
      %v3172 = vmul.f32 %v3044, %v3156
      %v3173 = vmul.f32 %v3045, %v3157
      %v3174 = vmul.f32 %v3046, %v3158
      %v3175 = vmul.f32 %v3047, %v3159
      %v3176 = vmul.f32 %v3048, %v3160
      %v3177 = vmul.f32 %v3049, %v3161
      %v3178 = vmul.f32 %v3050, %v3162
      %v3179 = vmul.f32 %v3051, %v3163
      %v3180 = vmul.f32 %v3052, %v3164
      %v3181 = vmul.f32 %v3053, %v3165
      %v3182 = vmul.f32 %v3054, %v3166
      %v3183 = vmul.f32 %v3055, %v3167
      %v3184 = vmul.f32 %v3056, %v3168
      %v3185 = vmul.f32 %v3057, %v3169
      %v3186 = vlaneseq
      %v3187 = vshrl.u32 %v3186, 7
      %v3188 = vsub.s32 6, %v3187
      %v3189 = vrot.slane %v268, %v3188
      %v3190 = vmul.f32 %v3170, %v3189
      %v3191 = vmul.f32 %v3171, %v3189
      %v3192 = vmul.f32 %v3172, %v3189
      %v3193 = vmul.f32 %v3173, %v3189
      %v3194 = vmul.f32 %v3174, %v3189
      %v3195 = vmul.f32 %v3175, %v3189
      %v3196 = vmul.f32 %v3176, %v3189
      %v3197 = vmul.f32 %v3177, %v3189
      %v3198 = vmul.f32 %v3178, %v3189
      %v3199 = vmul.f32 %v3179, %v3189
      %v3200 = vmul.f32 %v3180, %v3189
      %v3201 = vmul.f32 %v3181, %v3189
      %v3202 = vmul.f32 %v3182, %v3189
      %v3203 = vmul.f32 %v3183, %v3189
      %v3204 = vmul.f32 %v3184, %v3189
      %v3205 = vmul.f32 %v3185, %v3189
      %v3206 = vlaneseq
      %v3207 = vshrl.u32 %v3206, 7
      %v3208 = vsub.s32 7, %v3207
      %v3209 = vrot.slane %v268, %v3208
      %v3210 = vadd.f32 %v3190, %v3209
      %v3211 = vadd.f32 %v3191, %v3209
      %v3212 = vadd.f32 %v3192, %v3209
      %v3213 = vadd.f32 %v3193, %v3209
      %v3214 = vadd.f32 %v3194, %v3209
      %v3215 = vadd.f32 %v3195, %v3209
      %v3216 = vadd.f32 %v3196, %v3209
      %v3217 = vadd.f32 %v3197, %v3209
      %v3218 = vadd.f32 %v3198, %v3209
      %v3219 = vadd.f32 %v3199, %v3209
      %v3220 = vadd.f32 %v3200, %v3209
      %v3221 = vadd.f32 %v3201, %v3209
      %v3222 = vadd.f32 %v3202, %v3209
      %v3223 = vadd.f32 %v3203, %v3209
      %v3224 = vadd.f32 %v3204, %v3209
      %v3225 = vadd.f32 %v3205, %v3209
      %v3226 = vsel %vm278, %v3210, 0.0
      %v3227 = vsel %vm278, %v3211, 0.0
      %v3228 = vadd.f32 %v3226, %v3227
      %v3229 = vsel %vm278, %v3212, 0.0
      %v3230 = vadd.f32 %v3228, %v3229
      %v3231 = vsel %vm278, %v3213, 0.0
      %v3232 = vadd.f32 %v3230, %v3231
      %v3233 = vsel %vm278, %v3214, 0.0
      %v3234 = vadd.f32 %v3232, %v3233
      %v3235 = vsel %vm278, %v3215, 0.0
      %v3236 = vadd.f32 %v3234, %v3235
      %v3237 = vsel %vm278, %v3216, 0.0
      %v3238 = vadd.f32 %v3236, %v3237
      %v3239 = vsel %vm278, %v3217, 0.0
      %v3240 = vadd.f32 %v3238, %v3239
      %v3241 = vsel %vm278, %v3218, 0.0
      %v3242 = vadd.f32 %v3240, %v3241
      %v3243 = vsel %vm278, %v3219, 0.0
      %v3244 = vadd.f32 %v3242, %v3243
      %v3245 = vsel %vm278, %v3220, 0.0
      %v3246 = vadd.f32 %v3244, %v3245
      %v3247 = vsel %vm278, %v3221, 0.0
      %v3248 = vadd.f32 %v3246, %v3247
      %v3249 = vsel %vm278, %v3222, 0.0
      %v3250 = vadd.f32 %v3248, %v3249
      %v3251 = vsel %vm278, %v3223, 0.0
      %v3252 = vadd.f32 %v3250, %v3251
      %v3253 = vsel %vm278, %v3224, 0.0
      %v3254 = vadd.f32 %v3252, %v3253
      %v3255 = vsel %vm278, %v3225, 0.0
      %v3256 = vadd.f32 %v3254, %v3255
      %3257 = vadd.xlane.f32.xlu0 %v3256
      %v3258 = vpop.xlane.xlu0 %3257
      %v3259 = vrot.slane %v3258, 4
      %v3260 = vadd.f32 %v3258, %v3259
      %v3261 = vrot.slane %v3260, 2
      %v3262 = vadd.f32 %v3260, %v3261
      %v3263 = vrot.slane %v3262, 1
      %v3264 = vadd.f32 %v3262, %v3263
      %s3265 = vtos %v3264
      %v3266 = vrcp.pop 4096.0
      %s3267 = vtos %v3266
      %s3268 = smul.f32 %s3265, %s3267
      %v3269 = vstv %s3268
      %v3270 = vsub.f32 %v3210, %v3269
      %v3271 = vsub.f32 %v3211, %v3269
      %v3272 = vsub.f32 %v3212, %v3269
      %v3273 = vsub.f32 %v3213, %v3269
      %v3274 = vsub.f32 %v3214, %v3269
      %v3275 = vsub.f32 %v3215, %v3269
      %v3276 = vsub.f32 %v3216, %v3269
      %v3277 = vsub.f32 %v3217, %v3269
      %v3278 = vsub.f32 %v3218, %v3269
      %v3279 = vsub.f32 %v3219, %v3269
      %v3280 = vsub.f32 %v3220, %v3269
      %v3281 = vsub.f32 %v3221, %v3269
      %v3282 = vsub.f32 %v3222, %v3269
      %v3283 = vsub.f32 %v3223, %v3269
      %v3284 = vsub.f32 %v3224, %v3269
      %v3285 = vsub.f32 %v3225, %v3269
      %v3286 = vmul.f32 %v3270, %v3270
      %v3287 = vmul.f32 %v3271, %v3271
      %v3288 = vmul.f32 %v3272, %v3272
      %v3289 = vmul.f32 %v3273, %v3273
      %v3290 = vmul.f32 %v3274, %v3274
      %v3291 = vmul.f32 %v3275, %v3275
      %v3292 = vmul.f32 %v3276, %v3276
      %v3293 = vmul.f32 %v3277, %v3277
      %v3294 = vmul.f32 %v3278, %v3278
      %v3295 = vmul.f32 %v3279, %v3279
      %v3296 = vmul.f32 %v3280, %v3280
      %v3297 = vmul.f32 %v3281, %v3281
      %v3298 = vmul.f32 %v3282, %v3282
      %v3299 = vmul.f32 %v3283, %v3283
      %v3300 = vmul.f32 %v3284, %v3284
      %v3301 = vmul.f32 %v3285, %v3285
      %v3302 = vsel %vm278, %v3286, 0.0
      %v3303 = vsel %vm278, %v3287, 0.0
      %v3304 = vadd.f32 %v3302, %v3303
      %v3305 = vsel %vm278, %v3288, 0.0
      %v3306 = vadd.f32 %v3304, %v3305
      %v3307 = vsel %vm278, %v3289, 0.0
      %v3308 = vadd.f32 %v3306, %v3307
      %v3309 = vsel %vm278, %v3290, 0.0
      %v3310 = vadd.f32 %v3308, %v3309
      %v3311 = vsel %vm278, %v3291, 0.0
      %v3312 = vadd.f32 %v3310, %v3311
      %v3313 = vsel %vm278, %v3292, 0.0
      %v3314 = vadd.f32 %v3312, %v3313
      %v3315 = vsel %vm278, %v3293, 0.0
      %v3316 = vadd.f32 %v3314, %v3315
      %v3317 = vsel %vm278, %v3294, 0.0
      %v3318 = vadd.f32 %v3316, %v3317
      %v3319 = vsel %vm278, %v3295, 0.0
      %v3320 = vadd.f32 %v3318, %v3319
      %v3321 = vsel %vm278, %v3296, 0.0
      %v3322 = vadd.f32 %v3320, %v3321
      %v3323 = vsel %vm278, %v3297, 0.0
      %v3324 = vadd.f32 %v3322, %v3323
      %v3325 = vsel %vm278, %v3298, 0.0
      %v3326 = vadd.f32 %v3324, %v3325
      %v3327 = vsel %vm278, %v3299, 0.0
      %v3328 = vadd.f32 %v3326, %v3327
      %v3329 = vsel %vm278, %v3300, 0.0
      %v3330 = vadd.f32 %v3328, %v3329
      %v3331 = vsel %vm278, %v3301, 0.0
      %v3332 = vadd.f32 %v3330, %v3331
      %3333 = vadd.xlane.f32.xlu0 %v3332
      %v3334 = vpop.xlane.xlu0 %3333
      %v3335 = vrot.slane %v3334, 4
      %v3336 = vadd.f32 %v3334, %v3335
      %v3337 = vrot.slane %v3336, 2
      %v3338 = vadd.f32 %v3336, %v3337
      %v3339 = vrot.slane %v3338, 1
      %v3340 = vadd.f32 %v3338, %v3339
      %s3341 = vtos %v3340
      %v3342 = vrcp.pop 4096.0
      %s3343 = vtos %v3342
      %s3344 = smul.f32 %s3341, %s3343
      %s3345 = sadd.f32 %s3344, 1e-08
      %v3346 = vstv %s3345
      %v3347 = vrsqrt.pop %v3346
      %s3348 = vtos %v3347
      %v3349 = vstv %s3348
      %v3350 = vmul.f32 %v3270, %v3349
      %v3351 = vmul.f32 %v3271, %v3349
      %v3352 = vmul.f32 %v3272, %v3349
      %v3353 = vmul.f32 %v3273, %v3349
      %v3354 = vmul.f32 %v3274, %v3349
      %v3355 = vmul.f32 %v3275, %v3349
      %v3356 = vmul.f32 %v3276, %v3349
      %v3357 = vmul.f32 %v3277, %v3349
      %v3358 = vmul.f32 %v3278, %v3349
      %v3359 = vmul.f32 %v3279, %v3349
      %v3360 = vmul.f32 %v3280, %v3349
      %v3361 = vmul.f32 %v3281, %v3349
      %v3362 = vmul.f32 %v3282, %v3349
      %v3363 = vmul.f32 %v3283, %v3349
      %v3364 = vmul.f32 %v3284, %v3349
      %v3365 = vmul.f32 %v3285, %v3349
      %v3366 = vlaneseq
      %v3367 = vshrl.u32 %v3366, 7
      %v3368 = vsub.s32 0, %v3367
      %v3369 = vrot.slane %v269, %v3368
      %v3370 = vmul.f32 %v3350, %v3369
      %v3371 = vmul.f32 %v3351, %v3369
      %v3372 = vmul.f32 %v3352, %v3369
      %v3373 = vmul.f32 %v3353, %v3369
      %v3374 = vmul.f32 %v3354, %v3369
      %v3375 = vmul.f32 %v3355, %v3369
      %v3376 = vmul.f32 %v3356, %v3369
      %v3377 = vmul.f32 %v3357, %v3369
      %v3378 = vmul.f32 %v3358, %v3369
      %v3379 = vmul.f32 %v3359, %v3369
      %v3380 = vmul.f32 %v3360, %v3369
      %v3381 = vmul.f32 %v3361, %v3369
      %v3382 = vmul.f32 %v3362, %v3369
      %v3383 = vmul.f32 %v3363, %v3369
      %v3384 = vmul.f32 %v3364, %v3369
      %v3385 = vmul.f32 %v3365, %v3369
      %v3386 = vlaneseq
      %v3387 = vshrl.u32 %v3386, 7
      %v3388 = vsub.s32 1, %v3387
      %v3389 = vrot.slane %v269, %v3388
      %v3390 = vadd.f32 %v3370, %v3389
      %v3391 = vadd.f32 %v3371, %v3389
      %v3392 = vadd.f32 %v3372, %v3389
      %v3393 = vadd.f32 %v3373, %v3389
      %v3394 = vadd.f32 %v3374, %v3389
      %v3395 = vadd.f32 %v3375, %v3389
      %v3396 = vadd.f32 %v3376, %v3389
      %v3397 = vadd.f32 %v3377, %v3389
      %v3398 = vadd.f32 %v3378, %v3389
      %v3399 = vadd.f32 %v3379, %v3389
      %v3400 = vadd.f32 %v3380, %v3389
      %v3401 = vadd.f32 %v3381, %v3389
      %v3402 = vadd.f32 %v3382, %v3389
      %v3403 = vadd.f32 %v3383, %v3389
      %v3404 = vadd.f32 %v3384, %v3389
      %v3405 = vadd.f32 %v3385, %v3389
      %v3406 = vadd.f32 %v3390, %v252
      %v3407 = vadd.f32 %v3391, %v253
      %v3408 = vadd.f32 %v3392, %v254
      %v3409 = vadd.f32 %v3393, %v255
      %v3410 = vadd.f32 %v3394, %v256
      %v3411 = vadd.f32 %v3395, %v257
      %v3412 = vadd.f32 %v3396, %v258
      %v3413 = vadd.f32 %v3397, %v259
      %v3414 = vadd.f32 %v3398, %v260
      %v3415 = vadd.f32 %v3399, %v261
      %v3416 = vadd.f32 %v3400, %v262
      %v3417 = vadd.f32 %v3401, %v263
      %v3418 = vadd.f32 %v3402, %v264
      %v3419 = vadd.f32 %v3403, %v265
      %v3420 = vadd.f32 %v3404, %v266
      %v3421 = vadd.f32 %v3405, %v267
      %3422 = vst.msk [vmem:[%s251] sm:$0xff] %vm278, %v3406
      %3423 = vst.msk [vmem:[%s251 + $0x8] sm:$0xff] %vm278, %v3407
      %3424 = vst.msk [vmem:[%s251 + $0x10] sm:$0xff] %vm278, %v3408
      %3425 = vst.msk [vmem:[%s251 + $0x18] sm:$0xff] %vm278, %v3409
      %3426 = vst.msk [vmem:[%s251 + $0x20] sm:$0xff] %vm278, %v3410
      %3427 = vst.msk [vmem:[%s251 + $0x28] sm:$0xff] %vm278, %v3411
      %3428 = vst.msk [vmem:[%s251 + $0x30] sm:$0xff] %vm278, %v3412
      %3429 = vst.msk [vmem:[%s251 + $0x38] sm:$0xff] %vm278, %v3413
      %3430 = vst.msk [vmem:[%s251 + $0x40] sm:$0xff] %vm278, %v3414
      %3431 = vst.msk [vmem:[%s251 + $0x48] sm:$0xff] %vm278, %v3415
      %3432 = vst.msk [vmem:[%s251 + $0x50] sm:$0xff] %vm278, %v3416
      %3433 = vst.msk [vmem:[%s251 + $0x58] sm:$0xff] %vm278, %v3417
      %3434 = vst.msk [vmem:[%s251 + $0x60] sm:$0xff] %vm278, %v3418
      %3435 = vst.msk [vmem:[%s251 + $0x68] sm:$0xff] %vm278, %v3419
      %3436 = vst.msk [vmem:[%s251 + $0x70] sm:$0xff] %vm278, %v3420
      %3437 = vst.msk [vmem:[%s251 + $0x78] sm:$0xff] %vm278, %v3421
      %p3438 = scmp.lt.s32.totalorder %s17, 1
      %s3439 = scalar_select %p3438, %s17, 1
      %s3440 = smul.addr %s3439, 16
      %s3441 = smul.addr %s3440, 8
      %s3442 = scalar_lea.vmem %s6, %s3441
      // Predicated region
      $region45: #{dual_dpa_block.2} parent=43 // pred_check
        %p3443 = pneg %p166
      $region46: #{dual_dpa_block.2} parent=43 // pred_check_branch
        %3445 = sbr.rel (%p3443) target = $region48
      $region47: #{dual_dpa_block.2} parent=43 // pred_region
        _
      $region48: #{dual_dpa_block.2} parent=43 // pred_fallthru
        _
    $region44: #{dual_dpa_block.2} parent=5 // pred_fallthru
      _
    %p3446 = scmp.le.s32.totalorder 2, %s12
    // Predicated region
    $region49: #{dual_dpa_block.2} parent=5 // pred_check
      %p3447 = pneg %p3446
    $region50: #{dual_dpa_block.2} parent=5 // pred_check_branch
      %3449 = sbr.rel (%p3447) target = $region52
    $region51: #{dual_dpa_block.2} parent=5 // pred_region
      %s3450 = ssub.s32 %s12, 2
      // Predicated region
      $region53: #{dual_dpa_block.2} parent=51 // pred_check
        %p3451 = pneg %p172
      $region54: #{dual_dpa_block.2} parent=51 // pred_check_branch
        %3453 = sbr.rel (%p3451) target = $region56
      $region55: #{dual_dpa_block.2} parent=51 // pred_region
        %p3454 = scmp.lt.s32.totalorder %s18, 1
        %s3455 = scalar_select %p3454, %s18, 1
        %s3456 = smul.addr %s3455, 16
        %s3457 = smul.addr %s3456, 8
        %s3458 = scalar_lea.vmem %s6, %s3457
      $region56: #{dual_dpa_block.2} parent=51 // pred_fallthru
        _
    $region52: #{dual_dpa_block.2} parent=5 // pred_fallthru
      _
  $region6: #{dual_dpa_block.2} parent=0 // loop_footer
    %s16 = sadd.s32 1, %s12
  $region7: #{dual_dpa_block.2} parent=0 // loop_footer_branch
    %11 = sbr.rel target = $region3
  $region8: #{dual_dpa_block.2} parent=0 // loop_exit
    _

// kernel: dual_dpa_block.3
$region0: #{dual_dpa_block.3}
  #allocation0 [shape = 'u32[]', space=smem, size = 0x4, offset = 0x4, fixed_abs, tag = 'smem constant byte address 0x4 - core index']
  #allocation1 [shape = 'u32[144,128]{1,0:T(1,128)}', space=vmem, size = 0x12000, scoped, tag = 'internal scratch']
  %s0 = inlined_call_operand.vmem [shape: f32[2,16,8,32], index: 0, kind: input, shape index: {}]
  %s1 = inlined_call_operand.vmem [shape: f32[32,96], index: 1, kind: input, shape index: {}]
  %s2 = inlined_call_operand.vmem [shape: f32[32,32], index: 2, kind: input, shape index: {}]
  %s3 = inlined_call_operand.vmem [shape: f32[32,64], index: 3, kind: input, shape index: {}]
  %s4 = inlined_call_operand.vmem [shape: f32[64,32], index: 4, kind: input, shape index: {}]
  %s5 = inlined_call_operand.vmem [shape: f32[10,96], index: 5, kind: input, shape index: {}]
  %s6 = inlined_call_operand.hbm [shape: f32[2,16,8,32], index: 6, kind: output, shape index: {}]
  %s7 = sld [smem:[#allocation0]]
  $region57: #{dual_dpa_block.3} parent=0
    _
  %s9 = ssub.s32 1, %s7
  %s10 = scalar_select 0, %s9, %s7
  $region1: #{dual_dpa_block.3} parent=0
    #allocation2 [shape = 'u8[131072]{0}', space=vmem, size = 0x20000, scoped, tag = 'output window, operand 0']
    #allocation3 [shape = 's32[2]{0}', space=sflag, size = 0x8, scoped, tag = 'scoped memory for dual_dpa_block.3']
    %11 = vsyncpa [#allocation3], 0
    %s12 = scalar_lea.sflag [#allocation3], 1
    %13 = vsyncpa %s12, 0
    loop: start=0, step=1, limit=4
    $region2: #{dual_dpa_block.3} parent=1 // loop_pre_header
      _
    $region3: #{dual_dpa_block.3} parent=1 // loop_header
      %s15 = sphi 0, %s19
      %p16 = scmp.ge.s32.totalorder %s15, 4
      %s25 = sphi 0, %s27
      %s28 = sphi 0, %s25
      %s29 = sphi 0, %s28
      %s45 = sphi 0, %s29
      %s49 = sphi 0, %s49
      %s51 = sphi 0, %s49
      %s52 = sphi 0, %s51
      %s66 = sphi 0, %s52
      %s70 = sphi 0, %s70
      %s72 = sphi 0, %s70
      %s73 = sphi 0, %s72
      %s87 = sphi 0, %s73
      %s91 = sphi 0, %s91
      %s93 = sphi 0, %s91
      %s94 = sphi 0, %s93
      %s108 = sphi 0, %s94
      %s112 = sphi 0, %s112
      %s114 = sphi 0, %s112
      %s115 = sphi 0, %s114
      %s129 = sphi 0, %s115
      %s133 = sphi 0, %s133
      %s135 = sphi 0, %s133
      %s136 = sphi 0, %s135
      %s150 = sphi 0, %s136
      %s156 = sphi 0, %s158
      %s159 = sphi 0, %s156
      %s160 = sphi 0, %s159
      %s176 = sphi 0, %s160
    $region4: #{dual_dpa_block.3} parent=1 // loop_header_branch
      %18 = sbr.rel (%p16) target = $region8
    $region5: #{dual_dpa_block.3} parent=1 // loop_body
      %s20 = ssub.s32 %s15, 1
      %s21 = ssub.s32 %s15, 2
      %s22 = sadd.s32 %s15, 1
      %s23 = ssub.s32 %s15, %s22
      %p24 = scmp.eq.s32.totalorder %s23, 0
      %s26 = sadd.s32 %s25, 1
      %s27 = scalar_select %p24, %s25, %s26
      %p30 = pneg %p24
      %p31 = scmp.eq.s32.totalorder %s15, 1
      %p32 = por %p30, %p31
      %p33 = scmp.ne.s32.totalorder %s25, %s28
      %p34 = scmp.eq.s32.totalorder %s15, 0
      %p35 = por %p33, %p34
      %p36 = scmp.ne.s32.totalorder %s25, %s28
      %p37 = scmp.eq.s32.totalorder %s20, 1
      %p38 = por %p36, %p37
      %p39 = scmp.ne.s32.totalorder %s28, %s29
      %p40 = scmp.eq.s32.totalorder %s20, 0
      %p41 = por %p39, %p40
      %p42 = scmp.ne.s32.totalorder %s28, %s29
      %p43 = scmp.eq.s32.totalorder %s21, 1
      %p44 = por %p42, %p43
      %p46 = scmp.ne.s32.totalorder %s29, %s45
      %p47 = scmp.eq.s32.totalorder %s21, 0
      %p48 = por %p46, %p47
      %s50 = sadd.s32 %s49, 1
      %p53 = scmp.eq.s32.totalorder %s15, 1
      %p54 = scmp.ne.s32.totalorder %s49, %s51
      %p55 = scmp.eq.s32.totalorder %s15, 0
      %p56 = por %p54, %p55
      %p57 = scmp.ne.s32.totalorder %s49, %s51
      %p58 = scmp.eq.s32.totalorder %s20, 1
      %p59 = por %p57, %p58
      %p60 = scmp.ne.s32.totalorder %s51, %s52
      %p61 = scmp.eq.s32.totalorder %s20, 0
      %p62 = por %p60, %p61
      %p63 = scmp.ne.s32.totalorder %s51, %s52
      %p64 = scmp.eq.s32.totalorder %s21, 1
      %p65 = por %p63, %p64
      %p67 = scmp.ne.s32.totalorder %s52, %s66
      %p68 = scmp.eq.s32.totalorder %s21, 0
      %p69 = por %p67, %p68
      %s71 = sadd.s32 %s70, 1
      %p74 = scmp.eq.s32.totalorder %s15, 1
      %p75 = scmp.ne.s32.totalorder %s70, %s72
      %p76 = scmp.eq.s32.totalorder %s15, 0
      %p77 = por %p75, %p76
      %p78 = scmp.ne.s32.totalorder %s70, %s72
      %p79 = scmp.eq.s32.totalorder %s20, 1
      %p80 = por %p78, %p79
      %p81 = scmp.ne.s32.totalorder %s72, %s73
      %p82 = scmp.eq.s32.totalorder %s20, 0
      %p83 = por %p81, %p82
      %p84 = scmp.ne.s32.totalorder %s72, %s73
      %p85 = scmp.eq.s32.totalorder %s21, 1
      %p86 = por %p84, %p85
      %p88 = scmp.ne.s32.totalorder %s73, %s87
      %p89 = scmp.eq.s32.totalorder %s21, 0
      %p90 = por %p88, %p89
      %s92 = sadd.s32 %s91, 1
      %p95 = scmp.eq.s32.totalorder %s15, 1
      %p96 = scmp.ne.s32.totalorder %s91, %s93
      %p97 = scmp.eq.s32.totalorder %s15, 0
      %p98 = por %p96, %p97
      %p99 = scmp.ne.s32.totalorder %s91, %s93
      %p100 = scmp.eq.s32.totalorder %s20, 1
      %p101 = por %p99, %p100
      %p102 = scmp.ne.s32.totalorder %s93, %s94
      %p103 = scmp.eq.s32.totalorder %s20, 0
      %p104 = por %p102, %p103
      %p105 = scmp.ne.s32.totalorder %s93, %s94
      %p106 = scmp.eq.s32.totalorder %s21, 1
      %p107 = por %p105, %p106
      %p109 = scmp.ne.s32.totalorder %s94, %s108
      %p110 = scmp.eq.s32.totalorder %s21, 0
      %p111 = por %p109, %p110
      %s113 = sadd.s32 %s112, 1
      %p116 = scmp.eq.s32.totalorder %s15, 1
      %p117 = scmp.ne.s32.totalorder %s112, %s114
      %p118 = scmp.eq.s32.totalorder %s15, 0
      %p119 = por %p117, %p118
      %p120 = scmp.ne.s32.totalorder %s112, %s114
      %p121 = scmp.eq.s32.totalorder %s20, 1
      %p122 = por %p120, %p121
      %p123 = scmp.ne.s32.totalorder %s114, %s115
      %p124 = scmp.eq.s32.totalorder %s20, 0
      %p125 = por %p123, %p124
      %p126 = scmp.ne.s32.totalorder %s114, %s115
      %p127 = scmp.eq.s32.totalorder %s21, 1
      %p128 = por %p126, %p127
      %p130 = scmp.ne.s32.totalorder %s115, %s129
      %p131 = scmp.eq.s32.totalorder %s21, 0
      %p132 = por %p130, %p131
      %s134 = sadd.s32 %s133, 1
      %p137 = scmp.eq.s32.totalorder %s15, 1
      %p138 = scmp.ne.s32.totalorder %s133, %s135
      %p139 = scmp.eq.s32.totalorder %s15, 0
      %p140 = por %p138, %p139
      %p141 = scmp.ne.s32.totalorder %s133, %s135
      %p142 = scmp.eq.s32.totalorder %s20, 1
      %p143 = por %p141, %p142
      %p144 = scmp.ne.s32.totalorder %s135, %s136
      %p145 = scmp.eq.s32.totalorder %s20, 0
      %p146 = por %p144, %p145
      %p147 = scmp.ne.s32.totalorder %s135, %s136
      %p148 = scmp.eq.s32.totalorder %s21, 1
      %p149 = por %p147, %p148
      %p151 = scmp.ne.s32.totalorder %s136, %s150
      %p152 = scmp.eq.s32.totalorder %s21, 0
      %p153 = por %p151, %p152
      %s154 = ssub.s32 %s15, %s22
      %p155 = scmp.eq.s32.totalorder %s154, 0
      %s157 = sadd.s32 %s156, 1
      %s158 = scalar_select %p155, %s156, %s157
      %p161 = pneg %p155
      %p162 = scmp.eq.s32.totalorder %s15, 1
      %p163 = por %p161, %p162
      %p164 = scmp.ne.s32.totalorder %s156, %s159
      %p165 = scmp.eq.s32.totalorder %s15, 0
      %p166 = por %p164, %p165
      %p167 = scmp.ne.s32.totalorder %s156, %s159
      %p168 = scmp.eq.s32.totalorder %s20, 1
      %p169 = por %p167, %p168
      %p170 = scmp.ne.s32.totalorder %s159, %s160
      %p171 = scmp.eq.s32.totalorder %s20, 0
      %p172 = por %p170, %p171
      %p173 = scmp.ne.s32.totalorder %s159, %s160
      %p174 = scmp.eq.s32.totalorder %s21, 1
      %p175 = por %p173, %p174
      %p177 = scmp.ne.s32.totalorder %s160, %s176
      %p178 = scmp.eq.s32.totalorder %s21, 0
      %p179 = por %p177, %p178
      %p180 = scmp.le.s32.totalorder 1, %s15
      %p181 = scmp.lt.s32.totalorder %s15, 3
      %p182 = pnand %p180, %p181
      %p183 = pneg %p182
      // Predicated region
      $region9: #{dual_dpa_block.3} parent=5 // pred_check
        _
      $region10: #{dual_dpa_block.3} parent=5 // pred_check_branch
        %185 = sbr.rel (%p182) target = $region12
      $region11: #{dual_dpa_block.3} parent=5 // pred_region
        %s186 = ssub.s32 %s15, 1
        // Predicated region
        $region13: #{dual_dpa_block.3} parent=11 // pred_check
          %p187 = pneg %p62
        $region14: #{dual_dpa_block.3} parent=11 // pred_check_branch
          %189 = sbr.rel (%p187) target = $region16
        $region15: #{dual_dpa_block.3} parent=11 // pred_region
          _
        $region16: #{dual_dpa_block.3} parent=11 // pred_fallthru
          _
        // Predicated region
        $region17: #{dual_dpa_block.3} parent=11 // pred_check
          %p190 = pneg %p83
        $region18: #{dual_dpa_block.3} parent=11 // pred_check_branch
          %192 = sbr.rel (%p190) target = $region20
        $region19: #{dual_dpa_block.3} parent=11 // pred_region
          _
        $region20: #{dual_dpa_block.3} parent=11 // pred_fallthru
          _
        // Predicated region
        $region21: #{dual_dpa_block.3} parent=11 // pred_check
          %p193 = pneg %p104
        $region22: #{dual_dpa_block.3} parent=11 // pred_check_branch
          %195 = sbr.rel (%p193) target = $region24
        $region23: #{dual_dpa_block.3} parent=11 // pred_region
          _
        $region24: #{dual_dpa_block.3} parent=11 // pred_fallthru
          _
        // Predicated region
        $region25: #{dual_dpa_block.3} parent=11 // pred_check
          %p196 = pneg %p125
        $region26: #{dual_dpa_block.3} parent=11 // pred_check_branch
          %198 = sbr.rel (%p196) target = $region28
        $region27: #{dual_dpa_block.3} parent=11 // pred_region
          _
        $region28: #{dual_dpa_block.3} parent=11 // pred_fallthru
          _
        // Predicated region
        $region29: #{dual_dpa_block.3} parent=11 // pred_check
          %p199 = pneg %p146
        $region30: #{dual_dpa_block.3} parent=11 // pred_check_branch
          %201 = sbr.rel (%p199) target = $region32
        $region31: #{dual_dpa_block.3} parent=11 // pred_region
          _
        $region32: #{dual_dpa_block.3} parent=11 // pred_fallthru
          _
      $region12: #{dual_dpa_block.3} parent=5 // pred_fallthru
        _
      %p202 = scmp.lt.s32.totalorder %s15, 2
      // Predicated region
      $region33: #{dual_dpa_block.3} parent=5 // pred_check
        %p203 = pneg %p202
      $region34: #{dual_dpa_block.3} parent=5 // pred_check_branch
        %205 = sbr.rel (%p203) target = $region36
      $region35: #{dual_dpa_block.3} parent=5 // pred_region
        // Predicated region
        $region37: #{dual_dpa_block.3} parent=35 // pred_check
          %p206 = pneg %p35
        $region38: #{dual_dpa_block.3} parent=35 // pred_check_branch
          %208 = sbr.rel (%p206) target = $region40
        $region39: #{dual_dpa_block.3} parent=35 // pred_region
          %p209 = scmp.lt.s32.totalorder %s15, 1
          %s210 = scalar_select %p209, %s15, 1
          %s211 = smul.addr %s210, 16
          %s212 = smul.addr %s211, 8
          %s213 = scalar_lea.vmem %s0, %s212
        $region40: #{dual_dpa_block.3} parent=35 // pred_fallthru
          _
      $region36: #{dual_dpa_block.3} parent=5 // pred_fallthru
        _
      %p214 = scmp.le.s32.totalorder 1, %s15
      %p215 = scmp.lt.s32.totalorder %s15, 3
      %p216 = pnand %p214, %p215
      %p217 = pneg %p216
      // Predicated region
      $region41: #{dual_dpa_block.3} parent=5 // pred_check
        _
      $region42: #{dual_dpa_block.3} parent=5 // pred_check_branch
        %219 = sbr.rel (%p216) target = $region44
      $region43: #{dual_dpa_block.3} parent=5 // pred_region
        %s220 = ssub.s32 %s15, 1
        %p221 = scmp.lt.s32.totalorder %s20, 1
        %s222 = scalar_select %p221, %s20, 1
        %s223 = smul.addr %s222, 16
        %s224 = smul.addr %s223, 8
        %s225 = scalar_lea.vmem %s0, %s224
        %p226 = pneg %p41
        %p227 = pneg %p38
        %p228 = pneg %p62
        %p229 = pneg %p59
        %p230 = pneg %p83
        %p231 = pneg %p80
        %p232 = pneg %p104
        %p233 = pneg %p101
        %p234 = pneg %p125
        %p235 = pneg %p122
        %p236 = pneg %p146
        %p237 = pneg %p143
        %p238 = pneg %p172
        %p239 = pneg %p169
        %s240 = sand.u32 %s159, 1
        %s241 = scalar_lea.sflag [#allocation3], %s240
        %s242 = sand.u32 %s159, 1
        %s243 = smul.addr %s242, 128
        %s244 = scalar_lea.vmem [#allocation2], %s243
        %p245 = scmp.lt.s32.totalorder %s20, 1
        %s246 = scalar_select %p245, %s20, 1
        %s247 = smul.addr %s246, 16
        %s248 = smul.addr %s247, 8
        %s249 = scalar_lea.vmem %s0, %s248
        %v250 = vld [vmem:[%s249] sm:$0xff]
        %v251 = vld [vmem:[%s249 + $0x8] sm:$0xff]
        %v252 = vld [vmem:[%s249 + $0x10] sm:$0xff]
        %v253 = vld [vmem:[%s249 + $0x18] sm:$0xff]
        %v254 = vld [vmem:[%s249 + $0x20] sm:$0xff]
        %v255 = vld [vmem:[%s249 + $0x28] sm:$0xff]
        %v256 = vld [vmem:[%s249 + $0x30] sm:$0xff]
        %v257 = vld [vmem:[%s249 + $0x38] sm:$0xff]
        %v258 = vld [vmem:[%s249 + $0x40] sm:$0xff]
        %v259 = vld [vmem:[%s249 + $0x48] sm:$0xff]
        %v260 = vld [vmem:[%s249 + $0x50] sm:$0xff]
        %v261 = vld [vmem:[%s249 + $0x58] sm:$0xff]
        %v262 = vld [vmem:[%s249 + $0x60] sm:$0xff]
        %v263 = vld [vmem:[%s249 + $0x68] sm:$0xff]
        %v264 = vld [vmem:[%s249 + $0x70] sm:$0xff]
        %v265 = vld [vmem:[%s249 + $0x78] sm:$0xff]
        %v266 = vld [vmem:[%s5] sm:$0xff]
        %v267 = vld [vmem:[%s5 + $0x8] sm:$0x3]
        %v268 = vld [vmem:[%s1] sm:$0xff]
        %v269 = vld [vmem:[%s1 + $0x8] sm:$0xff]
        %v270 = vld [vmem:[%s1 + $0x10] sm:$0xff]
        %v271 = vld [vmem:[%s1 + $0x18] sm:$0xff]
        %v272 = vlaneseq
        %v273 = vshrl.u32 %v272, 7
        %v274 = vsub.s32 0, %v273
        %v275 = vrot.slane %v266, %v274
        %vm276 = vcmask 261120
        %v278 = vsel %vm276, %v250, 0
        %v281 = vsel %vm276, %v251, 0
        %v284 = vsel %vm276, %v252, 0
        %v287 = vsel %vm276, %v253, 0
        %v290 = vsel %vm276, %v254, 0
        %v293 = vsel %vm276, %v255, 0
        %v296 = vsel %vm276, %v256, 0
        %v299 = vsel %vm276, %v257, 0
        %v302 = vsel %vm276, %v258, 0
        %v305 = vsel %vm276, %v259, 0
        %v308 = vsel %vm276, %v260, 0
        %v311 = vsel %vm276, %v261, 0
        %v314 = vsel %vm276, %v262, 0
        %v317 = vsel %vm276, %v263, 0
        %v320 = vsel %vm276, %v264, 0
        %v323 = vsel %vm276, %v265, 0
        %325 = vmatprep.subr.mxu0 0.0
        %326 = vmatpush1.msra.mxu0 %v268
        %327 = vmatprep.subr.mxu0 0.0
        %328 = vmatpush1.msra.mxu0 %v269
        %329 = vmatprep.subr.mxu0 0.0
        %330 = vmatpush1.msra.mxu0 %v270
        %331 = vmatprep.subr.mxu0 0.0
        %332 = vmatpush1.msra.mxu0 %v271
        %333 = vmatprep.subr.mxu0 0.0
        %334 = vmatpush1.msra.mxu0 0.0
        %335 = vmatprep.subr.mxu0 0.0
        %336 = vmatpush1.msra.mxu0 0.0
        %337 = vmatprep.subr.mxu0 0.0
        %338 = vmatpush1.msra.mxu0 0.0
        %339 = vmatprep.subr.mxu0 0.0
        %340 = vmatpush1.msra.mxu0 0.0
        %341 = vmatprep.subr.mxu0 0.0
        %342 = vmatpush1.msra.mxu0 0.0
        %343 = vmatprep.subr.mxu0 0.0
        %344 = vmatpush1.msra.mxu0 0.0
        %345 = vmatprep.subr.mxu0 0.0
        %346 = vmatpush1.msra.mxu0 0.0
        %347 = vmatprep.subr.mxu0 0.0
        %348 = vmatpush1.msra.mxu0 0.0
        %349 = vmatprep.subr.mxu0 0.0
        %350 = vmatpush1.msra.mxu0 0.0
        %351 = vmatprep.subr.mxu0 0.0
        %352 = vmatpush1.msra.mxu0 0.0
        %353 = vmatprep.subr.mxu0 0.0
        %354 = vmatpush1.msra.mxu0 0.0
        %355 = vmatprep.subr.mxu0 0.0
        %356 = vmatpush1.msra.mxu0 0.0
        %357 = vmatprep.subr.mxu0 0.0
        %358 = vmatpush1.msra.mxu0 0.0
        %359 = vmatprep.subr.mxu0 0.0
        %360 = vmatpush1.msra.mxu0 0.0
        %361 = vmatprep.subr.mxu0 0.0
        %362 = vmatpush1.msra.mxu0 0.0
        %363 = vmatprep.subr.mxu0 0.0
        %364 = vmatpush1.msra.mxu0 0.0
        %365 = vmatprep.subr.mxu0 0.0
        %366 = vmatpush1.msra.mxu0 0.0
        %367 = vmatprep.subr.mxu0 0.0
        %368 = vmatpush1.msra.mxu0 0.0
        %369 = vmatprep.subr.mxu0 0.0
        %370 = vmatpush1.msra.mxu0 0.0
        %371 = vmatprep.subr.mxu0 0.0
        %372 = vmatpush1.msra.mxu0 0.0
        %373 = vmatprep.subr.mxu0 0.0
        %374 = vmatpush1.msra.mxu0 0.0
        %375 = vmatprep.subr.mxu0 0.0
        %376 = vmatpush1.msra.mxu0 0.0
        %377 = vmatprep.subr.mxu0 0.0
        %378 = vmatpush1.msra.mxu0 0.0
        %379 = vmatprep.subr.mxu0 0.0
        %380 = vmatpush1.msra.mxu0 0.0
        %381 = vmatprep.subr.mxu0 0.0
        %382 = vmatpush1.msra.mxu0 0.0
        %383 = vmatprep.subr.mxu0 0.0
        %384 = vmatpush1.msra.mxu0 0.0
        %385 = vmatprep.subr.mxu0 0.0
        %386 = vmatpush1.msra.mxu0 0.0
        %387 = vmatprep.subr.mxu0 0.0
        %388 = vmatpush1.msra.mxu0 0.0
        %389 = vmatprep.mubr.f32.mxu0 0.0
        %390 = vmatmul.mubr.f32.gmra.mrb[0].mxu0 %v278
        %v391 = vpop.f32.mrb[0].mxu0
        %v392 = vadd.f32 %v275, %v391
        %v393 = vpop.f32.mrb[0].mxu0
        %394 = vmatprep.mubr.f32.mxu0 0.0
        %395 = vmatmul.mubr.f32.gmra.mrb[0].mxu0 %v281
        %v396 = vpop.f32.mrb[0].mxu0
        %v397 = vadd.f32 %v275, %v396
        %v398 = vpop.f32.mrb[0].mxu0
        %399 = vmatprep.mubr.f32.mxu0 0.0
        %400 = vmatmul.mubr.f32.gmra.mrb[0].mxu0 %v284
        %v401 = vpop.f32.mrb[0].mxu0
        %v402 = vadd.f32 %v275, %v401
        %v403 = vpop.f32.mrb[0].mxu0
        %404 = vmatprep.mubr.f32.mxu0 0.0
        %405 = vmatmul.mubr.f32.gmra.mrb[0].mxu0 %v287
        %v406 = vpop.f32.mrb[0].mxu0
        %v407 = vadd.f32 %v275, %v406
        %v408 = vpop.f32.mrb[0].mxu0
        %409 = vmatprep.mubr.f32.mxu0 0.0
        %410 = vmatmul.mubr.f32.gmra.mrb[0].mxu0 %v290
        %v411 = vpop.f32.mrb[0].mxu0
        %v412 = vadd.f32 %v275, %v411
        %v413 = vpop.f32.mrb[0].mxu0
        %414 = vmatprep.mubr.f32.mxu0 0.0
        %415 = vmatmul.mubr.f32.gmra.mrb[0].mxu0 %v293
        %v416 = vpop.f32.mrb[0].mxu0
        %v417 = vadd.f32 %v275, %v416
        %v418 = vpop.f32.mrb[0].mxu0
        %419 = vmatprep.mubr.f32.mxu0 0.0
        %420 = vmatmul.mubr.f32.gmra.mrb[0].mxu0 %v296
        %v421 = vpop.f32.mrb[0].mxu0
        %v422 = vadd.f32 %v275, %v421
        %v423 = vpop.f32.mrb[0].mxu0
        %424 = vmatprep.mubr.f32.mxu0 0.0
        %425 = vmatmul.mubr.f32.gmra.mrb[0].mxu0 %v299
        %v426 = vpop.f32.mrb[0].mxu0
        %v427 = vadd.f32 %v275, %v426
        %v428 = vpop.f32.mrb[0].mxu0
        %429 = vmatprep.mubr.f32.mxu0 0.0
        %430 = vmatmul.mubr.f32.gmra.mrb[0].mxu0 %v302
        %v431 = vpop.f32.mrb[0].mxu0
        %v432 = vadd.f32 %v275, %v431
        %v433 = vpop.f32.mrb[0].mxu0
        %434 = vmatprep.mubr.f32.mxu0 0.0
        %435 = vmatmul.mubr.f32.gmra.mrb[0].mxu0 %v305
        %v436 = vpop.f32.mrb[0].mxu0
        %v437 = vadd.f32 %v275, %v436
        %v438 = vpop.f32.mrb[0].mxu0
        %439 = vmatprep.mubr.f32.mxu0 0.0
        %440 = vmatmul.mubr.f32.gmra.mrb[0].mxu0 %v308
        %v441 = vpop.f32.mrb[0].mxu0
        %v442 = vadd.f32 %v275, %v441
        %v443 = vpop.f32.mrb[0].mxu0
        %444 = vmatprep.mubr.f32.mxu0 0.0
        %445 = vmatmul.mubr.f32.gmra.mrb[0].mxu0 %v311
        %v446 = vpop.f32.mrb[0].mxu0
        %v447 = vadd.f32 %v275, %v446
        %v448 = vpop.f32.mrb[0].mxu0
        %449 = vmatprep.mubr.f32.mxu0 0.0
        %450 = vmatmul.mubr.f32.gmra.mrb[0].mxu0 %v314
        %v451 = vpop.f32.mrb[0].mxu0
        %v452 = vadd.f32 %v275, %v451
        %v453 = vpop.f32.mrb[0].mxu0
        %454 = vmatprep.mubr.f32.mxu0 0.0
        %455 = vmatmul.mubr.f32.gmra.mrb[0].mxu0 %v317
        %v456 = vpop.f32.mrb[0].mxu0
        %v457 = vadd.f32 %v275, %v456
        %v458 = vpop.f32.mrb[0].mxu0
        %459 = vmatprep.mubr.f32.mxu0 0.0
        %460 = vmatmul.mubr.f32.gmra.mrb[0].mxu0 %v320
        %v461 = vpop.f32.mrb[0].mxu0
        %v462 = vadd.f32 %v275, %v461
        %v463 = vpop.f32.mrb[0].mxu0
        %464 = vmatprep.mubr.f32.mxu0 0.0
        %465 = vmatmul.mubr.f32.gmra.mrb[0].mxu0 %v323
        %v466 = vpop.f32.mrb[0].mxu0
        %v467 = vadd.f32 %v275, %v466
        %v468 = vpop.f32.mrb[0].mxu0
        %469 = vdwg.mxu0
        %471 = vrot.lane.b32.xlu0 %v392, 96
        %v472 = vpop.permute.xlu0 %471
        %v473 = vsel %vm276, %v392, 0
        %v475 = vsel %vm276, %v472, 0
        %477 = vmatprep.subr.mxu0 0.0
        %478 = vmatpush1.xpose.msra.mxu0 %v475
        %479 = vmatprep.subr.mxu0 0.0
        %480 = vmatpush1.xpose.msra.mxu0 0.0
        %481 = vmatprep.subr.mxu0 0.0
        %482 = vmatpush1.xpose.msra.mxu0 0.0
        %483 = vmatprep.subr.mxu0 0.0
        %484 = vmatpush1.xpose.msra.mxu0 0.0
        %485 = vmatprep.subr.mxu0 0.0
        %486 = vmatpush1.xpose.msra.mxu0 0.0
        %487 = vmatprep.subr.mxu0 0.0
        %488 = vmatpush1.xpose.msra.mxu0 0.0
        %489 = vmatprep.subr.mxu0 0.0
        %490 = vmatpush1.xpose.msra.mxu0 0.0
        %491 = vmatprep.subr.mxu0 0.0
        %492 = vmatpush1.xpose.msra.mxu0 0.0
        %493 = vmatprep.subr.mxu0 0.0
        %494 = vmatpush1.xpose.msra.mxu0 0.0
        %495 = vmatprep.subr.mxu0 0.0
        %496 = vmatpush1.xpose.msra.mxu0 0.0
        %497 = vmatprep.subr.mxu0 0.0
        %498 = vmatpush1.xpose.msra.mxu0 0.0
        %499 = vmatprep.subr.mxu0 0.0
        %500 = vmatpush1.xpose.msra.mxu0 0.0
        %501 = vmatprep.subr.mxu0 0.0
        %502 = vmatpush1.xpose.msra.mxu0 0.0
        %503 = vmatprep.subr.mxu0 0.0
        %504 = vmatpush1.xpose.msra.mxu0 0.0
        %505 = vmatprep.subr.mxu0 0.0
        %506 = vmatpush1.xpose.msra.mxu0 0.0
        %507 = vmatprep.subr.mxu0 0.0
        %508 = vmatpush1.xpose.msra.mxu0 0.0
        %509 = vmatprep.subr.mxu0 0.0
        %510 = vmatpush1.xpose.msra.mxu0 0.0
        %511 = vmatprep.subr.mxu0 0.0
        %512 = vmatpush1.xpose.msra.mxu0 0.0
        %513 = vmatprep.subr.mxu0 0.0
        %514 = vmatpush1.xpose.msra.mxu0 0.0
        %515 = vmatprep.subr.mxu0 0.0
        %516 = vmatpush1.xpose.msra.mxu0 0.0
        %517 = vmatprep.subr.mxu0 0.0
        %518 = vmatpush1.xpose.msra.mxu0 0.0
        %519 = vmatprep.subr.mxu0 0.0
        %520 = vmatpush1.xpose.msra.mxu0 0.0
        %521 = vmatprep.subr.mxu0 0.0
        %522 = vmatpush1.xpose.msra.mxu0 0.0
        %523 = vmatprep.subr.mxu0 0.0
        %524 = vmatpush1.xpose.msra.mxu0 0.0
        %525 = vmatprep.subr.mxu0 0.0
        %526 = vmatpush1.xpose.msra.mxu0 0.0
        %527 = vmatprep.subr.mxu0 0.0
        %528 = vmatpush1.xpose.msra.mxu0 0.0
        %529 = vmatprep.subr.mxu0 0.0
        %530 = vmatpush1.xpose.msra.mxu0 0.0
        %531 = vmatprep.subr.mxu0 0.0
        %532 = vmatpush1.xpose.msra.mxu0 0.0
        %533 = vmatprep.subr.mxu0 0.0
        %534 = vmatpush1.xpose.msra.mxu0 0.0
        %535 = vmatprep.subr.mxu0 0.0
        %536 = vmatpush1.xpose.msra.mxu0 0.0
        %537 = vmatprep.subr.mxu0 0.0
        %538 = vmatpush1.xpose.msra.mxu0 0.0
        %539 = vmatprep.subr.mxu0 0.0
        %540 = vmatpush1.xpose.msra.mxu0 0.0
        %541 = vmatprep.mubr.f32.mxu0 0.0
        %542 = vmatmul.mubr.f32.gmra.mrb[0].mxu0 %v473
        %v543 = vpop.f32.mrb[0].mxu0
        %v544 = vadd.f32 0.0, %v543
        %v545 = vpop.f32.mrb[0].mxu0
        %546 = vdwg.mxu0
        %548 = vrot.lane.b32.xlu0 %v397, 96
        %v549 = vpop.permute.xlu0 %548
        %v550 = vsel %vm276, %v397, 0
        %v552 = vsel %vm276, %v549, 0
        %554 = vmatprep.subr.mxu0 0.0
        %555 = vmatpush1.xpose.msra.mxu0 %v552
        %556 = vmatprep.subr.mxu0 0.0
        %557 = vmatpush1.xpose.msra.mxu0 0.0
        %558 = vmatprep.subr.mxu0 0.0
        %559 = vmatpush1.xpose.msra.mxu0 0.0
        %560 = vmatprep.subr.mxu0 0.0
        %561 = vmatpush1.xpose.msra.mxu0 0.0
        %562 = vmatprep.subr.mxu0 0.0
        %563 = vmatpush1.xpose.msra.mxu0 0.0
        %564 = vmatprep.subr.mxu0 0.0
        %565 = vmatpush1.xpose.msra.mxu0 0.0
        %566 = vmatprep.subr.mxu0 0.0
        %567 = vmatpush1.xpose.msra.mxu0 0.0
        %568 = vmatprep.subr.mxu0 0.0
        %569 = vmatpush1.xpose.msra.mxu0 0.0
        %570 = vmatprep.subr.mxu0 0.0
        %571 = vmatpush1.xpose.msra.mxu0 0.0
        %572 = vmatprep.subr.mxu0 0.0
        %573 = vmatpush1.xpose.msra.mxu0 0.0
        %574 = vmatprep.subr.mxu0 0.0
        %575 = vmatpush1.xpose.msra.mxu0 0.0
        %576 = vmatprep.subr.mxu0 0.0
        %577 = vmatpush1.xpose.msra.mxu0 0.0
        %578 = vmatprep.subr.mxu0 0.0
        %579 = vmatpush1.xpose.msra.mxu0 0.0
        %580 = vmatprep.subr.mxu0 0.0
        %581 = vmatpush1.xpose.msra.mxu0 0.0
        %582 = vmatprep.subr.mxu0 0.0
        %583 = vmatpush1.xpose.msra.mxu0 0.0
        %584 = vmatprep.subr.mxu0 0.0
        %585 = vmatpush1.xpose.msra.mxu0 0.0
        %586 = vmatprep.subr.mxu0 0.0
        %587 = vmatpush1.xpose.msra.mxu0 0.0
        %588 = vmatprep.subr.mxu0 0.0
        %589 = vmatpush1.xpose.msra.mxu0 0.0
        %590 = vmatprep.subr.mxu0 0.0
        %591 = vmatpush1.xpose.msra.mxu0 0.0
        %592 = vmatprep.subr.mxu0 0.0
        %593 = vmatpush1.xpose.msra.mxu0 0.0
        %594 = vmatprep.subr.mxu0 0.0
        %595 = vmatpush1.xpose.msra.mxu0 0.0
        %596 = vmatprep.subr.mxu0 0.0
        %597 = vmatpush1.xpose.msra.mxu0 0.0
        %598 = vmatprep.subr.mxu0 0.0
        %599 = vmatpush1.xpose.msra.mxu0 0.0
        %600 = vmatprep.subr.mxu0 0.0
        %601 = vmatpush1.xpose.msra.mxu0 0.0
        %602 = vmatprep.subr.mxu0 0.0
        %603 = vmatpush1.xpose.msra.mxu0 0.0
        %604 = vmatprep.subr.mxu0 0.0
        %605 = vmatpush1.xpose.msra.mxu0 0.0
        %606 = vmatprep.subr.mxu0 0.0
        %607 = vmatpush1.xpose.msra.mxu0 0.0
        %608 = vmatprep.subr.mxu0 0.0
        %609 = vmatpush1.xpose.msra.mxu0 0.0
        %610 = vmatprep.subr.mxu0 0.0
        %611 = vmatpush1.xpose.msra.mxu0 0.0
        %612 = vmatprep.subr.mxu0 0.0
        %613 = vmatpush1.xpose.msra.mxu0 0.0
        %614 = vmatprep.subr.mxu0 0.0
        %615 = vmatpush1.xpose.msra.mxu0 0.0
        %616 = vmatprep.subr.mxu0 0.0
        %617 = vmatpush1.xpose.msra.mxu0 0.0
        %618 = vmatprep.mubr.f32.mxu0 0.0
        %619 = vmatmul.mubr.f32.gmra.mrb[0].mxu0 %v550
        %v620 = vpop.f32.mrb[0].mxu0
        %v621 = vadd.f32 0.0, %v620
        %v622 = vpop.f32.mrb[0].mxu0
        %623 = vdwg.mxu0
        %625 = vrot.lane.b32.xlu0 %v402, 96
        %v626 = vpop.permute.xlu0 %625
        %v627 = vsel %vm276, %v402, 0
        %v629 = vsel %vm276, %v626, 0
        %631 = vmatprep.subr.mxu0 0.0
        %632 = vmatpush1.xpose.msra.mxu0 %v629
        %633 = vmatprep.subr.mxu0 0.0
        %634 = vmatpush1.xpose.msra.mxu0 0.0
        %635 = vmatprep.subr.mxu0 0.0
        %636 = vmatpush1.xpose.msra.mxu0 0.0
        %637 = vmatprep.subr.mxu0 0.0
        %638 = vmatpush1.xpose.msra.mxu0 0.0
        %639 = vmatprep.subr.mxu0 0.0
        %640 = vmatpush1.xpose.msra.mxu0 0.0
        %641 = vmatprep.subr.mxu0 0.0
        %642 = vmatpush1.xpose.msra.mxu0 0.0
        %643 = vmatprep.subr.mxu0 0.0
        %644 = vmatpush1.xpose.msra.mxu0 0.0
        %645 = vmatprep.subr.mxu0 0.0
        %646 = vmatpush1.xpose.msra.mxu0 0.0
        %647 = vmatprep.subr.mxu0 0.0
        %648 = vmatpush1.xpose.msra.mxu0 0.0
        %649 = vmatprep.subr.mxu0 0.0
        %650 = vmatpush1.xpose.msra.mxu0 0.0
        %651 = vmatprep.subr.mxu0 0.0
        %652 = vmatpush1.xpose.msra.mxu0 0.0
        %653 = vmatprep.subr.mxu0 0.0
        %654 = vmatpush1.xpose.msra.mxu0 0.0
        %655 = vmatprep.subr.mxu0 0.0
        %656 = vmatpush1.xpose.msra.mxu0 0.0
        %657 = vmatprep.subr.mxu0 0.0
        %658 = vmatpush1.xpose.msra.mxu0 0.0
        %659 = vmatprep.subr.mxu0 0.0
        %660 = vmatpush1.xpose.msra.mxu0 0.0
        %661 = vmatprep.subr.mxu0 0.0
        %662 = vmatpush1.xpose.msra.mxu0 0.0
        %663 = vmatprep.subr.mxu0 0.0
        %664 = vmatpush1.xpose.msra.mxu0 0.0
        %665 = vmatprep.subr.mxu0 0.0
        %666 = vmatpush1.xpose.msra.mxu0 0.0
        %667 = vmatprep.subr.mxu0 0.0
        %668 = vmatpush1.xpose.msra.mxu0 0.0
        %669 = vmatprep.subr.mxu0 0.0
        %670 = vmatpush1.xpose.msra.mxu0 0.0
        %671 = vmatprep.subr.mxu0 0.0
        %672 = vmatpush1.xpose.msra.mxu0 0.0
        %673 = vmatprep.subr.mxu0 0.0
        %674 = vmatpush1.xpose.msra.mxu0 0.0
        %675 = vmatprep.subr.mxu0 0.0
        %676 = vmatpush1.xpose.msra.mxu0 0.0
        %677 = vmatprep.subr.mxu0 0.0
        %678 = vmatpush1.xpose.msra.mxu0 0.0
        %679 = vmatprep.subr.mxu0 0.0
        %680 = vmatpush1.xpose.msra.mxu0 0.0
        %681 = vmatprep.subr.mxu0 0.0
        %682 = vmatpush1.xpose.msra.mxu0 0.0
        %683 = vmatprep.subr.mxu0 0.0
        %684 = vmatpush1.xpose.msra.mxu0 0.0
        %685 = vmatprep.subr.mxu0 0.0
        %686 = vmatpush1.xpose.msra.mxu0 0.0
        %687 = vmatprep.subr.mxu0 0.0
        %688 = vmatpush1.xpose.msra.mxu0 0.0
        %689 = vmatprep.subr.mxu0 0.0
        %690 = vmatpush1.xpose.msra.mxu0 0.0
        %691 = vmatprep.subr.mxu0 0.0
        %692 = vmatpush1.xpose.msra.mxu0 0.0
        %693 = vmatprep.subr.mxu0 0.0
        %694 = vmatpush1.xpose.msra.mxu0 0.0
        %695 = vmatprep.mubr.f32.mxu0 0.0
        %696 = vmatmul.mubr.f32.gmra.mrb[0].mxu0 %v627
        %v697 = vpop.f32.mrb[0].mxu0
        %v698 = vadd.f32 0.0, %v697
        %v699 = vpop.f32.mrb[0].mxu0
        %700 = vdwg.mxu0
        %702 = vrot.lane.b32.xlu0 %v407, 96
        %v703 = vpop.permute.xlu0 %702
        %v704 = vsel %vm276, %v407, 0
        %v706 = vsel %vm276, %v703, 0
        %708 = vmatprep.subr.mxu0 0.0
        %709 = vmatpush1.xpose.msra.mxu0 %v706
        %710 = vmatprep.subr.mxu0 0.0
        %711 = vmatpush1.xpose.msra.mxu0 0.0
        %712 = vmatprep.subr.mxu0 0.0
        %713 = vmatpush1.xpose.msra.mxu0 0.0
        %714 = vmatprep.subr.mxu0 0.0
        %715 = vmatpush1.xpose.msra.mxu0 0.0
        %716 = vmatprep.subr.mxu0 0.0
        %717 = vmatpush1.xpose.msra.mxu0 0.0
        %718 = vmatprep.subr.mxu0 0.0
        %719 = vmatpush1.xpose.msra.mxu0 0.0
        %720 = vmatprep.subr.mxu0 0.0
        %721 = vmatpush1.xpose.msra.mxu0 0.0
        %722 = vmatprep.subr.mxu0 0.0
        %723 = vmatpush1.xpose.msra.mxu0 0.0
        %724 = vmatprep.subr.mxu0 0.0
        %725 = vmatpush1.xpose.msra.mxu0 0.0
        %726 = vmatprep.subr.mxu0 0.0
        %727 = vmatpush1.xpose.msra.mxu0 0.0
        %728 = vmatprep.subr.mxu0 0.0
        %729 = vmatpush1.xpose.msra.mxu0 0.0
        %730 = vmatprep.subr.mxu0 0.0
        %731 = vmatpush1.xpose.msra.mxu0 0.0
        %732 = vmatprep.subr.mxu0 0.0
        %733 = vmatpush1.xpose.msra.mxu0 0.0
        %734 = vmatprep.subr.mxu0 0.0
        %735 = vmatpush1.xpose.msra.mxu0 0.0
        %736 = vmatprep.subr.mxu0 0.0
        %737 = vmatpush1.xpose.msra.mxu0 0.0
        %738 = vmatprep.subr.mxu0 0.0
        %739 = vmatpush1.xpose.msra.mxu0 0.0
        %740 = vmatprep.subr.mxu0 0.0
        %741 = vmatpush1.xpose.msra.mxu0 0.0
        %742 = vmatprep.subr.mxu0 0.0
        %743 = vmatpush1.xpose.msra.mxu0 0.0
        %744 = vmatprep.subr.mxu0 0.0
        %745 = vmatpush1.xpose.msra.mxu0 0.0
        %746 = vmatprep.subr.mxu0 0.0
        %747 = vmatpush1.xpose.msra.mxu0 0.0
        %748 = vmatprep.subr.mxu0 0.0
        %749 = vmatpush1.xpose.msra.mxu0 0.0
        %750 = vmatprep.subr.mxu0 0.0
        %751 = vmatpush1.xpose.msra.mxu0 0.0
        %752 = vmatprep.subr.mxu0 0.0
        %753 = vmatpush1.xpose.msra.mxu0 0.0
        %754 = vmatprep.subr.mxu0 0.0
        %755 = vmatpush1.xpose.msra.mxu0 0.0
        %756 = vmatprep.subr.mxu0 0.0
        %757 = vmatpush1.xpose.msra.mxu0 0.0
        %758 = vmatprep.subr.mxu0 0.0
        %759 = vmatpush1.xpose.msra.mxu0 0.0
        %760 = vmatprep.subr.mxu0 0.0
        %761 = vmatpush1.xpose.msra.mxu0 0.0
        %762 = vmatprep.subr.mxu0 0.0
        %763 = vmatpush1.xpose.msra.mxu0 0.0
        %764 = vmatprep.subr.mxu0 0.0
        %765 = vmatpush1.xpose.msra.mxu0 0.0
        %766 = vmatprep.subr.mxu0 0.0
        %767 = vmatpush1.xpose.msra.mxu0 0.0
        %768 = vmatprep.subr.mxu0 0.0
        %769 = vmatpush1.xpose.msra.mxu0 0.0
        %770 = vmatprep.subr.mxu0 0.0
        %771 = vmatpush1.xpose.msra.mxu0 0.0
        %772 = vmatprep.mubr.f32.mxu0 0.0
        %773 = vmatmul.mubr.f32.gmra.mrb[0].mxu0 %v704
        %v774 = vpop.f32.mrb[0].mxu0
        %v775 = vadd.f32 0.0, %v774
        %v776 = vpop.f32.mrb[0].mxu0
        %777 = vdwg.mxu0
        %779 = vrot.lane.b32.xlu0 %v412, 96
        %v780 = vpop.permute.xlu0 %779
        %v781 = vsel %vm276, %v412, 0
        %v783 = vsel %vm276, %v780, 0
        %785 = vmatprep.subr.mxu0 0.0
        %786 = vmatpush1.xpose.msra.mxu0 %v783
        %787 = vmatprep.subr.mxu0 0.0
        %788 = vmatpush1.xpose.msra.mxu0 0.0
        %789 = vmatprep.subr.mxu0 0.0
        %790 = vmatpush1.xpose.msra.mxu0 0.0
        %791 = vmatprep.subr.mxu0 0.0
        %792 = vmatpush1.xpose.msra.mxu0 0.0
        %793 = vmatprep.subr.mxu0 0.0
        %794 = vmatpush1.xpose.msra.mxu0 0.0
        %795 = vmatprep.subr.mxu0 0.0
        %796 = vmatpush1.xpose.msra.mxu0 0.0
        %797 = vmatprep.subr.mxu0 0.0
        %798 = vmatpush1.xpose.msra.mxu0 0.0
        %799 = vmatprep.subr.mxu0 0.0
        %800 = vmatpush1.xpose.msra.mxu0 0.0
        %801 = vmatprep.subr.mxu0 0.0
        %802 = vmatpush1.xpose.msra.mxu0 0.0
        %803 = vmatprep.subr.mxu0 0.0
        %804 = vmatpush1.xpose.msra.mxu0 0.0
        %805 = vmatprep.subr.mxu0 0.0
        %806 = vmatpush1.xpose.msra.mxu0 0.0
        %807 = vmatprep.subr.mxu0 0.0
        %808 = vmatpush1.xpose.msra.mxu0 0.0
        %809 = vmatprep.subr.mxu0 0.0
        %810 = vmatpush1.xpose.msra.mxu0 0.0
        %811 = vmatprep.subr.mxu0 0.0
        %812 = vmatpush1.xpose.msra.mxu0 0.0
        %813 = vmatprep.subr.mxu0 0.0
        %814 = vmatpush1.xpose.msra.mxu0 0.0
        %815 = vmatprep.subr.mxu0 0.0
        %816 = vmatpush1.xpose.msra.mxu0 0.0
        %817 = vmatprep.subr.mxu0 0.0
        %818 = vmatpush1.xpose.msra.mxu0 0.0
        %819 = vmatprep.subr.mxu0 0.0
        %820 = vmatpush1.xpose.msra.mxu0 0.0
        %821 = vmatprep.subr.mxu0 0.0
        %822 = vmatpush1.xpose.msra.mxu0 0.0
        %823 = vmatprep.subr.mxu0 0.0
        %824 = vmatpush1.xpose.msra.mxu0 0.0
        %825 = vmatprep.subr.mxu0 0.0
        %826 = vmatpush1.xpose.msra.mxu0 0.0
        %827 = vmatprep.subr.mxu0 0.0
        %828 = vmatpush1.xpose.msra.mxu0 0.0
        %829 = vmatprep.subr.mxu0 0.0
        %830 = vmatpush1.xpose.msra.mxu0 0.0
        %831 = vmatprep.subr.mxu0 0.0
        %832 = vmatpush1.xpose.msra.mxu0 0.0
        %833 = vmatprep.subr.mxu0 0.0
        %834 = vmatpush1.xpose.msra.mxu0 0.0
        %835 = vmatprep.subr.mxu0 0.0
        %836 = vmatpush1.xpose.msra.mxu0 0.0
        %837 = vmatprep.subr.mxu0 0.0
        %838 = vmatpush1.xpose.msra.mxu0 0.0
        %839 = vmatprep.subr.mxu0 0.0
        %840 = vmatpush1.xpose.msra.mxu0 0.0
        %841 = vmatprep.subr.mxu0 0.0
        %842 = vmatpush1.xpose.msra.mxu0 0.0
        %843 = vmatprep.subr.mxu0 0.0
        %844 = vmatpush1.xpose.msra.mxu0 0.0
        %845 = vmatprep.subr.mxu0 0.0
        %846 = vmatpush1.xpose.msra.mxu0 0.0
        %847 = vmatprep.subr.mxu0 0.0
        %848 = vmatpush1.xpose.msra.mxu0 0.0
        %849 = vmatprep.mubr.f32.mxu0 0.0
        %850 = vmatmul.mubr.f32.gmra.mrb[0].mxu0 %v781
        %v851 = vpop.f32.mrb[0].mxu0
        %v852 = vadd.f32 0.0, %v851
        %v853 = vpop.f32.mrb[0].mxu0
        %854 = vdwg.mxu0
        %856 = vrot.lane.b32.xlu0 %v417, 96
        %v857 = vpop.permute.xlu0 %856
        %v858 = vsel %vm276, %v417, 0
        %v860 = vsel %vm276, %v857, 0
        %862 = vmatprep.subr.mxu0 0.0
        %863 = vmatpush1.xpose.msra.mxu0 %v860
        %864 = vmatprep.subr.mxu0 0.0
        %865 = vmatpush1.xpose.msra.mxu0 0.0
        %866 = vmatprep.subr.mxu0 0.0
        %867 = vmatpush1.xpose.msra.mxu0 0.0
        %868 = vmatprep.subr.mxu0 0.0
        %869 = vmatpush1.xpose.msra.mxu0 0.0
        %870 = vmatprep.subr.mxu0 0.0
        %871 = vmatpush1.xpose.msra.mxu0 0.0
        %872 = vmatprep.subr.mxu0 0.0
        %873 = vmatpush1.xpose.msra.mxu0 0.0
        %874 = vmatprep.subr.mxu0 0.0
        %875 = vmatpush1.xpose.msra.mxu0 0.0
        %876 = vmatprep.subr.mxu0 0.0
        %877 = vmatpush1.xpose.msra.mxu0 0.0
        %878 = vmatprep.subr.mxu0 0.0
        %879 = vmatpush1.xpose.msra.mxu0 0.0
        %880 = vmatprep.subr.mxu0 0.0
        %881 = vmatpush1.xpose.msra.mxu0 0.0
        %882 = vmatprep.subr.mxu0 0.0
        %883 = vmatpush1.xpose.msra.mxu0 0.0
        %884 = vmatprep.subr.mxu0 0.0
        %885 = vmatpush1.xpose.msra.mxu0 0.0
        %886 = vmatprep.subr.mxu0 0.0
        %887 = vmatpush1.xpose.msra.mxu0 0.0
        %888 = vmatprep.subr.mxu0 0.0
        %889 = vmatpush1.xpose.msra.mxu0 0.0
        %890 = vmatprep.subr.mxu0 0.0
        %891 = vmatpush1.xpose.msra.mxu0 0.0
        %892 = vmatprep.subr.mxu0 0.0
        %893 = vmatpush1.xpose.msra.mxu0 0.0
        %894 = vmatprep.subr.mxu0 0.0
        %895 = vmatpush1.xpose.msra.mxu0 0.0
        %896 = vmatprep.subr.mxu0 0.0
        %897 = vmatpush1.xpose.msra.mxu0 0.0
        %898 = vmatprep.subr.mxu0 0.0
        %899 = vmatpush1.xpose.msra.mxu0 0.0
        %900 = vmatprep.subr.mxu0 0.0
        %901 = vmatpush1.xpose.msra.mxu0 0.0
        %902 = vmatprep.subr.mxu0 0.0
        %903 = vmatpush1.xpose.msra.mxu0 0.0
        %904 = vmatprep.subr.mxu0 0.0
        %905 = vmatpush1.xpose.msra.mxu0 0.0
        %906 = vmatprep.subr.mxu0 0.0
        %907 = vmatpush1.xpose.msra.mxu0 0.0
        %908 = vmatprep.subr.mxu0 0.0
        %909 = vmatpush1.xpose.msra.mxu0 0.0
        %910 = vmatprep.subr.mxu0 0.0
        %911 = vmatpush1.xpose.msra.mxu0 0.0
        %912 = vmatprep.subr.mxu0 0.0
        %913 = vmatpush1.xpose.msra.mxu0 0.0
        %914 = vmatprep.subr.mxu0 0.0
        %915 = vmatpush1.xpose.msra.mxu0 0.0
        %916 = vmatprep.subr.mxu0 0.0
        %917 = vmatpush1.xpose.msra.mxu0 0.0
        %918 = vmatprep.subr.mxu0 0.0
        %919 = vmatpush1.xpose.msra.mxu0 0.0
        %920 = vmatprep.subr.mxu0 0.0
        %921 = vmatpush1.xpose.msra.mxu0 0.0
        %922 = vmatprep.subr.mxu0 0.0
        %923 = vmatpush1.xpose.msra.mxu0 0.0
        %924 = vmatprep.subr.mxu0 0.0
        %925 = vmatpush1.xpose.msra.mxu0 0.0
        %926 = vmatprep.mubr.f32.mxu0 0.0
        %927 = vmatmul.mubr.f32.gmra.mrb[0].mxu0 %v858
        %v928 = vpop.f32.mrb[0].mxu0
        %v929 = vadd.f32 0.0, %v928
        %v930 = vpop.f32.mrb[0].mxu0
        %931 = vdwg.mxu0
        %933 = vrot.lane.b32.xlu0 %v422, 96
        %v934 = vpop.permute.xlu0 %933
        %v935 = vsel %vm276, %v422, 0
        %v937 = vsel %vm276, %v934, 0
        %939 = vmatprep.subr.mxu0 0.0
        %940 = vmatpush1.xpose.msra.mxu0 %v937
        %941 = vmatprep.subr.mxu0 0.0
        %942 = vmatpush1.xpose.msra.mxu0 0.0
        %943 = vmatprep.subr.mxu0 0.0
        %944 = vmatpush1.xpose.msra.mxu0 0.0
        %945 = vmatprep.subr.mxu0 0.0
        %946 = vmatpush1.xpose.msra.mxu0 0.0
        %947 = vmatprep.subr.mxu0 0.0
        %948 = vmatpush1.xpose.msra.mxu0 0.0
        %949 = vmatprep.subr.mxu0 0.0
        %950 = vmatpush1.xpose.msra.mxu0 0.0
        %951 = vmatprep.subr.mxu0 0.0
        %952 = vmatpush1.xpose.msra.mxu0 0.0
        %953 = vmatprep.subr.mxu0 0.0
        %954 = vmatpush1.xpose.msra.mxu0 0.0
        %955 = vmatprep.subr.mxu0 0.0
        %956 = vmatpush1.xpose.msra.mxu0 0.0
        %957 = vmatprep.subr.mxu0 0.0
        %958 = vmatpush1.xpose.msra.mxu0 0.0
        %959 = vmatprep.subr.mxu0 0.0
        %960 = vmatpush1.xpose.msra.mxu0 0.0
        %961 = vmatprep.subr.mxu0 0.0
        %962 = vmatpush1.xpose.msra.mxu0 0.0
        %963 = vmatprep.subr.mxu0 0.0
        %964 = vmatpush1.xpose.msra.mxu0 0.0
        %965 = vmatprep.subr.mxu0 0.0
        %966 = vmatpush1.xpose.msra.mxu0 0.0
        %967 = vmatprep.subr.mxu0 0.0
        %968 = vmatpush1.xpose.msra.mxu0 0.0
        %969 = vmatprep.subr.mxu0 0.0
        %970 = vmatpush1.xpose.msra.mxu0 0.0
        %971 = vmatprep.subr.mxu0 0.0
        %972 = vmatpush1.xpose.msra.mxu0 0.0
        %973 = vmatprep.subr.mxu0 0.0
        %974 = vmatpush1.xpose.msra.mxu0 0.0
        %975 = vmatprep.subr.mxu0 0.0
        %976 = vmatpush1.xpose.msra.mxu0 0.0
        %977 = vmatprep.subr.mxu0 0.0
        %978 = vmatpush1.xpose.msra.mxu0 0.0
        %979 = vmatprep.subr.mxu0 0.0
        %980 = vmatpush1.xpose.msra.mxu0 0.0
        %981 = vmatprep.subr.mxu0 0.0
        %982 = vmatpush1.xpose.msra.mxu0 0.0
        %983 = vmatprep.subr.mxu0 0.0
        %984 = vmatpush1.xpose.msra.mxu0 0.0
        %985 = vmatprep.subr.mxu0 0.0
        %986 = vmatpush1.xpose.msra.mxu0 0.0
        %987 = vmatprep.subr.mxu0 0.0
        %988 = vmatpush1.xpose.msra.mxu0 0.0
        %989 = vmatprep.subr.mxu0 0.0
        %990 = vmatpush1.xpose.msra.mxu0 0.0
        %991 = vmatprep.subr.mxu0 0.0
        %992 = vmatpush1.xpose.msra.mxu0 0.0
        %993 = vmatprep.subr.mxu0 0.0
        %994 = vmatpush1.xpose.msra.mxu0 0.0
        %995 = vmatprep.subr.mxu0 0.0
        %996 = vmatpush1.xpose.msra.mxu0 0.0
        %997 = vmatprep.subr.mxu0 0.0
        %998 = vmatpush1.xpose.msra.mxu0 0.0
        %999 = vmatprep.subr.mxu0 0.0
        %1000 = vmatpush1.xpose.msra.mxu0 0.0
        %1001 = vmatprep.subr.mxu0 0.0
        %1002 = vmatpush1.xpose.msra.mxu0 0.0
        %1003 = vmatprep.mubr.f32.mxu0 0.0
        %1004 = vmatmul.mubr.f32.gmra.mrb[0].mxu0 %v935
        %v1005 = vpop.f32.mrb[0].mxu0
        %v1006 = vadd.f32 0.0, %v1005
        %v1007 = vpop.f32.mrb[0].mxu0
        %1008 = vdwg.mxu0
        %1010 = vrot.lane.b32.xlu0 %v427, 96
        %v1011 = vpop.permute.xlu0 %1010
        %v1012 = vsel %vm276, %v427, 0
        %v1014 = vsel %vm276, %v1011, 0
        %1016 = vmatprep.subr.mxu0 0.0
        %1017 = vmatpush1.xpose.msra.mxu0 %v1014
        %1018 = vmatprep.subr.mxu0 0.0
        %1019 = vmatpush1.xpose.msra.mxu0 0.0
        %1020 = vmatprep.subr.mxu0 0.0
        %1021 = vmatpush1.xpose.msra.mxu0 0.0
        %1022 = vmatprep.subr.mxu0 0.0
        %1023 = vmatpush1.xpose.msra.mxu0 0.0
        %1024 = vmatprep.subr.mxu0 0.0
        %1025 = vmatpush1.xpose.msra.mxu0 0.0
        %1026 = vmatprep.subr.mxu0 0.0
        %1027 = vmatpush1.xpose.msra.mxu0 0.0
        %1028 = vmatprep.subr.mxu0 0.0
        %1029 = vmatpush1.xpose.msra.mxu0 0.0
        %1030 = vmatprep.subr.mxu0 0.0
        %1031 = vmatpush1.xpose.msra.mxu0 0.0
        %1032 = vmatprep.subr.mxu0 0.0
        %1033 = vmatpush1.xpose.msra.mxu0 0.0
        %1034 = vmatprep.subr.mxu0 0.0
        %1035 = vmatpush1.xpose.msra.mxu0 0.0
        %1036 = vmatprep.subr.mxu0 0.0
        %1037 = vmatpush1.xpose.msra.mxu0 0.0
        %1038 = vmatprep.subr.mxu0 0.0
        %1039 = vmatpush1.xpose.msra.mxu0 0.0
        %1040 = vmatprep.subr.mxu0 0.0
        %1041 = vmatpush1.xpose.msra.mxu0 0.0
        %1042 = vmatprep.subr.mxu0 0.0
        %1043 = vmatpush1.xpose.msra.mxu0 0.0
        %1044 = vmatprep.subr.mxu0 0.0
        %1045 = vmatpush1.xpose.msra.mxu0 0.0
        %1046 = vmatprep.subr.mxu0 0.0
        %1047 = vmatpush1.xpose.msra.mxu0 0.0
        %1048 = vmatprep.subr.mxu0 0.0
        %1049 = vmatpush1.xpose.msra.mxu0 0.0
        %1050 = vmatprep.subr.mxu0 0.0
        %1051 = vmatpush1.xpose.msra.mxu0 0.0
        %1052 = vmatprep.subr.mxu0 0.0
        %1053 = vmatpush1.xpose.msra.mxu0 0.0
        %1054 = vmatprep.subr.mxu0 0.0
        %1055 = vmatpush1.xpose.msra.mxu0 0.0
        %1056 = vmatprep.subr.mxu0 0.0
        %1057 = vmatpush1.xpose.msra.mxu0 0.0
        %1058 = vmatprep.subr.mxu0 0.0
        %1059 = vmatpush1.xpose.msra.mxu0 0.0
        %1060 = vmatprep.subr.mxu0 0.0
        %1061 = vmatpush1.xpose.msra.mxu0 0.0
        %1062 = vmatprep.subr.mxu0 0.0
        %1063 = vmatpush1.xpose.msra.mxu0 0.0
        %1064 = vmatprep.subr.mxu0 0.0
        %1065 = vmatpush1.xpose.msra.mxu0 0.0
        %1066 = vmatprep.subr.mxu0 0.0
        %1067 = vmatpush1.xpose.msra.mxu0 0.0
        %1068 = vmatprep.subr.mxu0 0.0
        %1069 = vmatpush1.xpose.msra.mxu0 0.0
        %1070 = vmatprep.subr.mxu0 0.0
        %1071 = vmatpush1.xpose.msra.mxu0 0.0
        %1072 = vmatprep.subr.mxu0 0.0
        %1073 = vmatpush1.xpose.msra.mxu0 0.0
        %1074 = vmatprep.subr.mxu0 0.0
        %1075 = vmatpush1.xpose.msra.mxu0 0.0
        %1076 = vmatprep.subr.mxu0 0.0
        %1077 = vmatpush1.xpose.msra.mxu0 0.0
        %1078 = vmatprep.subr.mxu0 0.0
        %1079 = vmatpush1.xpose.msra.mxu0 0.0
        %1080 = vmatprep.mubr.f32.mxu0 0.0
        %1081 = vmatmul.mubr.f32.gmra.mrb[0].mxu0 %v1012
        %v1082 = vpop.f32.mrb[0].mxu0
        %v1083 = vadd.f32 0.0, %v1082
        %v1084 = vpop.f32.mrb[0].mxu0
        %1085 = vdwg.mxu0
        %1087 = vrot.lane.b32.xlu0 %v432, 96
        %v1088 = vpop.permute.xlu0 %1087
        %v1089 = vsel %vm276, %v432, 0
        %v1091 = vsel %vm276, %v1088, 0
        %1093 = vmatprep.subr.mxu0 0.0
        %1094 = vmatpush1.xpose.msra.mxu0 %v1091
        %1095 = vmatprep.subr.mxu0 0.0
        %1096 = vmatpush1.xpose.msra.mxu0 0.0
        %1097 = vmatprep.subr.mxu0 0.0
        %1098 = vmatpush1.xpose.msra.mxu0 0.0
        %1099 = vmatprep.subr.mxu0 0.0
        %1100 = vmatpush1.xpose.msra.mxu0 0.0
        %1101 = vmatprep.subr.mxu0 0.0
        %1102 = vmatpush1.xpose.msra.mxu0 0.0
        %1103 = vmatprep.subr.mxu0 0.0
        %1104 = vmatpush1.xpose.msra.mxu0 0.0
        %1105 = vmatprep.subr.mxu0 0.0
        %1106 = vmatpush1.xpose.msra.mxu0 0.0
        %1107 = vmatprep.subr.mxu0 0.0
        %1108 = vmatpush1.xpose.msra.mxu0 0.0
        %1109 = vmatprep.subr.mxu0 0.0
        %1110 = vmatpush1.xpose.msra.mxu0 0.0
        %1111 = vmatprep.subr.mxu0 0.0
        %1112 = vmatpush1.xpose.msra.mxu0 0.0
        %1113 = vmatprep.subr.mxu0 0.0
        %1114 = vmatpush1.xpose.msra.mxu0 0.0
        %1115 = vmatprep.subr.mxu0 0.0
        %1116 = vmatpush1.xpose.msra.mxu0 0.0
        %1117 = vmatprep.subr.mxu0 0.0
        %1118 = vmatpush1.xpose.msra.mxu0 0.0
        %1119 = vmatprep.subr.mxu0 0.0
        %1120 = vmatpush1.xpose.msra.mxu0 0.0
        %1121 = vmatprep.subr.mxu0 0.0
        %1122 = vmatpush1.xpose.msra.mxu0 0.0
        %1123 = vmatprep.subr.mxu0 0.0
        %1124 = vmatpush1.xpose.msra.mxu0 0.0
        %1125 = vmatprep.subr.mxu0 0.0
        %1126 = vmatpush1.xpose.msra.mxu0 0.0
        %1127 = vmatprep.subr.mxu0 0.0
        %1128 = vmatpush1.xpose.msra.mxu0 0.0
        %1129 = vmatprep.subr.mxu0 0.0
        %1130 = vmatpush1.xpose.msra.mxu0 0.0
        %1131 = vmatprep.subr.mxu0 0.0
        %1132 = vmatpush1.xpose.msra.mxu0 0.0
        %1133 = vmatprep.subr.mxu0 0.0
        %1134 = vmatpush1.xpose.msra.mxu0 0.0
        %1135 = vmatprep.subr.mxu0 0.0
        %1136 = vmatpush1.xpose.msra.mxu0 0.0
        %1137 = vmatprep.subr.mxu0 0.0
        %1138 = vmatpush1.xpose.msra.mxu0 0.0
        %1139 = vmatprep.subr.mxu0 0.0
        %1140 = vmatpush1.xpose.msra.mxu0 0.0
        %1141 = vmatprep.subr.mxu0 0.0
        %1142 = vmatpush1.xpose.msra.mxu0 0.0
        %1143 = vmatprep.subr.mxu0 0.0
        %1144 = vmatpush1.xpose.msra.mxu0 0.0
        %1145 = vmatprep.subr.mxu0 0.0
        %1146 = vmatpush1.xpose.msra.mxu0 0.0
        %1147 = vmatprep.subr.mxu0 0.0
        %1148 = vmatpush1.xpose.msra.mxu0 0.0
        %1149 = vmatprep.subr.mxu0 0.0
        %1150 = vmatpush1.xpose.msra.mxu0 0.0
        %1151 = vmatprep.subr.mxu0 0.0
        %1152 = vmatpush1.xpose.msra.mxu0 0.0
        %1153 = vmatprep.subr.mxu0 0.0
        %1154 = vmatpush1.xpose.msra.mxu0 0.0
        %1155 = vmatprep.subr.mxu0 0.0
        %1156 = vmatpush1.xpose.msra.mxu0 0.0
        %1157 = vmatprep.mubr.f32.mxu0 0.0
        %1158 = vmatmul.mubr.f32.gmra.mrb[0].mxu0 %v1089
        %v1159 = vpop.f32.mrb[0].mxu0
        %v1160 = vadd.f32 0.0, %v1159
        %v1161 = vpop.f32.mrb[0].mxu0
        %1162 = vdwg.mxu0
        %1164 = vrot.lane.b32.xlu0 %v437, 96
        %v1165 = vpop.permute.xlu0 %1164
        %v1166 = vsel %vm276, %v437, 0
        %v1168 = vsel %vm276, %v1165, 0
        %1170 = vmatprep.subr.mxu0 0.0
        %1171 = vmatpush1.xpose.msra.mxu0 %v1168
        %1172 = vmatprep.subr.mxu0 0.0
        %1173 = vmatpush1.xpose.msra.mxu0 0.0
        %1174 = vmatprep.subr.mxu0 0.0
        %1175 = vmatpush1.xpose.msra.mxu0 0.0
        %1176 = vmatprep.subr.mxu0 0.0
        %1177 = vmatpush1.xpose.msra.mxu0 0.0
        %1178 = vmatprep.subr.mxu0 0.0
        %1179 = vmatpush1.xpose.msra.mxu0 0.0
        %1180 = vmatprep.subr.mxu0 0.0
        %1181 = vmatpush1.xpose.msra.mxu0 0.0
        %1182 = vmatprep.subr.mxu0 0.0
        %1183 = vmatpush1.xpose.msra.mxu0 0.0
        %1184 = vmatprep.subr.mxu0 0.0
        %1185 = vmatpush1.xpose.msra.mxu0 0.0
        %1186 = vmatprep.subr.mxu0 0.0
        %1187 = vmatpush1.xpose.msra.mxu0 0.0
        %1188 = vmatprep.subr.mxu0 0.0
        %1189 = vmatpush1.xpose.msra.mxu0 0.0
        %1190 = vmatprep.subr.mxu0 0.0
        %1191 = vmatpush1.xpose.msra.mxu0 0.0
        %1192 = vmatprep.subr.mxu0 0.0
        %1193 = vmatpush1.xpose.msra.mxu0 0.0
        %1194 = vmatprep.subr.mxu0 0.0
        %1195 = vmatpush1.xpose.msra.mxu0 0.0
        %1196 = vmatprep.subr.mxu0 0.0
        %1197 = vmatpush1.xpose.msra.mxu0 0.0
        %1198 = vmatprep.subr.mxu0 0.0
        %1199 = vmatpush1.xpose.msra.mxu0 0.0
        %1200 = vmatprep.subr.mxu0 0.0
        %1201 = vmatpush1.xpose.msra.mxu0 0.0
        %1202 = vmatprep.subr.mxu0 0.0
        %1203 = vmatpush1.xpose.msra.mxu0 0.0
        %1204 = vmatprep.subr.mxu0 0.0
        %1205 = vmatpush1.xpose.msra.mxu0 0.0
        %1206 = vmatprep.subr.mxu0 0.0
        %1207 = vmatpush1.xpose.msra.mxu0 0.0
        %1208 = vmatprep.subr.mxu0 0.0
        %1209 = vmatpush1.xpose.msra.mxu0 0.0
        %1210 = vmatprep.subr.mxu0 0.0
        %1211 = vmatpush1.xpose.msra.mxu0 0.0
        %1212 = vmatprep.subr.mxu0 0.0
        %1213 = vmatpush1.xpose.msra.mxu0 0.0
        %1214 = vmatprep.subr.mxu0 0.0
        %1215 = vmatpush1.xpose.msra.mxu0 0.0
        %1216 = vmatprep.subr.mxu0 0.0
        %1217 = vmatpush1.xpose.msra.mxu0 0.0
        %1218 = vmatprep.subr.mxu0 0.0
        %1219 = vmatpush1.xpose.msra.mxu0 0.0
        %1220 = vmatprep.subr.mxu0 0.0
        %1221 = vmatpush1.xpose.msra.mxu0 0.0
        %1222 = vmatprep.subr.mxu0 0.0
        %1223 = vmatpush1.xpose.msra.mxu0 0.0
        %1224 = vmatprep.subr.mxu0 0.0
        %1225 = vmatpush1.xpose.msra.mxu0 0.0
        %1226 = vmatprep.subr.mxu0 0.0
        %1227 = vmatpush1.xpose.msra.mxu0 0.0
        %1228 = vmatprep.subr.mxu0 0.0
        %1229 = vmatpush1.xpose.msra.mxu0 0.0
        %1230 = vmatprep.subr.mxu0 0.0
        %1231 = vmatpush1.xpose.msra.mxu0 0.0
        %1232 = vmatprep.subr.mxu0 0.0
        %1233 = vmatpush1.xpose.msra.mxu0 0.0
        %1234 = vmatprep.mubr.f32.mxu0 0.0
        %1235 = vmatmul.mubr.f32.gmra.mrb[0].mxu0 %v1166
        %v1236 = vpop.f32.mrb[0].mxu0
        %v1237 = vadd.f32 0.0, %v1236
        %v1238 = vpop.f32.mrb[0].mxu0
        %1239 = vdwg.mxu0
        %1241 = vrot.lane.b32.xlu0 %v442, 96
        %v1242 = vpop.permute.xlu0 %1241
        %v1243 = vsel %vm276, %v442, 0
        %v1245 = vsel %vm276, %v1242, 0
        %1247 = vmatprep.subr.mxu0 0.0
        %1248 = vmatpush1.xpose.msra.mxu0 %v1245
        %1249 = vmatprep.subr.mxu0 0.0
        %1250 = vmatpush1.xpose.msra.mxu0 0.0
        %1251 = vmatprep.subr.mxu0 0.0
        %1252 = vmatpush1.xpose.msra.mxu0 0.0
        %1253 = vmatprep.subr.mxu0 0.0
        %1254 = vmatpush1.xpose.msra.mxu0 0.0
        %1255 = vmatprep.subr.mxu0 0.0
        %1256 = vmatpush1.xpose.msra.mxu0 0.0
        %1257 = vmatprep.subr.mxu0 0.0
        %1258 = vmatpush1.xpose.msra.mxu0 0.0
        %1259 = vmatprep.subr.mxu0 0.0
        %1260 = vmatpush1.xpose.msra.mxu0 0.0
        %1261 = vmatprep.subr.mxu0 0.0
        %1262 = vmatpush1.xpose.msra.mxu0 0.0
        %1263 = vmatprep.subr.mxu0 0.0
        %1264 = vmatpush1.xpose.msra.mxu0 0.0
        %1265 = vmatprep.subr.mxu0 0.0
        %1266 = vmatpush1.xpose.msra.mxu0 0.0
        %1267 = vmatprep.subr.mxu0 0.0
        %1268 = vmatpush1.xpose.msra.mxu0 0.0
        %1269 = vmatprep.subr.mxu0 0.0
        %1270 = vmatpush1.xpose.msra.mxu0 0.0
        %1271 = vmatprep.subr.mxu0 0.0
        %1272 = vmatpush1.xpose.msra.mxu0 0.0
        %1273 = vmatprep.subr.mxu0 0.0
        %1274 = vmatpush1.xpose.msra.mxu0 0.0
        %1275 = vmatprep.subr.mxu0 0.0
        %1276 = vmatpush1.xpose.msra.mxu0 0.0
        %1277 = vmatprep.subr.mxu0 0.0
        %1278 = vmatpush1.xpose.msra.mxu0 0.0
        %1279 = vmatprep.subr.mxu0 0.0
        %1280 = vmatpush1.xpose.msra.mxu0 0.0
        %1281 = vmatprep.subr.mxu0 0.0
        %1282 = vmatpush1.xpose.msra.mxu0 0.0
        %1283 = vmatprep.subr.mxu0 0.0
        %1284 = vmatpush1.xpose.msra.mxu0 0.0
        %1285 = vmatprep.subr.mxu0 0.0
        %1286 = vmatpush1.xpose.msra.mxu0 0.0
        %1287 = vmatprep.subr.mxu0 0.0
        %1288 = vmatpush1.xpose.msra.mxu0 0.0
        %1289 = vmatprep.subr.mxu0 0.0
        %1290 = vmatpush1.xpose.msra.mxu0 0.0
        %1291 = vmatprep.subr.mxu0 0.0
        %1292 = vmatpush1.xpose.msra.mxu0 0.0
        %1293 = vmatprep.subr.mxu0 0.0
        %1294 = vmatpush1.xpose.msra.mxu0 0.0
        %1295 = vmatprep.subr.mxu0 0.0
        %1296 = vmatpush1.xpose.msra.mxu0 0.0
        %1297 = vmatprep.subr.mxu0 0.0
        %1298 = vmatpush1.xpose.msra.mxu0 0.0
        %1299 = vmatprep.subr.mxu0 0.0
        %1300 = vmatpush1.xpose.msra.mxu0 0.0
        %1301 = vmatprep.subr.mxu0 0.0
        %1302 = vmatpush1.xpose.msra.mxu0 0.0
        %1303 = vmatprep.subr.mxu0 0.0
        %1304 = vmatpush1.xpose.msra.mxu0 0.0
        %1305 = vmatprep.subr.mxu0 0.0
        %1306 = vmatpush1.xpose.msra.mxu0 0.0
        %1307 = vmatprep.subr.mxu0 0.0
        %1308 = vmatpush1.xpose.msra.mxu0 0.0
        %1309 = vmatprep.subr.mxu0 0.0
        %1310 = vmatpush1.xpose.msra.mxu0 0.0
        %1311 = vmatprep.mubr.f32.mxu0 0.0
        %1312 = vmatmul.mubr.f32.gmra.mrb[0].mxu0 %v1243
        %v1313 = vpop.f32.mrb[0].mxu0
        %v1314 = vadd.f32 0.0, %v1313
        %v1315 = vpop.f32.mrb[0].mxu0
        %1316 = vdwg.mxu0
        %1318 = vrot.lane.b32.xlu0 %v447, 96
        %v1319 = vpop.permute.xlu0 %1318
        %v1320 = vsel %vm276, %v447, 0
        %v1322 = vsel %vm276, %v1319, 0
        %1324 = vmatprep.subr.mxu0 0.0
        %1325 = vmatpush1.xpose.msra.mxu0 %v1322
        %1326 = vmatprep.subr.mxu0 0.0
        %1327 = vmatpush1.xpose.msra.mxu0 0.0
        %1328 = vmatprep.subr.mxu0 0.0
        %1329 = vmatpush1.xpose.msra.mxu0 0.0
        %1330 = vmatprep.subr.mxu0 0.0
        %1331 = vmatpush1.xpose.msra.mxu0 0.0
        %1332 = vmatprep.subr.mxu0 0.0
        %1333 = vmatpush1.xpose.msra.mxu0 0.0
        %1334 = vmatprep.subr.mxu0 0.0
        %1335 = vmatpush1.xpose.msra.mxu0 0.0
        %1336 = vmatprep.subr.mxu0 0.0
        %1337 = vmatpush1.xpose.msra.mxu0 0.0
        %1338 = vmatprep.subr.mxu0 0.0
        %1339 = vmatpush1.xpose.msra.mxu0 0.0
        %1340 = vmatprep.subr.mxu0 0.0
        %1341 = vmatpush1.xpose.msra.mxu0 0.0
        %1342 = vmatprep.subr.mxu0 0.0
        %1343 = vmatpush1.xpose.msra.mxu0 0.0
        %1344 = vmatprep.subr.mxu0 0.0
        %1345 = vmatpush1.xpose.msra.mxu0 0.0
        %1346 = vmatprep.subr.mxu0 0.0
        %1347 = vmatpush1.xpose.msra.mxu0 0.0
        %1348 = vmatprep.subr.mxu0 0.0
        %1349 = vmatpush1.xpose.msra.mxu0 0.0
        %1350 = vmatprep.subr.mxu0 0.0
        %1351 = vmatpush1.xpose.msra.mxu0 0.0
        %1352 = vmatprep.subr.mxu0 0.0
        %1353 = vmatpush1.xpose.msra.mxu0 0.0
        %1354 = vmatprep.subr.mxu0 0.0
        %1355 = vmatpush1.xpose.msra.mxu0 0.0
        %1356 = vmatprep.subr.mxu0 0.0
        %1357 = vmatpush1.xpose.msra.mxu0 0.0
        %1358 = vmatprep.subr.mxu0 0.0
        %1359 = vmatpush1.xpose.msra.mxu0 0.0
        %1360 = vmatprep.subr.mxu0 0.0
        %1361 = vmatpush1.xpose.msra.mxu0 0.0
        %1362 = vmatprep.subr.mxu0 0.0
        %1363 = vmatpush1.xpose.msra.mxu0 0.0
        %1364 = vmatprep.subr.mxu0 0.0
        %1365 = vmatpush1.xpose.msra.mxu0 0.0
        %1366 = vmatprep.subr.mxu0 0.0
        %1367 = vmatpush1.xpose.msra.mxu0 0.0
        %1368 = vmatprep.subr.mxu0 0.0
        %1369 = vmatpush1.xpose.msra.mxu0 0.0
        %1370 = vmatprep.subr.mxu0 0.0
        %1371 = vmatpush1.xpose.msra.mxu0 0.0
        %1372 = vmatprep.subr.mxu0 0.0
        %1373 = vmatpush1.xpose.msra.mxu0 0.0
        %1374 = vmatprep.subr.mxu0 0.0
        %1375 = vmatpush1.xpose.msra.mxu0 0.0
        %1376 = vmatprep.subr.mxu0 0.0
        %1377 = vmatpush1.xpose.msra.mxu0 0.0
        %1378 = vmatprep.subr.mxu0 0.0
        %1379 = vmatpush1.xpose.msra.mxu0 0.0
        %1380 = vmatprep.subr.mxu0 0.0
        %1381 = vmatpush1.xpose.msra.mxu0 0.0
        %1382 = vmatprep.subr.mxu0 0.0
        %1383 = vmatpush1.xpose.msra.mxu0 0.0
        %1384 = vmatprep.subr.mxu0 0.0
        %1385 = vmatpush1.xpose.msra.mxu0 0.0
        %1386 = vmatprep.subr.mxu0 0.0
        %1387 = vmatpush1.xpose.msra.mxu0 0.0
        %1388 = vmatprep.mubr.f32.mxu0 0.0
        %1389 = vmatmul.mubr.f32.gmra.mrb[0].mxu0 %v1320
        %v1390 = vpop.f32.mrb[0].mxu0
        %v1391 = vadd.f32 0.0, %v1390
        %v1392 = vpop.f32.mrb[0].mxu0
        %1393 = vdwg.mxu0
        %1395 = vrot.lane.b32.xlu0 %v452, 96
        %v1396 = vpop.permute.xlu0 %1395
        %v1397 = vsel %vm276, %v452, 0
        %v1399 = vsel %vm276, %v1396, 0
        %1401 = vmatprep.subr.mxu0 0.0
        %1402 = vmatpush1.xpose.msra.mxu0 %v1399
        %1403 = vmatprep.subr.mxu0 0.0
        %1404 = vmatpush1.xpose.msra.mxu0 0.0
        %1405 = vmatprep.subr.mxu0 0.0
        %1406 = vmatpush1.xpose.msra.mxu0 0.0
        %1407 = vmatprep.subr.mxu0 0.0
        %1408 = vmatpush1.xpose.msra.mxu0 0.0
        %1409 = vmatprep.subr.mxu0 0.0
        %1410 = vmatpush1.xpose.msra.mxu0 0.0
        %1411 = vmatprep.subr.mxu0 0.0
        %1412 = vmatpush1.xpose.msra.mxu0 0.0
        %1413 = vmatprep.subr.mxu0 0.0
        %1414 = vmatpush1.xpose.msra.mxu0 0.0
        %1415 = vmatprep.subr.mxu0 0.0
        %1416 = vmatpush1.xpose.msra.mxu0 0.0
        %1417 = vmatprep.subr.mxu0 0.0
        %1418 = vmatpush1.xpose.msra.mxu0 0.0
        %1419 = vmatprep.subr.mxu0 0.0
        %1420 = vmatpush1.xpose.msra.mxu0 0.0
        %1421 = vmatprep.subr.mxu0 0.0
        %1422 = vmatpush1.xpose.msra.mxu0 0.0
        %1423 = vmatprep.subr.mxu0 0.0
        %1424 = vmatpush1.xpose.msra.mxu0 0.0
        %1425 = vmatprep.subr.mxu0 0.0
        %1426 = vmatpush1.xpose.msra.mxu0 0.0
        %1427 = vmatprep.subr.mxu0 0.0
        %1428 = vmatpush1.xpose.msra.mxu0 0.0
        %1429 = vmatprep.subr.mxu0 0.0
        %1430 = vmatpush1.xpose.msra.mxu0 0.0
        %1431 = vmatprep.subr.mxu0 0.0
        %1432 = vmatpush1.xpose.msra.mxu0 0.0
        %1433 = vmatprep.subr.mxu0 0.0
        %1434 = vmatpush1.xpose.msra.mxu0 0.0
        %1435 = vmatprep.subr.mxu0 0.0
        %1436 = vmatpush1.xpose.msra.mxu0 0.0
        %1437 = vmatprep.subr.mxu0 0.0
        %1438 = vmatpush1.xpose.msra.mxu0 0.0
        %1439 = vmatprep.subr.mxu0 0.0
        %1440 = vmatpush1.xpose.msra.mxu0 0.0
        %1441 = vmatprep.subr.mxu0 0.0
        %1442 = vmatpush1.xpose.msra.mxu0 0.0
        %1443 = vmatprep.subr.mxu0 0.0
        %1444 = vmatpush1.xpose.msra.mxu0 0.0
        %1445 = vmatprep.subr.mxu0 0.0
        %1446 = vmatpush1.xpose.msra.mxu0 0.0
        %1447 = vmatprep.subr.mxu0 0.0
        %1448 = vmatpush1.xpose.msra.mxu0 0.0
        %1449 = vmatprep.subr.mxu0 0.0
        %1450 = vmatpush1.xpose.msra.mxu0 0.0
        %1451 = vmatprep.subr.mxu0 0.0
        %1452 = vmatpush1.xpose.msra.mxu0 0.0
        %1453 = vmatprep.subr.mxu0 0.0
        %1454 = vmatpush1.xpose.msra.mxu0 0.0
        %1455 = vmatprep.subr.mxu0 0.0
        %1456 = vmatpush1.xpose.msra.mxu0 0.0
        %1457 = vmatprep.subr.mxu0 0.0
        %1458 = vmatpush1.xpose.msra.mxu0 0.0
        %1459 = vmatprep.subr.mxu0 0.0
        %1460 = vmatpush1.xpose.msra.mxu0 0.0
        %1461 = vmatprep.subr.mxu0 0.0
        %1462 = vmatpush1.xpose.msra.mxu0 0.0
        %1463 = vmatprep.subr.mxu0 0.0
        %1464 = vmatpush1.xpose.msra.mxu0 0.0
        %1465 = vmatprep.mubr.f32.mxu0 0.0
        %1466 = vmatmul.mubr.f32.gmra.mrb[0].mxu0 %v1397
        %v1467 = vpop.f32.mrb[0].mxu0
        %v1468 = vadd.f32 0.0, %v1467
        %v1469 = vpop.f32.mrb[0].mxu0
        %1470 = vdwg.mxu0
        %1472 = vrot.lane.b32.xlu0 %v457, 96
        %v1473 = vpop.permute.xlu0 %1472
        %v1474 = vsel %vm276, %v457, 0
        %v1476 = vsel %vm276, %v1473, 0
        %1478 = vmatprep.subr.mxu0 0.0
        %1479 = vmatpush1.xpose.msra.mxu0 %v1476
        %1480 = vmatprep.subr.mxu0 0.0
        %1481 = vmatpush1.xpose.msra.mxu0 0.0
        %1482 = vmatprep.subr.mxu0 0.0
        %1483 = vmatpush1.xpose.msra.mxu0 0.0
        %1484 = vmatprep.subr.mxu0 0.0
        %1485 = vmatpush1.xpose.msra.mxu0 0.0
        %1486 = vmatprep.subr.mxu0 0.0
        %1487 = vmatpush1.xpose.msra.mxu0 0.0
        %1488 = vmatprep.subr.mxu0 0.0
        %1489 = vmatpush1.xpose.msra.mxu0 0.0
        %1490 = vmatprep.subr.mxu0 0.0
        %1491 = vmatpush1.xpose.msra.mxu0 0.0
        %1492 = vmatprep.subr.mxu0 0.0
        %1493 = vmatpush1.xpose.msra.mxu0 0.0
        %1494 = vmatprep.subr.mxu0 0.0
        %1495 = vmatpush1.xpose.msra.mxu0 0.0
        %1496 = vmatprep.subr.mxu0 0.0
        %1497 = vmatpush1.xpose.msra.mxu0 0.0
        %1498 = vmatprep.subr.mxu0 0.0
        %1499 = vmatpush1.xpose.msra.mxu0 0.0
        %1500 = vmatprep.subr.mxu0 0.0
        %1501 = vmatpush1.xpose.msra.mxu0 0.0
        %1502 = vmatprep.subr.mxu0 0.0
        %1503 = vmatpush1.xpose.msra.mxu0 0.0
        %1504 = vmatprep.subr.mxu0 0.0
        %1505 = vmatpush1.xpose.msra.mxu0 0.0
        %1506 = vmatprep.subr.mxu0 0.0
        %1507 = vmatpush1.xpose.msra.mxu0 0.0
        %1508 = vmatprep.subr.mxu0 0.0
        %1509 = vmatpush1.xpose.msra.mxu0 0.0
        %1510 = vmatprep.subr.mxu0 0.0
        %1511 = vmatpush1.xpose.msra.mxu0 0.0
        %1512 = vmatprep.subr.mxu0 0.0
        %1513 = vmatpush1.xpose.msra.mxu0 0.0
        %1514 = vmatprep.subr.mxu0 0.0
        %1515 = vmatpush1.xpose.msra.mxu0 0.0
        %1516 = vmatprep.subr.mxu0 0.0
        %1517 = vmatpush1.xpose.msra.mxu0 0.0
        %1518 = vmatprep.subr.mxu0 0.0
        %1519 = vmatpush1.xpose.msra.mxu0 0.0
        %1520 = vmatprep.subr.mxu0 0.0
        %1521 = vmatpush1.xpose.msra.mxu0 0.0
        %1522 = vmatprep.subr.mxu0 0.0
        %1523 = vmatpush1.xpose.msra.mxu0 0.0
        %1524 = vmatprep.subr.mxu0 0.0
        %1525 = vmatpush1.xpose.msra.mxu0 0.0
        %1526 = vmatprep.subr.mxu0 0.0
        %1527 = vmatpush1.xpose.msra.mxu0 0.0
        %1528 = vmatprep.subr.mxu0 0.0
        %1529 = vmatpush1.xpose.msra.mxu0 0.0
        %1530 = vmatprep.subr.mxu0 0.0
        %1531 = vmatpush1.xpose.msra.mxu0 0.0
        %1532 = vmatprep.subr.mxu0 0.0
        %1533 = vmatpush1.xpose.msra.mxu0 0.0
        %1534 = vmatprep.subr.mxu0 0.0
        %1535 = vmatpush1.xpose.msra.mxu0 0.0
        %1536 = vmatprep.subr.mxu0 0.0
        %1537 = vmatpush1.xpose.msra.mxu0 0.0
        %1538 = vmatprep.subr.mxu0 0.0
        %1539 = vmatpush1.xpose.msra.mxu0 0.0
        %1540 = vmatprep.subr.mxu0 0.0
        %1541 = vmatpush1.xpose.msra.mxu0 0.0
        %1542 = vmatprep.mubr.f32.mxu0 0.0
        %1543 = vmatmul.mubr.f32.gmra.mrb[0].mxu0 %v1474
        %v1544 = vpop.f32.mrb[0].mxu0
        %v1545 = vadd.f32 0.0, %v1544
        %v1546 = vpop.f32.mrb[0].mxu0
        %1547 = vdwg.mxu0
        %1549 = vrot.lane.b32.xlu0 %v462, 96
        %v1550 = vpop.permute.xlu0 %1549
        %v1551 = vsel %vm276, %v462, 0
        %v1553 = vsel %vm276, %v1550, 0
        %1555 = vmatprep.subr.mxu0 0.0
        %1556 = vmatpush1.xpose.msra.mxu0 %v1553
        %1557 = vmatprep.subr.mxu0 0.0
        %1558 = vmatpush1.xpose.msra.mxu0 0.0
        %1559 = vmatprep.subr.mxu0 0.0
        %1560 = vmatpush1.xpose.msra.mxu0 0.0
        %1561 = vmatprep.subr.mxu0 0.0
        %1562 = vmatpush1.xpose.msra.mxu0 0.0
        %1563 = vmatprep.subr.mxu0 0.0
        %1564 = vmatpush1.xpose.msra.mxu0 0.0
        %1565 = vmatprep.subr.mxu0 0.0
        %1566 = vmatpush1.xpose.msra.mxu0 0.0
        %1567 = vmatprep.subr.mxu0 0.0
        %1568 = vmatpush1.xpose.msra.mxu0 0.0
        %1569 = vmatprep.subr.mxu0 0.0
        %1570 = vmatpush1.xpose.msra.mxu0 0.0
        %1571 = vmatprep.subr.mxu0 0.0
        %1572 = vmatpush1.xpose.msra.mxu0 0.0
        %1573 = vmatprep.subr.mxu0 0.0
        %1574 = vmatpush1.xpose.msra.mxu0 0.0
        %1575 = vmatprep.subr.mxu0 0.0
        %1576 = vmatpush1.xpose.msra.mxu0 0.0
        %1577 = vmatprep.subr.mxu0 0.0
        %1578 = vmatpush1.xpose.msra.mxu0 0.0
        %1579 = vmatprep.subr.mxu0 0.0
        %1580 = vmatpush1.xpose.msra.mxu0 0.0
        %1581 = vmatprep.subr.mxu0 0.0
        %1582 = vmatpush1.xpose.msra.mxu0 0.0
        %1583 = vmatprep.subr.mxu0 0.0
        %1584 = vmatpush1.xpose.msra.mxu0 0.0
        %1585 = vmatprep.subr.mxu0 0.0
        %1586 = vmatpush1.xpose.msra.mxu0 0.0
        %1587 = vmatprep.subr.mxu0 0.0
        %1588 = vmatpush1.xpose.msra.mxu0 0.0
        %1589 = vmatprep.subr.mxu0 0.0
        %1590 = vmatpush1.xpose.msra.mxu0 0.0
        %1591 = vmatprep.subr.mxu0 0.0
        %1592 = vmatpush1.xpose.msra.mxu0 0.0
        %1593 = vmatprep.subr.mxu0 0.0
        %1594 = vmatpush1.xpose.msra.mxu0 0.0
        %1595 = vmatprep.subr.mxu0 0.0
        %1596 = vmatpush1.xpose.msra.mxu0 0.0
        %1597 = vmatprep.subr.mxu0 0.0
        %1598 = vmatpush1.xpose.msra.mxu0 0.0
        %1599 = vmatprep.subr.mxu0 0.0
        %1600 = vmatpush1.xpose.msra.mxu0 0.0
        %1601 = vmatprep.subr.mxu0 0.0
        %1602 = vmatpush1.xpose.msra.mxu0 0.0
        %1603 = vmatprep.subr.mxu0 0.0
        %1604 = vmatpush1.xpose.msra.mxu0 0.0
        %1605 = vmatprep.subr.mxu0 0.0
        %1606 = vmatpush1.xpose.msra.mxu0 0.0
        %1607 = vmatprep.subr.mxu0 0.0
        %1608 = vmatpush1.xpose.msra.mxu0 0.0
        %1609 = vmatprep.subr.mxu0 0.0
        %1610 = vmatpush1.xpose.msra.mxu0 0.0
        %1611 = vmatprep.subr.mxu0 0.0
        %1612 = vmatpush1.xpose.msra.mxu0 0.0
        %1613 = vmatprep.subr.mxu0 0.0
        %1614 = vmatpush1.xpose.msra.mxu0 0.0
        %1615 = vmatprep.subr.mxu0 0.0
        %1616 = vmatpush1.xpose.msra.mxu0 0.0
        %1617 = vmatprep.subr.mxu0 0.0
        %1618 = vmatpush1.xpose.msra.mxu0 0.0
        %1619 = vmatprep.mubr.f32.mxu0 0.0
        %1620 = vmatmul.mubr.f32.gmra.mrb[0].mxu0 %v1551
        %v1621 = vpop.f32.mrb[0].mxu0
        %v1622 = vadd.f32 0.0, %v1621
        %v1623 = vpop.f32.mrb[0].mxu0
        %1624 = vdwg.mxu0
        %1626 = vrot.lane.b32.xlu0 %v467, 96
        %v1627 = vpop.permute.xlu0 %1626
        %v1628 = vsel %vm276, %v467, 0
        %v1630 = vsel %vm276, %v1627, 0
        %1632 = vmatprep.subr.mxu0 0.0
        %1633 = vmatpush1.xpose.msra.mxu0 %v1630
        %1634 = vmatprep.subr.mxu0 0.0
        %1635 = vmatpush1.xpose.msra.mxu0 0.0
        %1636 = vmatprep.subr.mxu0 0.0
        %1637 = vmatpush1.xpose.msra.mxu0 0.0
        %1638 = vmatprep.subr.mxu0 0.0
        %1639 = vmatpush1.xpose.msra.mxu0 0.0
        %1640 = vmatprep.subr.mxu0 0.0
        %1641 = vmatpush1.xpose.msra.mxu0 0.0
        %1642 = vmatprep.subr.mxu0 0.0
        %1643 = vmatpush1.xpose.msra.mxu0 0.0
        %1644 = vmatprep.subr.mxu0 0.0
        %1645 = vmatpush1.xpose.msra.mxu0 0.0
        %1646 = vmatprep.subr.mxu0 0.0
        %1647 = vmatpush1.xpose.msra.mxu0 0.0
        %1648 = vmatprep.subr.mxu0 0.0
        %1649 = vmatpush1.xpose.msra.mxu0 0.0
        %1650 = vmatprep.subr.mxu0 0.0
        %1651 = vmatpush1.xpose.msra.mxu0 0.0
        %1652 = vmatprep.subr.mxu0 0.0
        %1653 = vmatpush1.xpose.msra.mxu0 0.0
        %1654 = vmatprep.subr.mxu0 0.0
        %1655 = vmatpush1.xpose.msra.mxu0 0.0
        %1656 = vmatprep.subr.mxu0 0.0
        %1657 = vmatpush1.xpose.msra.mxu0 0.0
        %1658 = vmatprep.subr.mxu0 0.0
        %1659 = vmatpush1.xpose.msra.mxu0 0.0
        %1660 = vmatprep.subr.mxu0 0.0
        %1661 = vmatpush1.xpose.msra.mxu0 0.0
        %1662 = vmatprep.subr.mxu0 0.0
        %1663 = vmatpush1.xpose.msra.mxu0 0.0
        %1664 = vmatprep.subr.mxu0 0.0
        %1665 = vmatpush1.xpose.msra.mxu0 0.0
        %1666 = vmatprep.subr.mxu0 0.0
        %1667 = vmatpush1.xpose.msra.mxu0 0.0
        %1668 = vmatprep.subr.mxu0 0.0
        %1669 = vmatpush1.xpose.msra.mxu0 0.0
        %1670 = vmatprep.subr.mxu0 0.0
        %1671 = vmatpush1.xpose.msra.mxu0 0.0
        %1672 = vmatprep.subr.mxu0 0.0
        %1673 = vmatpush1.xpose.msra.mxu0 0.0
        %1674 = vmatprep.subr.mxu0 0.0
        %1675 = vmatpush1.xpose.msra.mxu0 0.0
        %1676 = vmatprep.subr.mxu0 0.0
        %1677 = vmatpush1.xpose.msra.mxu0 0.0
        %1678 = vmatprep.subr.mxu0 0.0
        %1679 = vmatpush1.xpose.msra.mxu0 0.0
        %1680 = vmatprep.subr.mxu0 0.0
        %1681 = vmatpush1.xpose.msra.mxu0 0.0
        %1682 = vmatprep.subr.mxu0 0.0
        %1683 = vmatpush1.xpose.msra.mxu0 0.0
        %1684 = vmatprep.subr.mxu0 0.0
        %1685 = vmatpush1.xpose.msra.mxu0 0.0
        %1686 = vmatprep.subr.mxu0 0.0
        %1687 = vmatpush1.xpose.msra.mxu0 0.0
        %1688 = vmatprep.subr.mxu0 0.0
        %1689 = vmatpush1.xpose.msra.mxu0 0.0
        %1690 = vmatprep.subr.mxu0 0.0
        %1691 = vmatpush1.xpose.msra.mxu0 0.0
        %1692 = vmatprep.subr.mxu0 0.0
        %1693 = vmatpush1.xpose.msra.mxu0 0.0
        %1694 = vmatprep.subr.mxu0 0.0
        %1695 = vmatpush1.xpose.msra.mxu0 0.0
        %1696 = vmatprep.mubr.f32.mxu0 0.0
        %1697 = vmatmul.mubr.f32.gmra.mrb[0].mxu0 %v1628
        %v1698 = vpop.f32.mrb[0].mxu0
        %v1699 = vadd.f32 0.0, %v1698
        %v1700 = vpop.f32.mrb[0].mxu0
        %1701 = vdwg.mxu0
        %v1702 = vmul.f32 %v544, 0.17677669
        %v1703 = vmul.f32 %v621, 0.17677669
        %v1704 = vmul.f32 %v698, 0.17677669
        %v1705 = vmul.f32 %v775, 0.17677669
        %v1706 = vmul.f32 %v852, 0.17677669
        %v1707 = vmul.f32 %v929, 0.17677669
        %v1708 = vmul.f32 %v1006, 0.17677669
        %v1709 = vmul.f32 %v1083, 0.17677669
        %v1710 = vmul.f32 %v1160, 0.17677669
        %v1711 = vmul.f32 %v1237, 0.17677669
        %v1712 = vmul.f32 %v1314, 0.17677669
        %v1713 = vmul.f32 %v1391, 0.17677669
        %v1714 = vmul.f32 %v1468, 0.17677669
        %v1715 = vmul.f32 %v1545, 0.17677669
        %v1716 = vmul.f32 %v1622, 0.17677669
        %v1717 = vmul.f32 %v1699, 0.17677669
        %vm1718 = vcmask 64512
        %v1719 = vsel %vm1718, %v1702, -inf
        %1720 = vmax.xlane.f32.xlu0 %v1719
        %v1721 = vpop.xlane.xlu0 %1720
        %v1722 = vsel %vm1718, %v1703, -inf
        %1723 = vmax.xlane.f32.xlu0 %v1722
        %v1724 = vpop.xlane.xlu0 %1723
        %v1725 = vsel %vm1718, %v1704, -inf
        %1726 = vmax.xlane.f32.xlu0 %v1725
        %v1727 = vpop.xlane.xlu0 %1726
        %v1728 = vsel %vm1718, %v1705, -inf
        %1729 = vmax.xlane.f32.xlu0 %v1728
        %v1730 = vpop.xlane.xlu0 %1729
        %v1731 = vsel %vm1718, %v1706, -inf
        %1732 = vmax.xlane.f32.xlu0 %v1731
        %v1733 = vpop.xlane.xlu0 %1732
        %v1734 = vsel %vm1718, %v1707, -inf
        %1735 = vmax.xlane.f32.xlu0 %v1734
        %v1736 = vpop.xlane.xlu0 %1735
        %v1737 = vsel %vm1718, %v1708, -inf
        %1738 = vmax.xlane.f32.xlu0 %v1737
        %v1739 = vpop.xlane.xlu0 %1738
        %v1740 = vsel %vm1718, %v1709, -inf
        %1741 = vmax.xlane.f32.xlu0 %v1740
        %v1742 = vpop.xlane.xlu0 %1741
        %v1743 = vsel %vm1718, %v1710, -inf
        %1744 = vmax.xlane.f32.xlu0 %v1743
        %v1745 = vpop.xlane.xlu0 %1744
        %v1746 = vsel %vm1718, %v1711, -inf
        %1747 = vmax.xlane.f32.xlu0 %v1746
        %v1748 = vpop.xlane.xlu0 %1747
        %v1749 = vsel %vm1718, %v1712, -inf
        %1750 = vmax.xlane.f32.xlu0 %v1749
        %v1751 = vpop.xlane.xlu0 %1750
        %v1752 = vsel %vm1718, %v1713, -inf
        %1753 = vmax.xlane.f32.xlu0 %v1752
        %v1754 = vpop.xlane.xlu0 %1753
        %v1755 = vsel %vm1718, %v1714, -inf
        %1756 = vmax.xlane.f32.xlu0 %v1755
        %v1757 = vpop.xlane.xlu0 %1756
        %v1758 = vsel %vm1718, %v1715, -inf
        %1759 = vmax.xlane.f32.xlu0 %v1758
        %v1760 = vpop.xlane.xlu0 %1759
        %v1761 = vsel %vm1718, %v1716, -inf
        %1762 = vmax.xlane.f32.xlu0 %v1761
        %v1763 = vpop.xlane.xlu0 %1762
        %v1764 = vsel %vm1718, %v1717, -inf
        %1765 = vmax.xlane.f32.xlu0 %v1764
        %v1766 = vpop.xlane.xlu0 %1765
        %v1767 = vsub.f32 %v1702, %v1721
        %v1768 = vsub.f32 %v1703, %v1724
        %v1769 = vsub.f32 %v1704, %v1727
        %v1770 = vsub.f32 %v1705, %v1730
        %v1771 = vsub.f32 %v1706, %v1733
        %v1772 = vsub.f32 %v1707, %v1736
        %v1773 = vsub.f32 %v1708, %v1739
        %v1774 = vsub.f32 %v1709, %v1742
        %v1775 = vsub.f32 %v1710, %v1745
        %v1776 = vsub.f32 %v1711, %v1748
        %v1777 = vsub.f32 %v1712, %v1751
        %v1778 = vsub.f32 %v1713, %v1754
        %v1779 = vsub.f32 %v1714, %v1757
        %v1780 = vsub.f32 %v1715, %v1760
        %v1781 = vsub.f32 %v1716, %v1763
        %v1782 = vsub.f32 %v1717, %v1766
        %v1783 = vmul.f32 %v1767, 1.442695
        %v1784 = vpow.pop %v1783
        %v1785 = vmul.f32 %v1768, 1.442695
        %v1786 = vpow.pop %v1785
        %v1787 = vmul.f32 %v1769, 1.442695
        %v1788 = vpow.pop %v1787
        %v1789 = vmul.f32 %v1770, 1.442695
        %v1790 = vpow.pop %v1789
        %v1791 = vmul.f32 %v1771, 1.442695
        %v1792 = vpow.pop %v1791
        %v1793 = vmul.f32 %v1772, 1.442695
        %v1794 = vpow.pop %v1793
        %v1795 = vmul.f32 %v1773, 1.442695
        %v1796 = vpow.pop %v1795
        %v1797 = vmul.f32 %v1774, 1.442695
        %v1798 = vpow.pop %v1797
        %v1799 = vmul.f32 %v1775, 1.442695
        %v1800 = vpow.pop %v1799
        %v1801 = vmul.f32 %v1776, 1.442695
        %v1802 = vpow.pop %v1801
        %v1803 = vmul.f32 %v1777, 1.442695
        %v1804 = vpow.pop %v1803
        %v1805 = vmul.f32 %v1778, 1.442695
        %v1806 = vpow.pop %v1805
        %v1807 = vmul.f32 %v1779, 1.442695
        %v1808 = vpow.pop %v1807
        %v1809 = vmul.f32 %v1780, 1.442695
        %v1810 = vpow.pop %v1809
        %v1811 = vmul.f32 %v1781, 1.442695
        %v1812 = vpow.pop %v1811
        %v1813 = vmul.f32 %v1782, 1.442695
        %v1814 = vpow.pop %v1813
        %v1815 = vsel %vm1718, %v1784, 0.0
        %1816 = vadd.xlane.f32.xlu0 %v1815
        %v1817 = vpop.xlane.xlu0 %1816
        %v1818 = vsel %vm1718, %v1786, 0.0
        %1819 = vadd.xlane.f32.xlu0 %v1818
        %v1820 = vpop.xlane.xlu0 %1819
        %v1821 = vsel %vm1718, %v1788, 0.0
        %1822 = vadd.xlane.f32.xlu0 %v1821
        %v1823 = vpop.xlane.xlu0 %1822
        %v1824 = vsel %vm1718, %v1790, 0.0
        %1825 = vadd.xlane.f32.xlu0 %v1824
        %v1826 = vpop.xlane.xlu0 %1825
        %v1827 = vsel %vm1718, %v1792, 0.0
        %1828 = vadd.xlane.f32.xlu0 %v1827
        %v1829 = vpop.xlane.xlu0 %1828
        %v1830 = vsel %vm1718, %v1794, 0.0
        %1831 = vadd.xlane.f32.xlu0 %v1830
        %v1832 = vpop.xlane.xlu0 %1831
        %v1833 = vsel %vm1718, %v1796, 0.0
        %1834 = vadd.xlane.f32.xlu0 %v1833
        %v1835 = vpop.xlane.xlu0 %1834
        %v1836 = vsel %vm1718, %v1798, 0.0
        %1837 = vadd.xlane.f32.xlu0 %v1836
        %v1838 = vpop.xlane.xlu0 %1837
        %v1839 = vsel %vm1718, %v1800, 0.0
        %1840 = vadd.xlane.f32.xlu0 %v1839
        %v1841 = vpop.xlane.xlu0 %1840
        %v1842 = vsel %vm1718, %v1802, 0.0
        %1843 = vadd.xlane.f32.xlu0 %v1842
        %v1844 = vpop.xlane.xlu0 %1843
        %v1845 = vsel %vm1718, %v1804, 0.0
        %1846 = vadd.xlane.f32.xlu0 %v1845
        %v1847 = vpop.xlane.xlu0 %1846
        %v1848 = vsel %vm1718, %v1806, 0.0
        %1849 = vadd.xlane.f32.xlu0 %v1848
        %v1850 = vpop.xlane.xlu0 %1849
        %v1851 = vsel %vm1718, %v1808, 0.0
        %1852 = vadd.xlane.f32.xlu0 %v1851
        %v1853 = vpop.xlane.xlu0 %1852
        %v1854 = vsel %vm1718, %v1810, 0.0
        %1855 = vadd.xlane.f32.xlu0 %v1854
        %v1856 = vpop.xlane.xlu0 %1855
        %v1857 = vsel %vm1718, %v1812, 0.0
        %1858 = vadd.xlane.f32.xlu0 %v1857
        %v1859 = vpop.xlane.xlu0 %1858
        %v1860 = vsel %vm1718, %v1814, 0.0
        %1861 = vadd.xlane.f32.xlu0 %v1860
        %v1862 = vpop.xlane.xlu0 %1861
        %v1863 = vrcp.pop %v1817
        %v1864 = vrcp.pop %v1820
        %v1865 = vrcp.pop %v1823
        %v1866 = vrcp.pop %v1826
        %v1867 = vrcp.pop %v1829
        %v1868 = vrcp.pop %v1832
        %v1869 = vrcp.pop %v1835
        %v1870 = vrcp.pop %v1838
        %v1871 = vrcp.pop %v1841
        %v1872 = vrcp.pop %v1844
        %v1873 = vrcp.pop %v1847
        %v1874 = vrcp.pop %v1850
        %v1875 = vrcp.pop %v1853
        %v1876 = vrcp.pop %v1856
        %v1877 = vrcp.pop %v1859
        %v1878 = vrcp.pop %v1862
        %v1879 = vmul.f32 %v1784, %v1863
        %v1880 = vmul.f32 %v1786, %v1864
        %v1881 = vmul.f32 %v1788, %v1865
        %v1882 = vmul.f32 %v1790, %v1866
        %v1883 = vmul.f32 %v1792, %v1867
        %v1884 = vmul.f32 %v1794, %v1868
        %v1885 = vmul.f32 %v1796, %v1869
        %v1886 = vmul.f32 %v1798, %v1870
        %v1887 = vmul.f32 %v1800, %v1871
        %v1888 = vmul.f32 %v1802, %v1872
        %v1889 = vmul.f32 %v1804, %v1873
        %v1890 = vmul.f32 %v1806, %v1874
        %v1891 = vmul.f32 %v1808, %v1875
        %v1892 = vmul.f32 %v1810, %v1876
        %v1893 = vmul.f32 %v1812, %v1877
        %v1894 = vmul.f32 %v1814, %v1878
        %1895 = vrot.lane.b32.xlu0 %v392, 64
        %v1896 = vpop.permute.xlu0 %1895
        %v1899 = vsel %vm1718, %v1879, 0
        %1901 = vmatprep.subr.mxu0 0.0
        %1902 = vmatpush1.msra.mxu0 %v1896
        %1903 = vmatprep.subr.mxu0 0.0
        %1904 = vmatpush1.msra.mxu0 0.0
        %1905 = vmatprep.subr.mxu0 0.0
        %1906 = vmatpush1.msra.mxu0 0.0
        %1907 = vmatprep.subr.mxu0 0.0
        %1908 = vmatpush1.msra.mxu0 0.0
        %1909 = vmatprep.subr.mxu0 0.0
        %1910 = vmatpush1.msra.mxu0 0.0
        %1911 = vmatprep.subr.mxu0 0.0
        %1912 = vmatpush1.msra.mxu0 0.0
        %1913 = vmatprep.subr.mxu0 0.0
        %1914 = vmatpush1.msra.mxu0 0.0
        %1915 = vmatprep.subr.mxu0 0.0
        %1916 = vmatpush1.msra.mxu0 0.0
        %1917 = vmatprep.subr.mxu0 0.0
        %1918 = vmatpush1.msra.mxu0 0.0
        %1919 = vmatprep.subr.mxu0 0.0
        %1920 = vmatpush1.msra.mxu0 0.0
        %1921 = vmatprep.subr.mxu0 0.0
        %1922 = vmatpush1.msra.mxu0 0.0
        %1923 = vmatprep.subr.mxu0 0.0
        %1924 = vmatpush1.msra.mxu0 0.0
        %1925 = vmatprep.subr.mxu0 0.0
        %1926 = vmatpush1.msra.mxu0 0.0
        %1927 = vmatprep.subr.mxu0 0.0
        %1928 = vmatpush1.msra.mxu0 0.0
        %1929 = vmatprep.subr.mxu0 0.0
        %1930 = vmatpush1.msra.mxu0 0.0
        %1931 = vmatprep.subr.mxu0 0.0
        %1932 = vmatpush1.msra.mxu0 0.0
        %1933 = vmatprep.subr.mxu0 0.0
        %1934 = vmatpush1.msra.mxu0 0.0
        %1935 = vmatprep.subr.mxu0 0.0
        %1936 = vmatpush1.msra.mxu0 0.0
        %1937 = vmatprep.subr.mxu0 0.0
        %1938 = vmatpush1.msra.mxu0 0.0
        %1939 = vmatprep.subr.mxu0 0.0
        %1940 = vmatpush1.msra.mxu0 0.0
        %1941 = vmatprep.subr.mxu0 0.0
        %1942 = vmatpush1.msra.mxu0 0.0
        %1943 = vmatprep.subr.mxu0 0.0
        %1944 = vmatpush1.msra.mxu0 0.0
        %1945 = vmatprep.subr.mxu0 0.0
        %1946 = vmatpush1.msra.mxu0 0.0
        %1947 = vmatprep.subr.mxu0 0.0
        %1948 = vmatpush1.msra.mxu0 0.0
        %1949 = vmatprep.subr.mxu0 0.0
        %1950 = vmatpush1.msra.mxu0 0.0
        %1951 = vmatprep.subr.mxu0 0.0
        %1952 = vmatpush1.msra.mxu0 0.0
        %1953 = vmatprep.subr.mxu0 0.0
        %1954 = vmatpush1.msra.mxu0 0.0
        %1955 = vmatprep.subr.mxu0 0.0
        %1956 = vmatpush1.msra.mxu0 0.0
        %1957 = vmatprep.subr.mxu0 0.0
        %1958 = vmatpush1.msra.mxu0 0.0
        %1959 = vmatprep.subr.mxu0 0.0
        %1960 = vmatpush1.msra.mxu0 0.0
        %1961 = vmatprep.subr.mxu0 0.0
        %1962 = vmatpush1.msra.mxu0 0.0
        %1963 = vmatprep.subr.mxu0 0.0
        %1964 = vmatpush1.msra.mxu0 0.0
        %1965 = vmatprep.mubr.f32.mxu0 0.0
        %1966 = vmatmul.mubr.f32.gmra.mrb[0].mxu0 %v1899
        %v1967 = vpop.f32.mrb[0].mxu0
        %v1968 = vadd.f32 0.0, %v1967
        %v1969 = vpop.f32.mrb[0].mxu0
        %1970 = vdwg.mxu0
        %1971 = vrot.lane.b32.xlu0 %v397, 64
        %v1972 = vpop.permute.xlu0 %1971
        %v1975 = vsel %vm1718, %v1880, 0
        %1977 = vmatprep.subr.mxu0 0.0
        %1978 = vmatpush1.msra.mxu0 %v1972
        %1979 = vmatprep.subr.mxu0 0.0
        %1980 = vmatpush1.msra.mxu0 0.0
        %1981 = vmatprep.subr.mxu0 0.0
        %1982 = vmatpush1.msra.mxu0 0.0
        %1983 = vmatprep.subr.mxu0 0.0
        %1984 = vmatpush1.msra.mxu0 0.0
        %1985 = vmatprep.subr.mxu0 0.0
        %1986 = vmatpush1.msra.mxu0 0.0
        %1987 = vmatprep.subr.mxu0 0.0
        %1988 = vmatpush1.msra.mxu0 0.0
        %1989 = vmatprep.subr.mxu0 0.0
        %1990 = vmatpush1.msra.mxu0 0.0
        %1991 = vmatprep.subr.mxu0 0.0
        %1992 = vmatpush1.msra.mxu0 0.0
        %1993 = vmatprep.subr.mxu0 0.0
        %1994 = vmatpush1.msra.mxu0 0.0
        %1995 = vmatprep.subr.mxu0 0.0
        %1996 = vmatpush1.msra.mxu0 0.0
        %1997 = vmatprep.subr.mxu0 0.0
        %1998 = vmatpush1.msra.mxu0 0.0
        %1999 = vmatprep.subr.mxu0 0.0
        %2000 = vmatpush1.msra.mxu0 0.0
        %2001 = vmatprep.subr.mxu0 0.0
        %2002 = vmatpush1.msra.mxu0 0.0
        %2003 = vmatprep.subr.mxu0 0.0
        %2004 = vmatpush1.msra.mxu0 0.0
        %2005 = vmatprep.subr.mxu0 0.0
        %2006 = vmatpush1.msra.mxu0 0.0
        %2007 = vmatprep.subr.mxu0 0.0
        %2008 = vmatpush1.msra.mxu0 0.0
        %2009 = vmatprep.subr.mxu0 0.0
        %2010 = vmatpush1.msra.mxu0 0.0
        %2011 = vmatprep.subr.mxu0 0.0
        %2012 = vmatpush1.msra.mxu0 0.0
        %2013 = vmatprep.subr.mxu0 0.0
        %2014 = vmatpush1.msra.mxu0 0.0
        %2015 = vmatprep.subr.mxu0 0.0
        %2016 = vmatpush1.msra.mxu0 0.0
        %2017 = vmatprep.subr.mxu0 0.0
        %2018 = vmatpush1.msra.mxu0 0.0
        %2019 = vmatprep.subr.mxu0 0.0
        %2020 = vmatpush1.msra.mxu0 0.0
        %2021 = vmatprep.subr.mxu0 0.0
        %2022 = vmatpush1.msra.mxu0 0.0
        %2023 = vmatprep.subr.mxu0 0.0
        %2024 = vmatpush1.msra.mxu0 0.0
        %2025 = vmatprep.subr.mxu0 0.0
        %2026 = vmatpush1.msra.mxu0 0.0
        %2027 = vmatprep.subr.mxu0 0.0
        %2028 = vmatpush1.msra.mxu0 0.0
        %2029 = vmatprep.subr.mxu0 0.0
        %2030 = vmatpush1.msra.mxu0 0.0
        %2031 = vmatprep.subr.mxu0 0.0
        %2032 = vmatpush1.msra.mxu0 0.0
        %2033 = vmatprep.subr.mxu0 0.0
        %2034 = vmatpush1.msra.mxu0 0.0
        %2035 = vmatprep.subr.mxu0 0.0
        %2036 = vmatpush1.msra.mxu0 0.0
        %2037 = vmatprep.subr.mxu0 0.0
        %2038 = vmatpush1.msra.mxu0 0.0
        %2039 = vmatprep.subr.mxu0 0.0
        %2040 = vmatpush1.msra.mxu0 0.0
        %2041 = vmatprep.mubr.f32.mxu0 0.0
        %2042 = vmatmul.mubr.f32.gmra.mrb[0].mxu0 %v1975
        %v2043 = vpop.f32.mrb[0].mxu0
        %v2044 = vadd.f32 0.0, %v2043
        %v2045 = vpop.f32.mrb[0].mxu0
        %2046 = vdwg.mxu0
        %2047 = vrot.lane.b32.xlu0 %v402, 64
        %v2048 = vpop.permute.xlu0 %2047
        %v2051 = vsel %vm1718, %v1881, 0
        %2053 = vmatprep.subr.mxu0 0.0
        %2054 = vmatpush1.msra.mxu0 %v2048
        %2055 = vmatprep.subr.mxu0 0.0
        %2056 = vmatpush1.msra.mxu0 0.0
        %2057 = vmatprep.subr.mxu0 0.0
        %2058 = vmatpush1.msra.mxu0 0.0
        %2059 = vmatprep.subr.mxu0 0.0
        %2060 = vmatpush1.msra.mxu0 0.0
        %2061 = vmatprep.subr.mxu0 0.0
        %2062 = vmatpush1.msra.mxu0 0.0
        %2063 = vmatprep.subr.mxu0 0.0
        %2064 = vmatpush1.msra.mxu0 0.0
        %2065 = vmatprep.subr.mxu0 0.0
        %2066 = vmatpush1.msra.mxu0 0.0
        %2067 = vmatprep.subr.mxu0 0.0
        %2068 = vmatpush1.msra.mxu0 0.0
        %2069 = vmatprep.subr.mxu0 0.0
        %2070 = vmatpush1.msra.mxu0 0.0
        %2071 = vmatprep.subr.mxu0 0.0
        %2072 = vmatpush1.msra.mxu0 0.0
        %2073 = vmatprep.subr.mxu0 0.0
        %2074 = vmatpush1.msra.mxu0 0.0
        %2075 = vmatprep.subr.mxu0 0.0
        %2076 = vmatpush1.msra.mxu0 0.0
        %2077 = vmatprep.subr.mxu0 0.0
        %2078 = vmatpush1.msra.mxu0 0.0
        %2079 = vmatprep.subr.mxu0 0.0
        %2080 = vmatpush1.msra.mxu0 0.0
        %2081 = vmatprep.subr.mxu0 0.0
        %2082 = vmatpush1.msra.mxu0 0.0
        %2083 = vmatprep.subr.mxu0 0.0
        %2084 = vmatpush1.msra.mxu0 0.0
        %2085 = vmatprep.subr.mxu0 0.0
        %2086 = vmatpush1.msra.mxu0 0.0
        %2087 = vmatprep.subr.mxu0 0.0
        %2088 = vmatpush1.msra.mxu0 0.0
        %2089 = vmatprep.subr.mxu0 0.0
        %2090 = vmatpush1.msra.mxu0 0.0
        %2091 = vmatprep.subr.mxu0 0.0
        %2092 = vmatpush1.msra.mxu0 0.0
        %2093 = vmatprep.subr.mxu0 0.0
        %2094 = vmatpush1.msra.mxu0 0.0
        %2095 = vmatprep.subr.mxu0 0.0
        %2096 = vmatpush1.msra.mxu0 0.0
        %2097 = vmatprep.subr.mxu0 0.0
        %2098 = vmatpush1.msra.mxu0 0.0
        %2099 = vmatprep.subr.mxu0 0.0
        %2100 = vmatpush1.msra.mxu0 0.0
        %2101 = vmatprep.subr.mxu0 0.0
        %2102 = vmatpush1.msra.mxu0 0.0
        %2103 = vmatprep.subr.mxu0 0.0
        %2104 = vmatpush1.msra.mxu0 0.0
        %2105 = vmatprep.subr.mxu0 0.0
        %2106 = vmatpush1.msra.mxu0 0.0
        %2107 = vmatprep.subr.mxu0 0.0
        %2108 = vmatpush1.msra.mxu0 0.0
        %2109 = vmatprep.subr.mxu0 0.0
        %2110 = vmatpush1.msra.mxu0 0.0
        %2111 = vmatprep.subr.mxu0 0.0
        %2112 = vmatpush1.msra.mxu0 0.0
        %2113 = vmatprep.subr.mxu0 0.0
        %2114 = vmatpush1.msra.mxu0 0.0
        %2115 = vmatprep.subr.mxu0 0.0
        %2116 = vmatpush1.msra.mxu0 0.0
        %2117 = vmatprep.mubr.f32.mxu0 0.0
        %2118 = vmatmul.mubr.f32.gmra.mrb[0].mxu0 %v2051
        %v2119 = vpop.f32.mrb[0].mxu0
        %v2120 = vadd.f32 0.0, %v2119
        %v2121 = vpop.f32.mrb[0].mxu0
        %2122 = vdwg.mxu0
        %2123 = vrot.lane.b32.xlu0 %v407, 64
        %v2124 = vpop.permute.xlu0 %2123
        %v2127 = vsel %vm1718, %v1882, 0
        %2129 = vmatprep.subr.mxu0 0.0
        %2130 = vmatpush1.msra.mxu0 %v2124
        %2131 = vmatprep.subr.mxu0 0.0
        %2132 = vmatpush1.msra.mxu0 0.0
        %2133 = vmatprep.subr.mxu0 0.0
        %2134 = vmatpush1.msra.mxu0 0.0
        %2135 = vmatprep.subr.mxu0 0.0
        %2136 = vmatpush1.msra.mxu0 0.0
        %2137 = vmatprep.subr.mxu0 0.0
        %2138 = vmatpush1.msra.mxu0 0.0
        %2139 = vmatprep.subr.mxu0 0.0
        %2140 = vmatpush1.msra.mxu0 0.0
        %2141 = vmatprep.subr.mxu0 0.0
        %2142 = vmatpush1.msra.mxu0 0.0
        %2143 = vmatprep.subr.mxu0 0.0
        %2144 = vmatpush1.msra.mxu0 0.0
        %2145 = vmatprep.subr.mxu0 0.0
        %2146 = vmatpush1.msra.mxu0 0.0
        %2147 = vmatprep.subr.mxu0 0.0
        %2148 = vmatpush1.msra.mxu0 0.0
        %2149 = vmatprep.subr.mxu0 0.0
        %2150 = vmatpush1.msra.mxu0 0.0
        %2151 = vmatprep.subr.mxu0 0.0
        %2152 = vmatpush1.msra.mxu0 0.0
        %2153 = vmatprep.subr.mxu0 0.0
        %2154 = vmatpush1.msra.mxu0 0.0
        %2155 = vmatprep.subr.mxu0 0.0
        %2156 = vmatpush1.msra.mxu0 0.0
        %2157 = vmatprep.subr.mxu0 0.0
        %2158 = vmatpush1.msra.mxu0 0.0
        %2159 = vmatprep.subr.mxu0 0.0
        %2160 = vmatpush1.msra.mxu0 0.0
        %2161 = vmatprep.subr.mxu0 0.0
        %2162 = vmatpush1.msra.mxu0 0.0
        %2163 = vmatprep.subr.mxu0 0.0
        %2164 = vmatpush1.msra.mxu0 0.0
        %2165 = vmatprep.subr.mxu0 0.0
        %2166 = vmatpush1.msra.mxu0 0.0
        %2167 = vmatprep.subr.mxu0 0.0
        %2168 = vmatpush1.msra.mxu0 0.0
        %2169 = vmatprep.subr.mxu0 0.0
        %2170 = vmatpush1.msra.mxu0 0.0
        %2171 = vmatprep.subr.mxu0 0.0
        %2172 = vmatpush1.msra.mxu0 0.0
        %2173 = vmatprep.subr.mxu0 0.0
        %2174 = vmatpush1.msra.mxu0 0.0
        %2175 = vmatprep.subr.mxu0 0.0
        %2176 = vmatpush1.msra.mxu0 0.0
        %2177 = vmatprep.subr.mxu0 0.0
        %2178 = vmatpush1.msra.mxu0 0.0
        %2179 = vmatprep.subr.mxu0 0.0
        %2180 = vmatpush1.msra.mxu0 0.0
        %2181 = vmatprep.subr.mxu0 0.0
        %2182 = vmatpush1.msra.mxu0 0.0
        %2183 = vmatprep.subr.mxu0 0.0
        %2184 = vmatpush1.msra.mxu0 0.0
        %2185 = vmatprep.subr.mxu0 0.0
        %2186 = vmatpush1.msra.mxu0 0.0
        %2187 = vmatprep.subr.mxu0 0.0
        %2188 = vmatpush1.msra.mxu0 0.0
        %2189 = vmatprep.subr.mxu0 0.0
        %2190 = vmatpush1.msra.mxu0 0.0
        %2191 = vmatprep.subr.mxu0 0.0
        %2192 = vmatpush1.msra.mxu0 0.0
        %2193 = vmatprep.mubr.f32.mxu0 0.0
        %2194 = vmatmul.mubr.f32.gmra.mrb[0].mxu0 %v2127
        %v2195 = vpop.f32.mrb[0].mxu0
        %v2196 = vadd.f32 0.0, %v2195
        %v2197 = vpop.f32.mrb[0].mxu0
        %2198 = vdwg.mxu0
        %2199 = vrot.lane.b32.xlu0 %v412, 64
        %v2200 = vpop.permute.xlu0 %2199
        %v2203 = vsel %vm1718, %v1883, 0
        %2205 = vmatprep.subr.mxu0 0.0
        %2206 = vmatpush1.msra.mxu0 %v2200
        %2207 = vmatprep.subr.mxu0 0.0
        %2208 = vmatpush1.msra.mxu0 0.0
        %2209 = vmatprep.subr.mxu0 0.0
        %2210 = vmatpush1.msra.mxu0 0.0
        %2211 = vmatprep.subr.mxu0 0.0
        %2212 = vmatpush1.msra.mxu0 0.0
        %2213 = vmatprep.subr.mxu0 0.0
        %2214 = vmatpush1.msra.mxu0 0.0
        %2215 = vmatprep.subr.mxu0 0.0
        %2216 = vmatpush1.msra.mxu0 0.0
        %2217 = vmatprep.subr.mxu0 0.0
        %2218 = vmatpush1.msra.mxu0 0.0
        %2219 = vmatprep.subr.mxu0 0.0
        %2220 = vmatpush1.msra.mxu0 0.0
        %2221 = vmatprep.subr.mxu0 0.0
        %2222 = vmatpush1.msra.mxu0 0.0
        %2223 = vmatprep.subr.mxu0 0.0
        %2224 = vmatpush1.msra.mxu0 0.0
        %2225 = vmatprep.subr.mxu0 0.0
        %2226 = vmatpush1.msra.mxu0 0.0
        %2227 = vmatprep.subr.mxu0 0.0
        %2228 = vmatpush1.msra.mxu0 0.0
        %2229 = vmatprep.subr.mxu0 0.0
        %2230 = vmatpush1.msra.mxu0 0.0
        %2231 = vmatprep.subr.mxu0 0.0
        %2232 = vmatpush1.msra.mxu0 0.0
        %2233 = vmatprep.subr.mxu0 0.0
        %2234 = vmatpush1.msra.mxu0 0.0
        %2235 = vmatprep.subr.mxu0 0.0
        %2236 = vmatpush1.msra.mxu0 0.0
        %2237 = vmatprep.subr.mxu0 0.0
        %2238 = vmatpush1.msra.mxu0 0.0
        %2239 = vmatprep.subr.mxu0 0.0
        %2240 = vmatpush1.msra.mxu0 0.0
        %2241 = vmatprep.subr.mxu0 0.0
        %2242 = vmatpush1.msra.mxu0 0.0
        %2243 = vmatprep.subr.mxu0 0.0
        %2244 = vmatpush1.msra.mxu0 0.0
        %2245 = vmatprep.subr.mxu0 0.0
        %2246 = vmatpush1.msra.mxu0 0.0
        %2247 = vmatprep.subr.mxu0 0.0
        %2248 = vmatpush1.msra.mxu0 0.0
        %2249 = vmatprep.subr.mxu0 0.0
        %2250 = vmatpush1.msra.mxu0 0.0
        %2251 = vmatprep.subr.mxu0 0.0
        %2252 = vmatpush1.msra.mxu0 0.0
        %2253 = vmatprep.subr.mxu0 0.0
        %2254 = vmatpush1.msra.mxu0 0.0
        %2255 = vmatprep.subr.mxu0 0.0
        %2256 = vmatpush1.msra.mxu0 0.0
        %2257 = vmatprep.subr.mxu0 0.0
        %2258 = vmatpush1.msra.mxu0 0.0
        %2259 = vmatprep.subr.mxu0 0.0
        %2260 = vmatpush1.msra.mxu0 0.0
        %2261 = vmatprep.subr.mxu0 0.0
        %2262 = vmatpush1.msra.mxu0 0.0
        %2263 = vmatprep.subr.mxu0 0.0
        %2264 = vmatpush1.msra.mxu0 0.0
        %2265 = vmatprep.subr.mxu0 0.0
        %2266 = vmatpush1.msra.mxu0 0.0
        %2267 = vmatprep.subr.mxu0 0.0
        %2268 = vmatpush1.msra.mxu0 0.0
        %2269 = vmatprep.mubr.f32.mxu0 0.0
        %2270 = vmatmul.mubr.f32.gmra.mrb[0].mxu0 %v2203
        %v2271 = vpop.f32.mrb[0].mxu0
        %v2272 = vadd.f32 0.0, %v2271
        %v2273 = vpop.f32.mrb[0].mxu0
        %2274 = vdwg.mxu0
        %2275 = vrot.lane.b32.xlu0 %v417, 64
        %v2276 = vpop.permute.xlu0 %2275
        %v2279 = vsel %vm1718, %v1884, 0
        %2281 = vmatprep.subr.mxu0 0.0
        %2282 = vmatpush1.msra.mxu0 %v2276
        %2283 = vmatprep.subr.mxu0 0.0
        %2284 = vmatpush1.msra.mxu0 0.0
        %2285 = vmatprep.subr.mxu0 0.0
        %2286 = vmatpush1.msra.mxu0 0.0
        %2287 = vmatprep.subr.mxu0 0.0
        %2288 = vmatpush1.msra.mxu0 0.0
        %2289 = vmatprep.subr.mxu0 0.0
        %2290 = vmatpush1.msra.mxu0 0.0
        %2291 = vmatprep.subr.mxu0 0.0
        %2292 = vmatpush1.msra.mxu0 0.0
        %2293 = vmatprep.subr.mxu0 0.0
        %2294 = vmatpush1.msra.mxu0 0.0
        %2295 = vmatprep.subr.mxu0 0.0
        %2296 = vmatpush1.msra.mxu0 0.0
        %2297 = vmatprep.subr.mxu0 0.0
        %2298 = vmatpush1.msra.mxu0 0.0
        %2299 = vmatprep.subr.mxu0 0.0
        %2300 = vmatpush1.msra.mxu0 0.0
        %2301 = vmatprep.subr.mxu0 0.0
        %2302 = vmatpush1.msra.mxu0 0.0
        %2303 = vmatprep.subr.mxu0 0.0
        %2304 = vmatpush1.msra.mxu0 0.0
        %2305 = vmatprep.subr.mxu0 0.0
        %2306 = vmatpush1.msra.mxu0 0.0
        %2307 = vmatprep.subr.mxu0 0.0
        %2308 = vmatpush1.msra.mxu0 0.0
        %2309 = vmatprep.subr.mxu0 0.0
        %2310 = vmatpush1.msra.mxu0 0.0
        %2311 = vmatprep.subr.mxu0 0.0
        %2312 = vmatpush1.msra.mxu0 0.0
        %2313 = vmatprep.subr.mxu0 0.0
        %2314 = vmatpush1.msra.mxu0 0.0
        %2315 = vmatprep.subr.mxu0 0.0
        %2316 = vmatpush1.msra.mxu0 0.0
        %2317 = vmatprep.subr.mxu0 0.0
        %2318 = vmatpush1.msra.mxu0 0.0
        %2319 = vmatprep.subr.mxu0 0.0
        %2320 = vmatpush1.msra.mxu0 0.0
        %2321 = vmatprep.subr.mxu0 0.0
        %2322 = vmatpush1.msra.mxu0 0.0
        %2323 = vmatprep.subr.mxu0 0.0
        %2324 = vmatpush1.msra.mxu0 0.0
        %2325 = vmatprep.subr.mxu0 0.0
        %2326 = vmatpush1.msra.mxu0 0.0
        %2327 = vmatprep.subr.mxu0 0.0
        %2328 = vmatpush1.msra.mxu0 0.0
        %2329 = vmatprep.subr.mxu0 0.0
        %2330 = vmatpush1.msra.mxu0 0.0
        %2331 = vmatprep.subr.mxu0 0.0
        %2332 = vmatpush1.msra.mxu0 0.0
        %2333 = vmatprep.subr.mxu0 0.0
        %2334 = vmatpush1.msra.mxu0 0.0
        %2335 = vmatprep.subr.mxu0 0.0
        %2336 = vmatpush1.msra.mxu0 0.0
        %2337 = vmatprep.subr.mxu0 0.0
        %2338 = vmatpush1.msra.mxu0 0.0
        %2339 = vmatprep.subr.mxu0 0.0
        %2340 = vmatpush1.msra.mxu0 0.0
        %2341 = vmatprep.subr.mxu0 0.0
        %2342 = vmatpush1.msra.mxu0 0.0
        %2343 = vmatprep.subr.mxu0 0.0
        %2344 = vmatpush1.msra.mxu0 0.0
        %2345 = vmatprep.mubr.f32.mxu0 0.0
        %2346 = vmatmul.mubr.f32.gmra.mrb[0].mxu0 %v2279
        %v2347 = vpop.f32.mrb[0].mxu0
        %v2348 = vadd.f32 0.0, %v2347
        %v2349 = vpop.f32.mrb[0].mxu0
        %2350 = vdwg.mxu0
        %2351 = vrot.lane.b32.xlu0 %v422, 64
        %v2352 = vpop.permute.xlu0 %2351
        %v2355 = vsel %vm1718, %v1885, 0
        %2357 = vmatprep.subr.mxu0 0.0
        %2358 = vmatpush1.msra.mxu0 %v2352
        %2359 = vmatprep.subr.mxu0 0.0
        %2360 = vmatpush1.msra.mxu0 0.0
        %2361 = vmatprep.subr.mxu0 0.0
        %2362 = vmatpush1.msra.mxu0 0.0
        %2363 = vmatprep.subr.mxu0 0.0
        %2364 = vmatpush1.msra.mxu0 0.0
        %2365 = vmatprep.subr.mxu0 0.0
        %2366 = vmatpush1.msra.mxu0 0.0
        %2367 = vmatprep.subr.mxu0 0.0
        %2368 = vmatpush1.msra.mxu0 0.0
        %2369 = vmatprep.subr.mxu0 0.0
        %2370 = vmatpush1.msra.mxu0 0.0
        %2371 = vmatprep.subr.mxu0 0.0
        %2372 = vmatpush1.msra.mxu0 0.0
        %2373 = vmatprep.subr.mxu0 0.0
        %2374 = vmatpush1.msra.mxu0 0.0
        %2375 = vmatprep.subr.mxu0 0.0
        %2376 = vmatpush1.msra.mxu0 0.0
        %2377 = vmatprep.subr.mxu0 0.0
        %2378 = vmatpush1.msra.mxu0 0.0
        %2379 = vmatprep.subr.mxu0 0.0
        %2380 = vmatpush1.msra.mxu0 0.0
        %2381 = vmatprep.subr.mxu0 0.0
        %2382 = vmatpush1.msra.mxu0 0.0
        %2383 = vmatprep.subr.mxu0 0.0
        %2384 = vmatpush1.msra.mxu0 0.0
        %2385 = vmatprep.subr.mxu0 0.0
        %2386 = vmatpush1.msra.mxu0 0.0
        %2387 = vmatprep.subr.mxu0 0.0
        %2388 = vmatpush1.msra.mxu0 0.0
        %2389 = vmatprep.subr.mxu0 0.0
        %2390 = vmatpush1.msra.mxu0 0.0
        %2391 = vmatprep.subr.mxu0 0.0
        %2392 = vmatpush1.msra.mxu0 0.0
        %2393 = vmatprep.subr.mxu0 0.0
        %2394 = vmatpush1.msra.mxu0 0.0
        %2395 = vmatprep.subr.mxu0 0.0
        %2396 = vmatpush1.msra.mxu0 0.0
        %2397 = vmatprep.subr.mxu0 0.0
        %2398 = vmatpush1.msra.mxu0 0.0
        %2399 = vmatprep.subr.mxu0 0.0
        %2400 = vmatpush1.msra.mxu0 0.0
        %2401 = vmatprep.subr.mxu0 0.0
        %2402 = vmatpush1.msra.mxu0 0.0
        %2403 = vmatprep.subr.mxu0 0.0
        %2404 = vmatpush1.msra.mxu0 0.0
        %2405 = vmatprep.subr.mxu0 0.0
        %2406 = vmatpush1.msra.mxu0 0.0
        %2407 = vmatprep.subr.mxu0 0.0
        %2408 = vmatpush1.msra.mxu0 0.0
        %2409 = vmatprep.subr.mxu0 0.0
        %2410 = vmatpush1.msra.mxu0 0.0
        %2411 = vmatprep.subr.mxu0 0.0
        %2412 = vmatpush1.msra.mxu0 0.0
        %2413 = vmatprep.subr.mxu0 0.0
        %2414 = vmatpush1.msra.mxu0 0.0
        %2415 = vmatprep.subr.mxu0 0.0
        %2416 = vmatpush1.msra.mxu0 0.0
        %2417 = vmatprep.subr.mxu0 0.0
        %2418 = vmatpush1.msra.mxu0 0.0
        %2419 = vmatprep.subr.mxu0 0.0
        %2420 = vmatpush1.msra.mxu0 0.0
        %2421 = vmatprep.mubr.f32.mxu0 0.0
        %2422 = vmatmul.mubr.f32.gmra.mrb[0].mxu0 %v2355
        %v2423 = vpop.f32.mrb[0].mxu0
        %v2424 = vadd.f32 0.0, %v2423
        %v2425 = vpop.f32.mrb[0].mxu0
        %2426 = vdwg.mxu0
        %2427 = vrot.lane.b32.xlu0 %v427, 64
        %v2428 = vpop.permute.xlu0 %2427
        %v2431 = vsel %vm1718, %v1886, 0
        %2433 = vmatprep.subr.mxu0 0.0
        %2434 = vmatpush1.msra.mxu0 %v2428
        %2435 = vmatprep.subr.mxu0 0.0
        %2436 = vmatpush1.msra.mxu0 0.0
        %2437 = vmatprep.subr.mxu0 0.0
        %2438 = vmatpush1.msra.mxu0 0.0
        %2439 = vmatprep.subr.mxu0 0.0
        %2440 = vmatpush1.msra.mxu0 0.0
        %2441 = vmatprep.subr.mxu0 0.0
        %2442 = vmatpush1.msra.mxu0 0.0
        %2443 = vmatprep.subr.mxu0 0.0
        %2444 = vmatpush1.msra.mxu0 0.0
        %2445 = vmatprep.subr.mxu0 0.0
        %2446 = vmatpush1.msra.mxu0 0.0
        %2447 = vmatprep.subr.mxu0 0.0
        %2448 = vmatpush1.msra.mxu0 0.0
        %2449 = vmatprep.subr.mxu0 0.0
        %2450 = vmatpush1.msra.mxu0 0.0
        %2451 = vmatprep.subr.mxu0 0.0
        %2452 = vmatpush1.msra.mxu0 0.0
        %2453 = vmatprep.subr.mxu0 0.0
        %2454 = vmatpush1.msra.mxu0 0.0
        %2455 = vmatprep.subr.mxu0 0.0
        %2456 = vmatpush1.msra.mxu0 0.0
        %2457 = vmatprep.subr.mxu0 0.0
        %2458 = vmatpush1.msra.mxu0 0.0
        %2459 = vmatprep.subr.mxu0 0.0
        %2460 = vmatpush1.msra.mxu0 0.0
        %2461 = vmatprep.subr.mxu0 0.0
        %2462 = vmatpush1.msra.mxu0 0.0
        %2463 = vmatprep.subr.mxu0 0.0
        %2464 = vmatpush1.msra.mxu0 0.0
        %2465 = vmatprep.subr.mxu0 0.0
        %2466 = vmatpush1.msra.mxu0 0.0
        %2467 = vmatprep.subr.mxu0 0.0
        %2468 = vmatpush1.msra.mxu0 0.0
        %2469 = vmatprep.subr.mxu0 0.0
        %2470 = vmatpush1.msra.mxu0 0.0
        %2471 = vmatprep.subr.mxu0 0.0
        %2472 = vmatpush1.msra.mxu0 0.0
        %2473 = vmatprep.subr.mxu0 0.0
        %2474 = vmatpush1.msra.mxu0 0.0
        %2475 = vmatprep.subr.mxu0 0.0
        %2476 = vmatpush1.msra.mxu0 0.0
        %2477 = vmatprep.subr.mxu0 0.0
        %2478 = vmatpush1.msra.mxu0 0.0
        %2479 = vmatprep.subr.mxu0 0.0
        %2480 = vmatpush1.msra.mxu0 0.0
        %2481 = vmatprep.subr.mxu0 0.0
        %2482 = vmatpush1.msra.mxu0 0.0
        %2483 = vmatprep.subr.mxu0 0.0
        %2484 = vmatpush1.msra.mxu0 0.0
        %2485 = vmatprep.subr.mxu0 0.0
        %2486 = vmatpush1.msra.mxu0 0.0
        %2487 = vmatprep.subr.mxu0 0.0
        %2488 = vmatpush1.msra.mxu0 0.0
        %2489 = vmatprep.subr.mxu0 0.0
        %2490 = vmatpush1.msra.mxu0 0.0
        %2491 = vmatprep.subr.mxu0 0.0
        %2492 = vmatpush1.msra.mxu0 0.0
        %2493 = vmatprep.subr.mxu0 0.0
        %2494 = vmatpush1.msra.mxu0 0.0
        %2495 = vmatprep.subr.mxu0 0.0
        %2496 = vmatpush1.msra.mxu0 0.0
        %2497 = vmatprep.mubr.f32.mxu0 0.0
        %2498 = vmatmul.mubr.f32.gmra.mrb[0].mxu0 %v2431
        %v2499 = vpop.f32.mrb[0].mxu0
        %v2500 = vadd.f32 0.0, %v2499
        %v2501 = vpop.f32.mrb[0].mxu0
        %2502 = vdwg.mxu0
        %2503 = vrot.lane.b32.xlu0 %v432, 64
        %v2504 = vpop.permute.xlu0 %2503
        %v2507 = vsel %vm1718, %v1887, 0
        %2509 = vmatprep.subr.mxu0 0.0
        %2510 = vmatpush1.msra.mxu0 %v2504
        %2511 = vmatprep.subr.mxu0 0.0
        %2512 = vmatpush1.msra.mxu0 0.0
        %2513 = vmatprep.subr.mxu0 0.0
        %2514 = vmatpush1.msra.mxu0 0.0
        %2515 = vmatprep.subr.mxu0 0.0
        %2516 = vmatpush1.msra.mxu0 0.0
        %2517 = vmatprep.subr.mxu0 0.0
        %2518 = vmatpush1.msra.mxu0 0.0
        %2519 = vmatprep.subr.mxu0 0.0
        %2520 = vmatpush1.msra.mxu0 0.0
        %2521 = vmatprep.subr.mxu0 0.0
        %2522 = vmatpush1.msra.mxu0 0.0
        %2523 = vmatprep.subr.mxu0 0.0
        %2524 = vmatpush1.msra.mxu0 0.0
        %2525 = vmatprep.subr.mxu0 0.0
        %2526 = vmatpush1.msra.mxu0 0.0
        %2527 = vmatprep.subr.mxu0 0.0
        %2528 = vmatpush1.msra.mxu0 0.0
        %2529 = vmatprep.subr.mxu0 0.0
        %2530 = vmatpush1.msra.mxu0 0.0
        %2531 = vmatprep.subr.mxu0 0.0
        %2532 = vmatpush1.msra.mxu0 0.0
        %2533 = vmatprep.subr.mxu0 0.0
        %2534 = vmatpush1.msra.mxu0 0.0
        %2535 = vmatprep.subr.mxu0 0.0
        %2536 = vmatpush1.msra.mxu0 0.0
        %2537 = vmatprep.subr.mxu0 0.0
        %2538 = vmatpush1.msra.mxu0 0.0
        %2539 = vmatprep.subr.mxu0 0.0
        %2540 = vmatpush1.msra.mxu0 0.0
        %2541 = vmatprep.subr.mxu0 0.0
        %2542 = vmatpush1.msra.mxu0 0.0
        %2543 = vmatprep.subr.mxu0 0.0
        %2544 = vmatpush1.msra.mxu0 0.0
        %2545 = vmatprep.subr.mxu0 0.0
        %2546 = vmatpush1.msra.mxu0 0.0
        %2547 = vmatprep.subr.mxu0 0.0
        %2548 = vmatpush1.msra.mxu0 0.0
        %2549 = vmatprep.subr.mxu0 0.0
        %2550 = vmatpush1.msra.mxu0 0.0
        %2551 = vmatprep.subr.mxu0 0.0
        %2552 = vmatpush1.msra.mxu0 0.0
        %2553 = vmatprep.subr.mxu0 0.0
        %2554 = vmatpush1.msra.mxu0 0.0
        %2555 = vmatprep.subr.mxu0 0.0
        %2556 = vmatpush1.msra.mxu0 0.0
        %2557 = vmatprep.subr.mxu0 0.0
        %2558 = vmatpush1.msra.mxu0 0.0
        %2559 = vmatprep.subr.mxu0 0.0
        %2560 = vmatpush1.msra.mxu0 0.0
        %2561 = vmatprep.subr.mxu0 0.0
        %2562 = vmatpush1.msra.mxu0 0.0
        %2563 = vmatprep.subr.mxu0 0.0
        %2564 = vmatpush1.msra.mxu0 0.0
        %2565 = vmatprep.subr.mxu0 0.0
        %2566 = vmatpush1.msra.mxu0 0.0
        %2567 = vmatprep.subr.mxu0 0.0
        %2568 = vmatpush1.msra.mxu0 0.0
        %2569 = vmatprep.subr.mxu0 0.0
        %2570 = vmatpush1.msra.mxu0 0.0
        %2571 = vmatprep.subr.mxu0 0.0
        %2572 = vmatpush1.msra.mxu0 0.0
        %2573 = vmatprep.mubr.f32.mxu0 0.0
        %2574 = vmatmul.mubr.f32.gmra.mrb[0].mxu0 %v2507
        %v2575 = vpop.f32.mrb[0].mxu0
        %v2576 = vadd.f32 0.0, %v2575
        %v2577 = vpop.f32.mrb[0].mxu0
        %2578 = vdwg.mxu0
        %2579 = vrot.lane.b32.xlu0 %v437, 64
        %v2580 = vpop.permute.xlu0 %2579
        %v2583 = vsel %vm1718, %v1888, 0
        %2585 = vmatprep.subr.mxu0 0.0
        %2586 = vmatpush1.msra.mxu0 %v2580
        %2587 = vmatprep.subr.mxu0 0.0
        %2588 = vmatpush1.msra.mxu0 0.0
        %2589 = vmatprep.subr.mxu0 0.0
        %2590 = vmatpush1.msra.mxu0 0.0
        %2591 = vmatprep.subr.mxu0 0.0
        %2592 = vmatpush1.msra.mxu0 0.0
        %2593 = vmatprep.subr.mxu0 0.0
        %2594 = vmatpush1.msra.mxu0 0.0
        %2595 = vmatprep.subr.mxu0 0.0
        %2596 = vmatpush1.msra.mxu0 0.0
        %2597 = vmatprep.subr.mxu0 0.0
        %2598 = vmatpush1.msra.mxu0 0.0
        %2599 = vmatprep.subr.mxu0 0.0
        %2600 = vmatpush1.msra.mxu0 0.0
        %2601 = vmatprep.subr.mxu0 0.0
        %2602 = vmatpush1.msra.mxu0 0.0
        %2603 = vmatprep.subr.mxu0 0.0
        %2604 = vmatpush1.msra.mxu0 0.0
        %2605 = vmatprep.subr.mxu0 0.0
        %2606 = vmatpush1.msra.mxu0 0.0
        %2607 = vmatprep.subr.mxu0 0.0
        %2608 = vmatpush1.msra.mxu0 0.0
        %2609 = vmatprep.subr.mxu0 0.0
        %2610 = vmatpush1.msra.mxu0 0.0
        %2611 = vmatprep.subr.mxu0 0.0
        %2612 = vmatpush1.msra.mxu0 0.0
        %2613 = vmatprep.subr.mxu0 0.0
        %2614 = vmatpush1.msra.mxu0 0.0
        %2615 = vmatprep.subr.mxu0 0.0
        %2616 = vmatpush1.msra.mxu0 0.0
        %2617 = vmatprep.subr.mxu0 0.0
        %2618 = vmatpush1.msra.mxu0 0.0
        %2619 = vmatprep.subr.mxu0 0.0
        %2620 = vmatpush1.msra.mxu0 0.0
        %2621 = vmatprep.subr.mxu0 0.0
        %2622 = vmatpush1.msra.mxu0 0.0
        %2623 = vmatprep.subr.mxu0 0.0
        %2624 = vmatpush1.msra.mxu0 0.0
        %2625 = vmatprep.subr.mxu0 0.0
        %2626 = vmatpush1.msra.mxu0 0.0
        %2627 = vmatprep.subr.mxu0 0.0
        %2628 = vmatpush1.msra.mxu0 0.0
        %2629 = vmatprep.subr.mxu0 0.0
        %2630 = vmatpush1.msra.mxu0 0.0
        %2631 = vmatprep.subr.mxu0 0.0
        %2632 = vmatpush1.msra.mxu0 0.0
        %2633 = vmatprep.subr.mxu0 0.0
        %2634 = vmatpush1.msra.mxu0 0.0
        %2635 = vmatprep.subr.mxu0 0.0
        %2636 = vmatpush1.msra.mxu0 0.0
        %2637 = vmatprep.subr.mxu0 0.0
        %2638 = vmatpush1.msra.mxu0 0.0
        %2639 = vmatprep.subr.mxu0 0.0
        %2640 = vmatpush1.msra.mxu0 0.0
        %2641 = vmatprep.subr.mxu0 0.0
        %2642 = vmatpush1.msra.mxu0 0.0
        %2643 = vmatprep.subr.mxu0 0.0
        %2644 = vmatpush1.msra.mxu0 0.0
        %2645 = vmatprep.subr.mxu0 0.0
        %2646 = vmatpush1.msra.mxu0 0.0
        %2647 = vmatprep.subr.mxu0 0.0
        %2648 = vmatpush1.msra.mxu0 0.0
        %2649 = vmatprep.mubr.f32.mxu0 0.0
        %2650 = vmatmul.mubr.f32.gmra.mrb[0].mxu0 %v2583
        %v2651 = vpop.f32.mrb[0].mxu0
        %v2652 = vadd.f32 0.0, %v2651
        %v2653 = vpop.f32.mrb[0].mxu0
        %2654 = vdwg.mxu0
        %2655 = vrot.lane.b32.xlu0 %v442, 64
        %v2656 = vpop.permute.xlu0 %2655
        %v2659 = vsel %vm1718, %v1889, 0
        %2661 = vmatprep.subr.mxu0 0.0
        %2662 = vmatpush1.msra.mxu0 %v2656
        %2663 = vmatprep.subr.mxu0 0.0
        %2664 = vmatpush1.msra.mxu0 0.0
        %2665 = vmatprep.subr.mxu0 0.0
        %2666 = vmatpush1.msra.mxu0 0.0
        %2667 = vmatprep.subr.mxu0 0.0
        %2668 = vmatpush1.msra.mxu0 0.0
        %2669 = vmatprep.subr.mxu0 0.0
        %2670 = vmatpush1.msra.mxu0 0.0
        %2671 = vmatprep.subr.mxu0 0.0
        %2672 = vmatpush1.msra.mxu0 0.0
        %2673 = vmatprep.subr.mxu0 0.0
        %2674 = vmatpush1.msra.mxu0 0.0
        %2675 = vmatprep.subr.mxu0 0.0
        %2676 = vmatpush1.msra.mxu0 0.0
        %2677 = vmatprep.subr.mxu0 0.0
        %2678 = vmatpush1.msra.mxu0 0.0
        %2679 = vmatprep.subr.mxu0 0.0
        %2680 = vmatpush1.msra.mxu0 0.0
        %2681 = vmatprep.subr.mxu0 0.0
        %2682 = vmatpush1.msra.mxu0 0.0
        %2683 = vmatprep.subr.mxu0 0.0
        %2684 = vmatpush1.msra.mxu0 0.0
        %2685 = vmatprep.subr.mxu0 0.0
        %2686 = vmatpush1.msra.mxu0 0.0
        %2687 = vmatprep.subr.mxu0 0.0
        %2688 = vmatpush1.msra.mxu0 0.0
        %2689 = vmatprep.subr.mxu0 0.0
        %2690 = vmatpush1.msra.mxu0 0.0
        %2691 = vmatprep.subr.mxu0 0.0
        %2692 = vmatpush1.msra.mxu0 0.0
        %2693 = vmatprep.subr.mxu0 0.0
        %2694 = vmatpush1.msra.mxu0 0.0
        %2695 = vmatprep.subr.mxu0 0.0
        %2696 = vmatpush1.msra.mxu0 0.0
        %2697 = vmatprep.subr.mxu0 0.0
        %2698 = vmatpush1.msra.mxu0 0.0
        %2699 = vmatprep.subr.mxu0 0.0
        %2700 = vmatpush1.msra.mxu0 0.0
        %2701 = vmatprep.subr.mxu0 0.0
        %2702 = vmatpush1.msra.mxu0 0.0
        %2703 = vmatprep.subr.mxu0 0.0
        %2704 = vmatpush1.msra.mxu0 0.0
        %2705 = vmatprep.subr.mxu0 0.0
        %2706 = vmatpush1.msra.mxu0 0.0
        %2707 = vmatprep.subr.mxu0 0.0
        %2708 = vmatpush1.msra.mxu0 0.0
        %2709 = vmatprep.subr.mxu0 0.0
        %2710 = vmatpush1.msra.mxu0 0.0
        %2711 = vmatprep.subr.mxu0 0.0
        %2712 = vmatpush1.msra.mxu0 0.0
        %2713 = vmatprep.subr.mxu0 0.0
        %2714 = vmatpush1.msra.mxu0 0.0
        %2715 = vmatprep.subr.mxu0 0.0
        %2716 = vmatpush1.msra.mxu0 0.0
        %2717 = vmatprep.subr.mxu0 0.0
        %2718 = vmatpush1.msra.mxu0 0.0
        %2719 = vmatprep.subr.mxu0 0.0
        %2720 = vmatpush1.msra.mxu0 0.0
        %2721 = vmatprep.subr.mxu0 0.0
        %2722 = vmatpush1.msra.mxu0 0.0
        %2723 = vmatprep.subr.mxu0 0.0
        %2724 = vmatpush1.msra.mxu0 0.0
        %2725 = vmatprep.mubr.f32.mxu0 0.0
        %2726 = vmatmul.mubr.f32.gmra.mrb[0].mxu0 %v2659
        %v2727 = vpop.f32.mrb[0].mxu0
        %v2728 = vadd.f32 0.0, %v2727
        %v2729 = vpop.f32.mrb[0].mxu0
        %2730 = vdwg.mxu0
        %2731 = vrot.lane.b32.xlu0 %v447, 64
        %v2732 = vpop.permute.xlu0 %2731
        %v2735 = vsel %vm1718, %v1890, 0
        %2737 = vmatprep.subr.mxu0 0.0
        %2738 = vmatpush1.msra.mxu0 %v2732
        %2739 = vmatprep.subr.mxu0 0.0
        %2740 = vmatpush1.msra.mxu0 0.0
        %2741 = vmatprep.subr.mxu0 0.0
        %2742 = vmatpush1.msra.mxu0 0.0
        %2743 = vmatprep.subr.mxu0 0.0
        %2744 = vmatpush1.msra.mxu0 0.0
        %2745 = vmatprep.subr.mxu0 0.0
        %2746 = vmatpush1.msra.mxu0 0.0
        %2747 = vmatprep.subr.mxu0 0.0
        %2748 = vmatpush1.msra.mxu0 0.0
        %2749 = vmatprep.subr.mxu0 0.0
        %2750 = vmatpush1.msra.mxu0 0.0
        %2751 = vmatprep.subr.mxu0 0.0
        %2752 = vmatpush1.msra.mxu0 0.0
        %2753 = vmatprep.subr.mxu0 0.0
        %2754 = vmatpush1.msra.mxu0 0.0
        %2755 = vmatprep.subr.mxu0 0.0
        %2756 = vmatpush1.msra.mxu0 0.0
        %2757 = vmatprep.subr.mxu0 0.0
        %2758 = vmatpush1.msra.mxu0 0.0
        %2759 = vmatprep.subr.mxu0 0.0
        %2760 = vmatpush1.msra.mxu0 0.0
        %2761 = vmatprep.subr.mxu0 0.0
        %2762 = vmatpush1.msra.mxu0 0.0
        %2763 = vmatprep.subr.mxu0 0.0
        %2764 = vmatpush1.msra.mxu0 0.0
        %2765 = vmatprep.subr.mxu0 0.0
        %2766 = vmatpush1.msra.mxu0 0.0
        %2767 = vmatprep.subr.mxu0 0.0
        %2768 = vmatpush1.msra.mxu0 0.0
        %2769 = vmatprep.subr.mxu0 0.0
        %2770 = vmatpush1.msra.mxu0 0.0
        %2771 = vmatprep.subr.mxu0 0.0
        %2772 = vmatpush1.msra.mxu0 0.0
        %2773 = vmatprep.subr.mxu0 0.0
        %2774 = vmatpush1.msra.mxu0 0.0
        %2775 = vmatprep.subr.mxu0 0.0
        %2776 = vmatpush1.msra.mxu0 0.0
        %2777 = vmatprep.subr.mxu0 0.0
        %2778 = vmatpush1.msra.mxu0 0.0
        %2779 = vmatprep.subr.mxu0 0.0
        %2780 = vmatpush1.msra.mxu0 0.0
        %2781 = vmatprep.subr.mxu0 0.0
        %2782 = vmatpush1.msra.mxu0 0.0
        %2783 = vmatprep.subr.mxu0 0.0
        %2784 = vmatpush1.msra.mxu0 0.0
        %2785 = vmatprep.subr.mxu0 0.0
        %2786 = vmatpush1.msra.mxu0 0.0
        %2787 = vmatprep.subr.mxu0 0.0
        %2788 = vmatpush1.msra.mxu0 0.0
        %2789 = vmatprep.subr.mxu0 0.0
        %2790 = vmatpush1.msra.mxu0 0.0
        %2791 = vmatprep.subr.mxu0 0.0
        %2792 = vmatpush1.msra.mxu0 0.0
        %2793 = vmatprep.subr.mxu0 0.0
        %2794 = vmatpush1.msra.mxu0 0.0
        %2795 = vmatprep.subr.mxu0 0.0
        %2796 = vmatpush1.msra.mxu0 0.0
        %2797 = vmatprep.subr.mxu0 0.0
        %2798 = vmatpush1.msra.mxu0 0.0
        %2799 = vmatprep.subr.mxu0 0.0
        %2800 = vmatpush1.msra.mxu0 0.0
        %2801 = vmatprep.mubr.f32.mxu0 0.0
        %2802 = vmatmul.mubr.f32.gmra.mrb[0].mxu0 %v2735
        %v2803 = vpop.f32.mrb[0].mxu0
        %v2804 = vadd.f32 0.0, %v2803
        %v2805 = vpop.f32.mrb[0].mxu0
        %2806 = vdwg.mxu0
        %2807 = vrot.lane.b32.xlu0 %v452, 64
        %v2808 = vpop.permute.xlu0 %2807
        %v2811 = vsel %vm1718, %v1891, 0
        %2813 = vmatprep.subr.mxu0 0.0
        %2814 = vmatpush1.msra.mxu0 %v2808
        %2815 = vmatprep.subr.mxu0 0.0
        %2816 = vmatpush1.msra.mxu0 0.0
        %2817 = vmatprep.subr.mxu0 0.0
        %2818 = vmatpush1.msra.mxu0 0.0
        %2819 = vmatprep.subr.mxu0 0.0
        %2820 = vmatpush1.msra.mxu0 0.0
        %2821 = vmatprep.subr.mxu0 0.0
        %2822 = vmatpush1.msra.mxu0 0.0
        %2823 = vmatprep.subr.mxu0 0.0
        %2824 = vmatpush1.msra.mxu0 0.0
        %2825 = vmatprep.subr.mxu0 0.0
        %2826 = vmatpush1.msra.mxu0 0.0
        %2827 = vmatprep.subr.mxu0 0.0
        %2828 = vmatpush1.msra.mxu0 0.0
        %2829 = vmatprep.subr.mxu0 0.0
        %2830 = vmatpush1.msra.mxu0 0.0
        %2831 = vmatprep.subr.mxu0 0.0
        %2832 = vmatpush1.msra.mxu0 0.0
        %2833 = vmatprep.subr.mxu0 0.0
        %2834 = vmatpush1.msra.mxu0 0.0
        %2835 = vmatprep.subr.mxu0 0.0
        %2836 = vmatpush1.msra.mxu0 0.0
        %2837 = vmatprep.subr.mxu0 0.0
        %2838 = vmatpush1.msra.mxu0 0.0
        %2839 = vmatprep.subr.mxu0 0.0
        %2840 = vmatpush1.msra.mxu0 0.0
        %2841 = vmatprep.subr.mxu0 0.0
        %2842 = vmatpush1.msra.mxu0 0.0
        %2843 = vmatprep.subr.mxu0 0.0
        %2844 = vmatpush1.msra.mxu0 0.0
        %2845 = vmatprep.subr.mxu0 0.0
        %2846 = vmatpush1.msra.mxu0 0.0
        %2847 = vmatprep.subr.mxu0 0.0
        %2848 = vmatpush1.msra.mxu0 0.0
        %2849 = vmatprep.subr.mxu0 0.0
        %2850 = vmatpush1.msra.mxu0 0.0
        %2851 = vmatprep.subr.mxu0 0.0
        %2852 = vmatpush1.msra.mxu0 0.0
        %2853 = vmatprep.subr.mxu0 0.0
        %2854 = vmatpush1.msra.mxu0 0.0
        %2855 = vmatprep.subr.mxu0 0.0
        %2856 = vmatpush1.msra.mxu0 0.0
        %2857 = vmatprep.subr.mxu0 0.0
        %2858 = vmatpush1.msra.mxu0 0.0
        %2859 = vmatprep.subr.mxu0 0.0
        %2860 = vmatpush1.msra.mxu0 0.0
        %2861 = vmatprep.subr.mxu0 0.0
        %2862 = vmatpush1.msra.mxu0 0.0
        %2863 = vmatprep.subr.mxu0 0.0
        %2864 = vmatpush1.msra.mxu0 0.0
        %2865 = vmatprep.subr.mxu0 0.0
        %2866 = vmatpush1.msra.mxu0 0.0
        %2867 = vmatprep.subr.mxu0 0.0
        %2868 = vmatpush1.msra.mxu0 0.0
        %2869 = vmatprep.subr.mxu0 0.0
        %2870 = vmatpush1.msra.mxu0 0.0
        %2871 = vmatprep.subr.mxu0 0.0
        %2872 = vmatpush1.msra.mxu0 0.0
        %2873 = vmatprep.subr.mxu0 0.0
        %2874 = vmatpush1.msra.mxu0 0.0
        %2875 = vmatprep.subr.mxu0 0.0
        %2876 = vmatpush1.msra.mxu0 0.0
        %2877 = vmatprep.mubr.f32.mxu0 0.0
        %2878 = vmatmul.mubr.f32.gmra.mrb[0].mxu0 %v2811
        %v2879 = vpop.f32.mrb[0].mxu0
        %v2880 = vadd.f32 0.0, %v2879
        %v2881 = vpop.f32.mrb[0].mxu0
        %2882 = vdwg.mxu0
        %2883 = vrot.lane.b32.xlu0 %v457, 64
        %v2884 = vpop.permute.xlu0 %2883
        %v2887 = vsel %vm1718, %v1892, 0
        %2889 = vmatprep.subr.mxu0 0.0
        %2890 = vmatpush1.msra.mxu0 %v2884
        %2891 = vmatprep.subr.mxu0 0.0
        %2892 = vmatpush1.msra.mxu0 0.0
        %2893 = vmatprep.subr.mxu0 0.0
        %2894 = vmatpush1.msra.mxu0 0.0
        %2895 = vmatprep.subr.mxu0 0.0
        %2896 = vmatpush1.msra.mxu0 0.0
        %2897 = vmatprep.subr.mxu0 0.0
        %2898 = vmatpush1.msra.mxu0 0.0
        %2899 = vmatprep.subr.mxu0 0.0
        %2900 = vmatpush1.msra.mxu0 0.0
        %2901 = vmatprep.subr.mxu0 0.0
        %2902 = vmatpush1.msra.mxu0 0.0
        %2903 = vmatprep.subr.mxu0 0.0
        %2904 = vmatpush1.msra.mxu0 0.0
        %2905 = vmatprep.subr.mxu0 0.0
        %2906 = vmatpush1.msra.mxu0 0.0
        %2907 = vmatprep.subr.mxu0 0.0
        %2908 = vmatpush1.msra.mxu0 0.0
        %2909 = vmatprep.subr.mxu0 0.0
        %2910 = vmatpush1.msra.mxu0 0.0
        %2911 = vmatprep.subr.mxu0 0.0
        %2912 = vmatpush1.msra.mxu0 0.0
        %2913 = vmatprep.subr.mxu0 0.0
        %2914 = vmatpush1.msra.mxu0 0.0
        %2915 = vmatprep.subr.mxu0 0.0
        %2916 = vmatpush1.msra.mxu0 0.0
        %2917 = vmatprep.subr.mxu0 0.0
        %2918 = vmatpush1.msra.mxu0 0.0
        %2919 = vmatprep.subr.mxu0 0.0
        %2920 = vmatpush1.msra.mxu0 0.0
        %2921 = vmatprep.subr.mxu0 0.0
        %2922 = vmatpush1.msra.mxu0 0.0
        %2923 = vmatprep.subr.mxu0 0.0
        %2924 = vmatpush1.msra.mxu0 0.0
        %2925 = vmatprep.subr.mxu0 0.0
        %2926 = vmatpush1.msra.mxu0 0.0
        %2927 = vmatprep.subr.mxu0 0.0
        %2928 = vmatpush1.msra.mxu0 0.0
        %2929 = vmatprep.subr.mxu0 0.0
        %2930 = vmatpush1.msra.mxu0 0.0
        %2931 = vmatprep.subr.mxu0 0.0
        %2932 = vmatpush1.msra.mxu0 0.0
        %2933 = vmatprep.subr.mxu0 0.0
        %2934 = vmatpush1.msra.mxu0 0.0
        %2935 = vmatprep.subr.mxu0 0.0
        %2936 = vmatpush1.msra.mxu0 0.0
        %2937 = vmatprep.subr.mxu0 0.0
        %2938 = vmatpush1.msra.mxu0 0.0
        %2939 = vmatprep.subr.mxu0 0.0
        %2940 = vmatpush1.msra.mxu0 0.0
        %2941 = vmatprep.subr.mxu0 0.0
        %2942 = vmatpush1.msra.mxu0 0.0
        %2943 = vmatprep.subr.mxu0 0.0
        %2944 = vmatpush1.msra.mxu0 0.0
        %2945 = vmatprep.subr.mxu0 0.0
        %2946 = vmatpush1.msra.mxu0 0.0
        %2947 = vmatprep.subr.mxu0 0.0
        %2948 = vmatpush1.msra.mxu0 0.0
        %2949 = vmatprep.subr.mxu0 0.0
        %2950 = vmatpush1.msra.mxu0 0.0
        %2951 = vmatprep.subr.mxu0 0.0
        %2952 = vmatpush1.msra.mxu0 0.0
        %2953 = vmatprep.mubr.f32.mxu0 0.0
        %2954 = vmatmul.mubr.f32.gmra.mrb[0].mxu0 %v2887
        %v2955 = vpop.f32.mrb[0].mxu0
        %v2956 = vadd.f32 0.0, %v2955
        %v2957 = vpop.f32.mrb[0].mxu0
        %2958 = vdwg.mxu0
        %2959 = vrot.lane.b32.xlu0 %v462, 64
        %v2960 = vpop.permute.xlu0 %2959
        %v2963 = vsel %vm1718, %v1893, 0
        %2965 = vmatprep.subr.mxu0 0.0
        %2966 = vmatpush1.msra.mxu0 %v2960
        %2967 = vmatprep.subr.mxu0 0.0
        %2968 = vmatpush1.msra.mxu0 0.0
        %2969 = vmatprep.subr.mxu0 0.0
        %2970 = vmatpush1.msra.mxu0 0.0
        %2971 = vmatprep.subr.mxu0 0.0
        %2972 = vmatpush1.msra.mxu0 0.0
        %2973 = vmatprep.subr.mxu0 0.0
        %2974 = vmatpush1.msra.mxu0 0.0
        %2975 = vmatprep.subr.mxu0 0.0
        %2976 = vmatpush1.msra.mxu0 0.0
        %2977 = vmatprep.subr.mxu0 0.0
        %2978 = vmatpush1.msra.mxu0 0.0
        %2979 = vmatprep.subr.mxu0 0.0
        %2980 = vmatpush1.msra.mxu0 0.0
        %2981 = vmatprep.subr.mxu0 0.0
        %2982 = vmatpush1.msra.mxu0 0.0
        %2983 = vmatprep.subr.mxu0 0.0
        %2984 = vmatpush1.msra.mxu0 0.0
        %2985 = vmatprep.subr.mxu0 0.0
        %2986 = vmatpush1.msra.mxu0 0.0
        %2987 = vmatprep.subr.mxu0 0.0
        %2988 = vmatpush1.msra.mxu0 0.0
        %2989 = vmatprep.subr.mxu0 0.0
        %2990 = vmatpush1.msra.mxu0 0.0
        %2991 = vmatprep.subr.mxu0 0.0
        %2992 = vmatpush1.msra.mxu0 0.0
        %2993 = vmatprep.subr.mxu0 0.0
        %2994 = vmatpush1.msra.mxu0 0.0
        %2995 = vmatprep.subr.mxu0 0.0
        %2996 = vmatpush1.msra.mxu0 0.0
        %2997 = vmatprep.subr.mxu0 0.0
        %2998 = vmatpush1.msra.mxu0 0.0
        %2999 = vmatprep.subr.mxu0 0.0
        %3000 = vmatpush1.msra.mxu0 0.0
        %3001 = vmatprep.subr.mxu0 0.0
        %3002 = vmatpush1.msra.mxu0 0.0
        %3003 = vmatprep.subr.mxu0 0.0
        %3004 = vmatpush1.msra.mxu0 0.0
        %3005 = vmatprep.subr.mxu0 0.0
        %3006 = vmatpush1.msra.mxu0 0.0
        %3007 = vmatprep.subr.mxu0 0.0
        %3008 = vmatpush1.msra.mxu0 0.0
        %3009 = vmatprep.subr.mxu0 0.0
        %3010 = vmatpush1.msra.mxu0 0.0
        %3011 = vmatprep.subr.mxu0 0.0
        %3012 = vmatpush1.msra.mxu0 0.0
        %3013 = vmatprep.subr.mxu0 0.0
        %3014 = vmatpush1.msra.mxu0 0.0
        %3015 = vmatprep.subr.mxu0 0.0
        %3016 = vmatpush1.msra.mxu0 0.0
        %3017 = vmatprep.subr.mxu0 0.0
        %3018 = vmatpush1.msra.mxu0 0.0
        %3019 = vmatprep.subr.mxu0 0.0
        %3020 = vmatpush1.msra.mxu0 0.0
        %3021 = vmatprep.subr.mxu0 0.0
        %3022 = vmatpush1.msra.mxu0 0.0
        %3023 = vmatprep.subr.mxu0 0.0
        %3024 = vmatpush1.msra.mxu0 0.0
        %3025 = vmatprep.subr.mxu0 0.0
        %3026 = vmatpush1.msra.mxu0 0.0
        %3027 = vmatprep.subr.mxu0 0.0
        %3028 = vmatpush1.msra.mxu0 0.0
        %3029 = vmatprep.mubr.f32.mxu0 0.0
        %3030 = vmatmul.mubr.f32.gmra.mrb[0].mxu0 %v2963
        %v3031 = vpop.f32.mrb[0].mxu0
        %v3032 = vadd.f32 0.0, %v3031
        %v3033 = vpop.f32.mrb[0].mxu0
        %3034 = vdwg.mxu0
        %3035 = vrot.lane.b32.xlu0 %v467, 64
        %v3036 = vpop.permute.xlu0 %3035
        %v3039 = vsel %vm1718, %v1894, 0
        %3041 = vmatprep.subr.mxu0 0.0
        %3042 = vmatpush1.msra.mxu0 %v3036
        %3043 = vmatprep.subr.mxu0 0.0
        %3044 = vmatpush1.msra.mxu0 0.0
        %3045 = vmatprep.subr.mxu0 0.0
        %3046 = vmatpush1.msra.mxu0 0.0
        %3047 = vmatprep.subr.mxu0 0.0
        %3048 = vmatpush1.msra.mxu0 0.0
        %3049 = vmatprep.subr.mxu0 0.0
        %3050 = vmatpush1.msra.mxu0 0.0
        %3051 = vmatprep.subr.mxu0 0.0
        %3052 = vmatpush1.msra.mxu0 0.0
        %3053 = vmatprep.subr.mxu0 0.0
        %3054 = vmatpush1.msra.mxu0 0.0
        %3055 = vmatprep.subr.mxu0 0.0
        %3056 = vmatpush1.msra.mxu0 0.0
        %3057 = vmatprep.subr.mxu0 0.0
        %3058 = vmatpush1.msra.mxu0 0.0
        %3059 = vmatprep.subr.mxu0 0.0
        %3060 = vmatpush1.msra.mxu0 0.0
        %3061 = vmatprep.subr.mxu0 0.0
        %3062 = vmatpush1.msra.mxu0 0.0
        %3063 = vmatprep.subr.mxu0 0.0
        %3064 = vmatpush1.msra.mxu0 0.0
        %3065 = vmatprep.subr.mxu0 0.0
        %3066 = vmatpush1.msra.mxu0 0.0
        %3067 = vmatprep.subr.mxu0 0.0
        %3068 = vmatpush1.msra.mxu0 0.0
        %3069 = vmatprep.subr.mxu0 0.0
        %3070 = vmatpush1.msra.mxu0 0.0
        %3071 = vmatprep.subr.mxu0 0.0
        %3072 = vmatpush1.msra.mxu0 0.0
        %3073 = vmatprep.subr.mxu0 0.0
        %3074 = vmatpush1.msra.mxu0 0.0
        %3075 = vmatprep.subr.mxu0 0.0
        %3076 = vmatpush1.msra.mxu0 0.0
        %3077 = vmatprep.subr.mxu0 0.0
        %3078 = vmatpush1.msra.mxu0 0.0
        %3079 = vmatprep.subr.mxu0 0.0
        %3080 = vmatpush1.msra.mxu0 0.0
        %3081 = vmatprep.subr.mxu0 0.0
        %3082 = vmatpush1.msra.mxu0 0.0
        %3083 = vmatprep.subr.mxu0 0.0
        %3084 = vmatpush1.msra.mxu0 0.0
        %3085 = vmatprep.subr.mxu0 0.0
        %3086 = vmatpush1.msra.mxu0 0.0
        %3087 = vmatprep.subr.mxu0 0.0
        %3088 = vmatpush1.msra.mxu0 0.0
        %3089 = vmatprep.subr.mxu0 0.0
        %3090 = vmatpush1.msra.mxu0 0.0
        %3091 = vmatprep.subr.mxu0 0.0
        %3092 = vmatpush1.msra.mxu0 0.0
        %3093 = vmatprep.subr.mxu0 0.0
        %3094 = vmatpush1.msra.mxu0 0.0
        %3095 = vmatprep.subr.mxu0 0.0
        %3096 = vmatpush1.msra.mxu0 0.0
        %3097 = vmatprep.subr.mxu0 0.0
        %3098 = vmatpush1.msra.mxu0 0.0
        %3099 = vmatprep.subr.mxu0 0.0
        %3100 = vmatpush1.msra.mxu0 0.0
        %3101 = vmatprep.subr.mxu0 0.0
        %3102 = vmatpush1.msra.mxu0 0.0
        %3103 = vmatprep.subr.mxu0 0.0
        %3104 = vmatpush1.msra.mxu0 0.0
        %3105 = vmatprep.mubr.f32.mxu0 0.0
        %3106 = vmatmul.mubr.f32.gmra.mrb[0].mxu0 %v3039
        %v3107 = vpop.f32.mrb[0].mxu0
        %v3108 = vadd.f32 0.0, %v3107
        %v3109 = vpop.f32.mrb[0].mxu0
        %3110 = vdwg.mxu0
        %v3111 = vld [vmem:[%s2] sm:$0xff]
        %v3112 = vld [vmem:[%s2 + $0x8] sm:$0xff]
        %v3113 = vld [vmem:[%s2 + $0x10] sm:$0xff]
        %v3114 = vld [vmem:[%s2 + $0x18] sm:$0xff]
        %v3115 = vlaneseq
        %v3116 = vshrl.u32 %v3115, 7
        %v3117 = vsub.s32 1, %v3116
        %v3118 = vrot.slane %v266, %v3117
        %v3120 = vsel %vm276, %v1968, 0
        %v3123 = vsel %vm276, %v2044, 0
        %v3126 = vsel %vm276, %v2120, 0
        %v3129 = vsel %vm276, %v2196, 0
        %v3132 = vsel %vm276, %v2272, 0
        %v3135 = vsel %vm276, %v2348, 0
        %v3138 = vsel %vm276, %v2424, 0
        %v3141 = vsel %vm276, %v2500, 0
        %v3144 = vsel %vm276, %v2576, 0
        %v3147 = vsel %vm276, %v2652, 0
        %v3150 = vsel %vm276, %v2728, 0
        %v3153 = vsel %vm276, %v2804, 0
        %v3156 = vsel %vm276, %v2880, 0
        %v3159 = vsel %vm276, %v2956, 0
        %v3162 = vsel %vm276, %v3032, 0
        %v3165 = vsel %vm276, %v3108, 0
        %3167 = vmatprep.subr.mxu0 0.0
        %3168 = vmatpush1.msra.mxu0 %v3111
        %3169 = vmatprep.subr.mxu0 0.0
        %3170 = vmatpush1.msra.mxu0 %v3112
        %3171 = vmatprep.subr.mxu0 0.0
        %3172 = vmatpush1.msra.mxu0 %v3113
        %3173 = vmatprep.subr.mxu0 0.0
        %3174 = vmatpush1.msra.mxu0 %v3114
        %3175 = vmatprep.subr.mxu0 0.0
        %3176 = vmatpush1.msra.mxu0 0.0
        %3177 = vmatprep.subr.mxu0 0.0
        %3178 = vmatpush1.msra.mxu0 0.0
        %3179 = vmatprep.subr.mxu0 0.0
        %3180 = vmatpush1.msra.mxu0 0.0
        %3181 = vmatprep.subr.mxu0 0.0
        %3182 = vmatpush1.msra.mxu0 0.0
        %3183 = vmatprep.subr.mxu0 0.0
        %3184 = vmatpush1.msra.mxu0 0.0
        %3185 = vmatprep.subr.mxu0 0.0
        %3186 = vmatpush1.msra.mxu0 0.0
        %3187 = vmatprep.subr.mxu0 0.0
        %3188 = vmatpush1.msra.mxu0 0.0
        %3189 = vmatprep.subr.mxu0 0.0
        %3190 = vmatpush1.msra.mxu0 0.0
        %3191 = vmatprep.subr.mxu0 0.0
        %3192 = vmatpush1.msra.mxu0 0.0
        %3193 = vmatprep.subr.mxu0 0.0
        %3194 = vmatpush1.msra.mxu0 0.0
        %3195 = vmatprep.subr.mxu0 0.0
        %3196 = vmatpush1.msra.mxu0 0.0
        %3197 = vmatprep.subr.mxu0 0.0
        %3198 = vmatpush1.msra.mxu0 0.0
        %3199 = vmatprep.subr.mxu0 0.0
        %3200 = vmatpush1.msra.mxu0 0.0
        %3201 = vmatprep.subr.mxu0 0.0
        %3202 = vmatpush1.msra.mxu0 0.0
        %3203 = vmatprep.subr.mxu0 0.0
        %3204 = vmatpush1.msra.mxu0 0.0
        %3205 = vmatprep.subr.mxu0 0.0
        %3206 = vmatpush1.msra.mxu0 0.0
        %3207 = vmatprep.subr.mxu0 0.0
        %3208 = vmatpush1.msra.mxu0 0.0
        %3209 = vmatprep.subr.mxu0 0.0
        %3210 = vmatpush1.msra.mxu0 0.0
        %3211 = vmatprep.subr.mxu0 0.0
        %3212 = vmatpush1.msra.mxu0 0.0
        %3213 = vmatprep.subr.mxu0 0.0
        %3214 = vmatpush1.msra.mxu0 0.0
        %3215 = vmatprep.subr.mxu0 0.0
        %3216 = vmatpush1.msra.mxu0 0.0
        %3217 = vmatprep.subr.mxu0 0.0
        %3218 = vmatpush1.msra.mxu0 0.0
        %3219 = vmatprep.subr.mxu0 0.0
        %3220 = vmatpush1.msra.mxu0 0.0
        %3221 = vmatprep.subr.mxu0 0.0
        %3222 = vmatpush1.msra.mxu0 0.0
        %3223 = vmatprep.subr.mxu0 0.0
        %3224 = vmatpush1.msra.mxu0 0.0
        %3225 = vmatprep.subr.mxu0 0.0
        %3226 = vmatpush1.msra.mxu0 0.0
        %3227 = vmatprep.subr.mxu0 0.0
        %3228 = vmatpush1.msra.mxu0 0.0
        %3229 = vmatprep.subr.mxu0 0.0
        %3230 = vmatpush1.msra.mxu0 0.0
        %3231 = vmatprep.mubr.f32.mxu0 0.0
        %3232 = vmatmul.mubr.f32.gmra.mrb[0].mxu0 %v3120
        %v3233 = vpop.f32.mrb[0].mxu0
        %v3234 = vadd.f32 %v3118, %v3233
        %v3235 = vpop.f32.mrb[0].mxu0
        %3236 = vmatprep.mubr.f32.mxu0 0.0
        %3237 = vmatmul.mubr.f32.gmra.mrb[0].mxu0 %v3123
        %v3238 = vpop.f32.mrb[0].mxu0
        %v3239 = vadd.f32 %v3118, %v3238
        %v3240 = vpop.f32.mrb[0].mxu0
        %3241 = vmatprep.mubr.f32.mxu0 0.0
        %3242 = vmatmul.mubr.f32.gmra.mrb[0].mxu0 %v3126
        %v3243 = vpop.f32.mrb[0].mxu0
        %v3244 = vadd.f32 %v3118, %v3243
        %v3245 = vpop.f32.mrb[0].mxu0
        %3246 = vmatprep.mubr.f32.mxu0 0.0
        %3247 = vmatmul.mubr.f32.gmra.mrb[0].mxu0 %v3129
        %v3248 = vpop.f32.mrb[0].mxu0
        %v3249 = vadd.f32 %v3118, %v3248
        %v3250 = vpop.f32.mrb[0].mxu0
        %3251 = vmatprep.mubr.f32.mxu0 0.0
        %3252 = vmatmul.mubr.f32.gmra.mrb[0].mxu0 %v3132
        %v3253 = vpop.f32.mrb[0].mxu0
        %v3254 = vadd.f32 %v3118, %v3253
        %v3255 = vpop.f32.mrb[0].mxu0
        %3256 = vmatprep.mubr.f32.mxu0 0.0
        %3257 = vmatmul.mubr.f32.gmra.mrb[0].mxu0 %v3135
        %v3258 = vpop.f32.mrb[0].mxu0
        %v3259 = vadd.f32 %v3118, %v3258
        %v3260 = vpop.f32.mrb[0].mxu0
        %3261 = vmatprep.mubr.f32.mxu0 0.0
        %3262 = vmatmul.mubr.f32.gmra.mrb[0].mxu0 %v3138
        %v3263 = vpop.f32.mrb[0].mxu0
        %v3264 = vadd.f32 %v3118, %v3263
        %v3265 = vpop.f32.mrb[0].mxu0
        %3266 = vmatprep.mubr.f32.mxu0 0.0
        %3267 = vmatmul.mubr.f32.gmra.mrb[0].mxu0 %v3141
        %v3268 = vpop.f32.mrb[0].mxu0
        %v3269 = vadd.f32 %v3118, %v3268
        %v3270 = vpop.f32.mrb[0].mxu0
        %3271 = vmatprep.mubr.f32.mxu0 0.0
        %3272 = vmatmul.mubr.f32.gmra.mrb[0].mxu0 %v3144
        %v3273 = vpop.f32.mrb[0].mxu0
        %v3274 = vadd.f32 %v3118, %v3273
        %v3275 = vpop.f32.mrb[0].mxu0
        %3276 = vmatprep.mubr.f32.mxu0 0.0
        %3277 = vmatmul.mubr.f32.gmra.mrb[0].mxu0 %v3147
        %v3278 = vpop.f32.mrb[0].mxu0
        %v3279 = vadd.f32 %v3118, %v3278
        %v3280 = vpop.f32.mrb[0].mxu0
        %3281 = vmatprep.mubr.f32.mxu0 0.0
        %3282 = vmatmul.mubr.f32.gmra.mrb[0].mxu0 %v3150
        %v3283 = vpop.f32.mrb[0].mxu0
        %v3284 = vadd.f32 %v3118, %v3283
        %v3285 = vpop.f32.mrb[0].mxu0
        %3286 = vmatprep.mubr.f32.mxu0 0.0
        %3287 = vmatmul.mubr.f32.gmra.mrb[0].mxu0 %v3153
        %v3288 = vpop.f32.mrb[0].mxu0
        %v3289 = vadd.f32 %v3118, %v3288
        %v3290 = vpop.f32.mrb[0].mxu0
        %3291 = vmatprep.mubr.f32.mxu0 0.0
        %3292 = vmatmul.mubr.f32.gmra.mrb[0].mxu0 %v3156
        %v3293 = vpop.f32.mrb[0].mxu0
        %v3294 = vadd.f32 %v3118, %v3293
        %v3295 = vpop.f32.mrb[0].mxu0
        %3296 = vmatprep.mubr.f32.mxu0 0.0
        %3297 = vmatmul.mubr.f32.gmra.mrb[0].mxu0 %v3159
        %v3298 = vpop.f32.mrb[0].mxu0
        %v3299 = vadd.f32 %v3118, %v3298
        %v3300 = vpop.f32.mrb[0].mxu0
        %3301 = vmatprep.mubr.f32.mxu0 0.0
        %3302 = vmatmul.mubr.f32.gmra.mrb[0].mxu0 %v3162
        %v3303 = vpop.f32.mrb[0].mxu0
        %v3304 = vadd.f32 %v3118, %v3303
        %v3305 = vpop.f32.mrb[0].mxu0
        %3306 = vmatprep.mubr.f32.mxu0 0.0
        %3307 = vmatmul.mubr.f32.gmra.mrb[0].mxu0 %v3165
        %v3308 = vpop.f32.mrb[0].mxu0
        %v3309 = vadd.f32 %v3118, %v3308
        %v3310 = vpop.f32.mrb[0].mxu0
        %3311 = vdwg.mxu0
        %v3312 = vadd.f32 %v250, %v3234
        %v3313 = vadd.f32 %v251, %v3239
        %v3314 = vadd.f32 %v252, %v3244
        %v3315 = vadd.f32 %v253, %v3249
        %v3316 = vadd.f32 %v254, %v3254
        %v3317 = vadd.f32 %v255, %v3259
        %v3318 = vadd.f32 %v256, %v3264
        %v3319 = vadd.f32 %v257, %v3269
        %v3320 = vadd.f32 %v258, %v3274
        %v3321 = vadd.f32 %v259, %v3279
        %v3322 = vadd.f32 %v260, %v3284
        %v3323 = vadd.f32 %v261, %v3289
        %v3324 = vadd.f32 %v262, %v3294
        %v3325 = vadd.f32 %v263, %v3299
        %v3326 = vadd.f32 %v264, %v3304
        %v3327 = vadd.f32 %v265, %v3309
        %v3328 = vsel %vm276, %v3312, 0.0
        %3329 = vadd.xlane.f32.xlu0 %v3328
        %v3330 = vpop.xlane.xlu0 %3329
        %v3331 = vsel %vm276, %v3313, 0.0
        %3332 = vadd.xlane.f32.xlu0 %v3331
        %v3333 = vpop.xlane.xlu0 %3332
        %v3334 = vsel %vm276, %v3314, 0.0
        %3335 = vadd.xlane.f32.xlu0 %v3334
        %v3336 = vpop.xlane.xlu0 %3335
        %v3337 = vsel %vm276, %v3315, 0.0
        %3338 = vadd.xlane.f32.xlu0 %v3337
        %v3339 = vpop.xlane.xlu0 %3338
        %v3340 = vsel %vm276, %v3316, 0.0
        %3341 = vadd.xlane.f32.xlu0 %v3340
        %v3342 = vpop.xlane.xlu0 %3341
        %v3343 = vsel %vm276, %v3317, 0.0
        %3344 = vadd.xlane.f32.xlu0 %v3343
        %v3345 = vpop.xlane.xlu0 %3344
        %v3346 = vsel %vm276, %v3318, 0.0
        %3347 = vadd.xlane.f32.xlu0 %v3346
        %v3348 = vpop.xlane.xlu0 %3347
        %v3349 = vsel %vm276, %v3319, 0.0
        %3350 = vadd.xlane.f32.xlu0 %v3349
        %v3351 = vpop.xlane.xlu0 %3350
        %v3352 = vsel %vm276, %v3320, 0.0
        %3353 = vadd.xlane.f32.xlu0 %v3352
        %v3354 = vpop.xlane.xlu0 %3353
        %v3355 = vsel %vm276, %v3321, 0.0
        %3356 = vadd.xlane.f32.xlu0 %v3355
        %v3357 = vpop.xlane.xlu0 %3356
        %v3358 = vsel %vm276, %v3322, 0.0
        %3359 = vadd.xlane.f32.xlu0 %v3358
        %v3360 = vpop.xlane.xlu0 %3359
        %v3361 = vsel %vm276, %v3323, 0.0
        %3362 = vadd.xlane.f32.xlu0 %v3361
        %v3363 = vpop.xlane.xlu0 %3362
        %v3364 = vsel %vm276, %v3324, 0.0
        %3365 = vadd.xlane.f32.xlu0 %v3364
        %v3366 = vpop.xlane.xlu0 %3365
        %v3367 = vsel %vm276, %v3325, 0.0
        %3368 = vadd.xlane.f32.xlu0 %v3367
        %v3369 = vpop.xlane.xlu0 %3368
        %v3370 = vsel %vm276, %v3326, 0.0
        %3371 = vadd.xlane.f32.xlu0 %v3370
        %v3372 = vpop.xlane.xlu0 %3371
        %v3373 = vsel %vm276, %v3327, 0.0
        %3374 = vadd.xlane.f32.xlu0 %v3373
        %v3375 = vpop.xlane.xlu0 %3374
        %v3376 = vrcp.pop 32.0
        %v3377 = vmul.f32 %v3330, %v3376
        %v3378 = vmul.f32 %v3333, %v3376
        %v3379 = vmul.f32 %v3336, %v3376
        %v3380 = vmul.f32 %v3339, %v3376
        %v3381 = vmul.f32 %v3342, %v3376
        %v3382 = vmul.f32 %v3345, %v3376
        %v3383 = vmul.f32 %v3348, %v3376
        %v3384 = vmul.f32 %v3351, %v3376
        %v3385 = vmul.f32 %v3354, %v3376
        %v3386 = vmul.f32 %v3357, %v3376
        %v3387 = vmul.f32 %v3360, %v3376
        %v3388 = vmul.f32 %v3363, %v3376
        %v3389 = vmul.f32 %v3366, %v3376
        %v3390 = vmul.f32 %v3369, %v3376
        %v3391 = vmul.f32 %v3372, %v3376
        %v3392 = vmul.f32 %v3375, %v3376
        %v3393 = vsub.f32 %v3312, %v3377
        %v3394 = vsub.f32 %v3313, %v3378
        %v3395 = vsub.f32 %v3314, %v3379
        %v3396 = vsub.f32 %v3315, %v3380
        %v3397 = vsub.f32 %v3316, %v3381
        %v3398 = vsub.f32 %v3317, %v3382
        %v3399 = vsub.f32 %v3318, %v3383
        %v3400 = vsub.f32 %v3319, %v3384
        %v3401 = vsub.f32 %v3320, %v3385
        %v3402 = vsub.f32 %v3321, %v3386
        %v3403 = vsub.f32 %v3322, %v3387
        %v3404 = vsub.f32 %v3323, %v3388
        %v3405 = vsub.f32 %v3324, %v3389
        %v3406 = vsub.f32 %v3325, %v3390
        %v3407 = vsub.f32 %v3326, %v3391
        %v3408 = vsub.f32 %v3327, %v3392
        %v3409 = vmul.f32 %v3393, %v3393
        %v3410 = vmul.f32 %v3394, %v3394
        %v3411 = vmul.f32 %v3395, %v3395
        %v3412 = vmul.f32 %v3396, %v3396
        %v3413 = vmul.f32 %v3397, %v3397
        %v3414 = vmul.f32 %v3398, %v3398
        %v3415 = vmul.f32 %v3399, %v3399
        %v3416 = vmul.f32 %v3400, %v3400
        %v3417 = vmul.f32 %v3401, %v3401
        %v3418 = vmul.f32 %v3402, %v3402
        %v3419 = vmul.f32 %v3403, %v3403
        %v3420 = vmul.f32 %v3404, %v3404
        %v3421 = vmul.f32 %v3405, %v3405
        %v3422 = vmul.f32 %v3406, %v3406
        %v3423 = vmul.f32 %v3407, %v3407
        %v3424 = vmul.f32 %v3408, %v3408
        %v3425 = vsel %vm276, %v3409, 0.0
        %3426 = vadd.xlane.f32.xlu0 %v3425
        %v3427 = vpop.xlane.xlu0 %3426
        %v3428 = vsel %vm276, %v3410, 0.0
        %3429 = vadd.xlane.f32.xlu0 %v3428
        %v3430 = vpop.xlane.xlu0 %3429
        %v3431 = vsel %vm276, %v3411, 0.0
        %3432 = vadd.xlane.f32.xlu0 %v3431
        %v3433 = vpop.xlane.xlu0 %3432
        %v3434 = vsel %vm276, %v3412, 0.0
        %3435 = vadd.xlane.f32.xlu0 %v3434
        %v3436 = vpop.xlane.xlu0 %3435
        %v3437 = vsel %vm276, %v3413, 0.0
        %3438 = vadd.xlane.f32.xlu0 %v3437
        %v3439 = vpop.xlane.xlu0 %3438
        %v3440 = vsel %vm276, %v3414, 0.0
        %3441 = vadd.xlane.f32.xlu0 %v3440
        %v3442 = vpop.xlane.xlu0 %3441
        %v3443 = vsel %vm276, %v3415, 0.0
        %3444 = vadd.xlane.f32.xlu0 %v3443
        %v3445 = vpop.xlane.xlu0 %3444
        %v3446 = vsel %vm276, %v3416, 0.0
        %3447 = vadd.xlane.f32.xlu0 %v3446
        %v3448 = vpop.xlane.xlu0 %3447
        %v3449 = vsel %vm276, %v3417, 0.0
        %3450 = vadd.xlane.f32.xlu0 %v3449
        %v3451 = vpop.xlane.xlu0 %3450
        %v3452 = vsel %vm276, %v3418, 0.0
        %3453 = vadd.xlane.f32.xlu0 %v3452
        %v3454 = vpop.xlane.xlu0 %3453
        %v3455 = vsel %vm276, %v3419, 0.0
        %3456 = vadd.xlane.f32.xlu0 %v3455
        %v3457 = vpop.xlane.xlu0 %3456
        %v3458 = vsel %vm276, %v3420, 0.0
        %3459 = vadd.xlane.f32.xlu0 %v3458
        %v3460 = vpop.xlane.xlu0 %3459
        %v3461 = vsel %vm276, %v3421, 0.0
        %3462 = vadd.xlane.f32.xlu0 %v3461
        %v3463 = vpop.xlane.xlu0 %3462
        %v3464 = vsel %vm276, %v3422, 0.0
        %3465 = vadd.xlane.f32.xlu0 %v3464
        %v3466 = vpop.xlane.xlu0 %3465
        %v3467 = vsel %vm276, %v3423, 0.0
        %3468 = vadd.xlane.f32.xlu0 %v3467
        %v3469 = vpop.xlane.xlu0 %3468
        %v3470 = vsel %vm276, %v3424, 0.0
        %3471 = vadd.xlane.f32.xlu0 %v3470
        %v3472 = vpop.xlane.xlu0 %3471
        %v3473 = vmul.f32 %v3427, %v3376
        %v3474 = vmul.f32 %v3430, %v3376
        %v3475 = vmul.f32 %v3433, %v3376
        %v3476 = vmul.f32 %v3436, %v3376
        %v3477 = vmul.f32 %v3439, %v3376
        %v3478 = vmul.f32 %v3442, %v3376
        %v3479 = vmul.f32 %v3445, %v3376
        %v3480 = vmul.f32 %v3448, %v3376
        %v3481 = vmul.f32 %v3451, %v3376
        %v3482 = vmul.f32 %v3454, %v3376
        %v3483 = vmul.f32 %v3457, %v3376
        %v3484 = vmul.f32 %v3460, %v3376
        %v3485 = vmul.f32 %v3463, %v3376
        %v3486 = vmul.f32 %v3466, %v3376
        %v3487 = vmul.f32 %v3469, %v3376
        %v3488 = vmul.f32 %v3472, %v3376
        %v3489 = vadd.f32 %v3473, 1e-05
        %v3490 = vadd.f32 %v3474, 1e-05
        %v3491 = vadd.f32 %v3475, 1e-05
        %v3492 = vadd.f32 %v3476, 1e-05
        %v3493 = vadd.f32 %v3477, 1e-05
        %v3494 = vadd.f32 %v3478, 1e-05
        %v3495 = vadd.f32 %v3479, 1e-05
        %v3496 = vadd.f32 %v3480, 1e-05
        %v3497 = vadd.f32 %v3481, 1e-05
        %v3498 = vadd.f32 %v3482, 1e-05
        %v3499 = vadd.f32 %v3483, 1e-05
        %v3500 = vadd.f32 %v3484, 1e-05
        %v3501 = vadd.f32 %v3485, 1e-05
        %v3502 = vadd.f32 %v3486, 1e-05
        %v3503 = vadd.f32 %v3487, 1e-05
        %v3504 = vadd.f32 %v3488, 1e-05
        %v3505 = vrsqrt.pop %v3489
        %v3506 = vrsqrt.pop %v3490
        %v3507 = vrsqrt.pop %v3491
        %v3508 = vrsqrt.pop %v3492
        %v3509 = vrsqrt.pop %v3493
        %v3510 = vrsqrt.pop %v3494
        %v3511 = vrsqrt.pop %v3495
        %v3512 = vrsqrt.pop %v3496
        %v3513 = vrsqrt.pop %v3497
        %v3514 = vrsqrt.pop %v3498
        %v3515 = vrsqrt.pop %v3499
        %v3516 = vrsqrt.pop %v3500
        %v3517 = vrsqrt.pop %v3501
        %v3518 = vrsqrt.pop %v3502
        %v3519 = vrsqrt.pop %v3503
        %v3520 = vrsqrt.pop %v3504
        %v3521 = vmul.f32 %v3393, %v3505
        %v3522 = vmul.f32 %v3394, %v3506
        %v3523 = vmul.f32 %v3395, %v3507
        %v3524 = vmul.f32 %v3396, %v3508
        %v3525 = vmul.f32 %v3397, %v3509
        %v3526 = vmul.f32 %v3398, %v3510
        %v3527 = vmul.f32 %v3399, %v3511
        %v3528 = vmul.f32 %v3400, %v3512
        %v3529 = vmul.f32 %v3401, %v3513
        %v3530 = vmul.f32 %v3402, %v3514
        %v3531 = vmul.f32 %v3403, %v3515
        %v3532 = vmul.f32 %v3404, %v3516
        %v3533 = vmul.f32 %v3405, %v3517
        %v3534 = vmul.f32 %v3406, %v3518
        %v3535 = vmul.f32 %v3407, %v3519
        %v3536 = vmul.f32 %v3408, %v3520
        %v3537 = vlaneseq
        %v3538 = vshrl.u32 %v3537, 7
        %v3539 = vsub.s32 2, %v3538
        %v3540 = vrot.slane %v266, %v3539
        %v3541 = vmul.f32 %v3521, %v3540
        %v3542 = vmul.f32 %v3522, %v3540
        %v3543 = vmul.f32 %v3523, %v3540
        %v3544 = vmul.f32 %v3524, %v3540
        %v3545 = vmul.f32 %v3525, %v3540
        %v3546 = vmul.f32 %v3526, %v3540
        %v3547 = vmul.f32 %v3527, %v3540
        %v3548 = vmul.f32 %v3528, %v3540
        %v3549 = vmul.f32 %v3529, %v3540
        %v3550 = vmul.f32 %v3530, %v3540
        %v3551 = vmul.f32 %v3531, %v3540
        %v3552 = vmul.f32 %v3532, %v3540
        %v3553 = vmul.f32 %v3533, %v3540
        %v3554 = vmul.f32 %v3534, %v3540
        %v3555 = vmul.f32 %v3535, %v3540
        %v3556 = vmul.f32 %v3536, %v3540
        %v3557 = vlaneseq
        %v3558 = vshrl.u32 %v3557, 7
        %v3559 = vsub.s32 3, %v3558
        %v3560 = vrot.slane %v266, %v3559
        %v3561 = vadd.f32 %v3541, %v3560
        %v3562 = vadd.f32 %v3542, %v3560
        %v3563 = vadd.f32 %v3543, %v3560
        %v3564 = vadd.f32 %v3544, %v3560
        %v3565 = vadd.f32 %v3545, %v3560
        %v3566 = vadd.f32 %v3546, %v3560
        %v3567 = vadd.f32 %v3547, %v3560
        %v3568 = vadd.f32 %v3548, %v3560
        %v3569 = vadd.f32 %v3549, %v3560
        %v3570 = vadd.f32 %v3550, %v3560
        %v3571 = vadd.f32 %v3551, %v3560
        %v3572 = vadd.f32 %v3552, %v3560
        %v3573 = vadd.f32 %v3553, %v3560
        %v3574 = vadd.f32 %v3554, %v3560
        %v3575 = vadd.f32 %v3555, %v3560
        %v3576 = vadd.f32 %v3556, %v3560
        %v3577 = vld [vmem:[%s3] sm:$0xff]
        %v3578 = vld [vmem:[%s3 + $0x8] sm:$0xff]
        %v3579 = vld [vmem:[%s3 + $0x10] sm:$0xff]
        %v3580 = vld [vmem:[%s3 + $0x18] sm:$0xff]
        %v3581 = vlaneseq
        %v3582 = vshrl.u32 %v3581, 7
        %v3583 = vsub.s32 4, %v3582
        %v3584 = vrot.slane %v266, %v3583
        %v3586 = vsel %vm276, %v3561, 0
        %v3589 = vsel %vm276, %v3562, 0
        %v3592 = vsel %vm276, %v3563, 0
        %v3595 = vsel %vm276, %v3564, 0
        %v3598 = vsel %vm276, %v3565, 0
        %v3601 = vsel %vm276, %v3566, 0
        %v3604 = vsel %vm276, %v3567, 0
        %v3607 = vsel %vm276, %v3568, 0
        %v3610 = vsel %vm276, %v3569, 0
        %v3613 = vsel %vm276, %v3570, 0
        %v3616 = vsel %vm276, %v3571, 0
        %v3619 = vsel %vm276, %v3572, 0
        %v3622 = vsel %vm276, %v3573, 0
        %v3625 = vsel %vm276, %v3574, 0
        %v3628 = vsel %vm276, %v3575, 0
        %v3631 = vsel %vm276, %v3576, 0
        %3633 = vmatprep.subr.mxu0 0.0
        %3634 = vmatpush1.msra.mxu0 %v3577
        %3635 = vmatprep.subr.mxu0 0.0
        %3636 = vmatpush1.msra.mxu0 %v3578
        %3637 = vmatprep.subr.mxu0 0.0
        %3638 = vmatpush1.msra.mxu0 %v3579
        %3639 = vmatprep.subr.mxu0 0.0
        %3640 = vmatpush1.msra.mxu0 %v3580
        %3641 = vmatprep.subr.mxu0 0.0
        %3642 = vmatpush1.msra.mxu0 0.0
        %3643 = vmatprep.subr.mxu0 0.0
        %3644 = vmatpush1.msra.mxu0 0.0
        %3645 = vmatprep.subr.mxu0 0.0
        %3646 = vmatpush1.msra.mxu0 0.0
        %3647 = vmatprep.subr.mxu0 0.0
        %3648 = vmatpush1.msra.mxu0 0.0
        %3649 = vmatprep.subr.mxu0 0.0
        %3650 = vmatpush1.msra.mxu0 0.0
        %3651 = vmatprep.subr.mxu0 0.0
        %3652 = vmatpush1.msra.mxu0 0.0
        %3653 = vmatprep.subr.mxu0 0.0
        %3654 = vmatpush1.msra.mxu0 0.0
        %3655 = vmatprep.subr.mxu0 0.0
        %3656 = vmatpush1.msra.mxu0 0.0
        %3657 = vmatprep.subr.mxu0 0.0
        %3658 = vmatpush1.msra.mxu0 0.0
        %3659 = vmatprep.subr.mxu0 0.0
        %3660 = vmatpush1.msra.mxu0 0.0
        %3661 = vmatprep.subr.mxu0 0.0
        %3662 = vmatpush1.msra.mxu0 0.0
        %3663 = vmatprep.subr.mxu0 0.0
        %3664 = vmatpush1.msra.mxu0 0.0
        %3665 = vmatprep.subr.mxu0 0.0
        %3666 = vmatpush1.msra.mxu0 0.0
        %3667 = vmatprep.subr.mxu0 0.0
        %3668 = vmatpush1.msra.mxu0 0.0
        %3669 = vmatprep.subr.mxu0 0.0
        %3670 = vmatpush1.msra.mxu0 0.0
        %3671 = vmatprep.subr.mxu0 0.0
        %3672 = vmatpush1.msra.mxu0 0.0
        %3673 = vmatprep.subr.mxu0 0.0
        %3674 = vmatpush1.msra.mxu0 0.0
        %3675 = vmatprep.subr.mxu0 0.0
        %3676 = vmatpush1.msra.mxu0 0.0
        %3677 = vmatprep.subr.mxu0 0.0
        %3678 = vmatpush1.msra.mxu0 0.0
        %3679 = vmatprep.subr.mxu0 0.0
        %3680 = vmatpush1.msra.mxu0 0.0
        %3681 = vmatprep.subr.mxu0 0.0
        %3682 = vmatpush1.msra.mxu0 0.0
        %3683 = vmatprep.subr.mxu0 0.0
        %3684 = vmatpush1.msra.mxu0 0.0
        %3685 = vmatprep.subr.mxu0 0.0
        %3686 = vmatpush1.msra.mxu0 0.0
        %3687 = vmatprep.subr.mxu0 0.0
        %3688 = vmatpush1.msra.mxu0 0.0
        %3689 = vmatprep.subr.mxu0 0.0
        %3690 = vmatpush1.msra.mxu0 0.0
        %3691 = vmatprep.subr.mxu0 0.0
        %3692 = vmatpush1.msra.mxu0 0.0
        %3693 = vmatprep.subr.mxu0 0.0
        %3694 = vmatpush1.msra.mxu0 0.0
        %3695 = vmatprep.subr.mxu0 0.0
        %3696 = vmatpush1.msra.mxu0 0.0
        %3697 = vmatprep.mubr.f32.mxu0 0.0
        %3698 = vmatmul.mubr.f32.gmra.mrb[0].mxu0 %v3586
        %v3699 = vpop.f32.mrb[0].mxu0
        %v3700 = vadd.f32 %v3584, %v3699
        %v3701 = vpop.f32.mrb[0].mxu0
        %3702 = vmatprep.mubr.f32.mxu0 0.0
        %3703 = vmatmul.mubr.f32.gmra.mrb[0].mxu0 %v3589
        %v3704 = vpop.f32.mrb[0].mxu0
        %v3705 = vadd.f32 %v3584, %v3704
        %v3706 = vpop.f32.mrb[0].mxu0
        %3707 = vmatprep.mubr.f32.mxu0 0.0
        %3708 = vmatmul.mubr.f32.gmra.mrb[0].mxu0 %v3592
        %v3709 = vpop.f32.mrb[0].mxu0
        %v3710 = vadd.f32 %v3584, %v3709
        %v3711 = vpop.f32.mrb[0].mxu0
        %3712 = vmatprep.mubr.f32.mxu0 0.0
        %3713 = vmatmul.mubr.f32.gmra.mrb[0].mxu0 %v3595
        %v3714 = vpop.f32.mrb[0].mxu0
        %v3715 = vadd.f32 %v3584, %v3714
        %v3716 = vpop.f32.mrb[0].mxu0
        %3717 = vmatprep.mubr.f32.mxu0 0.0
        %3718 = vmatmul.mubr.f32.gmra.mrb[0].mxu0 %v3598
        %v3719 = vpop.f32.mrb[0].mxu0
        %v3720 = vadd.f32 %v3584, %v3719
        %v3721 = vpop.f32.mrb[0].mxu0
        %3722 = vmatprep.mubr.f32.mxu0 0.0
        %3723 = vmatmul.mubr.f32.gmra.mrb[0].mxu0 %v3601
        %v3724 = vpop.f32.mrb[0].mxu0
        %v3725 = vadd.f32 %v3584, %v3724
        %v3726 = vpop.f32.mrb[0].mxu0
        %3727 = vmatprep.mubr.f32.mxu0 0.0
        %3728 = vmatmul.mubr.f32.gmra.mrb[0].mxu0 %v3604
        %v3729 = vpop.f32.mrb[0].mxu0
        %v3730 = vadd.f32 %v3584, %v3729
        %v3731 = vpop.f32.mrb[0].mxu0
        %3732 = vmatprep.mubr.f32.mxu0 0.0
        %3733 = vmatmul.mubr.f32.gmra.mrb[0].mxu0 %v3607
        %v3734 = vpop.f32.mrb[0].mxu0
        %v3735 = vadd.f32 %v3584, %v3734
        %v3736 = vpop.f32.mrb[0].mxu0
        %3737 = vmatprep.mubr.f32.mxu0 0.0
        %3738 = vmatmul.mubr.f32.gmra.mrb[0].mxu0 %v3610
        %v3739 = vpop.f32.mrb[0].mxu0
        %v3740 = vadd.f32 %v3584, %v3739
        %v3741 = vpop.f32.mrb[0].mxu0
        %3742 = vmatprep.mubr.f32.mxu0 0.0
        %3743 = vmatmul.mubr.f32.gmra.mrb[0].mxu0 %v3613
        %v3744 = vpop.f32.mrb[0].mxu0
        %v3745 = vadd.f32 %v3584, %v3744
        %v3746 = vpop.f32.mrb[0].mxu0
        %3747 = vmatprep.mubr.f32.mxu0 0.0
        %3748 = vmatmul.mubr.f32.gmra.mrb[0].mxu0 %v3616
        %v3749 = vpop.f32.mrb[0].mxu0
        %v3750 = vadd.f32 %v3584, %v3749
        %v3751 = vpop.f32.mrb[0].mxu0
        %3752 = vmatprep.mubr.f32.mxu0 0.0
        %3753 = vmatmul.mubr.f32.gmra.mrb[0].mxu0 %v3619
        %v3754 = vpop.f32.mrb[0].mxu0
        %v3755 = vadd.f32 %v3584, %v3754
        %v3756 = vpop.f32.mrb[0].mxu0
        %3757 = vmatprep.mubr.f32.mxu0 0.0
        %3758 = vmatmul.mubr.f32.gmra.mrb[0].mxu0 %v3622
        %v3759 = vpop.f32.mrb[0].mxu0
        %v3760 = vadd.f32 %v3584, %v3759
        %v3761 = vpop.f32.mrb[0].mxu0
        %3762 = vmatprep.mubr.f32.mxu0 0.0
        %3763 = vmatmul.mubr.f32.gmra.mrb[0].mxu0 %v3625
        %v3764 = vpop.f32.mrb[0].mxu0
        %v3765 = vadd.f32 %v3584, %v3764
        %v3766 = vpop.f32.mrb[0].mxu0
        %3767 = vmatprep.mubr.f32.mxu0 0.0
        %3768 = vmatmul.mubr.f32.gmra.mrb[0].mxu0 %v3628
        %v3769 = vpop.f32.mrb[0].mxu0
        %v3770 = vadd.f32 %v3584, %v3769
        %v3771 = vpop.f32.mrb[0].mxu0
        %3772 = vmatprep.mubr.f32.mxu0 0.0
        %3773 = vmatmul.mubr.f32.gmra.mrb[0].mxu0 %v3631
        %v3774 = vpop.f32.mrb[0].mxu0
        %v3775 = vadd.f32 %v3584, %v3774
        %v3776 = vpop.f32.mrb[0].mxu0
        %3777 = vdwg.mxu0
        %v3778 = vmax.f32 %v3700, 0.0
        %v3779 = vmax.f32 %v3705, 0.0
        %v3780 = vmax.f32 %v3710, 0.0
        %v3781 = vmax.f32 %v3715, 0.0
        %v3782 = vmax.f32 %v3720, 0.0
        %v3783 = vmax.f32 %v3725, 0.0
        %v3784 = vmax.f32 %v3730, 0.0
        %v3785 = vmax.f32 %v3735, 0.0
        %v3786 = vmax.f32 %v3740, 0.0
        %v3787 = vmax.f32 %v3745, 0.0
        %v3788 = vmax.f32 %v3750, 0.0
        %v3789 = vmax.f32 %v3755, 0.0
        %v3790 = vmax.f32 %v3760, 0.0
        %v3791 = vmax.f32 %v3765, 0.0
        %v3792 = vmax.f32 %v3770, 0.0
        %v3793 = vmax.f32 %v3775, 0.0
        %v3794 = vld [vmem:[%s4] sm:$0xff]
        %v3795 = vld [vmem:[%s4 + $0x8] sm:$0xff]
        %v3796 = vld [vmem:[%s4 + $0x10] sm:$0xff]
        %v3797 = vld [vmem:[%s4 + $0x18] sm:$0xff]
        %v3798 = vld [vmem:[%s4 + $0x20] sm:$0xff]
        %v3799 = vld [vmem:[%s4 + $0x28] sm:$0xff]
        %v3800 = vld [vmem:[%s4 + $0x30] sm:$0xff]
        %v3801 = vld [vmem:[%s4 + $0x38] sm:$0xff]
        %v3802 = vlaneseq
        %v3803 = vshrl.u32 %v3802, 7
        %v3804 = vsub.s32 5, %v3803
        %v3805 = vrot.slane %v266, %v3804
        %vm3806 = vcmask 523264
        %v3808 = vsel %vm3806, %v3778, 0
        %v3811 = vsel %vm3806, %v3779, 0
        %v3814 = vsel %vm3806, %v3780, 0
        %v3817 = vsel %vm3806, %v3781, 0
        %v3820 = vsel %vm3806, %v3782, 0
        %v3823 = vsel %vm3806, %v3783, 0
        %v3826 = vsel %vm3806, %v3784, 0
        %v3829 = vsel %vm3806, %v3785, 0
        %v3832 = vsel %vm3806, %v3786, 0
        %v3835 = vsel %vm3806, %v3787, 0
        %v3838 = vsel %vm3806, %v3788, 0
        %v3841 = vsel %vm3806, %v3789, 0
        %v3844 = vsel %vm3806, %v3790, 0
        %v3847 = vsel %vm3806, %v3791, 0
        %v3850 = vsel %vm3806, %v3792, 0
        %v3853 = vsel %vm3806, %v3793, 0
        %3855 = vmatprep.subr.mxu0 0.0
        %3856 = vmatpush1.msra.mxu0 %v3794
        %3857 = vmatprep.subr.mxu0 0.0
        %3858 = vmatpush1.msra.mxu0 %v3795
        %3859 = vmatprep.subr.mxu0 0.0
        %3860 = vmatpush1.msra.mxu0 %v3796
        %3861 = vmatprep.subr.mxu0 0.0
        %3862 = vmatpush1.msra.mxu0 %v3797
        %3863 = vmatprep.subr.mxu0 0.0
        %3864 = vmatpush1.msra.mxu0 %v3798
        %3865 = vmatprep.subr.mxu0 0.0
        %3866 = vmatpush1.msra.mxu0 %v3799
        %3867 = vmatprep.subr.mxu0 0.0
        %3868 = vmatpush1.msra.mxu0 %v3800
        %3869 = vmatprep.subr.mxu0 0.0
        %3870 = vmatpush1.msra.mxu0 %v3801
        %3871 = vmatprep.subr.mxu0 0.0
        %3872 = vmatpush1.msra.mxu0 0.0
        %3873 = vmatprep.subr.mxu0 0.0
        %3874 = vmatpush1.msra.mxu0 0.0
        %3875 = vmatprep.subr.mxu0 0.0
        %3876 = vmatpush1.msra.mxu0 0.0
        %3877 = vmatprep.subr.mxu0 0.0
        %3878 = vmatpush1.msra.mxu0 0.0
        %3879 = vmatprep.subr.mxu0 0.0
        %3880 = vmatpush1.msra.mxu0 0.0
        %3881 = vmatprep.subr.mxu0 0.0
        %3882 = vmatpush1.msra.mxu0 0.0
        %3883 = vmatprep.subr.mxu0 0.0
        %3884 = vmatpush1.msra.mxu0 0.0
        %3885 = vmatprep.subr.mxu0 0.0
        %3886 = vmatpush1.msra.mxu0 0.0
        %3887 = vmatprep.subr.mxu0 0.0
        %3888 = vmatpush1.msra.mxu0 0.0
        %3889 = vmatprep.subr.mxu0 0.0
        %3890 = vmatpush1.msra.mxu0 0.0
        %3891 = vmatprep.subr.mxu0 0.0
        %3892 = vmatpush1.msra.mxu0 0.0
        %3893 = vmatprep.subr.mxu0 0.0
        %3894 = vmatpush1.msra.mxu0 0.0
        %3895 = vmatprep.subr.mxu0 0.0
        %3896 = vmatpush1.msra.mxu0 0.0
        %3897 = vmatprep.subr.mxu0 0.0
        %3898 = vmatpush1.msra.mxu0 0.0
        %3899 = vmatprep.subr.mxu0 0.0
        %3900 = vmatpush1.msra.mxu0 0.0
        %3901 = vmatprep.subr.mxu0 0.0
        %3902 = vmatpush1.msra.mxu0 0.0
        %3903 = vmatprep.subr.mxu0 0.0
        %3904 = vmatpush1.msra.mxu0 0.0
        %3905 = vmatprep.subr.mxu0 0.0
        %3906 = vmatpush1.msra.mxu0 0.0
        %3907 = vmatprep.subr.mxu0 0.0
        %3908 = vmatpush1.msra.mxu0 0.0
        %3909 = vmatprep.subr.mxu0 0.0
        %3910 = vmatpush1.msra.mxu0 0.0
        %3911 = vmatprep.subr.mxu0 0.0
        %3912 = vmatpush1.msra.mxu0 0.0
        %3913 = vmatprep.subr.mxu0 0.0
        %3914 = vmatpush1.msra.mxu0 0.0
        %3915 = vmatprep.subr.mxu0 0.0
        %3916 = vmatpush1.msra.mxu0 0.0
        %3917 = vmatprep.subr.mxu0 0.0
        %3918 = vmatpush1.msra.mxu0 0.0
        %3919 = vmatprep.mubr.f32.mxu0 0.0
        %3920 = vmatmul.mubr.f32.gmra.mrb[0].mxu0 %v3808
        %v3921 = vpop.f32.mrb[0].mxu0
        %v3922 = vadd.f32 %v3805, %v3921
        %v3923 = vpop.f32.mrb[0].mxu0
        %3924 = vmatprep.mubr.f32.mxu0 0.0
        %3925 = vmatmul.mubr.f32.gmra.mrb[0].mxu0 %v3811
        %v3926 = vpop.f32.mrb[0].mxu0
        %v3927 = vadd.f32 %v3805, %v3926
        %v3928 = vpop.f32.mrb[0].mxu0
        %3929 = vmatprep.mubr.f32.mxu0 0.0
        %3930 = vmatmul.mubr.f32.gmra.mrb[0].mxu0 %v3814
        %v3931 = vpop.f32.mrb[0].mxu0
        %v3932 = vadd.f32 %v3805, %v3931
        %v3933 = vpop.f32.mrb[0].mxu0
        %3934 = vmatprep.mubr.f32.mxu0 0.0
        %3935 = vmatmul.mubr.f32.gmra.mrb[0].mxu0 %v3817
        %v3936 = vpop.f32.mrb[0].mxu0
        %v3937 = vadd.f32 %v3805, %v3936
        %v3938 = vpop.f32.mrb[0].mxu0
        %3939 = vmatprep.mubr.f32.mxu0 0.0
        %3940 = vmatmul.mubr.f32.gmra.mrb[0].mxu0 %v3820
        %v3941 = vpop.f32.mrb[0].mxu0
        %v3942 = vadd.f32 %v3805, %v3941
        %v3943 = vpop.f32.mrb[0].mxu0
        %3944 = vmatprep.mubr.f32.mxu0 0.0
        %3945 = vmatmul.mubr.f32.gmra.mrb[0].mxu0 %v3823
        %v3946 = vpop.f32.mrb[0].mxu0
        %v3947 = vadd.f32 %v3805, %v3946
        %v3948 = vpop.f32.mrb[0].mxu0
        %3949 = vmatprep.mubr.f32.mxu0 0.0
        %3950 = vmatmul.mubr.f32.gmra.mrb[0].mxu0 %v3826
        %v3951 = vpop.f32.mrb[0].mxu0
        %v3952 = vadd.f32 %v3805, %v3951
        %v3953 = vpop.f32.mrb[0].mxu0
        %3954 = vmatprep.mubr.f32.mxu0 0.0
        %3955 = vmatmul.mubr.f32.gmra.mrb[0].mxu0 %v3829
        %v3956 = vpop.f32.mrb[0].mxu0
        %v3957 = vadd.f32 %v3805, %v3956
        %v3958 = vpop.f32.mrb[0].mxu0
        %3959 = vmatprep.mubr.f32.mxu0 0.0
        %3960 = vmatmul.mubr.f32.gmra.mrb[0].mxu0 %v3832
        %v3961 = vpop.f32.mrb[0].mxu0
        %v3962 = vadd.f32 %v3805, %v3961
        %v3963 = vpop.f32.mrb[0].mxu0
        %3964 = vmatprep.mubr.f32.mxu0 0.0
        %3965 = vmatmul.mubr.f32.gmra.mrb[0].mxu0 %v3835
        %v3966 = vpop.f32.mrb[0].mxu0
        %v3967 = vadd.f32 %v3805, %v3966
        %v3968 = vpop.f32.mrb[0].mxu0
        %3969 = vmatprep.mubr.f32.mxu0 0.0
        %3970 = vmatmul.mubr.f32.gmra.mrb[0].mxu0 %v3838
        %v3971 = vpop.f32.mrb[0].mxu0
        %v3972 = vadd.f32 %v3805, %v3971
        %v3973 = vpop.f32.mrb[0].mxu0
        %3974 = vmatprep.mubr.f32.mxu0 0.0
        %3975 = vmatmul.mubr.f32.gmra.mrb[0].mxu0 %v3841
        %v3976 = vpop.f32.mrb[0].mxu0
        %v3977 = vadd.f32 %v3805, %v3976
        %v3978 = vpop.f32.mrb[0].mxu0
        %3979 = vmatprep.mubr.f32.mxu0 0.0
        %3980 = vmatmul.mubr.f32.gmra.mrb[0].mxu0 %v3844
        %v3981 = vpop.f32.mrb[0].mxu0
        %v3982 = vadd.f32 %v3805, %v3981
        %v3983 = vpop.f32.mrb[0].mxu0
        %3984 = vmatprep.mubr.f32.mxu0 0.0
        %3985 = vmatmul.mubr.f32.gmra.mrb[0].mxu0 %v3847
        %v3986 = vpop.f32.mrb[0].mxu0
        %v3987 = vadd.f32 %v3805, %v3986
        %v3988 = vpop.f32.mrb[0].mxu0
        %3989 = vmatprep.mubr.f32.mxu0 0.0
        %3990 = vmatmul.mubr.f32.gmra.mrb[0].mxu0 %v3850
        %v3991 = vpop.f32.mrb[0].mxu0
        %v3992 = vadd.f32 %v3805, %v3991
        %v3993 = vpop.f32.mrb[0].mxu0
        %3994 = vmatprep.mubr.f32.mxu0 0.0
        %3995 = vmatmul.mubr.f32.gmra.mrb[0].mxu0 %v3853
        %v3996 = vpop.f32.mrb[0].mxu0
        %v3997 = vadd.f32 %v3805, %v3996
        %v3998 = vpop.f32.mrb[0].mxu0
        %3999 = vdwg.mxu0
        %v4000 = vadd.f32 %v3561, %v3922
        %v4001 = vadd.f32 %v3562, %v3927
        %v4002 = vadd.f32 %v3563, %v3932
        %v4003 = vadd.f32 %v3564, %v3937
        %v4004 = vadd.f32 %v3565, %v3942
        %v4005 = vadd.f32 %v3566, %v3947
        %v4006 = vadd.f32 %v3567, %v3952
        %v4007 = vadd.f32 %v3568, %v3957
        %v4008 = vadd.f32 %v3569, %v3962
        %v4009 = vadd.f32 %v3570, %v3967
        %v4010 = vadd.f32 %v3571, %v3972
        %v4011 = vadd.f32 %v3572, %v3977
        %v4012 = vadd.f32 %v3573, %v3982
        %v4013 = vadd.f32 %v3574, %v3987
        %v4014 = vadd.f32 %v3575, %v3992
        %v4015 = vadd.f32 %v3576, %v3997
        %v4016 = vsel %vm276, %v4000, 0.0
        %4017 = vadd.xlane.f32.xlu0 %v4016
        %v4018 = vpop.xlane.xlu0 %4017
        %v4019 = vsel %vm276, %v4001, 0.0
        %4020 = vadd.xlane.f32.xlu0 %v4019
        %v4021 = vpop.xlane.xlu0 %4020
        %v4022 = vsel %vm276, %v4002, 0.0
        %4023 = vadd.xlane.f32.xlu0 %v4022
        %v4024 = vpop.xlane.xlu0 %4023
        %v4025 = vsel %vm276, %v4003, 0.0
        %4026 = vadd.xlane.f32.xlu0 %v4025
        %v4027 = vpop.xlane.xlu0 %4026
        %v4028 = vsel %vm276, %v4004, 0.0
        %4029 = vadd.xlane.f32.xlu0 %v4028
        %v4030 = vpop.xlane.xlu0 %4029
        %v4031 = vsel %vm276, %v4005, 0.0
        %4032 = vadd.xlane.f32.xlu0 %v4031
        %v4033 = vpop.xlane.xlu0 %4032
        %v4034 = vsel %vm276, %v4006, 0.0
        %4035 = vadd.xlane.f32.xlu0 %v4034
        %v4036 = vpop.xlane.xlu0 %4035
        %v4037 = vsel %vm276, %v4007, 0.0
        %4038 = vadd.xlane.f32.xlu0 %v4037
        %v4039 = vpop.xlane.xlu0 %4038
        %v4040 = vsel %vm276, %v4008, 0.0
        %4041 = vadd.xlane.f32.xlu0 %v4040
        %v4042 = vpop.xlane.xlu0 %4041
        %v4043 = vsel %vm276, %v4009, 0.0
        %4044 = vadd.xlane.f32.xlu0 %v4043
        %v4045 = vpop.xlane.xlu0 %4044
        %v4046 = vsel %vm276, %v4010, 0.0
        %4047 = vadd.xlane.f32.xlu0 %v4046
        %v4048 = vpop.xlane.xlu0 %4047
        %v4049 = vsel %vm276, %v4011, 0.0
        %4050 = vadd.xlane.f32.xlu0 %v4049
        %v4051 = vpop.xlane.xlu0 %4050
        %v4052 = vsel %vm276, %v4012, 0.0
        %4053 = vadd.xlane.f32.xlu0 %v4052
        %v4054 = vpop.xlane.xlu0 %4053
        %v4055 = vsel %vm276, %v4013, 0.0
        %4056 = vadd.xlane.f32.xlu0 %v4055
        %v4057 = vpop.xlane.xlu0 %4056
        %v4058 = vsel %vm276, %v4014, 0.0
        %4059 = vadd.xlane.f32.xlu0 %v4058
        %v4060 = vpop.xlane.xlu0 %4059
        %v4061 = vsel %vm276, %v4015, 0.0
        %4062 = vadd.xlane.f32.xlu0 %v4061
        %v4063 = vpop.xlane.xlu0 %4062
        %v4064 = vmul.f32 %v4018, %v3376
        %v4065 = vmul.f32 %v4021, %v3376
        %v4066 = vmul.f32 %v4024, %v3376
        %v4067 = vmul.f32 %v4027, %v3376
        %v4068 = vmul.f32 %v4030, %v3376
        %v4069 = vmul.f32 %v4033, %v3376
        %v4070 = vmul.f32 %v4036, %v3376
        %v4071 = vmul.f32 %v4039, %v3376
        %v4072 = vmul.f32 %v4042, %v3376
        %v4073 = vmul.f32 %v4045, %v3376
        %v4074 = vmul.f32 %v4048, %v3376
        %v4075 = vmul.f32 %v4051, %v3376
        %v4076 = vmul.f32 %v4054, %v3376
        %v4077 = vmul.f32 %v4057, %v3376
        %v4078 = vmul.f32 %v4060, %v3376
        %v4079 = vmul.f32 %v4063, %v3376
        %v4080 = vsub.f32 %v4000, %v4064
        %v4081 = vsub.f32 %v4001, %v4065
        %v4082 = vsub.f32 %v4002, %v4066
        %v4083 = vsub.f32 %v4003, %v4067
        %v4084 = vsub.f32 %v4004, %v4068
        %v4085 = vsub.f32 %v4005, %v4069
        %v4086 = vsub.f32 %v4006, %v4070
        %v4087 = vsub.f32 %v4007, %v4071
        %v4088 = vsub.f32 %v4008, %v4072
        %v4089 = vsub.f32 %v4009, %v4073
        %v4090 = vsub.f32 %v4010, %v4074
        %v4091 = vsub.f32 %v4011, %v4075
        %v4092 = vsub.f32 %v4012, %v4076
        %v4093 = vsub.f32 %v4013, %v4077
        %v4094 = vsub.f32 %v4014, %v4078
        %v4095 = vsub.f32 %v4015, %v4079
        %v4096 = vmul.f32 %v4080, %v4080
        %v4097 = vmul.f32 %v4081, %v4081
        %v4098 = vmul.f32 %v4082, %v4082
        %v4099 = vmul.f32 %v4083, %v4083
        %v4100 = vmul.f32 %v4084, %v4084
        %v4101 = vmul.f32 %v4085, %v4085
        %v4102 = vmul.f32 %v4086, %v4086
        %v4103 = vmul.f32 %v4087, %v4087
        %v4104 = vmul.f32 %v4088, %v4088
        %v4105 = vmul.f32 %v4089, %v4089
        %v4106 = vmul.f32 %v4090, %v4090
        %v4107 = vmul.f32 %v4091, %v4091
        %v4108 = vmul.f32 %v4092, %v4092
        %v4109 = vmul.f32 %v4093, %v4093
        %v4110 = vmul.f32 %v4094, %v4094
        %v4111 = vmul.f32 %v4095, %v4095
        %v4112 = vsel %vm276, %v4096, 0.0
        %4113 = vadd.xlane.f32.xlu0 %v4112
        %v4114 = vpop.xlane.xlu0 %4113
        %v4115 = vsel %vm276, %v4097, 0.0
        %4116 = vadd.xlane.f32.xlu0 %v4115
        %v4117 = vpop.xlane.xlu0 %4116
        %v4118 = vsel %vm276, %v4098, 0.0
        %4119 = vadd.xlane.f32.xlu0 %v4118
        %v4120 = vpop.xlane.xlu0 %4119
        %v4121 = vsel %vm276, %v4099, 0.0
        %4122 = vadd.xlane.f32.xlu0 %v4121
        %v4123 = vpop.xlane.xlu0 %4122
        %v4124 = vsel %vm276, %v4100, 0.0
        %4125 = vadd.xlane.f32.xlu0 %v4124
        %v4126 = vpop.xlane.xlu0 %4125
        %v4127 = vsel %vm276, %v4101, 0.0
        %4128 = vadd.xlane.f32.xlu0 %v4127
        %v4129 = vpop.xlane.xlu0 %4128
        %v4130 = vsel %vm276, %v4102, 0.0
        %4131 = vadd.xlane.f32.xlu0 %v4130
        %v4132 = vpop.xlane.xlu0 %4131
        %v4133 = vsel %vm276, %v4103, 0.0
        %4134 = vadd.xlane.f32.xlu0 %v4133
        %v4135 = vpop.xlane.xlu0 %4134
        %v4136 = vsel %vm276, %v4104, 0.0
        %4137 = vadd.xlane.f32.xlu0 %v4136
        %v4138 = vpop.xlane.xlu0 %4137
        %v4139 = vsel %vm276, %v4105, 0.0
        %4140 = vadd.xlane.f32.xlu0 %v4139
        %v4141 = vpop.xlane.xlu0 %4140
        %v4142 = vsel %vm276, %v4106, 0.0
        %4143 = vadd.xlane.f32.xlu0 %v4142
        %v4144 = vpop.xlane.xlu0 %4143
        %v4145 = vsel %vm276, %v4107, 0.0
        %4146 = vadd.xlane.f32.xlu0 %v4145
        %v4147 = vpop.xlane.xlu0 %4146
        %v4148 = vsel %vm276, %v4108, 0.0
        %4149 = vadd.xlane.f32.xlu0 %v4148
        %v4150 = vpop.xlane.xlu0 %4149
        %v4151 = vsel %vm276, %v4109, 0.0
        %4152 = vadd.xlane.f32.xlu0 %v4151
        %v4153 = vpop.xlane.xlu0 %4152
        %v4154 = vsel %vm276, %v4110, 0.0
        %4155 = vadd.xlane.f32.xlu0 %v4154
        %v4156 = vpop.xlane.xlu0 %4155
        %v4157 = vsel %vm276, %v4111, 0.0
        %4158 = vadd.xlane.f32.xlu0 %v4157
        %v4159 = vpop.xlane.xlu0 %4158
        %v4160 = vmul.f32 %v4114, %v3376
        %v4161 = vmul.f32 %v4117, %v3376
        %v4162 = vmul.f32 %v4120, %v3376
        %v4163 = vmul.f32 %v4123, %v3376
        %v4164 = vmul.f32 %v4126, %v3376
        %v4165 = vmul.f32 %v4129, %v3376
        %v4166 = vmul.f32 %v4132, %v3376
        %v4167 = vmul.f32 %v4135, %v3376
        %v4168 = vmul.f32 %v4138, %v3376
        %v4169 = vmul.f32 %v4141, %v3376
        %v4170 = vmul.f32 %v4144, %v3376
        %v4171 = vmul.f32 %v4147, %v3376
        %v4172 = vmul.f32 %v4150, %v3376
        %v4173 = vmul.f32 %v4153, %v3376
        %v4174 = vmul.f32 %v4156, %v3376
        %v4175 = vmul.f32 %v4159, %v3376
        %v4176 = vadd.f32 %v4160, 1e-05
        %v4177 = vadd.f32 %v4161, 1e-05
        %v4178 = vadd.f32 %v4162, 1e-05
        %v4179 = vadd.f32 %v4163, 1e-05
        %v4180 = vadd.f32 %v4164, 1e-05
        %v4181 = vadd.f32 %v4165, 1e-05
        %v4182 = vadd.f32 %v4166, 1e-05
        %v4183 = vadd.f32 %v4167, 1e-05
        %v4184 = vadd.f32 %v4168, 1e-05
        %v4185 = vadd.f32 %v4169, 1e-05
        %v4186 = vadd.f32 %v4170, 1e-05
        %v4187 = vadd.f32 %v4171, 1e-05
        %v4188 = vadd.f32 %v4172, 1e-05
        %v4189 = vadd.f32 %v4173, 1e-05
        %v4190 = vadd.f32 %v4174, 1e-05
        %v4191 = vadd.f32 %v4175, 1e-05
        %v4192 = vrsqrt.pop %v4176
        %v4193 = vrsqrt.pop %v4177
        %v4194 = vrsqrt.pop %v4178
        %v4195 = vrsqrt.pop %v4179
        %v4196 = vrsqrt.pop %v4180
        %v4197 = vrsqrt.pop %v4181
        %v4198 = vrsqrt.pop %v4182
        %v4199 = vrsqrt.pop %v4183
        %v4200 = vrsqrt.pop %v4184
        %v4201 = vrsqrt.pop %v4185
        %v4202 = vrsqrt.pop %v4186
        %v4203 = vrsqrt.pop %v4187
        %v4204 = vrsqrt.pop %v4188
        %v4205 = vrsqrt.pop %v4189
        %v4206 = vrsqrt.pop %v4190
        %v4207 = vrsqrt.pop %v4191
        %v4208 = vmul.f32 %v4080, %v4192
        %v4209 = vmul.f32 %v4081, %v4193
        %v4210 = vmul.f32 %v4082, %v4194
        %v4211 = vmul.f32 %v4083, %v4195
        %v4212 = vmul.f32 %v4084, %v4196
        %v4213 = vmul.f32 %v4085, %v4197
        %v4214 = vmul.f32 %v4086, %v4198
        %v4215 = vmul.f32 %v4087, %v4199
        %v4216 = vmul.f32 %v4088, %v4200
        %v4217 = vmul.f32 %v4089, %v4201
        %v4218 = vmul.f32 %v4090, %v4202
        %v4219 = vmul.f32 %v4091, %v4203
        %v4220 = vmul.f32 %v4092, %v4204
        %v4221 = vmul.f32 %v4093, %v4205
        %v4222 = vmul.f32 %v4094, %v4206
        %v4223 = vmul.f32 %v4095, %v4207
        %v4224 = vlaneseq
        %v4225 = vshrl.u32 %v4224, 7
        %v4226 = vsub.s32 6, %v4225
        %v4227 = vrot.slane %v266, %v4226
        %v4228 = vmul.f32 %v4208, %v4227
        %v4229 = vmul.f32 %v4209, %v4227
        %v4230 = vmul.f32 %v4210, %v4227
        %v4231 = vmul.f32 %v4211, %v4227
        %v4232 = vmul.f32 %v4212, %v4227
        %v4233 = vmul.f32 %v4213, %v4227
        %v4234 = vmul.f32 %v4214, %v4227
        %v4235 = vmul.f32 %v4215, %v4227
        %v4236 = vmul.f32 %v4216, %v4227
        %v4237 = vmul.f32 %v4217, %v4227
        %v4238 = vmul.f32 %v4218, %v4227
        %v4239 = vmul.f32 %v4219, %v4227
        %v4240 = vmul.f32 %v4220, %v4227
        %v4241 = vmul.f32 %v4221, %v4227
        %v4242 = vmul.f32 %v4222, %v4227
        %v4243 = vmul.f32 %v4223, %v4227
        %v4244 = vlaneseq
        %v4245 = vshrl.u32 %v4244, 7
        %v4246 = vsub.s32 7, %v4245
        %v4247 = vrot.slane %v266, %v4246
        %v4248 = vadd.f32 %v4228, %v4247
        %v4249 = vadd.f32 %v4229, %v4247
        %v4250 = vadd.f32 %v4230, %v4247
        %v4251 = vadd.f32 %v4231, %v4247
        %v4252 = vadd.f32 %v4232, %v4247
        %v4253 = vadd.f32 %v4233, %v4247
        %v4254 = vadd.f32 %v4234, %v4247
        %v4255 = vadd.f32 %v4235, %v4247
        %v4256 = vadd.f32 %v4236, %v4247
        %v4257 = vadd.f32 %v4237, %v4247
        %v4258 = vadd.f32 %v4238, %v4247
        %v4259 = vadd.f32 %v4239, %v4247
        %v4260 = vadd.f32 %v4240, %v4247
        %v4261 = vadd.f32 %v4241, %v4247
        %v4262 = vadd.f32 %v4242, %v4247
        %v4263 = vadd.f32 %v4243, %v4247
        %v4264 = vsel %vm276, %v4248, 0.0
        %v4265 = vsel %vm276, %v4249, 0.0
        %v4266 = vadd.f32 %v4264, %v4265
        %v4267 = vsel %vm276, %v4250, 0.0
        %v4268 = vadd.f32 %v4266, %v4267
        %v4269 = vsel %vm276, %v4251, 0.0
        %v4270 = vadd.f32 %v4268, %v4269
        %v4271 = vsel %vm276, %v4252, 0.0
        %v4272 = vadd.f32 %v4270, %v4271
        %v4273 = vsel %vm276, %v4253, 0.0
        %v4274 = vadd.f32 %v4272, %v4273
        %v4275 = vsel %vm276, %v4254, 0.0
        %v4276 = vadd.f32 %v4274, %v4275
        %v4277 = vsel %vm276, %v4255, 0.0
        %v4278 = vadd.f32 %v4276, %v4277
        %v4279 = vsel %vm276, %v4256, 0.0
        %v4280 = vadd.f32 %v4278, %v4279
        %v4281 = vsel %vm276, %v4257, 0.0
        %v4282 = vadd.f32 %v4280, %v4281
        %v4283 = vsel %vm276, %v4258, 0.0
        %v4284 = vadd.f32 %v4282, %v4283
        %v4285 = vsel %vm276, %v4259, 0.0
        %v4286 = vadd.f32 %v4284, %v4285
        %v4287 = vsel %vm276, %v4260, 0.0
        %v4288 = vadd.f32 %v4286, %v4287
        %v4289 = vsel %vm276, %v4261, 0.0
        %v4290 = vadd.f32 %v4288, %v4289
        %v4291 = vsel %vm276, %v4262, 0.0
        %v4292 = vadd.f32 %v4290, %v4291
        %v4293 = vsel %vm276, %v4263, 0.0
        %v4294 = vadd.f32 %v4292, %v4293
        %4295 = vadd.xlane.f32.xlu0 %v4294
        %v4296 = vpop.xlane.xlu0 %4295
        %v4297 = vrot.slane %v4296, 4
        %v4298 = vadd.f32 %v4296, %v4297
        %v4299 = vrot.slane %v4298, 2
        %v4300 = vadd.f32 %v4298, %v4299
        %v4301 = vrot.slane %v4300, 1
        %v4302 = vadd.f32 %v4300, %v4301
        %s4303 = vtos %v4302
        %v4304 = vrcp.pop 4096.0
        %s4305 = vtos %v4304
        %s4306 = smul.f32 %s4303, %s4305
        %v4307 = vstv %s4306
        %v4308 = vsub.f32 %v4248, %v4307
        %v4309 = vsub.f32 %v4249, %v4307
        %v4310 = vsub.f32 %v4250, %v4307
        %v4311 = vsub.f32 %v4251, %v4307
        %v4312 = vsub.f32 %v4252, %v4307
        %v4313 = vsub.f32 %v4253, %v4307
        %v4314 = vsub.f32 %v4254, %v4307
        %v4315 = vsub.f32 %v4255, %v4307
        %v4316 = vsub.f32 %v4256, %v4307
        %v4317 = vsub.f32 %v4257, %v4307
        %v4318 = vsub.f32 %v4258, %v4307
        %v4319 = vsub.f32 %v4259, %v4307
        %v4320 = vsub.f32 %v4260, %v4307
        %v4321 = vsub.f32 %v4261, %v4307
        %v4322 = vsub.f32 %v4262, %v4307
        %v4323 = vsub.f32 %v4263, %v4307
        %v4324 = vmul.f32 %v4308, %v4308
        %v4325 = vmul.f32 %v4309, %v4309
        %v4326 = vmul.f32 %v4310, %v4310
        %v4327 = vmul.f32 %v4311, %v4311
        %v4328 = vmul.f32 %v4312, %v4312
        %v4329 = vmul.f32 %v4313, %v4313
        %v4330 = vmul.f32 %v4314, %v4314
        %v4331 = vmul.f32 %v4315, %v4315
        %v4332 = vmul.f32 %v4316, %v4316
        %v4333 = vmul.f32 %v4317, %v4317
        %v4334 = vmul.f32 %v4318, %v4318
        %v4335 = vmul.f32 %v4319, %v4319
        %v4336 = vmul.f32 %v4320, %v4320
        %v4337 = vmul.f32 %v4321, %v4321
        %v4338 = vmul.f32 %v4322, %v4322
        %v4339 = vmul.f32 %v4323, %v4323
        %v4340 = vsel %vm276, %v4324, 0.0
        %v4341 = vsel %vm276, %v4325, 0.0
        %v4342 = vadd.f32 %v4340, %v4341
        %v4343 = vsel %vm276, %v4326, 0.0
        %v4344 = vadd.f32 %v4342, %v4343
        %v4345 = vsel %vm276, %v4327, 0.0
        %v4346 = vadd.f32 %v4344, %v4345
        %v4347 = vsel %vm276, %v4328, 0.0
        %v4348 = vadd.f32 %v4346, %v4347
        %v4349 = vsel %vm276, %v4329, 0.0
        %v4350 = vadd.f32 %v4348, %v4349
        %v4351 = vsel %vm276, %v4330, 0.0
        %v4352 = vadd.f32 %v4350, %v4351
        %v4353 = vsel %vm276, %v4331, 0.0
        %v4354 = vadd.f32 %v4352, %v4353
        %v4355 = vsel %vm276, %v4332, 0.0
        %v4356 = vadd.f32 %v4354, %v4355
        %v4357 = vsel %vm276, %v4333, 0.0
        %v4358 = vadd.f32 %v4356, %v4357
        %v4359 = vsel %vm276, %v4334, 0.0
        %v4360 = vadd.f32 %v4358, %v4359
        %v4361 = vsel %vm276, %v4335, 0.0
        %v4362 = vadd.f32 %v4360, %v4361
        %v4363 = vsel %vm276, %v4336, 0.0
        %v4364 = vadd.f32 %v4362, %v4363
        %v4365 = vsel %vm276, %v4337, 0.0
        %v4366 = vadd.f32 %v4364, %v4365
        %v4367 = vsel %vm276, %v4338, 0.0
        %v4368 = vadd.f32 %v4366, %v4367
        %v4369 = vsel %vm276, %v4339, 0.0
        %v4370 = vadd.f32 %v4368, %v4369
        %4371 = vadd.xlane.f32.xlu0 %v4370
        %v4372 = vpop.xlane.xlu0 %4371
        %v4373 = vrot.slane %v4372, 4
        %v4374 = vadd.f32 %v4372, %v4373
        %v4375 = vrot.slane %v4374, 2
        %v4376 = vadd.f32 %v4374, %v4375
        %v4377 = vrot.slane %v4376, 1
        %v4378 = vadd.f32 %v4376, %v4377
        %s4379 = vtos %v4378
        %v4380 = vrcp.pop 4096.0
        %s4381 = vtos %v4380
        %s4382 = smul.f32 %s4379, %s4381
        %s4383 = sadd.f32 %s4382, 1e-08
        %v4384 = vstv %s4383
        %v4385 = vrsqrt.pop %v4384
        %s4386 = vtos %v4385
        %v4387 = vstv %s4386
        %v4388 = vmul.f32 %v4308, %v4387
        %v4389 = vmul.f32 %v4309, %v4387
        %v4390 = vmul.f32 %v4310, %v4387
        %v4391 = vmul.f32 %v4311, %v4387
        %v4392 = vmul.f32 %v4312, %v4387
        %v4393 = vmul.f32 %v4313, %v4387
        %v4394 = vmul.f32 %v4314, %v4387
        %v4395 = vmul.f32 %v4315, %v4387
        %v4396 = vmul.f32 %v4316, %v4387
        %v4397 = vmul.f32 %v4317, %v4387
        %v4398 = vmul.f32 %v4318, %v4387
        %v4399 = vmul.f32 %v4319, %v4387
        %v4400 = vmul.f32 %v4320, %v4387
        %v4401 = vmul.f32 %v4321, %v4387
        %v4402 = vmul.f32 %v4322, %v4387
        %v4403 = vmul.f32 %v4323, %v4387
        %v4404 = vlaneseq
        %v4405 = vshrl.u32 %v4404, 7
        %v4406 = vsub.s32 0, %v4405
        %v4407 = vrot.slane %v267, %v4406
        %v4408 = vmul.f32 %v4388, %v4407
        %v4409 = vmul.f32 %v4389, %v4407
        %v4410 = vmul.f32 %v4390, %v4407
        %v4411 = vmul.f32 %v4391, %v4407
        %v4412 = vmul.f32 %v4392, %v4407
        %v4413 = vmul.f32 %v4393, %v4407
        %v4414 = vmul.f32 %v4394, %v4407
        %v4415 = vmul.f32 %v4395, %v4407
        %v4416 = vmul.f32 %v4396, %v4407
        %v4417 = vmul.f32 %v4397, %v4407
        %v4418 = vmul.f32 %v4398, %v4407
        %v4419 = vmul.f32 %v4399, %v4407
        %v4420 = vmul.f32 %v4400, %v4407
        %v4421 = vmul.f32 %v4401, %v4407
        %v4422 = vmul.f32 %v4402, %v4407
        %v4423 = vmul.f32 %v4403, %v4407
        %v4424 = vlaneseq
        %v4425 = vshrl.u32 %v4424, 7
        %v4426 = vsub.s32 1, %v4425
        %v4427 = vrot.slane %v267, %v4426
        %v4428 = vadd.f32 %v4408, %v4427
        %v4429 = vadd.f32 %v4409, %v4427
        %v4430 = vadd.f32 %v4410, %v4427
        %v4431 = vadd.f32 %v4411, %v4427
        %v4432 = vadd.f32 %v4412, %v4427
        %v4433 = vadd.f32 %v4413, %v4427
        %v4434 = vadd.f32 %v4414, %v4427
        %v4435 = vadd.f32 %v4415, %v4427
        %v4436 = vadd.f32 %v4416, %v4427
        %v4437 = vadd.f32 %v4417, %v4427
        %v4438 = vadd.f32 %v4418, %v4427
        %v4439 = vadd.f32 %v4419, %v4427
        %v4440 = vadd.f32 %v4420, %v4427
        %v4441 = vadd.f32 %v4421, %v4427
        %v4442 = vadd.f32 %v4422, %v4427
        %v4443 = vadd.f32 %v4423, %v4427
        %v4444 = vadd.f32 %v4428, %v250
        %v4445 = vadd.f32 %v4429, %v251
        %v4446 = vadd.f32 %v4430, %v252
        %v4447 = vadd.f32 %v4431, %v253
        %v4448 = vadd.f32 %v4432, %v254
        %v4449 = vadd.f32 %v4433, %v255
        %v4450 = vadd.f32 %v4434, %v256
        %v4451 = vadd.f32 %v4435, %v257
        %v4452 = vadd.f32 %v4436, %v258
        %v4453 = vadd.f32 %v4437, %v259
        %v4454 = vadd.f32 %v4438, %v260
        %v4455 = vadd.f32 %v4439, %v261
        %v4456 = vadd.f32 %v4440, %v262
        %v4457 = vadd.f32 %v4441, %v263
        %v4458 = vadd.f32 %v4442, %v264
        %v4459 = vadd.f32 %v4443, %v265
        %4460 = vst.msk [vmem:[%s244] sm:$0xff] %vm276, %v4444
        %4461 = vst.msk [vmem:[%s244 + $0x8] sm:$0xff] %vm276, %v4445
        %4462 = vst.msk [vmem:[%s244 + $0x10] sm:$0xff] %vm276, %v4446
        %4463 = vst.msk [vmem:[%s244 + $0x18] sm:$0xff] %vm276, %v4447
        %4464 = vst.msk [vmem:[%s244 + $0x20] sm:$0xff] %vm276, %v4448
        %4465 = vst.msk [vmem:[%s244 + $0x28] sm:$0xff] %vm276, %v4449
        %4466 = vst.msk [vmem:[%s244 + $0x30] sm:$0xff] %vm276, %v4450
        %4467 = vst.msk [vmem:[%s244 + $0x38] sm:$0xff] %vm276, %v4451
        %4468 = vst.msk [vmem:[%s244 + $0x40] sm:$0xff] %vm276, %v4452
        %4469 = vst.msk [vmem:[%s244 + $0x48] sm:$0xff] %vm276, %v4453
        %4470 = vst.msk [vmem:[%s244 + $0x50] sm:$0xff] %vm276, %v4454
        %4471 = vst.msk [vmem:[%s244 + $0x58] sm:$0xff] %vm276, %v4455
        %4472 = vst.msk [vmem:[%s244 + $0x60] sm:$0xff] %vm276, %v4456
        %4473 = vst.msk [vmem:[%s244 + $0x68] sm:$0xff] %vm276, %v4457
        %4474 = vst.msk [vmem:[%s244 + $0x70] sm:$0xff] %vm276, %v4458
        %4475 = vst.msk [vmem:[%s244 + $0x78] sm:$0xff] %vm276, %v4459
        %s4476 = sand.u32 %s159, 1
        %s4477 = scalar_lea.sflag [#allocation3], %s4476
        %s4478 = sand.u32 %s159, 1
        %s4479 = smul.addr %s4478, 128
        %s4480 = scalar_lea.vmem [#allocation2], %s4479
        // Predicated region
        $region45: #{dual_dpa_block.3} parent=43 // pred_check
          %p4481 = pneg %p169
        $region46: #{dual_dpa_block.3} parent=43 // pred_check_branch
          %4483 = sbr.rel (%p4481) target = $region48
        $region47: #{dual_dpa_block.3} parent=43 // pred_region
          %s4485 = ssub.s32 2048, 2048
          %4486 = vsyncadd %s4477, %s4485
          %s4487 = smul.addr %s20, 16
          %s4488 = smul.addr %s4487, 128
          %s4489 = scalar_lea.hbm %s6, %s4488
          %s4490 = sshll.u32 %s4480, 4
          %s4491 = int_to_ptr.vmem [resolvable:$true] %s4490
          %4496 = dma.vmem_to_hbm [thread:$0]  %s4491, 2048, %s4489, %s4477, 128, 128, 8
        $region48: #{dual_dpa_block.3} parent=43 // pred_fallthru
          _
      $region44: #{dual_dpa_block.3} parent=5 // pred_fallthru
        _
      %p4497 = scmp.le.s32.totalorder 2, %s15
      // Predicated region
      $region49: #{dual_dpa_block.3} parent=5 // pred_check
        %p4498 = pneg %p4497
      $region50: #{dual_dpa_block.3} parent=5 // pred_check_branch
        %4500 = sbr.rel (%p4498) target = $region52
      $region51: #{dual_dpa_block.3} parent=5 // pred_region
        %s4501 = ssub.s32 %s15, 2
        // Predicated region
        $region53: #{dual_dpa_block.3} parent=51 // pred_check
          %p4502 = pneg %p175
        $region54: #{dual_dpa_block.3} parent=51 // pred_check_branch
          %4504 = sbr.rel (%p4502) target = $region56
        $region55: #{dual_dpa_block.3} parent=51 // pred_region
          %s4505 = sand.u32 %s160, 1
          %s4506 = scalar_lea.sflag [#allocation3], %s4505
          %s4507 = sand.u32 %s160, 1
          %s4508 = smul.addr %s4507, 128
          %s4509 = scalar_lea.vmem [#allocation2], %s4508
          %4510 = dma.done %s4506, 2048
        $region56: #{dual_dpa_block.3} parent=51 // pred_fallthru
          _
      $region52: #{dual_dpa_block.3} parent=5 // pred_fallthru
        _
    $region6: #{dual_dpa_block.3} parent=1 // loop_footer
      %s19 = sadd.s32 1, %s15
    $region7: #{dual_dpa_block.3} parent=1 // loop_footer_branch
      %14 = sbr.rel target = $region3
    $region8: #{dual_dpa_block.3} parent=1 // loop_exit
      _
    %4511 = vsyncpa [#allocation3], 1
    %s4512 = scalar_lea.sflag [#allocation3], 1
    %4513 = vsyncpa %s4512, 1

</llo_original>
